<compile_context>
chip_gen: v5e
topology: v5e:2x2
jax: 0.10.0
libtpu: 0.0.40
codegen_flags: <defaults>
</compile_context>

<pallas_src>
import functools

import jax
import jax.numpy as jnp
from jax import lax
from jax.experimental import pallas as pl
from jax.experimental.pallas import tpu as pltpu

EPS = 1e-5


def _vmem_limit_bytes():
    # v5e/v6e have 128 MiB physical VMEM (scoped defaults 16/32 MiB) -> raise.
    # v7x has only 64 MiB physical -> stay at the conservative 32 MiB.
    try:
        kind = jax.devices()[0].device_kind.lower()
    except Exception:
        return 32 * 1024 * 1024
    if "v5" in kind or "v6" in kind:
        return 64 * 1024 * 1024
    return 32 * 1024 * 1024


VMEM_LIMIT = _vmem_limit_bytes()

# Tile targets (bf16 operands, f32 accumulators).
TM, TN, TK, TKV = 512, 512, 512, 512   # plain matmul kernels
TM_LN = 256                            # row tile for LN-fused kernels (full-N blocks)


def _tile(dim, target, align):
    """Largest divisor of `dim` that is <= target and a multiple of `align`;
    falls back to the full dim (always a legal block) if none exists."""
    if dim <= target:
        return dim
    cand = (target // align) * align
    while cand >= align:
        if dim % cand == 0:
            return cand
        cand -= align
    return dim


def _heads_per_group(nhead, dh, lane_target=256):
    """Smallest divisor kh of nhead with kh*dh >= lane_target (lane-dense group
    width for MXU N-tiles and unmasked stores); falls back to all heads."""
    for kh in range(1, nhead + 1):
        if nhead % kh == 0 and kh * dh >= lane_target:
            return kh
    return nhead


# ---------------------------------------------------------------------------
# Kernel bodies
# ---------------------------------------------------------------------------

def _grouped_proj_kernel(x_ref, w_ref, b_ref, o_ref, acc_ref, *, groups):
    """For every head-group g: acc[g] += x @ w[g]; epilogue adds bias -> bf16.
    x is loaded once per grid step and reused for all groups (no re-streaming)."""
    k = pl.program_id(1)

    @pl.when(k == 0)
    def _():
        acc_ref[...] = jnp.zeros_like(acc_ref)

    x = x_ref[...]                                    # (tm, tk) bf16
    for g in range(groups):                           # static unroll
        acc_ref[g] += jnp.dot(x, w_ref[g], preferred_element_type=jnp.float32)

    @pl.when(k == pl.num_programs(1) - 1)
    def _():
        o_ref[...] = (acc_ref[...] + b_ref[...]).astype(o_ref.dtype)


def _matmul_kernel(x_ref, w_ref, b_ref, o_ref, acc_ref, *, k_axis, activation):
    """acc += x @ w ; epilogue: out = act(acc + bias) cast to out dtype."""
    k = pl.program_id(k_axis)

    @pl.when(k == 0)
    def _():
        acc_ref[...] = jnp.zeros_like(acc_ref)

    acc_ref[...] += jnp.dot(x_ref[...], w_ref[...],
                            preferred_element_type=jnp.float32)

    @pl.when(k == pl.num_programs(k_axis) - 1)
    def _():
        y = acc_ref[...] + b_ref[...]
        if activation == "relu":
            y = jnp.maximum(y, 0.0)
        o_ref[...] = y.astype(o_ref.dtype)


def _matmul_add_ln_kernel(x_ref, w_ref, b_ref, r_ref, g_ref, bb_ref,
                          o_ref, acc_ref, *, k_axis):
    """acc += x @ w ; epilogue: out = LayerNorm(acc + bias + residual)*g + b.
    LN statistics are computed in f32; output cast to out dtype (bf16)."""
    k = pl.program_id(k_axis)

    @pl.when(k == 0)
    def _():
        acc_ref[...] = jnp.zeros_like(acc_ref)

    acc_ref[...] += jnp.dot(x_ref[...], w_ref[...],
                            preferred_element_type=jnp.float32)

    @pl.when(k == pl.num_programs(k_axis) - 1)
    def _():
        y = acc_ref[...] + b_ref[...] + r_ref[...].astype(jnp.float32)
        mu = jnp.mean(y, axis=-1, keepdims=True)
        var = jnp.mean(jnp.square(y - mu), axis=-1, keepdims=True)
        yn = (y - mu) * lax.rsqrt(var + EPS)
        o_ref[...] = (yn * g_ref[...] + bb_ref[...]).astype(o_ref.dtype)


def _flash_attn_kernel(q_ref, k_ref, v_ref, o_ref, m_sc, l_sc, acc_sc, *, kh, dh):
    """Online-softmax attention for one (head-group, batch) pair.  The kh heads
    of the group are packed along the lane dim and unrolled statically; kv is
    the grid-1 reduction axis.  The softmax scale is pre-folded into q."""
    kv = pl.program_id(1)

    @pl.when(kv == 0)
    def _():
        m_sc[...] = jnp.full_like(m_sc, -jnp.inf)
        l_sc[...] = jnp.zeros_like(l_sc)
        acc_sc[...] = jnp.zeros_like(acc_sc)

    for h in range(kh):                               # static unroll over heads
        sl = pl.ds(h * dh, dh)
        qh = q_ref[:, sl]                             # (Sq, dh)  bf16
        kb = k_ref[:, sl]                             # (Tkv, dh) bf16
        vb = v_ref[:, sl]                             # (Tkv, dh) bf16
        # s = qh @ kb^T (contract head dim), bf16 operands, f32 accumulation.
        s = lax.dot_general(qh, kb, (((1,), (1,)), ((), ())),
                            preferred_element_type=jnp.float32)   # (Sq, Tkv)
        m_prev = m_sc[h]                                           # (Sq, 1) f32
        m_new = jnp.maximum(m_prev, jnp.max(s, axis=-1, keepdims=True))
        alpha = jnp.exp(m_prev - m_new)
        p = jnp.exp(s - m_new)                                     # f32 stats
        l_sc[h] = alpha * l_sc[h] + jnp.sum(p, axis=-1, keepdims=True)
        acc_sc[h] = alpha * acc_sc[h] + jnp.dot(
            p.astype(jnp.bfloat16), vb, preferred_element_type=jnp.float32)
        m_sc[h] = m_new

    @pl.when(kv == pl.num_programs(1) - 1)
    def _():
        parts = []
        for h in range(kh):
            inv = pl.reciprocal(l_sc[h], approx=True)   # EUP vrcp, epilogue-only
            parts.append(acc_sc[h] * inv)
        out = parts[0] if kh == 1 else jnp.concatenate(parts, axis=-1)
        o_ref[...] = out.astype(o_ref.dtype)


def _ln_kernel(x_ref, g_ref, b_ref, o_ref):
    y = x_ref[...].astype(jnp.float32)
    mu = jnp.mean(y, axis=-1, keepdims=True)
    var = jnp.mean(jnp.square(y - mu), axis=-1, keepdims=True)
    o_ref[...] = (((y - mu) * lax.rsqrt(var + EPS)) * g_ref[...]
                  + b_ref[...]).astype(o_ref.dtype)


# ---------------------------------------------------------------------------
# pallas_call wrappers
# ---------------------------------------------------------------------------

def project_heads(x, w_heads, b_heads):
    """x: (M, D) bf16; w_heads: (G, D, W) bf16; b_heads: (G, 1, W) f32
    -> (G, M, W) bf16, W = kh*Dh head-group width (lane-dense).

    Grid = (M tiles, D reduction).  All G groups are computed inside the kernel
    so the activation x is streamed from HBM exactly once."""
    M, D = x.shape
    G, _, W = w_heads.shape
    tm, tk = _tile(M, TM, 8), _tile(D, TK, 128)
    grid = (M // tm, D // tk)
    return pl.pallas_call(
        functools.partial(_grouped_proj_kernel, groups=G),
        out_shape=jax.ShapeDtypeStruct((G, M, W), jnp.bfloat16),
        grid=grid,
        in_specs=[
            pl.BlockSpec((tm, tk), lambda i, k: (i, k)),
            pl.BlockSpec((G, tk, W), lambda i, k: (0, k, 0)),
            pl.BlockSpec((G, 1, W), lambda i, k: (0, 0, 0)),
        ],
        out_specs=pl.BlockSpec((G, tm, W), lambda i, k: (0, i, 0)),
        scratch_shapes=[pltpu.VMEM((G, tm, W), jnp.float32)],
        compiler_params=pltpu.CompilerParams(
            dimension_semantics=("parallel", "arbitrary"),
            vmem_limit_bytes=VMEM_LIMIT),
    )(x, w_heads, b_heads)


def linear_act(x, w, b_row, activation=None):
    """out = act(x @ w + b) in bf16; tiled over (M, N) with K reduction."""
    M, K = x.shape
    N = w.shape[1]
    tm, tn, tk = _tile(M, TM, 8), _tile(N, TN, 128), _tile(K, TK, 128)
    grid = (M // tm, N // tn, K // tk)
    return pl.pallas_call(
        functools.partial(_matmul_kernel, k_axis=2, activation=activation),
        out_shape=jax.ShapeDtypeStruct((M, N), jnp.bfloat16),
        grid=grid,
        in_specs=[
            pl.BlockSpec((tm, tk), lambda i, j, k: (i, k)),
            pl.BlockSpec((tk, tn), lambda i, j, k: (k, j)),
            pl.BlockSpec((1, tn), lambda i, j, k: (0, j)),
        ],
        out_specs=pl.BlockSpec((tm, tn), lambda i, j, k: (i, j)),
        scratch_shapes=[pltpu.VMEM((tm, tn), jnp.float32)],
        compiler_params=pltpu.CompilerParams(
            dimension_semantics=("parallel", "parallel", "arbitrary"),
            vmem_limit_bytes=VMEM_LIMIT),
    )(x, w, b_row)


def linear_add_layernorm(x, w, b_row, residual, gamma_row, beta_row):
    """out = LayerNorm(x @ w + b + residual) in bf16.  The output block keeps
    the full feature dim (needed for the row-LN reduction in the epilogue)."""
    M, K = x.shape
    N = w.shape[1]
    tm, tk = _tile(M, TM_LN, 8), _tile(K, TK, 128)
    grid = (M // tm, K // tk)
    return pl.pallas_call(
        functools.partial(_matmul_add_ln_kernel, k_axis=1),
        out_shape=jax.ShapeDtypeStruct((M, N), jnp.bfloat16),
        grid=grid,
        in_specs=[
            pl.BlockSpec((tm, tk), lambda i, k: (i, k)),
            pl.BlockSpec((tk, N), lambda i, k: (k, 0)),
            pl.BlockSpec((1, N), lambda i, k: (0, 0)),
            pl.BlockSpec((tm, N), lambda i, k: (i, 0)),
            pl.BlockSpec((1, N), lambda i, k: (0, 0)),
            pl.BlockSpec((1, N), lambda i, k: (0, 0)),
        ],
        out_specs=pl.BlockSpec((tm, N), lambda i, k: (i, 0)),
        scratch_shapes=[pltpu.VMEM((tm, N), jnp.float32)],
        compiler_params=pltpu.CompilerParams(
            dimension_semantics=("parallel", "arbitrary"),
            vmem_limit_bytes=VMEM_LIMIT),
    )(x, w, b_row, residual, gamma_row, beta_row)


def headmerge_add_layernorm(attn, w_o_heads, b_row, residual, gamma_row, beta_row):
    """attn: (G', M, W) head-group-major bf16.  Computes
         LayerNorm(concat_heads(attn) @ W_o + b_o + residual)
    reducing over head GROUPS on the grid: each step contracts K = W = kh*Dh
    (full MXU depth) and the head-merge never materializes in HBM."""
    Gp, M, W = attn.shape
    D = w_o_heads.shape[2]
    tm = _tile(M, TM_LN, 8)
    grid = (M // tm, Gp)
    return pl.pallas_call(
        functools.partial(_matmul_add_ln_kernel, k_axis=1),
        out_shape=jax.ShapeDtypeStruct((M, D), jnp.bfloat16),
        grid=grid,
        in_specs=[
            pl.BlockSpec((None, tm, W), lambda i, g: (g, i, 0)),
            pl.BlockSpec((None, W, D), lambda i, g: (g, 0, 0)),
            pl.BlockSpec((1, D), lambda i, g: (0, 0)),
            pl.BlockSpec((tm, D), lambda i, g: (i, 0)),
            pl.BlockSpec((1, D), lambda i, g: (0, 0)),
            pl.BlockSpec((1, D), lambda i, g: (0, 0)),
        ],
        out_specs=pl.BlockSpec((tm, D), lambda i, g: (i, 0)),
        scratch_shapes=[pltpu.VMEM((tm, D), jnp.float32)],
        compiler_params=pltpu.CompilerParams(
            dimension_semantics=("parallel", "arbitrary"),
            vmem_limit_bytes=VMEM_LIMIT),
    )(attn, w_o_heads, b_row, residual, gamma_row, beta_row)


def flash_attention(q_arr, kv_arr, *, gb, sq, sk, kh, dh, k_off, v_off):
    """q_arr: (gb, sq, kh*dh) bf16 (group,batch)-major; kv_arr holds K groups at
    rows [k_off, k_off+gb) and V groups at rows [v_off, v_off+gb).
    Grid = (gb, kv_blocks); kv is the online-softmax reduction axis."""
    W = kh * dh
    tkv = _tile(sk, TKV, 8)
    grid = (gb, sk // tkv)
    return pl.pallas_call(
        functools.partial(_flash_attn_kernel, kh=kh, dh=dh),
        out_shape=jax.ShapeDtypeStruct((gb, sq, W), jnp.bfloat16),
        grid=grid,
        in_specs=[
            pl.BlockSpec((None, sq, W), lambda g, kv: (g, 0, 0)),
            pl.BlockSpec((None, tkv, W), lambda g, kv: (k_off + g, kv, 0)),
            pl.BlockSpec((None, tkv, W), lambda g, kv: (v_off + g, kv, 0)),
        ],
        out_specs=pl.BlockSpec((None, sq, W), lambda g, kv: (g, 0, 0)),
        scratch_shapes=[pltpu.VMEM((kh, sq, 1), jnp.float32),
                        pltpu.VMEM((kh, sq, 1), jnp.float32),
                        pltpu.VMEM((kh, sq, dh), jnp.float32)],
        compiler_params=pltpu.CompilerParams(
            dimension_semantics=("parallel", "arbitrary"),
            vmem_limit_bytes=VMEM_LIMIT),
    )(q_arr, kv_arr, kv_arr)


def layernorm(x, gamma_row, beta_row):
    """Row-tiled LayerNorm (bf16 in, f32 out for the module's final output)."""
    M, D = x.shape
    tm = _tile(M, TM_LN, 8)
    return pl.pallas_call(
        _ln_kernel,
        out_shape=jax.ShapeDtypeStruct((M, D), jnp.float32),
        grid=(M // tm,),
        in_specs=[
            pl.BlockSpec((tm, D), lambda i: (i, 0)),
            pl.BlockSpec((1, D), lambda i: (0, 0)),
            pl.BlockSpec((1, D), lambda i: (0, 0)),
        ],
        out_specs=pl.BlockSpec((tm, D), lambda i: (i, 0)),
        compiler_params=pltpu.CompilerParams(
            dimension_semantics=("parallel",),
            vmem_limit_bytes=VMEM_LIMIT),
    )(x, gamma_row, beta_row)


# ---------------------------------------------------------------------------
# Decoder layer / stack (glue: only cheap reshapes, no transposes)
# ---------------------------------------------------------------------------

def decoder_layer(tgt, memory, p, nhead, kh):
    B, St, D = tgt.shape
    Sm = memory.shape[1]
    dh = D // nhead
    gq = nhead // kh                 # number of head groups
    W = kh * dh
    GB = gq * B

    x = tgt.reshape(B * St, D)       # bf16 residual stream
    mem = memory.reshape(B * Sm, D)

    # ---- self-attention + add & LN1 (fused epilogue) ----
    sa = p['self_attn']
    qkv = project_heads(x, sa['w_qkv_heads'], sa['b_qkv_heads'])     # (3gq, B*St, W)
    qkv = qkv.reshape(3 * GB, St, W)                                 # pure reshape
    attn = flash_attention(qkv, qkv, gb=GB, sq=St, sk=St, kh=kh, dh=dh,
                           k_off=GB, v_off=2 * GB)                   # (GB, St, W)
    attn = attn.reshape(gq, B * St, W)
    x = headmerge_add_layernorm(attn, sa['w_o_heads'], sa['b_o'],
                                x, p['ln1_g'], p['ln1_b'])           # (B*St, D)

    # ---- cross-attention + add & LN2 ----
    ca = p['cross_attn']
    q = project_heads(x, ca['w_q_heads'], ca['b_q_heads'])           # (gq, B*St, W)
    q = q.reshape(GB, St, W)
    kv = project_heads(mem, ca['w_kv_heads'], ca['b_kv_heads'])      # (2gq, B*Sm, W)
    kv = kv.reshape(2 * GB, Sm, W)
    attn = flash_attention(q, kv, gb=GB, sq=St, sk=Sm, kh=kh, dh=dh,
                           k_off=0, v_off=GB)
    attn = attn.reshape(gq, B * St, W)
    x = headmerge_add_layernorm(attn, ca['w_o_heads'], ca['b_o'],
                                x, p['ln2_g'], p['ln2_b'])

    # ---- feed-forward + add & LN3 ----
    h = linear_act(x, p['w1'], p['b1'], activation="relu")           # (B*St, F) bf16
    x = linear_add_layernorm(h, p['w2'], p['b2'], x, p['ln3_g'], p['ln3_b'])
    return x.reshape(B, St, D)


def transformer_decoder(tgt, memory, layer_params, final_norm, nhead, kh):
    B, St, D = tgt.shape
    out = tgt.astype(jnp.bfloat16)          # bf16 residual stream between kernels
    mem = memory.astype(jnp.bfloat16)
    for p in layer_params:
        out = decoder_layer(out, mem, p, nhead, kh)
    if final_norm is not None:
        return layernorm(out.reshape(B * St, D),
                         final_norm['g'], final_norm['b']).reshape(B, St, D)
    return out.astype(jnp.float32)


# ---------------------------------------------------------------------------
# One-time parameter preparation (layout/dtype prep OUT of the hot path)
# ---------------------------------------------------------------------------

def prepare_layer_params(p, nhead, d_model, kh):
    dh = d_model // nhead
    gq = nhead // kh
    W = kh * dh
    scale = 1.0 / float(dh) ** 0.5

    def group_w(w_rows):      # (G*W, D) torch (out,in) -> (G, D, W)
        G = w_rows.shape[0] // W
        return w_rows.reshape(G, W, d_model).transpose(0, 2, 1)

    def group_b(b_rows):      # (G*W,) -> (G, 1, W)
        G = b_rows.shape[0] // W
        return b_rows.reshape(G, 1, W)

    def prep_attn(ap):
        w_in, b_in = ap['in_proj_w'], ap['in_proj_b']
        # Fold the softmax scale into the q projection (weights + bias).
        w_q = group_w(w_in[:d_model]) * scale
        b_q = group_b(b_in[:d_model]) * scale
        w_kv = group_w(w_in[d_model:])
        b_kv = group_b(b_in[d_model:])
        w_qkv = jnp.concatenate([w_q, w_kv], axis=0)                 # (3gq, D, W)
        b_qkv = jnp.concatenate([b_q, b_kv], axis=0)                 # (3gq, 1, W)
        return {
            'w_qkv_heads': w_qkv.astype(jnp.bfloat16),
            'b_qkv_heads': b_qkv,                                    # f32 epilogue
            'w_q_heads': w_q.astype(jnp.bfloat16),
            'b_q_heads': b_q,
            'w_kv_heads': w_kv.astype(jnp.bfloat16),
            'b_kv_heads': b_kv,
            'w_o_heads': ap['out_proj_w'].T.reshape(gq, W, d_model).astype(jnp.bfloat16),
            'b_o': ap['out_proj_b'].reshape(1, d_model),
        }

    row = lambda v: v.reshape(1, -1)
    return {
        'self_attn': prep_attn(p['self_attn']),
        'cross_attn': prep_attn(p['cross_attn']),
        'w1': p['lin1_w'].T.astype(jnp.bfloat16), 'b1': row(p['lin1_b']),
        'w2': p['lin2_w'].T.astype(jnp.bfloat16), 'b2': row(p['lin2_b']),
        'ln1_g': row(p['ln1_g']), 'ln1_b': row(p['ln1_b']),
        'ln2_g': row(p['ln2_g']), 'ln2_b': row(p['ln2_b']),
        'ln3_g': row(p['ln3_g']), 'ln3_b': row(p['ln3_b']),
    }


def prepare_final_norm(fn):
    if fn is None:
        return None
    return {'g': fn['g'].reshape(1, -1), 'b': fn['b'].reshape(1, -1)}


# ---------------------------------------------------------------------------
# Deterministic init (PyTorch-style parameter layout) + pure-JAX reference
# ---------------------------------------------------------------------------

def init_params(key, num_layers, d_model, nhead, dim_ff):
    def attn_params(k):
        k1, k2, k3, k4 = jax.random.split(k, 4)
        s = 0.1
        return {
            'in_proj_w': s * jax.random.normal(k1, (3 * d_model, d_model), jnp.float32),
            'in_proj_b': s * jax.random.normal(k2, (3 * d_model,), jnp.float32),
            'out_proj_w': s * jax.random.normal(k3, (d_model, d_model), jnp.float32),
            'out_proj_b': s * jax.random.normal(k4, (d_model,), jnp.float32),
        }

    layer_params = []
    for i in range(num_layers):
        k = jax.random.fold_in(key, i)
        ks = jax.random.split(k, 6)
        s = 0.1
        layer_params.append({
            'self_attn': attn_params(ks[0]),
            'cross_attn': attn_params(ks[1]),
            'lin1_w': s * jax.random.normal(ks[2], (dim_ff, d_model), jnp.float32),
            'lin1_b': s * jax.random.normal(ks[3], (dim_ff,), jnp.float32),
            'lin2_w': s * jax.random.normal(ks[4], (d_model, dim_ff), jnp.float32),
            'lin2_b': s * jax.random.normal(ks[5], (d_model,), jnp.float32),
            'ln1_g': jnp.ones((d_model,), jnp.float32),
            'ln1_b': jnp.zeros((d_model,), jnp.float32),
            'ln2_g': jnp.ones((d_model,), jnp.float32),
            'ln2_b': jnp.zeros((d_model,), jnp.float32),
            'ln3_g': jnp.ones((d_model,), jnp.float32),
            'ln3_b': jnp.zeros((d_model,), jnp.float32),
        })
    final_norm = {'g': jnp.ones((d_model,), jnp.float32),
                  'b': jnp.zeros((d_model,), jnp.float32)}
    return layer_params, final_norm


def _ref_ln(x, g, b):
    mu = jnp.mean(x, axis=-1, keepdims=True)
    var = jnp.mean(jnp.square(x - mu), axis=-1, keepdims=True)
    return (x - mu) / jnp.sqrt(var + EPS) * g + b


def _ref_mha(x_q, x_kv, p, nhead):
    B, Sq, D = x_q.shape
    Sk = x_kv.shape[1]
    Dh = D // nhead
    wq, wk, wv = jnp.split(p['in_proj_w'], 3, axis=0)
    bq, bk, bv = jnp.split(p['in_proj_b'], 3, axis=0)
    q = x_q @ wq.T + bq
    k = x_kv @ wk.T + bk
    v = x_kv @ wv.T + bv
    q = q.reshape(B, Sq, nhead, Dh).transpose(0, 2, 1, 3)
    k = k.reshape(B, Sk, nhead, Dh).transpose(0, 2, 1, 3)
    v = v.reshape(B, Sk, nhead, Dh).transpose(0, 2, 1, 3)
    s = jnp.einsum('bhqd,bhkd->bhqk', q, k) / jnp.sqrt(jnp.float32(Dh))
    p_attn = jax.nn.softmax(s, axis=-1)
    o = jnp.einsum('bhqk,bhkd->bhqd', p_attn, v)
    o = o.transpose(0, 2, 1, 3).reshape(B, Sq, D)
    return o @ p['out_proj_w'].T + p['out_proj_b']


def reference_decoder(tgt, memory, layer_params, final_norm, nhead):
    out = tgt
    for p in layer_params:
        sa = _ref_mha(out, out, p['self_attn'], nhead)
        out = _ref_ln(out + sa, p['ln1_g'], p['ln1_b'])
        ca = _ref_mha(out, memory, p['cross_attn'], nhead)
        out = _ref_ln(out + ca, p['ln2_g'], p['ln2_b'])
        ff = jnp.maximum(out @ p['lin1_w'].T + p['lin1_b'], 0.0) @ p['lin2_w'].T + p['lin2_b']
        out = _ref_ln(out + ff, p['ln3_g'], p['ln3_b'])
    if final_norm is not None:
        out = _ref_ln(out, final_norm['g'], final_norm['b'])
    return out


# ---------------------------------------------------------------------------

if __name__ == "__main__":
    B, S_TGT, S_MEM = 2, 8, 16
    D_MODEL, NHEAD, DIM_FF = 32, 4, 64
    NUM_LAYERS = 2

    key = jax.random.PRNGKey(0)
    k_tgt, k_mem, k_par = jax.random.split(key, 3)

    tgt = jax.random.normal(k_tgt, (B, S_TGT, D_MODEL), jnp.float32)
    memory = jax.random.normal(k_mem, (B, S_MEM, D_MODEL), jnp.float32)

    torch_params, torch_final = init_params(k_par, NUM_LAYERS, D_MODEL, NHEAD, DIM_FF)

    KH = _heads_per_group(NHEAD, D_MODEL // NHEAD)   # heads per lane-dense group
    prepared = [prepare_layer_params(p, NHEAD, D_MODEL, KH) for p in torch_params]
    final_prepared = prepare_final_norm(torch_final)

    fwd = jax.jit(functools.partial(transformer_decoder, nhead=NHEAD, kh=KH))
    out = jax.block_until_ready(fwd(tgt, memory, prepared, final_prepared))

    ref = jax.block_until_ready(
        reference_decoder(tgt, memory, torch_params, torch_final, NHEAD))

    assert out.shape == (B, S_TGT, D_MODEL)
    assert out.dtype == jnp.float32
    # bf16 matmul path + approx reciprocal vs. pure-f32 reference -> relaxed tol.
    max_err = float(jnp.max(jnp.abs(out - ref)))
    assert max_err < 1e-1, max_err

    print("KERNEL_OK")
</pallas_src>

<mosaic_0001>
module attributes {stable_mosaic.version = 11 : i64} {
  func.func @_flash_attn_kernel(%arg0: i32, %arg1: i32, %arg2: memref<1x8x32xbf16, #tpu.memory_space<vmem>>, %arg3: memref<1x8x32xbf16, #tpu.memory_space<vmem>>, %arg4: memref<1x8x32xbf16, #tpu.memory_space<vmem>>, %arg5: memref<1x8x32xbf16, #tpu.memory_space<vmem>>, %arg6: memref<4x8x1xf32, #tpu.memory_space<vmem>>, %arg7: memref<4x8x1xf32, #tpu.memory_space<vmem>>, %arg8: memref<4x8x8xf32, #tpu.memory_space<vmem>>) attributes {dimension_semantics = [#tpu.dimension_semantics<parallel>, #tpu.dimension_semantics<arbitrary>], iteration_bounds = array<i64: 2, 1>, scalar_prefetch = 0 : i64, scratch_operands = 3 : i64, tpu.core_type = #tpu.core_type<tc>, window_params = [{transform_indices = @transform_0, window_bounds = array<i64: 1, 8, 32>}, {transform_indices = @transform_1, window_bounds = array<i64: 1, 8, 32>}, {transform_indices = @transform_2, window_bounds = array<i64: 1, 8, 32>}, {transform_indices = @transform_3, window_bounds = array<i64: 1, 8, 32>}]} {
    %c0_i32 = arith.constant 0 : i32
    %0 = arith.cmpi eq, %arg1, %c0_i32 : i32
    %1 = arith.extui %0 : i1 to i32
    %c0_i32_0 = arith.constant 0 : i32
    %2 = arith.cmpi ne, %1, %c0_i32_0 : i32
    scf.if %2 {
      %cst_119 = arith.constant 0xFF800000 : f32
      %162 = vector.broadcast %cst_119 : f32 to vector<4x8x1xf32>
      %c0_120 = arith.constant 0 : index
      %c0_121 = arith.constant 0 : index
      %c0_122 = arith.constant 0 : index
      %163 = vector.load %arg6[%c0_120, %c0_121, %c0_122] : memref<4x8x1xf32, #tpu.memory_space<vmem>>, vector<4x8x1xf32>
      tpu.vector_store %arg6[%c0_120, %c0_121, %c0_122], %162 {strides = array<i32>} : memref<4x8x1xf32, #tpu.memory_space<vmem>>, vector<4x8x1xf32>,
      %cst_123 = arith.constant 0.000000e+00 : f32
      %164 = vector.broadcast %cst_123 : f32 to vector<4x8x1xf32>
      %c0_124 = arith.constant 0 : index
      %c0_125 = arith.constant 0 : index
      %c0_126 = arith.constant 0 : index
      %165 = vector.load %arg7[%c0_124, %c0_125, %c0_126] : memref<4x8x1xf32, #tpu.memory_space<vmem>>, vector<4x8x1xf32>
      tpu.vector_store %arg7[%c0_124, %c0_125, %c0_126], %164 {strides = array<i32>} : memref<4x8x1xf32, #tpu.memory_space<vmem>>, vector<4x8x1xf32>,
      %cst_127 = arith.constant 0.000000e+00 : f32
      %166 = vector.broadcast %cst_127 : f32 to vector<4x8x8xf32>
      %c0_128 = arith.constant 0 : index
      %c0_129 = arith.constant 0 : index
      %c0_130 = arith.constant 0 : index
      %167 = vector.load %arg8[%c0_128, %c0_129, %c0_130] : memref<4x8x8xf32, #tpu.memory_space<vmem>>, vector<4x8x8xf32>
      tpu.vector_store %arg8[%c0_128, %c0_129, %c0_130], %166 {strides = array<i32>} : memref<4x8x8xf32, #tpu.memory_space<vmem>>, vector<4x8x8xf32>,
    } else {
    }
    %c0 = arith.constant 0 : index
    %c0_1 = arith.constant 0 : index
    %c0_2 = arith.constant 0 : index
    %3 = vector.load %arg2[%c0, %c0_1, %c0_2] : memref<1x8x32xbf16, #tpu.memory_space<vmem>>, vector<1x8x8xbf16>
    %4 = vector.shape_cast %3 : vector<1x8x8xbf16> to vector<8x8xbf16>
    %c0_3 = arith.constant 0 : index
    %c0_4 = arith.constant 0 : index
    %c0_5 = arith.constant 0 : index
    %5 = vector.load %arg3[%c0_3, %c0_4, %c0_5] : memref<1x8x32xbf16, #tpu.memory_space<vmem>>, vector<1x8x8xbf16>
    %6 = vector.shape_cast %5 : vector<1x8x8xbf16> to vector<8x8xbf16>
    %c0_6 = arith.constant 0 : index
    %c0_7 = arith.constant 0 : index
    %c0_8 = arith.constant 0 : index
    %7 = vector.load %arg4[%c0_6, %c0_7, %c0_8] : memref<1x8x32xbf16, #tpu.memory_space<vmem>>, vector<1x8x8xbf16>
    %8 = vector.shape_cast %7 : vector<1x8x8xbf16> to vector<8x8xbf16>
    %cst = arith.constant dense<0.000000e+00> : vector<8x8xf32>
    %9 = tpu.matmul %4, %6, %cst {dimension_numbers = #tpu.dot_dimension_numbers<[1], [1], [0], [0], [0, 0, 1, 0], [], []>} : vector<8x8xbf16>, vector<8x8xbf16>, vector<8x8xf32> -> vector<8x8xf32>
    %c0_9 = arith.constant 0 : index
    %c0_10 = arith.constant 0 : index
    %c0_11 = arith.constant 0 : index
    %10 = vector.load %arg6[%c0_9, %c0_10, %c0_11] : memref<4x8x1xf32, #tpu.memory_space<vmem>>, vector<1x8x1xf32>
    %11 = vector.shape_cast %10 : vector<1x8x1xf32> to vector<8x1xf32>
    %cst_12 = arith.constant dense<0xFF800000> : vector<8xf32>
    %12 = vector.multi_reduction <maximumf>, %9, %cst_12 [1] : vector<8x8xf32> to vector<8xf32>
    %13 = vector.shape_cast %12 : vector<8xf32> to vector<8x1xf32>
    %14 = arith.maximumf %11, %13 : vector<8x1xf32>
    %15 = arith.subf %11, %14 : vector<8x1xf32>
    %16 = math.exp %15 : vector<8x1xf32>
    %17 = vector.broadcast %14 : vector<8x1xf32> to vector<8x8xf32>
    %18 = arith.subf %9, %17 : vector<8x8xf32>
    %19 = math.exp %18 : vector<8x8xf32>
    %c0_13 = arith.constant 0 : index
    %c0_14 = arith.constant 0 : index
    %c0_15 = arith.constant 0 : index
    %20 = vector.load %arg7[%c0_13, %c0_14, %c0_15] : memref<4x8x1xf32, #tpu.memory_space<vmem>>, vector<1x8x1xf32>
    %21 = vector.shape_cast %20 : vector<1x8x1xf32> to vector<8x1xf32>
    %22 = arith.mulf %16, %21 : vector<8x1xf32>
    %cst_16 = arith.constant dense<0.000000e+00> : vector<8xf32>
    %23 = vector.multi_reduction <add>, %19, %cst_16 [1] : vector<8x8xf32> to vector<8xf32>
    %24 = vector.shape_cast %23 : vector<8xf32> to vector<8x1xf32>
    %25 = arith.addf %22, %24 : vector<8x1xf32>
    %c0_17 = arith.constant 0 : index
    %c0_18 = arith.constant 0 : index
    %c0_19 = arith.constant 0 : index
    %26 = vector.load %arg7[%c0_17, %c0_18, %c0_19] : memref<4x8x1xf32, #tpu.memory_space<vmem>>, vector<1x8x1xf32>
    %27 = vector.shape_cast %26 : vector<1x8x1xf32> to vector<8x1xf32>
    %28 = vector.shape_cast %25 : vector<8x1xf32> to vector<1x8x1xf32>
    tpu.vector_store %arg7[%c0_17, %c0_18, %c0_19], %28 {strides = array<i32>} : memref<4x8x1xf32, #tpu.memory_space<vmem>>, vector<1x8x1xf32>,
    %c0_20 = arith.constant 0 : index
    %c0_21 = arith.constant 0 : index
    %c0_22 = arith.constant 0 : index
    %29 = vector.load %arg8[%c0_20, %c0_21, %c0_22] : memref<4x8x8xf32, #tpu.memory_space<vmem>>, vector<1x8x8xf32>
    %30 = vector.shape_cast %29 : vector<1x8x8xf32> to vector<8x8xf32>
    %31 = vector.broadcast %16 : vector<8x1xf32> to vector<8x8xf32>
    %32 = arith.mulf %31, %30 : vector<8x8xf32>
    %33 = arith.truncf %19 : vector<8x8xf32> to vector<8x8xbf16>
    %cst_23 = arith.constant dense<0.000000e+00> : vector<8x8xf32>
    %34 = tpu.matmul %33, %8, %cst_23 {dimension_numbers = #tpu.dot_dimension_numbers<[1], [0], [0], [1], [0, 0, 1, 1], [], []>} : vector<8x8xbf16>, vector<8x8xbf16>, vector<8x8xf32> -> vector<8x8xf32>
    %35 = arith.addf %32, %34 : vector<8x8xf32>
    %c0_24 = arith.constant 0 : index
    %c0_25 = arith.constant 0 : index
    %c0_26 = arith.constant 0 : index
    %36 = vector.load %arg8[%c0_24, %c0_25, %c0_26] : memref<4x8x8xf32, #tpu.memory_space<vmem>>, vector<1x8x8xf32>
    %37 = vector.shape_cast %36 : vector<1x8x8xf32> to vector<8x8xf32>
    %38 = vector.shape_cast %35 : vector<8x8xf32> to vector<1x8x8xf32>
    tpu.vector_store %arg8[%c0_24, %c0_25, %c0_26], %38 {strides = array<i32>} : memref<4x8x8xf32, #tpu.memory_space<vmem>>, vector<1x8x8xf32>,
    %c0_27 = arith.constant 0 : index
    %c0_28 = arith.constant 0 : index
    %c0_29 = arith.constant 0 : index
    %39 = vector.load %arg6[%c0_27, %c0_28, %c0_29] : memref<4x8x1xf32, #tpu.memory_space<vmem>>, vector<1x8x1xf32>
    %40 = vector.shape_cast %39 : vector<1x8x1xf32> to vector<8x1xf32>
    %41 = vector.shape_cast %14 : vector<8x1xf32> to vector<1x8x1xf32>
    tpu.vector_store %arg6[%c0_27, %c0_28, %c0_29], %41 {strides = array<i32>} : memref<4x8x1xf32, #tpu.memory_space<vmem>>, vector<1x8x1xf32>,
    %c0_30 = arith.constant 0 : index
    %c0_31 = arith.constant 0 : index
    %c8 = arith.constant 8 : index
    %42 = vector.load %arg2[%c0_30, %c0_31, %c8] : memref<1x8x32xbf16, #tpu.memory_space<vmem>>, vector<1x8x8xbf16>
    %43 = vector.shape_cast %42 : vector<1x8x8xbf16> to vector<8x8xbf16>
    %c0_32 = arith.constant 0 : index
    %c0_33 = arith.constant 0 : index
    %c8_34 = arith.constant 8 : index
    %44 = vector.load %arg3[%c0_32, %c0_33, %c8_34] : memref<1x8x32xbf16, #tpu.memory_space<vmem>>, vector<1x8x8xbf16>
    %45 = vector.shape_cast %44 : vector<1x8x8xbf16> to vector<8x8xbf16>
    %c0_35 = arith.constant 0 : index
    %c0_36 = arith.constant 0 : index
    %c8_37 = arith.constant 8 : index
    %46 = vector.load %arg4[%c0_35, %c0_36, %c8_37] : memref<1x8x32xbf16, #tpu.memory_space<vmem>>, vector<1x8x8xbf16>
    %47 = vector.shape_cast %46 : vector<1x8x8xbf16> to vector<8x8xbf16>
    %cst_38 = arith.constant dense<0.000000e+00> : vector<8x8xf32>
    %48 = tpu.matmul %43, %45, %cst_38 {dimension_numbers = #tpu.dot_dimension_numbers<[1], [1], [0], [0], [0, 0, 1, 0], [], []>} : vector<8x8xbf16>, vector<8x8xbf16>, vector<8x8xf32> -> vector<8x8xf32>
    %c1 = arith.constant 1 : index
    %c0_39 = arith.constant 0 : index
    %c0_40 = arith.constant 0 : index
    %49 = vector.load %arg6[%c1, %c0_39, %c0_40] : memref<4x8x1xf32, #tpu.memory_space<vmem>>, vector<1x8x1xf32>
    %50 = vector.shape_cast %49 : vector<1x8x1xf32> to vector<8x1xf32>
    %cst_41 = arith.constant dense<0xFF800000> : vector<8xf32>
    %51 = vector.multi_reduction <maximumf>, %48, %cst_41 [1] : vector<8x8xf32> to vector<8xf32>
    %52 = vector.shape_cast %51 : vector<8xf32> to vector<8x1xf32>
    %53 = arith.maximumf %50, %52 : vector<8x1xf32>
    %54 = arith.subf %50, %53 : vector<8x1xf32>
    %55 = math.exp %54 : vector<8x1xf32>
    %56 = vector.broadcast %53 : vector<8x1xf32> to vector<8x8xf32>
    %57 = arith.subf %48, %56 : vector<8x8xf32>
    %58 = math.exp %57 : vector<8x8xf32>
    %c1_42 = arith.constant 1 : index
    %c0_43 = arith.constant 0 : index
    %c0_44 = arith.constant 0 : index
    %59 = vector.load %arg7[%c1_42, %c0_43, %c0_44] : memref<4x8x1xf32, #tpu.memory_space<vmem>>, vector<1x8x1xf32>
    %60 = vector.shape_cast %59 : vector<1x8x1xf32> to vector<8x1xf32>
    %61 = arith.mulf %55, %60 : vector<8x1xf32>
    %cst_45 = arith.constant dense<0.000000e+00> : vector<8xf32>
    %62 = vector.multi_reduction <add>, %58, %cst_45 [1] : vector<8x8xf32> to vector<8xf32>
    %63 = vector.shape_cast %62 : vector<8xf32> to vector<8x1xf32>
    %64 = arith.addf %61, %63 : vector<8x1xf32>
    %c1_46 = arith.constant 1 : index
    %c0_47 = arith.constant 0 : index
    %c0_48 = arith.constant 0 : index
    %65 = vector.load %arg7[%c1_46, %c0_47, %c0_48] : memref<4x8x1xf32, #tpu.memory_space<vmem>>, vector<1x8x1xf32>
    %66 = vector.shape_cast %65 : vector<1x8x1xf32> to vector<8x1xf32>
    %67 = vector.shape_cast %64 : vector<8x1xf32> to vector<1x8x1xf32>
    tpu.vector_store %arg7[%c1_46, %c0_47, %c0_48], %67 {strides = array<i32>} : memref<4x8x1xf32, #tpu.memory_space<vmem>>, vector<1x8x1xf32>,
    %c1_49 = arith.constant 1 : index
    %c0_50 = arith.constant 0 : index
    %c0_51 = arith.constant 0 : index
    %68 = vector.load %arg8[%c1_49, %c0_50, %c0_51] : memref<4x8x8xf32, #tpu.memory_space<vmem>>, vector<1x8x8xf32>
    %69 = vector.shape_cast %68 : vector<1x8x8xf32> to vector<8x8xf32>
    %70 = vector.broadcast %55 : vector<8x1xf32> to vector<8x8xf32>
    %71 = arith.mulf %70, %69 : vector<8x8xf32>
    %72 = arith.truncf %58 : vector<8x8xf32> to vector<8x8xbf16>
    %cst_52 = arith.constant dense<0.000000e+00> : vector<8x8xf32>
    %73 = tpu.matmul %72, %47, %cst_52 {dimension_numbers = #tpu.dot_dimension_numbers<[1], [0], [0], [1], [0, 0, 1, 1], [], []>} : vector<8x8xbf16>, vector<8x8xbf16>, vector<8x8xf32> -> vector<8x8xf32>
    %74 = arith.addf %71, %73 : vector<8x8xf32>
    %c1_53 = arith.constant 1 : index
    %c0_54 = arith.constant 0 : index
    %c0_55 = arith.constant 0 : index
    %75 = vector.load %arg8[%c1_53, %c0_54, %c0_55] : memref<4x8x8xf32, #tpu.memory_space<vmem>>, vector<1x8x8xf32>
    %76 = vector.shape_cast %75 : vector<1x8x8xf32> to vector<8x8xf32>
    %77 = vector.shape_cast %74 : vector<8x8xf32> to vector<1x8x8xf32>
    tpu.vector_store %arg8[%c1_53, %c0_54, %c0_55], %77 {strides = array<i32>} : memref<4x8x8xf32, #tpu.memory_space<vmem>>, vector<1x8x8xf32>,
    %c1_56 = arith.constant 1 : index
    %c0_57 = arith.constant 0 : index
    %c0_58 = arith.constant 0 : index
    %78 = vector.load %arg6[%c1_56, %c0_57, %c0_58] : memref<4x8x1xf32, #tpu.memory_space<vmem>>, vector<1x8x1xf32>
    %79 = vector.shape_cast %78 : vector<1x8x1xf32> to vector<8x1xf32>
    %80 = vector.shape_cast %53 : vector<8x1xf32> to vector<1x8x1xf32>
    tpu.vector_store %arg6[%c1_56, %c0_57, %c0_58], %80 {strides = array<i32>} : memref<4x8x1xf32, #tpu.memory_space<vmem>>, vector<1x8x1xf32>,
    %c0_59 = arith.constant 0 : index
    %c0_60 = arith.constant 0 : index
    %c16 = arith.constant 16 : index
    %81 = vector.load %arg2[%c0_59, %c0_60, %c16] : memref<1x8x32xbf16, #tpu.memory_space<vmem>>, vector<1x8x8xbf16>
    %82 = vector.shape_cast %81 : vector<1x8x8xbf16> to vector<8x8xbf16>
    %c0_61 = arith.constant 0 : index
    %c0_62 = arith.constant 0 : index
    %c16_63 = arith.constant 16 : index
    %83 = vector.load %arg3[%c0_61, %c0_62, %c16_63] : memref<1x8x32xbf16, #tpu.memory_space<vmem>>, vector<1x8x8xbf16>
    %84 = vector.shape_cast %83 : vector<1x8x8xbf16> to vector<8x8xbf16>
    %c0_64 = arith.constant 0 : index
    %c0_65 = arith.constant 0 : index
    %c16_66 = arith.constant 16 : index
    %85 = vector.load %arg4[%c0_64, %c0_65, %c16_66] : memref<1x8x32xbf16, #tpu.memory_space<vmem>>, vector<1x8x8xbf16>
    %86 = vector.shape_cast %85 : vector<1x8x8xbf16> to vector<8x8xbf16>
    %cst_67 = arith.constant dense<0.000000e+00> : vector<8x8xf32>
    %87 = tpu.matmul %82, %84, %cst_67 {dimension_numbers = #tpu.dot_dimension_numbers<[1], [1], [0], [0], [0, 0, 1, 0], [], []>} : vector<8x8xbf16>, vector<8x8xbf16>, vector<8x8xf32> -> vector<8x8xf32>
    %c2 = arith.constant 2 : index
    %c0_68 = arith.constant 0 : index
    %c0_69 = arith.constant 0 : index
    %88 = vector.load %arg6[%c2, %c0_68, %c0_69] : memref<4x8x1xf32, #tpu.memory_space<vmem>>, vector<1x8x1xf32>
    %89 = vector.shape_cast %88 : vector<1x8x1xf32> to vector<8x1xf32>
    %cst_70 = arith.constant dense<0xFF800000> : vector<8xf32>
    %90 = vector.multi_reduction <maximumf>, %87, %cst_70 [1] : vector<8x8xf32> to vector<8xf32>
    %91 = vector.shape_cast %90 : vector<8xf32> to vector<8x1xf32>
    %92 = arith.maximumf %89, %91 : vector<8x1xf32>
    %93 = arith.subf %89, %92 : vector<8x1xf32>
    %94 = math.exp %93 : vector<8x1xf32>
    %95 = vector.broadcast %92 : vector<8x1xf32> to vector<8x8xf32>
    %96 = arith.subf %87, %95 : vector<8x8xf32>
    %97 = math.exp %96 : vector<8x8xf32>
    %c2_71 = arith.constant 2 : index
    %c0_72 = arith.constant 0 : index
    %c0_73 = arith.constant 0 : index
    %98 = vector.load %arg7[%c2_71, %c0_72, %c0_73] : memref<4x8x1xf32, #tpu.memory_space<vmem>>, vector<1x8x1xf32>
    %99 = vector.shape_cast %98 : vector<1x8x1xf32> to vector<8x1xf32>
    %100 = arith.mulf %94, %99 : vector<8x1xf32>
    %cst_74 = arith.constant dense<0.000000e+00> : vector<8xf32>
    %101 = vector.multi_reduction <add>, %97, %cst_74 [1] : vector<8x8xf32> to vector<8xf32>
    %102 = vector.shape_cast %101 : vector<8xf32> to vector<8x1xf32>
    %103 = arith.addf %100, %102 : vector<8x1xf32>
    %c2_75 = arith.constant 2 : index
    %c0_76 = arith.constant 0 : index
    %c0_77 = arith.constant 0 : index
    %104 = vector.load %arg7[%c2_75, %c0_76, %c0_77] : memref<4x8x1xf32, #tpu.memory_space<vmem>>, vector<1x8x1xf32>
    %105 = vector.shape_cast %104 : vector<1x8x1xf32> to vector<8x1xf32>
    %106 = vector.shape_cast %103 : vector<8x1xf32> to vector<1x8x1xf32>
    tpu.vector_store %arg7[%c2_75, %c0_76, %c0_77], %106 {strides = array<i32>} : memref<4x8x1xf32, #tpu.memory_space<vmem>>, vector<1x8x1xf32>,
    %c2_78 = arith.constant 2 : index
    %c0_79 = arith.constant 0 : index
    %c0_80 = arith.constant 0 : index
    %107 = vector.load %arg8[%c2_78, %c0_79, %c0_80] : memref<4x8x8xf32, #tpu.memory_space<vmem>>, vector<1x8x8xf32>
    %108 = vector.shape_cast %107 : vector<1x8x8xf32> to vector<8x8xf32>
    %109 = vector.broadcast %94 : vector<8x1xf32> to vector<8x8xf32>
    %110 = arith.mulf %109, %108 : vector<8x8xf32>
    %111 = arith.truncf %97 : vector<8x8xf32> to vector<8x8xbf16>
    %cst_81 = arith.constant dense<0.000000e+00> : vector<8x8xf32>
    %112 = tpu.matmul %111, %86, %cst_81 {dimension_numbers = #tpu.dot_dimension_numbers<[1], [0], [0], [1], [0, 0, 1, 1], [], []>} : vector<8x8xbf16>, vector<8x8xbf16>, vector<8x8xf32> -> vector<8x8xf32>
    %113 = arith.addf %110, %112 : vector<8x8xf32>
    %c2_82 = arith.constant 2 : index
    %c0_83 = arith.constant 0 : index
    %c0_84 = arith.constant 0 : index
    %114 = vector.load %arg8[%c2_82, %c0_83, %c0_84] : memref<4x8x8xf32, #tpu.memory_space<vmem>>, vector<1x8x8xf32>
    %115 = vector.shape_cast %114 : vector<1x8x8xf32> to vector<8x8xf32>
    %116 = vector.shape_cast %113 : vector<8x8xf32> to vector<1x8x8xf32>
    tpu.vector_store %arg8[%c2_82, %c0_83, %c0_84], %116 {strides = array<i32>} : memref<4x8x8xf32, #tpu.memory_space<vmem>>, vector<1x8x8xf32>,
    %c2_85 = arith.constant 2 : index
    %c0_86 = arith.constant 0 : index
    %c0_87 = arith.constant 0 : index
    %117 = vector.load %arg6[%c2_85, %c0_86, %c0_87] : memref<4x8x1xf32, #tpu.memory_space<vmem>>, vector<1x8x1xf32>
    %118 = vector.shape_cast %117 : vector<1x8x1xf32> to vector<8x1xf32>
    %119 = vector.shape_cast %92 : vector<8x1xf32> to vector<1x8x1xf32>
    tpu.vector_store %arg6[%c2_85, %c0_86, %c0_87], %119 {strides = array<i32>} : memref<4x8x1xf32, #tpu.memory_space<vmem>>, vector<1x8x1xf32>,
    %c0_88 = arith.constant 0 : index
    %c0_89 = arith.constant 0 : index
    %c24 = arith.constant 24 : index
    %120 = vector.load %arg2[%c0_88, %c0_89, %c24] : memref<1x8x32xbf16, #tpu.memory_space<vmem>>, vector<1x8x8xbf16>
    %121 = vector.shape_cast %120 : vector<1x8x8xbf16> to vector<8x8xbf16>
    %c0_90 = arith.constant 0 : index
    %c0_91 = arith.constant 0 : index
    %c24_92 = arith.constant 24 : index
    %122 = vector.load %arg3[%c0_90, %c0_91, %c24_92] : memref<1x8x32xbf16, #tpu.memory_space<vmem>>, vector<1x8x8xbf16>
    %123 = vector.shape_cast %122 : vector<1x8x8xbf16> to vector<8x8xbf16>
    %c0_93 = arith.constant 0 : index
    %c0_94 = arith.constant 0 : index
    %c24_95 = arith.constant 24 : index
    %124 = vector.load %arg4[%c0_93, %c0_94, %c24_95] : memref<1x8x32xbf16, #tpu.memory_space<vmem>>, vector<1x8x8xbf16>
    %125 = vector.shape_cast %124 : vector<1x8x8xbf16> to vector<8x8xbf16>
    %cst_96 = arith.constant dense<0.000000e+00> : vector<8x8xf32>
    %126 = tpu.matmul %121, %123, %cst_96 {dimension_numbers = #tpu.dot_dimension_numbers<[1], [1], [0], [0], [0, 0, 1, 0], [], []>} : vector<8x8xbf16>, vector<8x8xbf16>, vector<8x8xf32> -> vector<8x8xf32>
    %c3 = arith.constant 3 : index
    %c0_97 = arith.constant 0 : index
    %c0_98 = arith.constant 0 : index
    %127 = vector.load %arg6[%c3, %c0_97, %c0_98] : memref<4x8x1xf32, #tpu.memory_space<vmem>>, vector<1x8x1xf32>
    %128 = vector.shape_cast %127 : vector<1x8x1xf32> to vector<8x1xf32>
    %cst_99 = arith.constant dense<0xFF800000> : vector<8xf32>
    %129 = vector.multi_reduction <maximumf>, %126, %cst_99 [1] : vector<8x8xf32> to vector<8xf32>
    %130 = vector.shape_cast %129 : vector<8xf32> to vector<8x1xf32>
    %131 = arith.maximumf %128, %130 : vector<8x1xf32>
    %132 = arith.subf %128, %131 : vector<8x1xf32>
    %133 = math.exp %132 : vector<8x1xf32>
    %134 = vector.broadcast %131 : vector<8x1xf32> to vector<8x8xf32>
    %135 = arith.subf %126, %134 : vector<8x8xf32>
    %136 = math.exp %135 : vector<8x8xf32>
    %c3_100 = arith.constant 3 : index
    %c0_101 = arith.constant 0 : index
    %c0_102 = arith.constant 0 : index
    %137 = vector.load %arg7[%c3_100, %c0_101, %c0_102] : memref<4x8x1xf32, #tpu.memory_space<vmem>>, vector<1x8x1xf32>
    %138 = vector.shape_cast %137 : vector<1x8x1xf32> to vector<8x1xf32>
    %139 = arith.mulf %133, %138 : vector<8x1xf32>
    %cst_103 = arith.constant dense<0.000000e+00> : vector<8xf32>
    %140 = vector.multi_reduction <add>, %136, %cst_103 [1] : vector<8x8xf32> to vector<8xf32>
    %141 = vector.shape_cast %140 : vector<8xf32> to vector<8x1xf32>
    %142 = arith.addf %139, %141 : vector<8x1xf32>
    %c3_104 = arith.constant 3 : index
    %c0_105 = arith.constant 0 : index
    %c0_106 = arith.constant 0 : index
    %143 = vector.load %arg7[%c3_104, %c0_105, %c0_106] : memref<4x8x1xf32, #tpu.memory_space<vmem>>, vector<1x8x1xf32>
    %144 = vector.shape_cast %143 : vector<1x8x1xf32> to vector<8x1xf32>
    %145 = vector.shape_cast %142 : vector<8x1xf32> to vector<1x8x1xf32>
    tpu.vector_store %arg7[%c3_104, %c0_105, %c0_106], %145 {strides = array<i32>} : memref<4x8x1xf32, #tpu.memory_space<vmem>>, vector<1x8x1xf32>,
    %c3_107 = arith.constant 3 : index
    %c0_108 = arith.constant 0 : index
    %c0_109 = arith.constant 0 : index
    %146 = vector.load %arg8[%c3_107, %c0_108, %c0_109] : memref<4x8x8xf32, #tpu.memory_space<vmem>>, vector<1x8x8xf32>
    %147 = vector.shape_cast %146 : vector<1x8x8xf32> to vector<8x8xf32>
    %148 = vector.broadcast %133 : vector<8x1xf32> to vector<8x8xf32>
    %149 = arith.mulf %148, %147 : vector<8x8xf32>
    %150 = arith.truncf %136 : vector<8x8xf32> to vector<8x8xbf16>
    %cst_110 = arith.constant dense<0.000000e+00> : vector<8x8xf32>
    %151 = tpu.matmul %150, %125, %cst_110 {dimension_numbers = #tpu.dot_dimension_numbers<[1], [0], [0], [1], [0, 0, 1, 1], [], []>} : vector<8x8xbf16>, vector<8x8xbf16>, vector<8x8xf32> -> vector<8x8xf32>
    %152 = arith.addf %149, %151 : vector<8x8xf32>
    %c3_111 = arith.constant 3 : index
    %c0_112 = arith.constant 0 : index
    %c0_113 = arith.constant 0 : index
    %153 = vector.load %arg8[%c3_111, %c0_112, %c0_113] : memref<4x8x8xf32, #tpu.memory_space<vmem>>, vector<1x8x8xf32>
    %154 = vector.shape_cast %153 : vector<1x8x8xf32> to vector<8x8xf32>
    %155 = vector.shape_cast %152 : vector<8x8xf32> to vector<1x8x8xf32>
    tpu.vector_store %arg8[%c3_111, %c0_112, %c0_113], %155 {strides = array<i32>} : memref<4x8x8xf32, #tpu.memory_space<vmem>>, vector<1x8x8xf32>,
    %c3_114 = arith.constant 3 : index
    %c0_115 = arith.constant 0 : index
    %c0_116 = arith.constant 0 : index
    %156 = vector.load %arg6[%c3_114, %c0_115, %c0_116] : memref<4x8x1xf32, #tpu.memory_space<vmem>>, vector<1x8x1xf32>
    %157 = vector.shape_cast %156 : vector<1x8x1xf32> to vector<8x1xf32>
    %158 = vector.shape_cast %131 : vector<8x1xf32> to vector<1x8x1xf32>
    tpu.vector_store %arg6[%c3_114, %c0_115, %c0_116], %158 {strides = array<i32>} : memref<4x8x1xf32, #tpu.memory_space<vmem>>, vector<1x8x1xf32>,
    %c0_i32_117 = arith.constant 0 : i32
    %159 = arith.cmpi eq, %arg1, %c0_i32_117 : i32
    %160 = arith.extui %159 : i1 to i32
    %c0_i32_118 = arith.constant 0 : i32
    %161 = arith.cmpi ne, %160, %c0_i32_118 : i32
    scf.if %161 {
      %c0_119 = arith.constant 0 : index
      %c0_120 = arith.constant 0 : index
      %c0_121 = arith.constant 0 : index
      %162 = vector.load %arg7[%c0_119, %c0_120, %c0_121] : memref<4x8x1xf32, #tpu.memory_space<vmem>>, vector<1x8x1xf32>
      %163 = vector.shape_cast %162 : vector<1x8x1xf32> to vector<8x1xf32>
      %164 = tpu.reciprocal %163 {approx = true} : vector<8x1xf32> -> vector<8x1xf32>
      %c0_122 = arith.constant 0 : index
      %c0_123 = arith.constant 0 : index
      %c0_124 = arith.constant 0 : index
      %165 = vector.load %arg8[%c0_122, %c0_123, %c0_124] : memref<4x8x8xf32, #tpu.memory_space<vmem>>, vector<1x8x8xf32>
      %166 = vector.shape_cast %165 : vector<1x8x8xf32> to vector<8x8xf32>
      %167 = vector.broadcast %164 : vector<8x1xf32> to vector<8x8xf32>
      %168 = arith.mulf %166, %167 : vector<8x8xf32>
      %c1_125 = arith.constant 1 : index
      %c0_126 = arith.constant 0 : index
      %c0_127 = arith.constant 0 : index
      %169 = vector.load %arg7[%c1_125, %c0_126, %c0_127] : memref<4x8x1xf32, #tpu.memory_space<vmem>>, vector<1x8x1xf32>
      %170 = vector.shape_cast %169 : vector<1x8x1xf32> to vector<8x1xf32>
      %171 = tpu.reciprocal %170 {approx = true} : vector<8x1xf32> -> vector<8x1xf32>
      %c1_128 = arith.constant 1 : index
      %c0_129 = arith.constant 0 : index
      %c0_130 = arith.constant 0 : index
      %172 = vector.load %arg8[%c1_128, %c0_129, %c0_130] : memref<4x8x8xf32, #tpu.memory_space<vmem>>, vector<1x8x8xf32>
      %173 = vector.shape_cast %172 : vector<1x8x8xf32> to vector<8x8xf32>
      %174 = vector.broadcast %171 : vector<8x1xf32> to vector<8x8xf32>
      %175 = arith.mulf %173, %174 : vector<8x8xf32>
      %c2_131 = arith.constant 2 : index
      %c0_132 = arith.constant 0 : index
      %c0_133 = arith.constant 0 : index
      %176 = vector.load %arg7[%c2_131, %c0_132, %c0_133] : memref<4x8x1xf32, #tpu.memory_space<vmem>>, vector<1x8x1xf32>
      %177 = vector.shape_cast %176 : vector<1x8x1xf32> to vector<8x1xf32>
      %178 = tpu.reciprocal %177 {approx = true} : vector<8x1xf32> -> vector<8x1xf32>
      %c2_134 = arith.constant 2 : index
      %c0_135 = arith.constant 0 : index
      %c0_136 = arith.constant 0 : index
      %179 = vector.load %arg8[%c2_134, %c0_135, %c0_136] : memref<4x8x8xf32, #tpu.memory_space<vmem>>, vector<1x8x8xf32>
      %180 = vector.shape_cast %179 : vector<1x8x8xf32> to vector<8x8xf32>
      %181 = vector.broadcast %178 : vector<8x1xf32> to vector<8x8xf32>
      %182 = arith.mulf %180, %181 : vector<8x8xf32>
      %c3_137 = arith.constant 3 : index
      %c0_138 = arith.constant 0 : index
      %c0_139 = arith.constant 0 : index
      %183 = vector.load %arg7[%c3_137, %c0_138, %c0_139] : memref<4x8x1xf32, #tpu.memory_space<vmem>>, vector<1x8x1xf32>
      %184 = vector.shape_cast %183 : vector<1x8x1xf32> to vector<8x1xf32>
      %185 = tpu.reciprocal %184 {approx = true} : vector<8x1xf32> -> vector<8x1xf32>
      %c3_140 = arith.constant 3 : index
      %c0_141 = arith.constant 0 : index
      %c0_142 = arith.constant 0 : index
      %186 = vector.load %arg8[%c3_140, %c0_141, %c0_142] : memref<4x8x8xf32, #tpu.memory_space<vmem>>, vector<1x8x8xf32>
      %187 = vector.shape_cast %186 : vector<1x8x8xf32> to vector<8x8xf32>
      %188 = vector.broadcast %185 : vector<8x1xf32> to vector<8x8xf32>
      %189 = arith.mulf %187, %188 : vector<8x8xf32>
      %190 = tpu.concatenate %168, %175, %182, %189 in 1 : vector<8x8xf32>, vector<8x8xf32>, vector<8x8xf32>, vector<8x8xf32> -> vector<8x32xf32>
      %191 = arith.truncf %190 : vector<8x32xf32> to vector<8x32xbf16>
      %c0_143 = arith.constant 0 : index
      %c0_144 = arith.constant 0 : index
      %c0_145 = arith.constant 0 : index
      %192 = vector.load %arg5[%c0_143, %c0_144, %c0_145] : memref<1x8x32xbf16, #tpu.memory_space<vmem>>, vector<1x8x32xbf16>
      %193 = vector.shape_cast %192 : vector<1x8x32xbf16> to vector<8x32xbf16>
      %194 = vector.shape_cast %191 : vector<8x32xbf16> to vector<1x8x32xbf16>
      tpu.vector_store %arg5[%c0_143, %c0_144, %c0_145], %194 {strides = array<i32>} : memref<1x8x32xbf16, #tpu.memory_space<vmem>>, vector<1x8x32xbf16>,
    } else {
    }
    return
  }
  func.func @transform_0(%arg0: i32, %arg1: i32) -> (i32, i32, i32) {
    %c0_i32 = arith.constant 0 : i32
    %c0_i32_0 = arith.constant 0 : i32
    %c0_i32_1 = arith.constant 0 : i32
    return %arg0, %c0_i32, %c0_i32_0 : i32, i32, i32
  }
  func.func @transform_1(%arg0: i32, %arg1: i32) -> (i32, i32, i32) {
    %c2_i32 = arith.constant 2 : i32
    %0 = arith.addi %c2_i32, %arg0 : i32
    %c0_i32 = arith.constant 0 : i32
    %c0_i32_0 = arith.constant 0 : i32
    return %0, %arg1, %c0_i32 : i32, i32, i32
  }
  func.func @transform_2(%arg0: i32, %arg1: i32) -> (i32, i32, i32) {
    %c4_i32 = arith.constant 4 : i32
    %0 = arith.addi %c4_i32, %arg0 : i32
    %c0_i32 = arith.constant 0 : i32
    %c0_i32_0 = arith.constant 0 : i32
    return %0, %arg1, %c0_i32 : i32, i32, i32
  }
  func.func @transform_3(%arg0: i32, %arg1: i32) -> (i32, i32, i32) {
    %c0_i32 = arith.constant 0 : i32
    %c0_i32_0 = arith.constant 0 : i32
    %c0_i32_1 = arith.constant 0 : i32
    return %arg0, %c0_i32, %c0_i32_0 : i32, i32, i32
  }
}

module attributes {stable_mosaic.version = 11 : i64} {
  func.func @_matmul_add_ln_kernel(%arg0: i32, %arg1: i32, %arg2: memref<1x16x32xbf16, #tpu.memory_space<vmem>>, %arg3: memref<1x32x32xbf16, #tpu.memory_space<vmem>>, %arg4: memref<1x32xf32, #tpu.memory_space<vmem>>, %arg5: memref<16x32xbf16, #tpu.memory_space<vmem>>, %arg6: memref<1x32xf32, #tpu.memory_space<vmem>>, %arg7: memref<1x32xf32, #tpu.memory_space<vmem>>, %arg8: memref<16x32xbf16, #tpu.memory_space<vmem>>, %arg9: memref<16x32xf32, #tpu.memory_space<vmem>>) attributes {dimension_semantics = [#tpu.dimension_semantics<parallel>, #tpu.dimension_semantics<arbitrary>], iteration_bounds = array<i64: 1, 1>, scalar_prefetch = 0 : i64, scratch_operands = 1 : i64, tpu.core_type = #tpu.core_type<tc>, window_params = [{transform_indices = @transform_0, window_bounds = array<i64: 1, 16, 32>}, {transform_indices = @transform_1, window_bounds = array<i64: 1, 32, 32>}, {pipeline_mode = #tpu.pipeline_mode<synchronous>, transform_indices = @transform_2, window_bounds = array<i64: 1, 32>}, {transform_indices = @transform_3, window_bounds = array<i64: 16, 32>}, {pipeline_mode = #tpu.pipeline_mode<synchronous>, transform_indices = @transform_4, window_bounds = array<i64: 1, 32>}, {pipeline_mode = #tpu.pipeline_mode<synchronous>, transform_indices = @transform_5, window_bounds = array<i64: 1, 32>}, {transform_indices = @transform_6, window_bounds = array<i64: 16, 32>}]} {
    %c0_i32 = arith.constant 0 : i32
    %0 = arith.cmpi eq, %arg1, %c0_i32 : i32
    %1 = arith.extui %0 : i1 to i32
    %c0_i32_0 = arith.constant 0 : i32
    %2 = arith.cmpi ne, %1, %c0_i32_0 : i32
    scf.if %2 {
      %cst_12 = arith.constant 0.000000e+00 : f32
      %14 = vector.broadcast %cst_12 : f32 to vector<16x32xf32>
      %c0_13 = arith.constant 0 : index
      %c0_14 = arith.constant 0 : index
      %15 = vector.load %arg9[%c0_13, %c0_14] : memref<16x32xf32, #tpu.memory_space<vmem>>, vector<16x32xf32>
      tpu.vector_store %arg9[%c0_13, %c0_14], %14 {strides = array<i32>} : memref<16x32xf32, #tpu.memory_space<vmem>>, vector<16x32xf32>,
    } else {
    }
    %c0 = arith.constant 0 : index
    %c0_1 = arith.constant 0 : index
    %3 = vector.load %arg9[%c0, %c0_1] : memref<16x32xf32, #tpu.memory_space<vmem>>, vector<16x32xf32>
    %c0_2 = arith.constant 0 : index
    %c0_3 = arith.constant 0 : index
    %c0_4 = arith.constant 0 : index
    %4 = vector.load %arg2[%c0_2, %c0_3, %c0_4] : memref<1x16x32xbf16, #tpu.memory_space<vmem>>, vector<1x16x32xbf16>
    %5 = vector.shape_cast %4 : vector<1x16x32xbf16> to vector<16x32xbf16>
    %c0_5 = arith.constant 0 : index
    %c0_6 = arith.constant 0 : index
    %c0_7 = arith.constant 0 : index
    %6 = vector.load %arg3[%c0_5, %c0_6, %c0_7] : memref<1x32x32xbf16, #tpu.memory_space<vmem>>, vector<1x32x32xbf16>
    %7 = vector.shape_cast %6 : vector<1x32x32xbf16> to vector<32x32xbf16>
    %cst = arith.constant dense<0.000000e+00> : vector<16x32xf32>
    %8 = tpu.matmul %5, %7, %cst {dimension_numbers = #tpu.dot_dimension_numbers<[1], [0], [0], [1], [0, 0, 1, 1], [], []>} : vector<16x32xbf16>, vector<32x32xbf16>, vector<16x32xf32> -> vector<16x32xf32>
    %9 = arith.addf %3, %8 : vector<16x32xf32>
    %c0_8 = arith.constant 0 : index
    %c0_9 = arith.constant 0 : index
    %10 = vector.load %arg9[%c0_8, %c0_9] : memref<16x32xf32, #tpu.memory_space<vmem>>, vector<16x32xf32>
    tpu.vector_store %arg9[%c0_8, %c0_9], %9 {strides = array<i32>} : memref<16x32xf32, #tpu.memory_space<vmem>>, vector<16x32xf32>,
    %c0_i32_10 = arith.constant 0 : i32
    %11 = arith.cmpi eq, %arg1, %c0_i32_10 : i32
    %12 = arith.extui %11 : i1 to i32
    %c0_i32_11 = arith.constant 0 : i32
    %13 = arith.cmpi ne, %12, %c0_i32_11 : i32
    scf.if %13 {
      %c0_12 = arith.constant 0 : index
      %c0_13 = arith.constant 0 : index
      %14 = vector.load %arg9[%c0_12, %c0_13] : memref<16x32xf32, #tpu.memory_space<vmem>>, vector<16x32xf32>
      %c0_14 = arith.constant 0 : index
      %c0_15 = arith.constant 0 : index
      %15 = vector.load %arg4[%c0_14, %c0_15] : memref<1x32xf32, #tpu.memory_space<vmem>>, vector<1x32xf32>
      %16 = vector.broadcast %15 : vector<1x32xf32> to vector<16x32xf32>
      %17 = arith.addf %14, %16 : vector<16x32xf32>
      %c0_16 = arith.constant 0 : index
      %c0_17 = arith.constant 0 : index
      %18 = vector.load %arg5[%c0_16, %c0_17] : memref<16x32xbf16, #tpu.memory_space<vmem>>, vector<16x32xbf16>
      %19 = arith.extf %18 : vector<16x32xbf16> to vector<16x32xf32>
      %20 = arith.addf %17, %19 : vector<16x32xf32>
      %cst_18 = arith.constant dense<0.000000e+00> : vector<16xf32>
      %21 = vector.multi_reduction <add>, %20, %cst_18 [1] : vector<16x32xf32> to vector<16xf32>
      %22 = vector.shape_cast %21 : vector<16xf32> to vector<16x1xf32>
      %cst_19 = arith.constant 3.200000e+01 : f32
      %23 = vector.broadcast %cst_19 : f32 to vector<16x1xf32>
      %24 = arith.divf %22, %23 : vector<16x1xf32>
      %25 = vector.broadcast %24 : vector<16x1xf32> to vector<16x32xf32>
      %26 = arith.subf %20, %25 : vector<16x32xf32>
      %27 = arith.mulf %26, %26 : vector<16x32xf32>
      %cst_20 = arith.constant dense<0.000000e+00> : vector<16xf32>
      %28 = vector.multi_reduction <add>, %27, %cst_20 [1] : vector<16x32xf32> to vector<16xf32>
      %29 = vector.shape_cast %28 : vector<16xf32> to vector<16x1xf32>
      %cst_21 = arith.constant 3.200000e+01 : f32
      %30 = vector.broadcast %cst_21 : f32 to vector<16x1xf32>
      %31 = arith.divf %29, %30 : vector<16x1xf32>
      %32 = vector.broadcast %24 : vector<16x1xf32> to vector<16x32xf32>
      %33 = arith.subf %20, %32 : vector<16x32xf32>
      %cst_22 = arith.constant 9.99999974E-6 : f32
      %34 = vector.broadcast %cst_22 : f32 to vector<16x1xf32>
      %35 = arith.addf %31, %34 : vector<16x1xf32>
      %36 = math.rsqrt %35 : vector<16x1xf32>
      %37 = vector.broadcast %36 : vector<16x1xf32> to vector<16x32xf32>
      %38 = arith.mulf %33, %37 : vector<16x32xf32>
      %c0_23 = arith.constant 0 : index
      %c0_24 = arith.constant 0 : index
      %39 = vector.load %arg6[%c0_23, %c0_24] : memref<1x32xf32, #tpu.memory_space<vmem>>, vector<1x32xf32>
      %40 = vector.broadcast %39 : vector<1x32xf32> to vector<16x32xf32>
      %41 = arith.mulf %38, %40 : vector<16x32xf32>
      %c0_25 = arith.constant 0 : index
      %c0_26 = arith.constant 0 : index
      %42 = vector.load %arg7[%c0_25, %c0_26] : memref<1x32xf32, #tpu.memory_space<vmem>>, vector<1x32xf32>
      %43 = vector.broadcast %42 : vector<1x32xf32> to vector<16x32xf32>
      %44 = arith.addf %41, %43 : vector<16x32xf32>
      %45 = arith.truncf %44 : vector<16x32xf32> to vector<16x32xbf16>
      %c0_27 = arith.constant 0 : index
      %c0_28 = arith.constant 0 : index
      %46 = vector.load %arg8[%c0_27, %c0_28] : memref<16x32xbf16, #tpu.memory_space<vmem>>, vector<16x32xbf16>
      tpu.vector_store %arg8[%c0_27, %c0_28], %45 {strides = array<i32>} : memref<16x32xbf16, #tpu.memory_space<vmem>>, vector<16x32xbf16>,
    } else {
    }
    return
  }
  func.func @transform_0(%arg0: i32, %arg1: i32) -> (i32, i32, i32) {
    %c0_i32 = arith.constant 0 : i32
    %c0_i32_0 = arith.constant 0 : i32
    return %arg1, %arg0, %c0_i32 : i32, i32, i32
  }
  func.func @transform_1(%arg0: i32, %arg1: i32) -> (i32, i32, i32) {
    %c0_i32 = arith.constant 0 : i32
    %c0_i32_0 = arith.constant 0 : i32
    %c0_i32_1 = arith.constant 0 : i32
    return %arg1, %c0_i32, %c0_i32_0 : i32, i32, i32
  }
  func.func @transform_2(%arg0: i32, %arg1: i32) -> (i32, i32) {
    %c0_i32 = arith.constant 0 : i32
    %c0_i32_0 = arith.constant 0 : i32
    %c0_i32_1 = arith.constant 0 : i32
    return %c0_i32, %c0_i32_0 : i32, i32
  }
  func.func @transform_3(%arg0: i32, %arg1: i32) -> (i32, i32) {
    %c0_i32 = arith.constant 0 : i32
    %c0_i32_0 = arith.constant 0 : i32
    return %arg0, %c0_i32 : i32, i32
  }
  func.func @transform_4(%arg0: i32, %arg1: i32) -> (i32, i32) {
    %c0_i32 = arith.constant 0 : i32
    %c0_i32_0 = arith.constant 0 : i32
    %c0_i32_1 = arith.constant 0 : i32
    return %c0_i32, %c0_i32_0 : i32, i32
  }
  func.func @transform_5(%arg0: i32, %arg1: i32) -> (i32, i32) {
    %c0_i32 = arith.constant 0 : i32
    %c0_i32_0 = arith.constant 0 : i32
    %c0_i32_1 = arith.constant 0 : i32
    return %c0_i32, %c0_i32_0 : i32, i32
  }
  func.func @transform_6(%arg0: i32, %arg1: i32) -> (i32, i32) {
    %c0_i32 = arith.constant 0 : i32
    %c0_i32_0 = arith.constant 0 : i32
    return %arg0, %c0_i32 : i32, i32
  }
}

module attributes {stable_mosaic.version = 11 : i64} {
  func.func @_grouped_proj_kernel(%arg0: i32, %arg1: i32, %arg2: memref<16x32xbf16, #tpu.memory_space<vmem>>, %arg3: memref<3x32x32xbf16, #tpu.memory_space<vmem>>, %arg4: memref<3x1x32xf32, #tpu.memory_space<vmem>>, %arg5: memref<3x16x32xbf16, #tpu.memory_space<vmem>>, %arg6: memref<3x16x32xf32, #tpu.memory_space<vmem>>) attributes {dimension_semantics = [#tpu.dimension_semantics<parallel>, #tpu.dimension_semantics<arbitrary>], iteration_bounds = array<i64: 1, 1>, scalar_prefetch = 0 : i64, scratch_operands = 1 : i64, tpu.core_type = #tpu.core_type<tc>, window_params = [{transform_indices = @transform_0, window_bounds = array<i64: 16, 32>}, {transform_indices = @transform_1, window_bounds = array<i64: 3, 32, 32>}, {pipeline_mode = #tpu.pipeline_mode<synchronous>, transform_indices = @transform_2, window_bounds = array<i64: 3, 1, 32>}, {transform_indices = @transform_3, window_bounds = array<i64: 3, 16, 32>}]} {
    %c0_i32 = arith.constant 0 : i32
    %0 = arith.cmpi eq, %arg1, %c0_i32 : i32
    %1 = arith.extui %0 : i1 to i32
    %c0_i32_0 = arith.constant 0 : i32
    %2 = arith.cmpi ne, %1, %c0_i32_0 : i32
    scf.if %2 {
      %cst_31 = arith.constant 0.000000e+00 : f32
      %34 = vector.broadcast %cst_31 : f32 to vector<3x16x32xf32>
      %c0_32 = arith.constant 0 : index
      %c0_33 = arith.constant 0 : index
      %c0_34 = arith.constant 0 : index
      %35 = vector.load %arg6[%c0_32, %c0_33, %c0_34] : memref<3x16x32xf32, #tpu.memory_space<vmem>>, vector<3x16x32xf32>
      tpu.vector_store %arg6[%c0_32, %c0_33, %c0_34], %34 {strides = array<i32>} : memref<3x16x32xf32, #tpu.memory_space<vmem>>, vector<3x16x32xf32>,
    } else {
    }
    %c0 = arith.constant 0 : index
    %c0_1 = arith.constant 0 : index
    %3 = vector.load %arg2[%c0, %c0_1] : memref<16x32xbf16, #tpu.memory_space<vmem>>, vector<16x32xbf16>
    %c0_2 = arith.constant 0 : index
    %c0_3 = arith.constant 0 : index
    %c0_4 = arith.constant 0 : index
    %4 = vector.load %arg6[%c0_2, %c0_3, %c0_4] : memref<3x16x32xf32, #tpu.memory_space<vmem>>, vector<1x16x32xf32>
    %5 = vector.shape_cast %4 : vector<1x16x32xf32> to vector<16x32xf32>
    %c0_5 = arith.constant 0 : index
    %c0_6 = arith.constant 0 : index
    %c0_7 = arith.constant 0 : index
    %6 = vector.load %arg3[%c0_5, %c0_6, %c0_7] : memref<3x32x32xbf16, #tpu.memory_space<vmem>>, vector<1x32x32xbf16>
    %7 = vector.shape_cast %6 : vector<1x32x32xbf16> to vector<32x32xbf16>
    %cst = arith.constant dense<0.000000e+00> : vector<16x32xf32>
    %8 = tpu.matmul %3, %7, %cst {dimension_numbers = #tpu.dot_dimension_numbers<[1], [0], [0], [1], [0, 0, 1, 1], [], []>} : vector<16x32xbf16>, vector<32x32xbf16>, vector<16x32xf32> -> vector<16x32xf32>
    %9 = arith.addf %5, %8 : vector<16x32xf32>
    %c0_8 = arith.constant 0 : index
    %c0_9 = arith.constant 0 : index
    %c0_10 = arith.constant 0 : index
    %10 = vector.load %arg6[%c0_8, %c0_9, %c0_10] : memref<3x16x32xf32, #tpu.memory_space<vmem>>, vector<1x16x32xf32>
    %11 = vector.shape_cast %10 : vector<1x16x32xf32> to vector<16x32xf32>
    %12 = vector.shape_cast %9 : vector<16x32xf32> to vector<1x16x32xf32>
    tpu.vector_store %arg6[%c0_8, %c0_9, %c0_10], %12 {strides = array<i32>} : memref<3x16x32xf32, #tpu.memory_space<vmem>>, vector<1x16x32xf32>,
    %c1 = arith.constant 1 : index
    %c0_11 = arith.constant 0 : index
    %c0_12 = arith.constant 0 : index
    %13 = vector.load %arg6[%c1, %c0_11, %c0_12] : memref<3x16x32xf32, #tpu.memory_space<vmem>>, vector<1x16x32xf32>
    %14 = vector.shape_cast %13 : vector<1x16x32xf32> to vector<16x32xf32>
    %c1_13 = arith.constant 1 : index
    %c0_14 = arith.constant 0 : index
    %c0_15 = arith.constant 0 : index
    %15 = vector.load %arg3[%c1_13, %c0_14, %c0_15] : memref<3x32x32xbf16, #tpu.memory_space<vmem>>, vector<1x32x32xbf16>
    %16 = vector.shape_cast %15 : vector<1x32x32xbf16> to vector<32x32xbf16>
    %cst_16 = arith.constant dense<0.000000e+00> : vector<16x32xf32>
    %17 = tpu.matmul %3, %16, %cst_16 {dimension_numbers = #tpu.dot_dimension_numbers<[1], [0], [0], [1], [0, 0, 1, 1], [], []>} : vector<16x32xbf16>, vector<32x32xbf16>, vector<16x32xf32> -> vector<16x32xf32>
    %18 = arith.addf %14, %17 : vector<16x32xf32>
    %c1_17 = arith.constant 1 : index
    %c0_18 = arith.constant 0 : index
    %c0_19 = arith.constant 0 : index
    %19 = vector.load %arg6[%c1_17, %c0_18, %c0_19] : memref<3x16x32xf32, #tpu.memory_space<vmem>>, vector<1x16x32xf32>
    %20 = vector.shape_cast %19 : vector<1x16x32xf32> to vector<16x32xf32>
    %21 = vector.shape_cast %18 : vector<16x32xf32> to vector<1x16x32xf32>
    tpu.vector_store %arg6[%c1_17, %c0_18, %c0_19], %21 {strides = array<i32>} : memref<3x16x32xf32, #tpu.memory_space<vmem>>, vector<1x16x32xf32>,
    %c2 = arith.constant 2 : index
    %c0_20 = arith.constant 0 : index
    %c0_21 = arith.constant 0 : index
    %22 = vector.load %arg6[%c2, %c0_20, %c0_21] : memref<3x16x32xf32, #tpu.memory_space<vmem>>, vector<1x16x32xf32>
    %23 = vector.shape_cast %22 : vector<1x16x32xf32> to vector<16x32xf32>
    %c2_22 = arith.constant 2 : index
    %c0_23 = arith.constant 0 : index
    %c0_24 = arith.constant 0 : index
    %24 = vector.load %arg3[%c2_22, %c0_23, %c0_24] : memref<3x32x32xbf16, #tpu.memory_space<vmem>>, vector<1x32x32xbf16>
    %25 = vector.shape_cast %24 : vector<1x32x32xbf16> to vector<32x32xbf16>
    %cst_25 = arith.constant dense<0.000000e+00> : vector<16x32xf32>
    %26 = tpu.matmul %3, %25, %cst_25 {dimension_numbers = #tpu.dot_dimension_numbers<[1], [0], [0], [1], [0, 0, 1, 1], [], []>} : vector<16x32xbf16>, vector<32x32xbf16>, vector<16x32xf32> -> vector<16x32xf32>
    %27 = arith.addf %23, %26 : vector<16x32xf32>
    %c2_26 = arith.constant 2 : index
    %c0_27 = arith.constant 0 : index
    %c0_28 = arith.constant 0 : index
    %28 = vector.load %arg6[%c2_26, %c0_27, %c0_28] : memref<3x16x32xf32, #tpu.memory_space<vmem>>, vector<1x16x32xf32>
    %29 = vector.shape_cast %28 : vector<1x16x32xf32> to vector<16x32xf32>
    %30 = vector.shape_cast %27 : vector<16x32xf32> to vector<1x16x32xf32>
    tpu.vector_store %arg6[%c2_26, %c0_27, %c0_28], %30 {strides = array<i32>} : memref<3x16x32xf32, #tpu.memory_space<vmem>>, vector<1x16x32xf32>,
    %c0_i32_29 = arith.constant 0 : i32
    %31 = arith.cmpi eq, %arg1, %c0_i32_29 : i32
    %32 = arith.extui %31 : i1 to i32
    %c0_i32_30 = arith.constant 0 : i32
    %33 = arith.cmpi ne, %32, %c0_i32_30 : i32
    scf.if %33 {
      %c0_31 = arith.constant 0 : index
      %c0_32 = arith.constant 0 : index
      %c0_33 = arith.constant 0 : index
      %34 = vector.load %arg6[%c0_31, %c0_32, %c0_33] : memref<3x16x32xf32, #tpu.memory_space<vmem>>, vector<3x16x32xf32>
      %c0_34 = arith.constant 0 : index
      %c0_35 = arith.constant 0 : index
      %c0_36 = arith.constant 0 : index
      %35 = vector.load %arg4[%c0_34, %c0_35, %c0_36] : memref<3x1x32xf32, #tpu.memory_space<vmem>>, vector<3x1x32xf32>
      %36 = vector.broadcast %35 : vector<3x1x32xf32> to vector<3x16x32xf32>
      %37 = arith.addf %34, %36 : vector<3x16x32xf32>
      %38 = arith.truncf %37 : vector<3x16x32xf32> to vector<3x16x32xbf16>
      %c0_37 = arith.constant 0 : index
      %c0_38 = arith.constant 0 : index
      %c0_39 = arith.constant 0 : index
      %39 = vector.load %arg5[%c0_37, %c0_38, %c0_39] : memref<3x16x32xbf16, #tpu.memory_space<vmem>>, vector<3x16x32xbf16>
      tpu.vector_store %arg5[%c0_37, %c0_38, %c0_39], %38 {strides = array<i32>} : memref<3x16x32xbf16, #tpu.memory_space<vmem>>, vector<3x16x32xbf16>,
    } else {
    }
    return
  }
  func.func @transform_0(%arg0: i32, %arg1: i32) -> (i32, i32) {
    %c0_i32 = arith.constant 0 : i32
    return %arg0, %arg1 : i32, i32
  }
  func.func @transform_1(%arg0: i32, %arg1: i32) -> (i32, i32, i32) {
    %c0_i32 = arith.constant 0 : i32
    %c0_i32_0 = arith.constant 0 : i32
    %c0_i32_1 = arith.constant 0 : i32
    return %c0_i32, %arg1, %c0_i32_0 : i32, i32, i32
  }
  func.func @transform_2(%arg0: i32, %arg1: i32) -> (i32, i32, i32) {
    %c0_i32 = arith.constant 0 : i32
    %c0_i32_0 = arith.constant 0 : i32
    %c0_i32_1 = arith.constant 0 : i32
    %c0_i32_2 = arith.constant 0 : i32
    return %c0_i32, %c0_i32_0, %c0_i32_1 : i32, i32, i32
  }
  func.func @transform_3(%arg0: i32, %arg1: i32) -> (i32, i32, i32) {
    %c0_i32 = arith.constant 0 : i32
    %c0_i32_0 = arith.constant 0 : i32
    %c0_i32_1 = arith.constant 0 : i32
    return %c0_i32, %arg0, %c0_i32_0 : i32, i32, i32
  }
}

module attributes {stable_mosaic.version = 11 : i64} {
  func.func @_grouped_proj_kernel(%arg0: i32, %arg1: i32, %arg2: memref<16x32xbf16, #tpu.memory_space<vmem>>, %arg3: memref<1x32x32xbf16, #tpu.memory_space<vmem>>, %arg4: memref<1x1x32xf32, #tpu.memory_space<vmem>>, %arg5: memref<1x16x32xbf16, #tpu.memory_space<vmem>>, %arg6: memref<1x16x32xf32, #tpu.memory_space<vmem>>) attributes {dimension_semantics = [#tpu.dimension_semantics<parallel>, #tpu.dimension_semantics<arbitrary>], iteration_bounds = array<i64: 1, 1>, scalar_prefetch = 0 : i64, scratch_operands = 1 : i64, tpu.core_type = #tpu.core_type<tc>, window_params = [{transform_indices = @transform_0, window_bounds = array<i64: 16, 32>}, {transform_indices = @transform_1, window_bounds = array<i64: 1, 32, 32>}, {pipeline_mode = #tpu.pipeline_mode<synchronous>, transform_indices = @transform_2, window_bounds = array<i64: 1, 1, 32>}, {transform_indices = @transform_3, window_bounds = array<i64: 1, 16, 32>}]} {
    %c0_i32 = arith.constant 0 : i32
    %0 = arith.cmpi eq, %arg1, %c0_i32 : i32
    %1 = arith.extui %0 : i1 to i32
    %c0_i32_0 = arith.constant 0 : i32
    %2 = arith.cmpi ne, %1, %c0_i32_0 : i32
    scf.if %2 {
      %cst_13 = arith.constant 0.000000e+00 : f32
      %16 = vector.broadcast %cst_13 : f32 to vector<1x16x32xf32>
      %c0_14 = arith.constant 0 : index
      %c0_15 = arith.constant 0 : index
      %c0_16 = arith.constant 0 : index
      %17 = vector.load %arg6[%c0_14, %c0_15, %c0_16] : memref<1x16x32xf32, #tpu.memory_space<vmem>>, vector<1x16x32xf32>
      tpu.vector_store %arg6[%c0_14, %c0_15, %c0_16], %16 {strides = array<i32>} : memref<1x16x32xf32, #tpu.memory_space<vmem>>, vector<1x16x32xf32>,
    } else {
    }
    %c0 = arith.constant 0 : index
    %c0_1 = arith.constant 0 : index
    %3 = vector.load %arg2[%c0, %c0_1] : memref<16x32xbf16, #tpu.memory_space<vmem>>, vector<16x32xbf16>
    %c0_2 = arith.constant 0 : index
    %c0_3 = arith.constant 0 : index
    %c0_4 = arith.constant 0 : index
    %4 = vector.load %arg6[%c0_2, %c0_3, %c0_4] : memref<1x16x32xf32, #tpu.memory_space<vmem>>, vector<1x16x32xf32>
    %5 = vector.shape_cast %4 : vector<1x16x32xf32> to vector<16x32xf32>
    %c0_5 = arith.constant 0 : index
    %c0_6 = arith.constant 0 : index
    %c0_7 = arith.constant 0 : index
    %6 = vector.load %arg3[%c0_5, %c0_6, %c0_7] : memref<1x32x32xbf16, #tpu.memory_space<vmem>>, vector<1x32x32xbf16>
    %7 = vector.shape_cast %6 : vector<1x32x32xbf16> to vector<32x32xbf16>
    %cst = arith.constant dense<0.000000e+00> : vector<16x32xf32>
    %8 = tpu.matmul %3, %7, %cst {dimension_numbers = #tpu.dot_dimension_numbers<[1], [0], [0], [1], [0, 0, 1, 1], [], []>} : vector<16x32xbf16>, vector<32x32xbf16>, vector<16x32xf32> -> vector<16x32xf32>
    %9 = arith.addf %5, %8 : vector<16x32xf32>
    %c0_8 = arith.constant 0 : index
    %c0_9 = arith.constant 0 : index
    %c0_10 = arith.constant 0 : index
    %10 = vector.load %arg6[%c0_8, %c0_9, %c0_10] : memref<1x16x32xf32, #tpu.memory_space<vmem>>, vector<1x16x32xf32>
    %11 = vector.shape_cast %10 : vector<1x16x32xf32> to vector<16x32xf32>
    %12 = vector.shape_cast %9 : vector<16x32xf32> to vector<1x16x32xf32>
    tpu.vector_store %arg6[%c0_8, %c0_9, %c0_10], %12 {strides = array<i32>} : memref<1x16x32xf32, #tpu.memory_space<vmem>>, vector<1x16x32xf32>,
    %c0_i32_11 = arith.constant 0 : i32
    %13 = arith.cmpi eq, %arg1, %c0_i32_11 : i32
    %14 = arith.extui %13 : i1 to i32
    %c0_i32_12 = arith.constant 0 : i32
    %15 = arith.cmpi ne, %14, %c0_i32_12 : i32
    scf.if %15 {
      %c0_13 = arith.constant 0 : index
      %c0_14 = arith.constant 0 : index
      %c0_15 = arith.constant 0 : index
      %16 = vector.load %arg6[%c0_13, %c0_14, %c0_15] : memref<1x16x32xf32, #tpu.memory_space<vmem>>, vector<1x16x32xf32>
      %c0_16 = arith.constant 0 : index
      %c0_17 = arith.constant 0 : index
      %c0_18 = arith.constant 0 : index
      %17 = vector.load %arg4[%c0_16, %c0_17, %c0_18] : memref<1x1x32xf32, #tpu.memory_space<vmem>>, vector<1x1x32xf32>
      %18 = vector.broadcast %17 : vector<1x1x32xf32> to vector<1x16x32xf32>
      %19 = arith.addf %16, %18 : vector<1x16x32xf32>
      %20 = arith.truncf %19 : vector<1x16x32xf32> to vector<1x16x32xbf16>
      %c0_19 = arith.constant 0 : index
      %c0_20 = arith.constant 0 : index
      %c0_21 = arith.constant 0 : index
      %21 = vector.load %arg5[%c0_19, %c0_20, %c0_21] : memref<1x16x32xbf16, #tpu.memory_space<vmem>>, vector<1x16x32xbf16>
      tpu.vector_store %arg5[%c0_19, %c0_20, %c0_21], %20 {strides = array<i32>} : memref<1x16x32xbf16, #tpu.memory_space<vmem>>, vector<1x16x32xbf16>,
    } else {
    }
    return
  }
  func.func @transform_0(%arg0: i32, %arg1: i32) -> (i32, i32) {
    %c0_i32 = arith.constant 0 : i32
    return %arg0, %arg1 : i32, i32
  }
  func.func @transform_1(%arg0: i32, %arg1: i32) -> (i32, i32, i32) {
    %c0_i32 = arith.constant 0 : i32
    %c0_i32_0 = arith.constant 0 : i32
    %c0_i32_1 = arith.constant 0 : i32
    return %c0_i32, %arg1, %c0_i32_0 : i32, i32, i32
  }
  func.func @transform_2(%arg0: i32, %arg1: i32) -> (i32, i32, i32) {
    %c0_i32 = arith.constant 0 : i32
    %c0_i32_0 = arith.constant 0 : i32
    %c0_i32_1 = arith.constant 0 : i32
    %c0_i32_2 = arith.constant 0 : i32
    return %c0_i32, %c0_i32_0, %c0_i32_1 : i32, i32, i32
  }
  func.func @transform_3(%arg0: i32, %arg1: i32) -> (i32, i32, i32) {
    %c0_i32 = arith.constant 0 : i32
    %c0_i32_0 = arith.constant 0 : i32
    %c0_i32_1 = arith.constant 0 : i32
    return %c0_i32, %arg0, %c0_i32_0 : i32, i32, i32
  }
}

module attributes {stable_mosaic.version = 11 : i64} {
  func.func @_grouped_proj_kernel(%arg0: i32, %arg1: i32, %arg2: memref<32x32xbf16, #tpu.memory_space<vmem>>, %arg3: memref<2x32x32xbf16, #tpu.memory_space<vmem>>, %arg4: memref<2x1x32xf32, #tpu.memory_space<vmem>>, %arg5: memref<2x32x32xbf16, #tpu.memory_space<vmem>>, %arg6: memref<2x32x32xf32, #tpu.memory_space<vmem>>) attributes {dimension_semantics = [#tpu.dimension_semantics<parallel>, #tpu.dimension_semantics<arbitrary>], iteration_bounds = array<i64: 1, 1>, scalar_prefetch = 0 : i64, scratch_operands = 1 : i64, tpu.core_type = #tpu.core_type<tc>, window_params = [{transform_indices = @transform_0, window_bounds = array<i64: 32, 32>}, {transform_indices = @transform_1, window_bounds = array<i64: 2, 32, 32>}, {pipeline_mode = #tpu.pipeline_mode<synchronous>, transform_indices = @transform_2, window_bounds = array<i64: 2, 1, 32>}, {transform_indices = @transform_3, window_bounds = array<i64: 2, 32, 32>}]} {
    %c0_i32 = arith.constant 0 : i32
    %0 = arith.cmpi eq, %arg1, %c0_i32 : i32
    %1 = arith.extui %0 : i1 to i32
    %c0_i32_0 = arith.constant 0 : i32
    %2 = arith.cmpi ne, %1, %c0_i32_0 : i32
    scf.if %2 {
      %cst_22 = arith.constant 0.000000e+00 : f32
      %25 = vector.broadcast %cst_22 : f32 to vector<2x32x32xf32>
      %c0_23 = arith.constant 0 : index
      %c0_24 = arith.constant 0 : index
      %c0_25 = arith.constant 0 : index
      %26 = vector.load %arg6[%c0_23, %c0_24, %c0_25] : memref<2x32x32xf32, #tpu.memory_space<vmem>>, vector<2x32x32xf32>
      tpu.vector_store %arg6[%c0_23, %c0_24, %c0_25], %25 {strides = array<i32>} : memref<2x32x32xf32, #tpu.memory_space<vmem>>, vector<2x32x32xf32>,
    } else {
    }
    %c0 = arith.constant 0 : index
    %c0_1 = arith.constant 0 : index
    %3 = vector.load %arg2[%c0, %c0_1] : memref<32x32xbf16, #tpu.memory_space<vmem>>, vector<32x32xbf16>
    %c0_2 = arith.constant 0 : index
    %c0_3 = arith.constant 0 : index
    %c0_4 = arith.constant 0 : index
    %4 = vector.load %arg6[%c0_2, %c0_3, %c0_4] : memref<2x32x32xf32, #tpu.memory_space<vmem>>, vector<1x32x32xf32>
    %5 = vector.shape_cast %4 : vector<1x32x32xf32> to vector<32x32xf32>
    %c0_5 = arith.constant 0 : index
    %c0_6 = arith.constant 0 : index
    %c0_7 = arith.constant 0 : index
    %6 = vector.load %arg3[%c0_5, %c0_6, %c0_7] : memref<2x32x32xbf16, #tpu.memory_space<vmem>>, vector<1x32x32xbf16>
    %7 = vector.shape_cast %6 : vector<1x32x32xbf16> to vector<32x32xbf16>
    %cst = arith.constant dense<0.000000e+00> : vector<32x32xf32>
    %8 = tpu.matmul %3, %7, %cst {dimension_numbers = #tpu.dot_dimension_numbers<[1], [0], [0], [1], [0, 0, 1, 1], [], []>} : vector<32x32xbf16>, vector<32x32xbf16>, vector<32x32xf32> -> vector<32x32xf32>
    %9 = arith.addf %5, %8 : vector<32x32xf32>
    %c0_8 = arith.constant 0 : index
    %c0_9 = arith.constant 0 : index
    %c0_10 = arith.constant 0 : index
    %10 = vector.load %arg6[%c0_8, %c0_9, %c0_10] : memref<2x32x32xf32, #tpu.memory_space<vmem>>, vector<1x32x32xf32>
    %11 = vector.shape_cast %10 : vector<1x32x32xf32> to vector<32x32xf32>
    %12 = vector.shape_cast %9 : vector<32x32xf32> to vector<1x32x32xf32>
    tpu.vector_store %arg6[%c0_8, %c0_9, %c0_10], %12 {strides = array<i32>} : memref<2x32x32xf32, #tpu.memory_space<vmem>>, vector<1x32x32xf32>,
    %c1 = arith.constant 1 : index
    %c0_11 = arith.constant 0 : index
    %c0_12 = arith.constant 0 : index
    %13 = vector.load %arg6[%c1, %c0_11, %c0_12] : memref<2x32x32xf32, #tpu.memory_space<vmem>>, vector<1x32x32xf32>
    %14 = vector.shape_cast %13 : vector<1x32x32xf32> to vector<32x32xf32>
    %c1_13 = arith.constant 1 : index
    %c0_14 = arith.constant 0 : index
    %c0_15 = arith.constant 0 : index
    %15 = vector.load %arg3[%c1_13, %c0_14, %c0_15] : memref<2x32x32xbf16, #tpu.memory_space<vmem>>, vector<1x32x32xbf16>
    %16 = vector.shape_cast %15 : vector<1x32x32xbf16> to vector<32x32xbf16>
    %cst_16 = arith.constant dense<0.000000e+00> : vector<32x32xf32>
    %17 = tpu.matmul %3, %16, %cst_16 {dimension_numbers = #tpu.dot_dimension_numbers<[1], [0], [0], [1], [0, 0, 1, 1], [], []>} : vector<32x32xbf16>, vector<32x32xbf16>, vector<32x32xf32> -> vector<32x32xf32>
    %18 = arith.addf %14, %17 : vector<32x32xf32>
    %c1_17 = arith.constant 1 : index
    %c0_18 = arith.constant 0 : index
    %c0_19 = arith.constant 0 : index
    %19 = vector.load %arg6[%c1_17, %c0_18, %c0_19] : memref<2x32x32xf32, #tpu.memory_space<vmem>>, vector<1x32x32xf32>
    %20 = vector.shape_cast %19 : vector<1x32x32xf32> to vector<32x32xf32>
    %21 = vector.shape_cast %18 : vector<32x32xf32> to vector<1x32x32xf32>
    tpu.vector_store %arg6[%c1_17, %c0_18, %c0_19], %21 {strides = array<i32>} : memref<2x32x32xf32, #tpu.memory_space<vmem>>, vector<1x32x32xf32>,
    %c0_i32_20 = arith.constant 0 : i32
    %22 = arith.cmpi eq, %arg1, %c0_i32_20 : i32
    %23 = arith.extui %22 : i1 to i32
    %c0_i32_21 = arith.constant 0 : i32
    %24 = arith.cmpi ne, %23, %c0_i32_21 : i32
    scf.if %24 {
      %c0_22 = arith.constant 0 : index
      %c0_23 = arith.constant 0 : index
      %c0_24 = arith.constant 0 : index
      %25 = vector.load %arg6[%c0_22, %c0_23, %c0_24] : memref<2x32x32xf32, #tpu.memory_space<vmem>>, vector<2x32x32xf32>
      %c0_25 = arith.constant 0 : index
      %c0_26 = arith.constant 0 : index
      %c0_27 = arith.constant 0 : index
      %26 = vector.load %arg4[%c0_25, %c0_26, %c0_27] : memref<2x1x32xf32, #tpu.memory_space<vmem>>, vector<2x1x32xf32>
      %27 = vector.broadcast %26 : vector<2x1x32xf32> to vector<2x32x32xf32>
      %28 = arith.addf %25, %27 : vector<2x32x32xf32>
      %29 = arith.truncf %28 : vector<2x32x32xf32> to vector<2x32x32xbf16>
      %c0_28 = arith.constant 0 : index
      %c0_29 = arith.constant 0 : index
      %c0_30 = arith.constant 0 : index
      %30 = vector.load %arg5[%c0_28, %c0_29, %c0_30] : memref<2x32x32xbf16, #tpu.memory_space<vmem>>, vector<2x32x32xbf16>
      tpu.vector_store %arg5[%c0_28, %c0_29, %c0_30], %29 {strides = array<i32>} : memref<2x32x32xbf16, #tpu.memory_space<vmem>>, vector<2x32x32xbf16>,
    } else {
    }
    return
  }
  func.func @transform_0(%arg0: i32, %arg1: i32) -> (i32, i32) {
    %c0_i32 = arith.constant 0 : i32
    return %arg0, %arg1 : i32, i32
  }
  func.func @transform_1(%arg0: i32, %arg1: i32) -> (i32, i32, i32) {
    %c0_i32 = arith.constant 0 : i32
    %c0_i32_0 = arith.constant 0 : i32
    %c0_i32_1 = arith.constant 0 : i32
    return %c0_i32, %arg1, %c0_i32_0 : i32, i32, i32
  }
  func.func @transform_2(%arg0: i32, %arg1: i32) -> (i32, i32, i32) {
    %c0_i32 = arith.constant 0 : i32
    %c0_i32_0 = arith.constant 0 : i32
    %c0_i32_1 = arith.constant 0 : i32
    %c0_i32_2 = arith.constant 0 : i32
    return %c0_i32, %c0_i32_0, %c0_i32_1 : i32, i32, i32
  }
  func.func @transform_3(%arg0: i32, %arg1: i32) -> (i32, i32, i32) {
    %c0_i32 = arith.constant 0 : i32
    %c0_i32_0 = arith.constant 0 : i32
    %c0_i32_1 = arith.constant 0 : i32
    return %c0_i32, %arg0, %c0_i32_0 : i32, i32, i32
  }
}

module attributes {stable_mosaic.version = 11 : i64} {
  func.func @_flash_attn_kernel(%arg0: i32, %arg1: i32, %arg2: memref<1x8x32xbf16, #tpu.memory_space<vmem>>, %arg3: memref<1x16x32xbf16, #tpu.memory_space<vmem>>, %arg4: memref<1x16x32xbf16, #tpu.memory_space<vmem>>, %arg5: memref<1x8x32xbf16, #tpu.memory_space<vmem>>, %arg6: memref<4x8x1xf32, #tpu.memory_space<vmem>>, %arg7: memref<4x8x1xf32, #tpu.memory_space<vmem>>, %arg8: memref<4x8x8xf32, #tpu.memory_space<vmem>>) attributes {dimension_semantics = [#tpu.dimension_semantics<parallel>, #tpu.dimension_semantics<arbitrary>], iteration_bounds = array<i64: 2, 1>, scalar_prefetch = 0 : i64, scratch_operands = 3 : i64, tpu.core_type = #tpu.core_type<tc>, window_params = [{transform_indices = @transform_0, window_bounds = array<i64: 1, 8, 32>}, {transform_indices = @transform_1, window_bounds = array<i64: 1, 16, 32>}, {transform_indices = @transform_2, window_bounds = array<i64: 1, 16, 32>}, {transform_indices = @transform_3, window_bounds = array<i64: 1, 8, 32>}]} {
    %c0_i32 = arith.constant 0 : i32
    %0 = arith.cmpi eq, %arg1, %c0_i32 : i32
    %1 = arith.extui %0 : i1 to i32
    %c0_i32_0 = arith.constant 0 : i32
    %2 = arith.cmpi ne, %1, %c0_i32_0 : i32
    scf.if %2 {
      %cst_119 = arith.constant 0xFF800000 : f32
      %162 = vector.broadcast %cst_119 : f32 to vector<4x8x1xf32>
      %c0_120 = arith.constant 0 : index
      %c0_121 = arith.constant 0 : index
      %c0_122 = arith.constant 0 : index
      %163 = vector.load %arg6[%c0_120, %c0_121, %c0_122] : memref<4x8x1xf32, #tpu.memory_space<vmem>>, vector<4x8x1xf32>
      tpu.vector_store %arg6[%c0_120, %c0_121, %c0_122], %162 {strides = array<i32>} : memref<4x8x1xf32, #tpu.memory_space<vmem>>, vector<4x8x1xf32>,
      %cst_123 = arith.constant 0.000000e+00 : f32
      %164 = vector.broadcast %cst_123 : f32 to vector<4x8x1xf32>
      %c0_124 = arith.constant 0 : index
      %c0_125 = arith.constant 0 : index
      %c0_126 = arith.constant 0 : index
      %165 = vector.load %arg7[%c0_124, %c0_125, %c0_126] : memref<4x8x1xf32, #tpu.memory_space<vmem>>, vector<4x8x1xf32>
      tpu.vector_store %arg7[%c0_124, %c0_125, %c0_126], %164 {strides = array<i32>} : memref<4x8x1xf32, #tpu.memory_space<vmem>>, vector<4x8x1xf32>,
      %cst_127 = arith.constant 0.000000e+00 : f32
      %166 = vector.broadcast %cst_127 : f32 to vector<4x8x8xf32>
      %c0_128 = arith.constant 0 : index
      %c0_129 = arith.constant 0 : index
      %c0_130 = arith.constant 0 : index
      %167 = vector.load %arg8[%c0_128, %c0_129, %c0_130] : memref<4x8x8xf32, #tpu.memory_space<vmem>>, vector<4x8x8xf32>
      tpu.vector_store %arg8[%c0_128, %c0_129, %c0_130], %166 {strides = array<i32>} : memref<4x8x8xf32, #tpu.memory_space<vmem>>, vector<4x8x8xf32>,
    } else {
    }
    %c0 = arith.constant 0 : index
    %c0_1 = arith.constant 0 : index
    %c0_2 = arith.constant 0 : index
    %3 = vector.load %arg2[%c0, %c0_1, %c0_2] : memref<1x8x32xbf16, #tpu.memory_space<vmem>>, vector<1x8x8xbf16>
    %4 = vector.shape_cast %3 : vector<1x8x8xbf16> to vector<8x8xbf16>
    %c0_3 = arith.constant 0 : index
    %c0_4 = arith.constant 0 : index
    %c0_5 = arith.constant 0 : index
    %5 = vector.load %arg3[%c0_3, %c0_4, %c0_5] : memref<1x16x32xbf16, #tpu.memory_space<vmem>>, vector<1x16x8xbf16>
    %6 = vector.shape_cast %5 : vector<1x16x8xbf16> to vector<16x8xbf16>
    %c0_6 = arith.constant 0 : index
    %c0_7 = arith.constant 0 : index
    %c0_8 = arith.constant 0 : index
    %7 = vector.load %arg4[%c0_6, %c0_7, %c0_8] : memref<1x16x32xbf16, #tpu.memory_space<vmem>>, vector<1x16x8xbf16>
    %8 = vector.shape_cast %7 : vector<1x16x8xbf16> to vector<16x8xbf16>
    %cst = arith.constant dense<0.000000e+00> : vector<8x16xf32>
    %9 = tpu.matmul %4, %6, %cst {dimension_numbers = #tpu.dot_dimension_numbers<[1], [1], [0], [0], [0, 0, 1, 0], [], []>} : vector<8x8xbf16>, vector<16x8xbf16>, vector<8x16xf32> -> vector<8x16xf32>
    %c0_9 = arith.constant 0 : index
    %c0_10 = arith.constant 0 : index
    %c0_11 = arith.constant 0 : index
    %10 = vector.load %arg6[%c0_9, %c0_10, %c0_11] : memref<4x8x1xf32, #tpu.memory_space<vmem>>, vector<1x8x1xf32>
    %11 = vector.shape_cast %10 : vector<1x8x1xf32> to vector<8x1xf32>
    %cst_12 = arith.constant dense<0xFF800000> : vector<8xf32>
    %12 = vector.multi_reduction <maximumf>, %9, %cst_12 [1] : vector<8x16xf32> to vector<8xf32>
    %13 = vector.shape_cast %12 : vector<8xf32> to vector<8x1xf32>
    %14 = arith.maximumf %11, %13 : vector<8x1xf32>
    %15 = arith.subf %11, %14 : vector<8x1xf32>
    %16 = math.exp %15 : vector<8x1xf32>
    %17 = vector.broadcast %14 : vector<8x1xf32> to vector<8x16xf32>
    %18 = arith.subf %9, %17 : vector<8x16xf32>
    %19 = math.exp %18 : vector<8x16xf32>
    %c0_13 = arith.constant 0 : index
    %c0_14 = arith.constant 0 : index
    %c0_15 = arith.constant 0 : index
    %20 = vector.load %arg7[%c0_13, %c0_14, %c0_15] : memref<4x8x1xf32, #tpu.memory_space<vmem>>, vector<1x8x1xf32>
    %21 = vector.shape_cast %20 : vector<1x8x1xf32> to vector<8x1xf32>
    %22 = arith.mulf %16, %21 : vector<8x1xf32>
    %cst_16 = arith.constant dense<0.000000e+00> : vector<8xf32>
    %23 = vector.multi_reduction <add>, %19, %cst_16 [1] : vector<8x16xf32> to vector<8xf32>
    %24 = vector.shape_cast %23 : vector<8xf32> to vector<8x1xf32>
    %25 = arith.addf %22, %24 : vector<8x1xf32>
    %c0_17 = arith.constant 0 : index
    %c0_18 = arith.constant 0 : index
    %c0_19 = arith.constant 0 : index
    %26 = vector.load %arg7[%c0_17, %c0_18, %c0_19] : memref<4x8x1xf32, #tpu.memory_space<vmem>>, vector<1x8x1xf32>
    %27 = vector.shape_cast %26 : vector<1x8x1xf32> to vector<8x1xf32>
    %28 = vector.shape_cast %25 : vector<8x1xf32> to vector<1x8x1xf32>
    tpu.vector_store %arg7[%c0_17, %c0_18, %c0_19], %28 {strides = array<i32>} : memref<4x8x1xf32, #tpu.memory_space<vmem>>, vector<1x8x1xf32>,
    %c0_20 = arith.constant 0 : index
    %c0_21 = arith.constant 0 : index
    %c0_22 = arith.constant 0 : index
    %29 = vector.load %arg8[%c0_20, %c0_21, %c0_22] : memref<4x8x8xf32, #tpu.memory_space<vmem>>, vector<1x8x8xf32>
    %30 = vector.shape_cast %29 : vector<1x8x8xf32> to vector<8x8xf32>
    %31 = vector.broadcast %16 : vector<8x1xf32> to vector<8x8xf32>
    %32 = arith.mulf %31, %30 : vector<8x8xf32>
    %33 = arith.truncf %19 : vector<8x16xf32> to vector<8x16xbf16>
    %cst_23 = arith.constant dense<0.000000e+00> : vector<8x8xf32>
    %34 = tpu.matmul %33, %8, %cst_23 {dimension_numbers = #tpu.dot_dimension_numbers<[1], [0], [0], [1], [0, 0, 1, 1], [], []>} : vector<8x16xbf16>, vector<16x8xbf16>, vector<8x8xf32> -> vector<8x8xf32>
    %35 = arith.addf %32, %34 : vector<8x8xf32>
    %c0_24 = arith.constant 0 : index
    %c0_25 = arith.constant 0 : index
    %c0_26 = arith.constant 0 : index
    %36 = vector.load %arg8[%c0_24, %c0_25, %c0_26] : memref<4x8x8xf32, #tpu.memory_space<vmem>>, vector<1x8x8xf32>
    %37 = vector.shape_cast %36 : vector<1x8x8xf32> to vector<8x8xf32>
    %38 = vector.shape_cast %35 : vector<8x8xf32> to vector<1x8x8xf32>
    tpu.vector_store %arg8[%c0_24, %c0_25, %c0_26], %38 {strides = array<i32>} : memref<4x8x8xf32, #tpu.memory_space<vmem>>, vector<1x8x8xf32>,
    %c0_27 = arith.constant 0 : index
    %c0_28 = arith.constant 0 : index
    %c0_29 = arith.constant 0 : index
    %39 = vector.load %arg6[%c0_27, %c0_28, %c0_29] : memref<4x8x1xf32, #tpu.memory_space<vmem>>, vector<1x8x1xf32>
    %40 = vector.shape_cast %39 : vector<1x8x1xf32> to vector<8x1xf32>
    %41 = vector.shape_cast %14 : vector<8x1xf32> to vector<1x8x1xf32>
    tpu.vector_store %arg6[%c0_27, %c0_28, %c0_29], %41 {strides = array<i32>} : memref<4x8x1xf32, #tpu.memory_space<vmem>>, vector<1x8x1xf32>,
    %c0_30 = arith.constant 0 : index
    %c0_31 = arith.constant 0 : index
    %c8 = arith.constant 8 : index
    %42 = vector.load %arg2[%c0_30, %c0_31, %c8] : memref<1x8x32xbf16, #tpu.memory_space<vmem>>, vector<1x8x8xbf16>
    %43 = vector.shape_cast %42 : vector<1x8x8xbf16> to vector<8x8xbf16>
    %c0_32 = arith.constant 0 : index
    %c0_33 = arith.constant 0 : index
    %c8_34 = arith.constant 8 : index
    %44 = vector.load %arg3[%c0_32, %c0_33, %c8_34] : memref<1x16x32xbf16, #tpu.memory_space<vmem>>, vector<1x16x8xbf16>
    %45 = vector.shape_cast %44 : vector<1x16x8xbf16> to vector<16x8xbf16>
    %c0_35 = arith.constant 0 : index
    %c0_36 = arith.constant 0 : index
    %c8_37 = arith.constant 8 : index
    %46 = vector.load %arg4[%c0_35, %c0_36, %c8_37] : memref<1x16x32xbf16, #tpu.memory_space<vmem>>, vector<1x16x8xbf16>
    %47 = vector.shape_cast %46 : vector<1x16x8xbf16> to vector<16x8xbf16>
    %cst_38 = arith.constant dense<0.000000e+00> : vector<8x16xf32>
    %48 = tpu.matmul %43, %45, %cst_38 {dimension_numbers = #tpu.dot_dimension_numbers<[1], [1], [0], [0], [0, 0, 1, 0], [], []>} : vector<8x8xbf16>, vector<16x8xbf16>, vector<8x16xf32> -> vector<8x16xf32>
    %c1 = arith.constant 1 : index
    %c0_39 = arith.constant 0 : index
    %c0_40 = arith.constant 0 : index
    %49 = vector.load %arg6[%c1, %c0_39, %c0_40] : memref<4x8x1xf32, #tpu.memory_space<vmem>>, vector<1x8x1xf32>
    %50 = vector.shape_cast %49 : vector<1x8x1xf32> to vector<8x1xf32>
    %cst_41 = arith.constant dense<0xFF800000> : vector<8xf32>
    %51 = vector.multi_reduction <maximumf>, %48, %cst_41 [1] : vector<8x16xf32> to vector<8xf32>
    %52 = vector.shape_cast %51 : vector<8xf32> to vector<8x1xf32>
    %53 = arith.maximumf %50, %52 : vector<8x1xf32>
    %54 = arith.subf %50, %53 : vector<8x1xf32>
    %55 = math.exp %54 : vector<8x1xf32>
    %56 = vector.broadcast %53 : vector<8x1xf32> to vector<8x16xf32>
    %57 = arith.subf %48, %56 : vector<8x16xf32>
    %58 = math.exp %57 : vector<8x16xf32>
    %c1_42 = arith.constant 1 : index
    %c0_43 = arith.constant 0 : index
    %c0_44 = arith.constant 0 : index
    %59 = vector.load %arg7[%c1_42, %c0_43, %c0_44] : memref<4x8x1xf32, #tpu.memory_space<vmem>>, vector<1x8x1xf32>
    %60 = vector.shape_cast %59 : vector<1x8x1xf32> to vector<8x1xf32>
    %61 = arith.mulf %55, %60 : vector<8x1xf32>
    %cst_45 = arith.constant dense<0.000000e+00> : vector<8xf32>
    %62 = vector.multi_reduction <add>, %58, %cst_45 [1] : vector<8x16xf32> to vector<8xf32>
    %63 = vector.shape_cast %62 : vector<8xf32> to vector<8x1xf32>
    %64 = arith.addf %61, %63 : vector<8x1xf32>
    %c1_46 = arith.constant 1 : index
    %c0_47 = arith.constant 0 : index
    %c0_48 = arith.constant 0 : index
    %65 = vector.load %arg7[%c1_46, %c0_47, %c0_48] : memref<4x8x1xf32, #tpu.memory_space<vmem>>, vector<1x8x1xf32>
    %66 = vector.shape_cast %65 : vector<1x8x1xf32> to vector<8x1xf32>
    %67 = vector.shape_cast %64 : vector<8x1xf32> to vector<1x8x1xf32>
    tpu.vector_store %arg7[%c1_46, %c0_47, %c0_48], %67 {strides = array<i32>} : memref<4x8x1xf32, #tpu.memory_space<vmem>>, vector<1x8x1xf32>,
    %c1_49 = arith.constant 1 : index
    %c0_50 = arith.constant 0 : index
    %c0_51 = arith.constant 0 : index
    %68 = vector.load %arg8[%c1_49, %c0_50, %c0_51] : memref<4x8x8xf32, #tpu.memory_space<vmem>>, vector<1x8x8xf32>
    %69 = vector.shape_cast %68 : vector<1x8x8xf32> to vector<8x8xf32>
    %70 = vector.broadcast %55 : vector<8x1xf32> to vector<8x8xf32>
    %71 = arith.mulf %70, %69 : vector<8x8xf32>
    %72 = arith.truncf %58 : vector<8x16xf32> to vector<8x16xbf16>
    %cst_52 = arith.constant dense<0.000000e+00> : vector<8x8xf32>
    %73 = tpu.matmul %72, %47, %cst_52 {dimension_numbers = #tpu.dot_dimension_numbers<[1], [0], [0], [1], [0, 0, 1, 1], [], []>} : vector<8x16xbf16>, vector<16x8xbf16>, vector<8x8xf32> -> vector<8x8xf32>
    %74 = arith.addf %71, %73 : vector<8x8xf32>
    %c1_53 = arith.constant 1 : index
    %c0_54 = arith.constant 0 : index
    %c0_55 = arith.constant 0 : index
    %75 = vector.load %arg8[%c1_53, %c0_54, %c0_55] : memref<4x8x8xf32, #tpu.memory_space<vmem>>, vector<1x8x8xf32>
    %76 = vector.shape_cast %75 : vector<1x8x8xf32> to vector<8x8xf32>
    %77 = vector.shape_cast %74 : vector<8x8xf32> to vector<1x8x8xf32>
    tpu.vector_store %arg8[%c1_53, %c0_54, %c0_55], %77 {strides = array<i32>} : memref<4x8x8xf32, #tpu.memory_space<vmem>>, vector<1x8x8xf32>,
    %c1_56 = arith.constant 1 : index
    %c0_57 = arith.constant 0 : index
    %c0_58 = arith.constant 0 : index
    %78 = vector.load %arg6[%c1_56, %c0_57, %c0_58] : memref<4x8x1xf32, #tpu.memory_space<vmem>>, vector<1x8x1xf32>
    %79 = vector.shape_cast %78 : vector<1x8x1xf32> to vector<8x1xf32>
    %80 = vector.shape_cast %53 : vector<8x1xf32> to vector<1x8x1xf32>
    tpu.vector_store %arg6[%c1_56, %c0_57, %c0_58], %80 {strides = array<i32>} : memref<4x8x1xf32, #tpu.memory_space<vmem>>, vector<1x8x1xf32>,
    %c0_59 = arith.constant 0 : index
    %c0_60 = arith.constant 0 : index
    %c16 = arith.constant 16 : index
    %81 = vector.load %arg2[%c0_59, %c0_60, %c16] : memref<1x8x32xbf16, #tpu.memory_space<vmem>>, vector<1x8x8xbf16>
    %82 = vector.shape_cast %81 : vector<1x8x8xbf16> to vector<8x8xbf16>
    %c0_61 = arith.constant 0 : index
    %c0_62 = arith.constant 0 : index
    %c16_63 = arith.constant 16 : index
    %83 = vector.load %arg3[%c0_61, %c0_62, %c16_63] : memref<1x16x32xbf16, #tpu.memory_space<vmem>>, vector<1x16x8xbf16>
    %84 = vector.shape_cast %83 : vector<1x16x8xbf16> to vector<16x8xbf16>
    %c0_64 = arith.constant 0 : index
    %c0_65 = arith.constant 0 : index
    %c16_66 = arith.constant 16 : index
    %85 = vector.load %arg4[%c0_64, %c0_65, %c16_66] : memref<1x16x32xbf16, #tpu.memory_space<vmem>>, vector<1x16x8xbf16>
    %86 = vector.shape_cast %85 : vector<1x16x8xbf16> to vector<16x8xbf16>
    %cst_67 = arith.constant dense<0.000000e+00> : vector<8x16xf32>
    %87 = tpu.matmul %82, %84, %cst_67 {dimension_numbers = #tpu.dot_dimension_numbers<[1], [1], [0], [0], [0, 0, 1, 0], [], []>} : vector<8x8xbf16>, vector<16x8xbf16>, vector<8x16xf32> -> vector<8x16xf32>
    %c2 = arith.constant 2 : index
    %c0_68 = arith.constant 0 : index
    %c0_69 = arith.constant 0 : index
    %88 = vector.load %arg6[%c2, %c0_68, %c0_69] : memref<4x8x1xf32, #tpu.memory_space<vmem>>, vector<1x8x1xf32>
    %89 = vector.shape_cast %88 : vector<1x8x1xf32> to vector<8x1xf32>
    %cst_70 = arith.constant dense<0xFF800000> : vector<8xf32>
    %90 = vector.multi_reduction <maximumf>, %87, %cst_70 [1] : vector<8x16xf32> to vector<8xf32>
    %91 = vector.shape_cast %90 : vector<8xf32> to vector<8x1xf32>
    %92 = arith.maximumf %89, %91 : vector<8x1xf32>
    %93 = arith.subf %89, %92 : vector<8x1xf32>
    %94 = math.exp %93 : vector<8x1xf32>
    %95 = vector.broadcast %92 : vector<8x1xf32> to vector<8x16xf32>
    %96 = arith.subf %87, %95 : vector<8x16xf32>
    %97 = math.exp %96 : vector<8x16xf32>
    %c2_71 = arith.constant 2 : index
    %c0_72 = arith.constant 0 : index
    %c0_73 = arith.constant 0 : index
    %98 = vector.load %arg7[%c2_71, %c0_72, %c0_73] : memref<4x8x1xf32, #tpu.memory_space<vmem>>, vector<1x8x1xf32>
    %99 = vector.shape_cast %98 : vector<1x8x1xf32> to vector<8x1xf32>
    %100 = arith.mulf %94, %99 : vector<8x1xf32>
    %cst_74 = arith.constant dense<0.000000e+00> : vector<8xf32>
    %101 = vector.multi_reduction <add>, %97, %cst_74 [1] : vector<8x16xf32> to vector<8xf32>
    %102 = vector.shape_cast %101 : vector<8xf32> to vector<8x1xf32>
    %103 = arith.addf %100, %102 : vector<8x1xf32>
    %c2_75 = arith.constant 2 : index
    %c0_76 = arith.constant 0 : index
    %c0_77 = arith.constant 0 : index
    %104 = vector.load %arg7[%c2_75, %c0_76, %c0_77] : memref<4x8x1xf32, #tpu.memory_space<vmem>>, vector<1x8x1xf32>
    %105 = vector.shape_cast %104 : vector<1x8x1xf32> to vector<8x1xf32>
    %106 = vector.shape_cast %103 : vector<8x1xf32> to vector<1x8x1xf32>
    tpu.vector_store %arg7[%c2_75, %c0_76, %c0_77], %106 {strides = array<i32>} : memref<4x8x1xf32, #tpu.memory_space<vmem>>, vector<1x8x1xf32>,
    %c2_78 = arith.constant 2 : index
    %c0_79 = arith.constant 0 : index
    %c0_80 = arith.constant 0 : index
    %107 = vector.load %arg8[%c2_78, %c0_79, %c0_80] : memref<4x8x8xf32, #tpu.memory_space<vmem>>, vector<1x8x8xf32>
    %108 = vector.shape_cast %107 : vector<1x8x8xf32> to vector<8x8xf32>
    %109 = vector.broadcast %94 : vector<8x1xf32> to vector<8x8xf32>
    %110 = arith.mulf %109, %108 : vector<8x8xf32>
    %111 = arith.truncf %97 : vector<8x16xf32> to vector<8x16xbf16>
    %cst_81 = arith.constant dense<0.000000e+00> : vector<8x8xf32>
    %112 = tpu.matmul %111, %86, %cst_81 {dimension_numbers = #tpu.dot_dimension_numbers<[1], [0], [0], [1], [0, 0, 1, 1], [], []>} : vector<8x16xbf16>, vector<16x8xbf16>, vector<8x8xf32> -> vector<8x8xf32>
    %113 = arith.addf %110, %112 : vector<8x8xf32>
    %c2_82 = arith.constant 2 : index
    %c0_83 = arith.constant 0 : index
    %c0_84 = arith.constant 0 : index
    %114 = vector.load %arg8[%c2_82, %c0_83, %c0_84] : memref<4x8x8xf32, #tpu.memory_space<vmem>>, vector<1x8x8xf32>
    %115 = vector.shape_cast %114 : vector<1x8x8xf32> to vector<8x8xf32>
    %116 = vector.shape_cast %113 : vector<8x8xf32> to vector<1x8x8xf32>
    tpu.vector_store %arg8[%c2_82, %c0_83, %c0_84], %116 {strides = array<i32>} : memref<4x8x8xf32, #tpu.memory_space<vmem>>, vector<1x8x8xf32>,
    %c2_85 = arith.constant 2 : index
    %c0_86 = arith.constant 0 : index
    %c0_87 = arith.constant 0 : index
    %117 = vector.load %arg6[%c2_85, %c0_86, %c0_87] : memref<4x8x1xf32, #tpu.memory_space<vmem>>, vector<1x8x1xf32>
    %118 = vector.shape_cast %117 : vector<1x8x1xf32> to vector<8x1xf32>
    %119 = vector.shape_cast %92 : vector<8x1xf32> to vector<1x8x1xf32>
    tpu.vector_store %arg6[%c2_85, %c0_86, %c0_87], %119 {strides = array<i32>} : memref<4x8x1xf32, #tpu.memory_space<vmem>>, vector<1x8x1xf32>,
    %c0_88 = arith.constant 0 : index
    %c0_89 = arith.constant 0 : index
    %c24 = arith.constant 24 : index
    %120 = vector.load %arg2[%c0_88, %c0_89, %c24] : memref<1x8x32xbf16, #tpu.memory_space<vmem>>, vector<1x8x8xbf16>
    %121 = vector.shape_cast %120 : vector<1x8x8xbf16> to vector<8x8xbf16>
    %c0_90 = arith.constant 0 : index
    %c0_91 = arith.constant 0 : index
    %c24_92 = arith.constant 24 : index
    %122 = vector.load %arg3[%c0_90, %c0_91, %c24_92] : memref<1x16x32xbf16, #tpu.memory_space<vmem>>, vector<1x16x8xbf16>
    %123 = vector.shape_cast %122 : vector<1x16x8xbf16> to vector<16x8xbf16>
    %c0_93 = arith.constant 0 : index
    %c0_94 = arith.constant 0 : index
    %c24_95 = arith.constant 24 : index
    %124 = vector.load %arg4[%c0_93, %c0_94, %c24_95] : memref<1x16x32xbf16, #tpu.memory_space<vmem>>, vector<1x16x8xbf16>
    %125 = vector.shape_cast %124 : vector<1x16x8xbf16> to vector<16x8xbf16>
    %cst_96 = arith.constant dense<0.000000e+00> : vector<8x16xf32>
    %126 = tpu.matmul %121, %123, %cst_96 {dimension_numbers = #tpu.dot_dimension_numbers<[1], [1], [0], [0], [0, 0, 1, 0], [], []>} : vector<8x8xbf16>, vector<16x8xbf16>, vector<8x16xf32> -> vector<8x16xf32>
    %c3 = arith.constant 3 : index
    %c0_97 = arith.constant 0 : index
    %c0_98 = arith.constant 0 : index
    %127 = vector.load %arg6[%c3, %c0_97, %c0_98] : memref<4x8x1xf32, #tpu.memory_space<vmem>>, vector<1x8x1xf32>
    %128 = vector.shape_cast %127 : vector<1x8x1xf32> to vector<8x1xf32>
    %cst_99 = arith.constant dense<0xFF800000> : vector<8xf32>
    %129 = vector.multi_reduction <maximumf>, %126, %cst_99 [1] : vector<8x16xf32> to vector<8xf32>
    %130 = vector.shape_cast %129 : vector<8xf32> to vector<8x1xf32>
    %131 = arith.maximumf %128, %130 : vector<8x1xf32>
    %132 = arith.subf %128, %131 : vector<8x1xf32>
    %133 = math.exp %132 : vector<8x1xf32>
    %134 = vector.broadcast %131 : vector<8x1xf32> to vector<8x16xf32>
    %135 = arith.subf %126, %134 : vector<8x16xf32>
    %136 = math.exp %135 : vector<8x16xf32>
    %c3_100 = arith.constant 3 : index
    %c0_101 = arith.constant 0 : index
    %c0_102 = arith.constant 0 : index
    %137 = vector.load %arg7[%c3_100, %c0_101, %c0_102] : memref<4x8x1xf32, #tpu.memory_space<vmem>>, vector<1x8x1xf32>
    %138 = vector.shape_cast %137 : vector<1x8x1xf32> to vector<8x1xf32>
    %139 = arith.mulf %133, %138 : vector<8x1xf32>
    %cst_103 = arith.constant dense<0.000000e+00> : vector<8xf32>
    %140 = vector.multi_reduction <add>, %136, %cst_103 [1] : vector<8x16xf32> to vector<8xf32>
    %141 = vector.shape_cast %140 : vector<8xf32> to vector<8x1xf32>
    %142 = arith.addf %139, %141 : vector<8x1xf32>
    %c3_104 = arith.constant 3 : index
    %c0_105 = arith.constant 0 : index
    %c0_106 = arith.constant 0 : index
    %143 = vector.load %arg7[%c3_104, %c0_105, %c0_106] : memref<4x8x1xf32, #tpu.memory_space<vmem>>, vector<1x8x1xf32>
    %144 = vector.shape_cast %143 : vector<1x8x1xf32> to vector<8x1xf32>
    %145 = vector.shape_cast %142 : vector<8x1xf32> to vector<1x8x1xf32>
    tpu.vector_store %arg7[%c3_104, %c0_105, %c0_106], %145 {strides = array<i32>} : memref<4x8x1xf32, #tpu.memory_space<vmem>>, vector<1x8x1xf32>,
    %c3_107 = arith.constant 3 : index
    %c0_108 = arith.constant 0 : index
    %c0_109 = arith.constant 0 : index
    %146 = vector.load %arg8[%c3_107, %c0_108, %c0_109] : memref<4x8x8xf32, #tpu.memory_space<vmem>>, vector<1x8x8xf32>
    %147 = vector.shape_cast %146 : vector<1x8x8xf32> to vector<8x8xf32>
    %148 = vector.broadcast %133 : vector<8x1xf32> to vector<8x8xf32>
    %149 = arith.mulf %148, %147 : vector<8x8xf32>
    %150 = arith.truncf %136 : vector<8x16xf32> to vector<8x16xbf16>
    %cst_110 = arith.constant dense<0.000000e+00> : vector<8x8xf32>
    %151 = tpu.matmul %150, %125, %cst_110 {dimension_numbers = #tpu.dot_dimension_numbers<[1], [0], [0], [1], [0, 0, 1, 1], [], []>} : vector<8x16xbf16>, vector<16x8xbf16>, vector<8x8xf32> -> vector<8x8xf32>
    %152 = arith.addf %149, %151 : vector<8x8xf32>
    %c3_111 = arith.constant 3 : index
    %c0_112 = arith.constant 0 : index
    %c0_113 = arith.constant 0 : index
    %153 = vector.load %arg8[%c3_111, %c0_112, %c0_113] : memref<4x8x8xf32, #tpu.memory_space<vmem>>, vector<1x8x8xf32>
    %154 = vector.shape_cast %153 : vector<1x8x8xf32> to vector<8x8xf32>
    %155 = vector.shape_cast %152 : vector<8x8xf32> to vector<1x8x8xf32>
    tpu.vector_store %arg8[%c3_111, %c0_112, %c0_113], %155 {strides = array<i32>} : memref<4x8x8xf32, #tpu.memory_space<vmem>>, vector<1x8x8xf32>,
    %c3_114 = arith.constant 3 : index
    %c0_115 = arith.constant 0 : index
    %c0_116 = arith.constant 0 : index
    %156 = vector.load %arg6[%c3_114, %c0_115, %c0_116] : memref<4x8x1xf32, #tpu.memory_space<vmem>>, vector<1x8x1xf32>
    %157 = vector.shape_cast %156 : vector<1x8x1xf32> to vector<8x1xf32>
    %158 = vector.shape_cast %131 : vector<8x1xf32> to vector<1x8x1xf32>
    tpu.vector_store %arg6[%c3_114, %c0_115, %c0_116], %158 {strides = array<i32>} : memref<4x8x1xf32, #tpu.memory_space<vmem>>, vector<1x8x1xf32>,
    %c0_i32_117 = arith.constant 0 : i32
    %159 = arith.cmpi eq, %arg1, %c0_i32_117 : i32
    %160 = arith.extui %159 : i1 to i32
    %c0_i32_118 = arith.constant 0 : i32
    %161 = arith.cmpi ne, %160, %c0_i32_118 : i32
    scf.if %161 {
      %c0_119 = arith.constant 0 : index
      %c0_120 = arith.constant 0 : index
      %c0_121 = arith.constant 0 : index
      %162 = vector.load %arg7[%c0_119, %c0_120, %c0_121] : memref<4x8x1xf32, #tpu.memory_space<vmem>>, vector<1x8x1xf32>
      %163 = vector.shape_cast %162 : vector<1x8x1xf32> to vector<8x1xf32>
      %164 = tpu.reciprocal %163 {approx = true} : vector<8x1xf32> -> vector<8x1xf32>
      %c0_122 = arith.constant 0 : index
      %c0_123 = arith.constant 0 : index
      %c0_124 = arith.constant 0 : index
      %165 = vector.load %arg8[%c0_122, %c0_123, %c0_124] : memref<4x8x8xf32, #tpu.memory_space<vmem>>, vector<1x8x8xf32>
      %166 = vector.shape_cast %165 : vector<1x8x8xf32> to vector<8x8xf32>
      %167 = vector.broadcast %164 : vector<8x1xf32> to vector<8x8xf32>
      %168 = arith.mulf %166, %167 : vector<8x8xf32>
      %c1_125 = arith.constant 1 : index
      %c0_126 = arith.constant 0 : index
      %c0_127 = arith.constant 0 : index
      %169 = vector.load %arg7[%c1_125, %c0_126, %c0_127] : memref<4x8x1xf32, #tpu.memory_space<vmem>>, vector<1x8x1xf32>
      %170 = vector.shape_cast %169 : vector<1x8x1xf32> to vector<8x1xf32>
      %171 = tpu.reciprocal %170 {approx = true} : vector<8x1xf32> -> vector<8x1xf32>
      %c1_128 = arith.constant 1 : index
      %c0_129 = arith.constant 0 : index
      %c0_130 = arith.constant 0 : index
      %172 = vector.load %arg8[%c1_128, %c0_129, %c0_130] : memref<4x8x8xf32, #tpu.memory_space<vmem>>, vector<1x8x8xf32>
      %173 = vector.shape_cast %172 : vector<1x8x8xf32> to vector<8x8xf32>
      %174 = vector.broadcast %171 : vector<8x1xf32> to vector<8x8xf32>
      %175 = arith.mulf %173, %174 : vector<8x8xf32>
      %c2_131 = arith.constant 2 : index
      %c0_132 = arith.constant 0 : index
      %c0_133 = arith.constant 0 : index
      %176 = vector.load %arg7[%c2_131, %c0_132, %c0_133] : memref<4x8x1xf32, #tpu.memory_space<vmem>>, vector<1x8x1xf32>
      %177 = vector.shape_cast %176 : vector<1x8x1xf32> to vector<8x1xf32>
      %178 = tpu.reciprocal %177 {approx = true} : vector<8x1xf32> -> vector<8x1xf32>
      %c2_134 = arith.constant 2 : index
      %c0_135 = arith.constant 0 : index
      %c0_136 = arith.constant 0 : index
      %179 = vector.load %arg8[%c2_134, %c0_135, %c0_136] : memref<4x8x8xf32, #tpu.memory_space<vmem>>, vector<1x8x8xf32>
      %180 = vector.shape_cast %179 : vector<1x8x8xf32> to vector<8x8xf32>
      %181 = vector.broadcast %178 : vector<8x1xf32> to vector<8x8xf32>
      %182 = arith.mulf %180, %181 : vector<8x8xf32>
      %c3_137 = arith.constant 3 : index
      %c0_138 = arith.constant 0 : index
      %c0_139 = arith.constant 0 : index
      %183 = vector.load %arg7[%c3_137, %c0_138, %c0_139] : memref<4x8x1xf32, #tpu.memory_space<vmem>>, vector<1x8x1xf32>
      %184 = vector.shape_cast %183 : vector<1x8x1xf32> to vector<8x1xf32>
      %185 = tpu.reciprocal %184 {approx = true} : vector<8x1xf32> -> vector<8x1xf32>
      %c3_140 = arith.constant 3 : index
      %c0_141 = arith.constant 0 : index
      %c0_142 = arith.constant 0 : index
      %186 = vector.load %arg8[%c3_140, %c0_141, %c0_142] : memref<4x8x8xf32, #tpu.memory_space<vmem>>, vector<1x8x8xf32>
      %187 = vector.shape_cast %186 : vector<1x8x8xf32> to vector<8x8xf32>
      %188 = vector.broadcast %185 : vector<8x1xf32> to vector<8x8xf32>
      %189 = arith.mulf %187, %188 : vector<8x8xf32>
      %190 = tpu.concatenate %168, %175, %182, %189 in 1 : vector<8x8xf32>, vector<8x8xf32>, vector<8x8xf32>, vector<8x8xf32> -> vector<8x32xf32>
      %191 = arith.truncf %190 : vector<8x32xf32> to vector<8x32xbf16>
      %c0_143 = arith.constant 0 : index
      %c0_144 = arith.constant 0 : index
      %c0_145 = arith.constant 0 : index
      %192 = vector.load %arg5[%c0_143, %c0_144, %c0_145] : memref<1x8x32xbf16, #tpu.memory_space<vmem>>, vector<1x8x32xbf16>
      %193 = vector.shape_cast %192 : vector<1x8x32xbf16> to vector<8x32xbf16>
      %194 = vector.shape_cast %191 : vector<8x32xbf16> to vector<1x8x32xbf16>
      tpu.vector_store %arg5[%c0_143, %c0_144, %c0_145], %194 {strides = array<i32>} : memref<1x8x32xbf16, #tpu.memory_space<vmem>>, vector<1x8x32xbf16>,
    } else {
    }
    return
  }
  func.func @transform_0(%arg0: i32, %arg1: i32) -> (i32, i32, i32) {
    %c0_i32 = arith.constant 0 : i32
    %c0_i32_0 = arith.constant 0 : i32
    %c0_i32_1 = arith.constant 0 : i32
    return %arg0, %c0_i32, %c0_i32_0 : i32, i32, i32
  }
  func.func @transform_1(%arg0: i32, %arg1: i32) -> (i32, i32, i32) {
    %c0_i32 = arith.constant 0 : i32
    %0 = arith.addi %c0_i32, %arg0 : i32
    %c0_i32_0 = arith.constant 0 : i32
    %c0_i32_1 = arith.constant 0 : i32
    return %0, %arg1, %c0_i32_0 : i32, i32, i32
  }
  func.func @transform_2(%arg0: i32, %arg1: i32) -> (i32, i32, i32) {
    %c2_i32 = arith.constant 2 : i32
    %0 = arith.addi %c2_i32, %arg0 : i32
    %c0_i32 = arith.constant 0 : i32
    %c0_i32_0 = arith.constant 0 : i32
    return %0, %arg1, %c0_i32 : i32, i32, i32
  }
  func.func @transform_3(%arg0: i32, %arg1: i32) -> (i32, i32, i32) {
    %c0_i32 = arith.constant 0 : i32
    %c0_i32_0 = arith.constant 0 : i32
    %c0_i32_1 = arith.constant 0 : i32
    return %arg0, %c0_i32, %c0_i32_0 : i32, i32, i32
  }
}

module attributes {stable_mosaic.version = 11 : i64} {
  func.func @_matmul_add_ln_kernel(%arg0: i32, %arg1: i32, %arg2: memref<1x16x32xbf16, #tpu.memory_space<vmem>>, %arg3: memref<1x32x32xbf16, #tpu.memory_space<vmem>>, %arg4: memref<1x32xf32, #tpu.memory_space<vmem>>, %arg5: memref<16x32xbf16, #tpu.memory_space<vmem>>, %arg6: memref<1x32xf32, #tpu.memory_space<vmem>>, %arg7: memref<1x32xf32, #tpu.memory_space<vmem>>, %arg8: memref<16x32xbf16, #tpu.memory_space<vmem>>, %arg9: memref<16x32xf32, #tpu.memory_space<vmem>>) attributes {dimension_semantics = [#tpu.dimension_semantics<parallel>, #tpu.dimension_semantics<arbitrary>], iteration_bounds = array<i64: 1, 1>, scalar_prefetch = 0 : i64, scratch_operands = 1 : i64, tpu.core_type = #tpu.core_type<tc>, window_params = [{transform_indices = @transform_0, window_bounds = array<i64: 1, 16, 32>}, {transform_indices = @transform_1, window_bounds = array<i64: 1, 32, 32>}, {pipeline_mode = #tpu.pipeline_mode<synchronous>, transform_indices = @transform_2, window_bounds = array<i64: 1, 32>}, {transform_indices = @transform_3, window_bounds = array<i64: 16, 32>}, {pipeline_mode = #tpu.pipeline_mode<synchronous>, transform_indices = @transform_4, window_bounds = array<i64: 1, 32>}, {pipeline_mode = #tpu.pipeline_mode<synchronous>, transform_indices = @transform_5, window_bounds = array<i64: 1, 32>}, {transform_indices = @transform_6, window_bounds = array<i64: 16, 32>}]} {
    %c0_i32 = arith.constant 0 : i32
    %0 = arith.cmpi eq, %arg1, %c0_i32 : i32
    %1 = arith.extui %0 : i1 to i32
    %c0_i32_0 = arith.constant 0 : i32
    %2 = arith.cmpi ne, %1, %c0_i32_0 : i32
    scf.if %2 {
      %cst_12 = arith.constant 0.000000e+00 : f32
      %14 = vector.broadcast %cst_12 : f32 to vector<16x32xf32>
      %c0_13 = arith.constant 0 : index
      %c0_14 = arith.constant 0 : index
      %15 = vector.load %arg9[%c0_13, %c0_14] : memref<16x32xf32, #tpu.memory_space<vmem>>, vector<16x32xf32>
      tpu.vector_store %arg9[%c0_13, %c0_14], %14 {strides = array<i32>} : memref<16x32xf32, #tpu.memory_space<vmem>>, vector<16x32xf32>,
    } else {
    }
    %c0 = arith.constant 0 : index
    %c0_1 = arith.constant 0 : index
    %3 = vector.load %arg9[%c0, %c0_1] : memref<16x32xf32, #tpu.memory_space<vmem>>, vector<16x32xf32>
    %c0_2 = arith.constant 0 : index
    %c0_3 = arith.constant 0 : index
    %c0_4 = arith.constant 0 : index
    %4 = vector.load %arg2[%c0_2, %c0_3, %c0_4] : memref<1x16x32xbf16, #tpu.memory_space<vmem>>, vector<1x16x32xbf16>
    %5 = vector.shape_cast %4 : vector<1x16x32xbf16> to vector<16x32xbf16>
    %c0_5 = arith.constant 0 : index
    %c0_6 = arith.constant 0 : index
    %c0_7 = arith.constant 0 : index
    %6 = vector.load %arg3[%c0_5, %c0_6, %c0_7] : memref<1x32x32xbf16, #tpu.memory_space<vmem>>, vector<1x32x32xbf16>
    %7 = vector.shape_cast %6 : vector<1x32x32xbf16> to vector<32x32xbf16>
    %cst = arith.constant dense<0.000000e+00> : vector<16x32xf32>
    %8 = tpu.matmul %5, %7, %cst {dimension_numbers = #tpu.dot_dimension_numbers<[1], [0], [0], [1], [0, 0, 1, 1], [], []>} : vector<16x32xbf16>, vector<32x32xbf16>, vector<16x32xf32> -> vector<16x32xf32>
    %9 = arith.addf %3, %8 : vector<16x32xf32>
    %c0_8 = arith.constant 0 : index
    %c0_9 = arith.constant 0 : index
    %10 = vector.load %arg9[%c0_8, %c0_9] : memref<16x32xf32, #tpu.memory_space<vmem>>, vector<16x32xf32>
    tpu.vector_store %arg9[%c0_8, %c0_9], %9 {strides = array<i32>} : memref<16x32xf32, #tpu.memory_space<vmem>>, vector<16x32xf32>,
    %c0_i32_10 = arith.constant 0 : i32
    %11 = arith.cmpi eq, %arg1, %c0_i32_10 : i32
    %12 = arith.extui %11 : i1 to i32
    %c0_i32_11 = arith.constant 0 : i32
    %13 = arith.cmpi ne, %12, %c0_i32_11 : i32
    scf.if %13 {
      %c0_12 = arith.constant 0 : index
      %c0_13 = arith.constant 0 : index
      %14 = vector.load %arg9[%c0_12, %c0_13] : memref<16x32xf32, #tpu.memory_space<vmem>>, vector<16x32xf32>
      %c0_14 = arith.constant 0 : index
      %c0_15 = arith.constant 0 : index
      %15 = vector.load %arg4[%c0_14, %c0_15] : memref<1x32xf32, #tpu.memory_space<vmem>>, vector<1x32xf32>
      %16 = vector.broadcast %15 : vector<1x32xf32> to vector<16x32xf32>
      %17 = arith.addf %14, %16 : vector<16x32xf32>
      %c0_16 = arith.constant 0 : index
      %c0_17 = arith.constant 0 : index
      %18 = vector.load %arg5[%c0_16, %c0_17] : memref<16x32xbf16, #tpu.memory_space<vmem>>, vector<16x32xbf16>
      %19 = arith.extf %18 : vector<16x32xbf16> to vector<16x32xf32>
      %20 = arith.addf %17, %19 : vector<16x32xf32>
      %cst_18 = arith.constant dense<0.000000e+00> : vector<16xf32>
      %21 = vector.multi_reduction <add>, %20, %cst_18 [1] : vector<16x32xf32> to vector<16xf32>
      %22 = vector.shape_cast %21 : vector<16xf32> to vector<16x1xf32>
      %cst_19 = arith.constant 3.200000e+01 : f32
      %23 = vector.broadcast %cst_19 : f32 to vector<16x1xf32>
      %24 = arith.divf %22, %23 : vector<16x1xf32>
      %25 = vector.broadcast %24 : vector<16x1xf32> to vector<16x32xf32>
      %26 = arith.subf %20, %25 : vector<16x32xf32>
      %27 = arith.mulf %26, %26 : vector<16x32xf32>
      %cst_20 = arith.constant dense<0.000000e+00> : vector<16xf32>
      %28 = vector.multi_reduction <add>, %27, %cst_20 [1] : vector<16x32xf32> to vector<16xf32>
      %29 = vector.shape_cast %28 : vector<16xf32> to vector<16x1xf32>
      %cst_21 = arith.constant 3.200000e+01 : f32
      %30 = vector.broadcast %cst_21 : f32 to vector<16x1xf32>
      %31 = arith.divf %29, %30 : vector<16x1xf32>
      %32 = vector.broadcast %24 : vector<16x1xf32> to vector<16x32xf32>
      %33 = arith.subf %20, %32 : vector<16x32xf32>
      %cst_22 = arith.constant 9.99999974E-6 : f32
      %34 = vector.broadcast %cst_22 : f32 to vector<16x1xf32>
      %35 = arith.addf %31, %34 : vector<16x1xf32>
      %36 = math.rsqrt %35 : vector<16x1xf32>
      %37 = vector.broadcast %36 : vector<16x1xf32> to vector<16x32xf32>
      %38 = arith.mulf %33, %37 : vector<16x32xf32>
      %c0_23 = arith.constant 0 : index
      %c0_24 = arith.constant 0 : index
      %39 = vector.load %arg6[%c0_23, %c0_24] : memref<1x32xf32, #tpu.memory_space<vmem>>, vector<1x32xf32>
      %40 = vector.broadcast %39 : vector<1x32xf32> to vector<16x32xf32>
      %41 = arith.mulf %38, %40 : vector<16x32xf32>
      %c0_25 = arith.constant 0 : index
      %c0_26 = arith.constant 0 : index
      %42 = vector.load %arg7[%c0_25, %c0_26] : memref<1x32xf32, #tpu.memory_space<vmem>>, vector<1x32xf32>
      %43 = vector.broadcast %42 : vector<1x32xf32> to vector<16x32xf32>
      %44 = arith.addf %41, %43 : vector<16x32xf32>
      %45 = arith.truncf %44 : vector<16x32xf32> to vector<16x32xbf16>
      %c0_27 = arith.constant 0 : index
      %c0_28 = arith.constant 0 : index
      %46 = vector.load %arg8[%c0_27, %c0_28] : memref<16x32xbf16, #tpu.memory_space<vmem>>, vector<16x32xbf16>
      tpu.vector_store %arg8[%c0_27, %c0_28], %45 {strides = array<i32>} : memref<16x32xbf16, #tpu.memory_space<vmem>>, vector<16x32xbf16>,
    } else {
    }
    return
  }
  func.func @transform_0(%arg0: i32, %arg1: i32) -> (i32, i32, i32) {
    %c0_i32 = arith.constant 0 : i32
    %c0_i32_0 = arith.constant 0 : i32
    return %arg1, %arg0, %c0_i32 : i32, i32, i32
  }
  func.func @transform_1(%arg0: i32, %arg1: i32) -> (i32, i32, i32) {
    %c0_i32 = arith.constant 0 : i32
    %c0_i32_0 = arith.constant 0 : i32
    %c0_i32_1 = arith.constant 0 : i32
    return %arg1, %c0_i32, %c0_i32_0 : i32, i32, i32
  }
  func.func @transform_2(%arg0: i32, %arg1: i32) -> (i32, i32) {
    %c0_i32 = arith.constant 0 : i32
    %c0_i32_0 = arith.constant 0 : i32
    %c0_i32_1 = arith.constant 0 : i32
    return %c0_i32, %c0_i32_0 : i32, i32
  }
  func.func @transform_3(%arg0: i32, %arg1: i32) -> (i32, i32) {
    %c0_i32 = arith.constant 0 : i32
    %c0_i32_0 = arith.constant 0 : i32
    return %arg0, %c0_i32 : i32, i32
  }
  func.func @transform_4(%arg0: i32, %arg1: i32) -> (i32, i32) {
    %c0_i32 = arith.constant 0 : i32
    %c0_i32_0 = arith.constant 0 : i32
    %c0_i32_1 = arith.constant 0 : i32
    return %c0_i32, %c0_i32_0 : i32, i32
  }
  func.func @transform_5(%arg0: i32, %arg1: i32) -> (i32, i32) {
    %c0_i32 = arith.constant 0 : i32
    %c0_i32_0 = arith.constant 0 : i32
    %c0_i32_1 = arith.constant 0 : i32
    return %c0_i32, %c0_i32_0 : i32, i32
  }
  func.func @transform_6(%arg0: i32, %arg1: i32) -> (i32, i32) {
    %c0_i32 = arith.constant 0 : i32
    %c0_i32_0 = arith.constant 0 : i32
    return %arg0, %c0_i32 : i32, i32
  }
}

module attributes {stable_mosaic.version = 11 : i64} {
  func.func @_matmul_kernel(%arg0: i32, %arg1: i32, %arg2: i32, %arg3: memref<16x32xbf16, #tpu.memory_space<vmem>>, %arg4: memref<32x64xbf16, #tpu.memory_space<vmem>>, %arg5: memref<1x64xf32, #tpu.memory_space<vmem>>, %arg6: memref<16x64xbf16, #tpu.memory_space<vmem>>, %arg7: memref<16x64xf32, #tpu.memory_space<vmem>>) attributes {dimension_semantics = [#tpu.dimension_semantics<parallel>, #tpu.dimension_semantics<parallel>, #tpu.dimension_semantics<arbitrary>], iteration_bounds = array<i64: 1, 1, 1>, scalar_prefetch = 0 : i64, scratch_operands = 1 : i64, tpu.core_type = #tpu.core_type<tc>, window_params = [{transform_indices = @transform_0, window_bounds = array<i64: 16, 32>}, {transform_indices = @transform_1, window_bounds = array<i64: 32, 64>}, {transform_indices = @transform_2, window_bounds = array<i64: 1, 64>}, {transform_indices = @transform_3, window_bounds = array<i64: 16, 64>}]} {
    %c0_i32 = arith.constant 0 : i32
    %0 = arith.cmpi eq, %arg2, %c0_i32 : i32
    %1 = arith.extui %0 : i1 to i32
    %c0_i32_0 = arith.constant 0 : i32
    %2 = arith.cmpi ne, %1, %c0_i32_0 : i32
    scf.if %2 {
      %cst_10 = arith.constant 0.000000e+00 : f32
      %12 = vector.broadcast %cst_10 : f32 to vector<16x64xf32>
      %c0_11 = arith.constant 0 : index
      %c0_12 = arith.constant 0 : index
      %13 = vector.load %arg7[%c0_11, %c0_12] : memref<16x64xf32, #tpu.memory_space<vmem>>, vector<16x64xf32>
      tpu.vector_store %arg7[%c0_11, %c0_12], %12 {strides = array<i32>} : memref<16x64xf32, #tpu.memory_space<vmem>>, vector<16x64xf32>,
    } else {
    }
    %c0 = arith.constant 0 : index
    %c0_1 = arith.constant 0 : index
    %3 = vector.load %arg7[%c0, %c0_1] : memref<16x64xf32, #tpu.memory_space<vmem>>, vector<16x64xf32>
    %c0_2 = arith.constant 0 : index
    %c0_3 = arith.constant 0 : index
    %4 = vector.load %arg3[%c0_2, %c0_3] : memref<16x32xbf16, #tpu.memory_space<vmem>>, vector<16x32xbf16>
    %c0_4 = arith.constant 0 : index
    %c0_5 = arith.constant 0 : index
    %5 = vector.load %arg4[%c0_4, %c0_5] : memref<32x64xbf16, #tpu.memory_space<vmem>>, vector<32x64xbf16>
    %cst = arith.constant dense<0.000000e+00> : vector<16x64xf32>
    %6 = tpu.matmul %4, %5, %cst {dimension_numbers = #tpu.dot_dimension_numbers<[1], [0], [0], [1], [0, 0, 1, 1], [], []>} : vector<16x32xbf16>, vector<32x64xbf16>, vector<16x64xf32> -> vector<16x64xf32>
    %7 = arith.addf %3, %6 : vector<16x64xf32>
    %c0_6 = arith.constant 0 : index
    %c0_7 = arith.constant 0 : index
    %8 = vector.load %arg7[%c0_6, %c0_7] : memref<16x64xf32, #tpu.memory_space<vmem>>, vector<16x64xf32>
    tpu.vector_store %arg7[%c0_6, %c0_7], %7 {strides = array<i32>} : memref<16x64xf32, #tpu.memory_space<vmem>>, vector<16x64xf32>,
    %c0_i32_8 = arith.constant 0 : i32
    %9 = arith.cmpi eq, %arg2, %c0_i32_8 : i32
    %10 = arith.extui %9 : i1 to i32
    %c0_i32_9 = arith.constant 0 : i32
    %11 = arith.cmpi ne, %10, %c0_i32_9 : i32
    scf.if %11 {
      %c0_10 = arith.constant 0 : index
      %c0_11 = arith.constant 0 : index
      %12 = vector.load %arg7[%c0_10, %c0_11] : memref<16x64xf32, #tpu.memory_space<vmem>>, vector<16x64xf32>
      %c0_12 = arith.constant 0 : index
      %c0_13 = arith.constant 0 : index
      %13 = vector.load %arg5[%c0_12, %c0_13] : memref<1x64xf32, #tpu.memory_space<vmem>>, vector<1x64xf32>
      %14 = vector.broadcast %13 : vector<1x64xf32> to vector<16x64xf32>
      %15 = arith.addf %12, %14 : vector<16x64xf32>
      %cst_14 = arith.constant 0.000000e+00 : f32
      %16 = vector.broadcast %cst_14 : f32 to vector<16x64xf32>
      %17 = arith.maximumf %15, %16 : vector<16x64xf32>
      %18 = arith.truncf %17 : vector<16x64xf32> to vector<16x64xbf16>
      %c0_15 = arith.constant 0 : index
      %c0_16 = arith.constant 0 : index
      %19 = vector.load %arg6[%c0_15, %c0_16] : memref<16x64xbf16, #tpu.memory_space<vmem>>, vector<16x64xbf16>
      tpu.vector_store %arg6[%c0_15, %c0_16], %18 {strides = array<i32>} : memref<16x64xbf16, #tpu.memory_space<vmem>>, vector<16x64xbf16>,
    } else {
    }
    return
  }
  func.func @transform_0(%arg0: i32, %arg1: i32, %arg2: i32) -> (i32, i32) {
    %c0_i32 = arith.constant 0 : i32
    return %arg0, %arg2 : i32, i32
  }
  func.func @transform_1(%arg0: i32, %arg1: i32, %arg2: i32) -> (i32, i32) {
    %c0_i32 = arith.constant 0 : i32
    return %arg2, %arg1 : i32, i32
  }
  func.func @transform_2(%arg0: i32, %arg1: i32, %arg2: i32) -> (i32, i32) {
    %c0_i32 = arith.constant 0 : i32
    %c0_i32_0 = arith.constant 0 : i32
    return %c0_i32, %arg1 : i32, i32
  }
  func.func @transform_3(%arg0: i32, %arg1: i32, %arg2: i32) -> (i32, i32) {
    %c0_i32 = arith.constant 0 : i32
    return %arg0, %arg1 : i32, i32
  }
}

module attributes {stable_mosaic.version = 11 : i64} {
  func.func @_matmul_add_ln_kernel(%arg0: i32, %arg1: i32, %arg2: memref<16x64xbf16, #tpu.memory_space<vmem>>, %arg3: memref<64x32xbf16, #tpu.memory_space<vmem>>, %arg4: memref<1x32xf32, #tpu.memory_space<vmem>>, %arg5: memref<16x32xbf16, #tpu.memory_space<vmem>>, %arg6: memref<1x32xf32, #tpu.memory_space<vmem>>, %arg7: memref<1x32xf32, #tpu.memory_space<vmem>>, %arg8: memref<16x32xbf16, #tpu.memory_space<vmem>>, %arg9: memref<16x32xf32, #tpu.memory_space<vmem>>) attributes {dimension_semantics = [#tpu.dimension_semantics<parallel>, #tpu.dimension_semantics<arbitrary>], iteration_bounds = array<i64: 1, 1>, scalar_prefetch = 0 : i64, scratch_operands = 1 : i64, tpu.core_type = #tpu.core_type<tc>, window_params = [{transform_indices = @transform_0, window_bounds = array<i64: 16, 64>}, {transform_indices = @transform_1, window_bounds = array<i64: 64, 32>}, {pipeline_mode = #tpu.pipeline_mode<synchronous>, transform_indices = @transform_2, window_bounds = array<i64: 1, 32>}, {transform_indices = @transform_3, window_bounds = array<i64: 16, 32>}, {pipeline_mode = #tpu.pipeline_mode<synchronous>, transform_indices = @transform_4, window_bounds = array<i64: 1, 32>}, {pipeline_mode = #tpu.pipeline_mode<synchronous>, transform_indices = @transform_5, window_bounds = array<i64: 1, 32>}, {transform_indices = @transform_6, window_bounds = array<i64: 16, 32>}]} {
    %c0_i32 = arith.constant 0 : i32
    %0 = arith.cmpi eq, %arg1, %c0_i32 : i32
    %1 = arith.extui %0 : i1 to i32
    %c0_i32_0 = arith.constant 0 : i32
    %2 = arith.cmpi ne, %1, %c0_i32_0 : i32
    scf.if %2 {
      %cst_10 = arith.constant 0.000000e+00 : f32
      %12 = vector.broadcast %cst_10 : f32 to vector<16x32xf32>
      %c0_11 = arith.constant 0 : index
      %c0_12 = arith.constant 0 : index
      %13 = vector.load %arg9[%c0_11, %c0_12] : memref<16x32xf32, #tpu.memory_space<vmem>>, vector<16x32xf32>
      tpu.vector_store %arg9[%c0_11, %c0_12], %12 {strides = array<i32>} : memref<16x32xf32, #tpu.memory_space<vmem>>, vector<16x32xf32>,
    } else {
    }
    %c0 = arith.constant 0 : index
    %c0_1 = arith.constant 0 : index
    %3 = vector.load %arg9[%c0, %c0_1] : memref<16x32xf32, #tpu.memory_space<vmem>>, vector<16x32xf32>
    %c0_2 = arith.constant 0 : index
    %c0_3 = arith.constant 0 : index
    %4 = vector.load %arg2[%c0_2, %c0_3] : memref<16x64xbf16, #tpu.memory_space<vmem>>, vector<16x64xbf16>
    %c0_4 = arith.constant 0 : index
    %c0_5 = arith.constant 0 : index
    %5 = vector.load %arg3[%c0_4, %c0_5] : memref<64x32xbf16, #tpu.memory_space<vmem>>, vector<64x32xbf16>
    %cst = arith.constant dense<0.000000e+00> : vector<16x32xf32>
    %6 = tpu.matmul %4, %5, %cst {dimension_numbers = #tpu.dot_dimension_numbers<[1], [0], [0], [1], [0, 0, 1, 1], [], []>} : vector<16x64xbf16>, vector<64x32xbf16>, vector<16x32xf32> -> vector<16x32xf32>
    %7 = arith.addf %3, %6 : vector<16x32xf32>
    %c0_6 = arith.constant 0 : index
    %c0_7 = arith.constant 0 : index
    %8 = vector.load %arg9[%c0_6, %c0_7] : memref<16x32xf32, #tpu.memory_space<vmem>>, vector<16x32xf32>
    tpu.vector_store %arg9[%c0_6, %c0_7], %7 {strides = array<i32>} : memref<16x32xf32, #tpu.memory_space<vmem>>, vector<16x32xf32>,
    %c0_i32_8 = arith.constant 0 : i32
    %9 = arith.cmpi eq, %arg1, %c0_i32_8 : i32
    %10 = arith.extui %9 : i1 to i32
    %c0_i32_9 = arith.constant 0 : i32
    %11 = arith.cmpi ne, %10, %c0_i32_9 : i32
    scf.if %11 {
      %c0_10 = arith.constant 0 : index
      %c0_11 = arith.constant 0 : index
      %12 = vector.load %arg9[%c0_10, %c0_11] : memref<16x32xf32, #tpu.memory_space<vmem>>, vector<16x32xf32>
      %c0_12 = arith.constant 0 : index
      %c0_13 = arith.constant 0 : index
      %13 = vector.load %arg4[%c0_12, %c0_13] : memref<1x32xf32, #tpu.memory_space<vmem>>, vector<1x32xf32>
      %14 = vector.broadcast %13 : vector<1x32xf32> to vector<16x32xf32>
      %15 = arith.addf %12, %14 : vector<16x32xf32>
      %c0_14 = arith.constant 0 : index
      %c0_15 = arith.constant 0 : index
      %16 = vector.load %arg5[%c0_14, %c0_15] : memref<16x32xbf16, #tpu.memory_space<vmem>>, vector<16x32xbf16>
      %17 = arith.extf %16 : vector<16x32xbf16> to vector<16x32xf32>
      %18 = arith.addf %15, %17 : vector<16x32xf32>
      %cst_16 = arith.constant dense<0.000000e+00> : vector<16xf32>
      %19 = vector.multi_reduction <add>, %18, %cst_16 [1] : vector<16x32xf32> to vector<16xf32>
      %20 = vector.shape_cast %19 : vector<16xf32> to vector<16x1xf32>
      %cst_17 = arith.constant 3.200000e+01 : f32
      %21 = vector.broadcast %cst_17 : f32 to vector<16x1xf32>
      %22 = arith.divf %20, %21 : vector<16x1xf32>
      %23 = vector.broadcast %22 : vector<16x1xf32> to vector<16x32xf32>
      %24 = arith.subf %18, %23 : vector<16x32xf32>
      %25 = arith.mulf %24, %24 : vector<16x32xf32>
      %cst_18 = arith.constant dense<0.000000e+00> : vector<16xf32>
      %26 = vector.multi_reduction <add>, %25, %cst_18 [1] : vector<16x32xf32> to vector<16xf32>
      %27 = vector.shape_cast %26 : vector<16xf32> to vector<16x1xf32>
      %cst_19 = arith.constant 3.200000e+01 : f32
      %28 = vector.broadcast %cst_19 : f32 to vector<16x1xf32>
      %29 = arith.divf %27, %28 : vector<16x1xf32>
      %30 = vector.broadcast %22 : vector<16x1xf32> to vector<16x32xf32>
      %31 = arith.subf %18, %30 : vector<16x32xf32>
      %cst_20 = arith.constant 9.99999974E-6 : f32
      %32 = vector.broadcast %cst_20 : f32 to vector<16x1xf32>
      %33 = arith.addf %29, %32 : vector<16x1xf32>
      %34 = math.rsqrt %33 : vector<16x1xf32>
      %35 = vector.broadcast %34 : vector<16x1xf32> to vector<16x32xf32>
      %36 = arith.mulf %31, %35 : vector<16x32xf32>
      %c0_21 = arith.constant 0 : index
      %c0_22 = arith.constant 0 : index
      %37 = vector.load %arg6[%c0_21, %c0_22] : memref<1x32xf32, #tpu.memory_space<vmem>>, vector<1x32xf32>
      %38 = vector.broadcast %37 : vector<1x32xf32> to vector<16x32xf32>
      %39 = arith.mulf %36, %38 : vector<16x32xf32>
      %c0_23 = arith.constant 0 : index
      %c0_24 = arith.constant 0 : index
      %40 = vector.load %arg7[%c0_23, %c0_24] : memref<1x32xf32, #tpu.memory_space<vmem>>, vector<1x32xf32>
      %41 = vector.broadcast %40 : vector<1x32xf32> to vector<16x32xf32>
      %42 = arith.addf %39, %41 : vector<16x32xf32>
      %43 = arith.truncf %42 : vector<16x32xf32> to vector<16x32xbf16>
      %c0_25 = arith.constant 0 : index
      %c0_26 = arith.constant 0 : index
      %44 = vector.load %arg8[%c0_25, %c0_26] : memref<16x32xbf16, #tpu.memory_space<vmem>>, vector<16x32xbf16>
      tpu.vector_store %arg8[%c0_25, %c0_26], %43 {strides = array<i32>} : memref<16x32xbf16, #tpu.memory_space<vmem>>, vector<16x32xbf16>,
    } else {
    }
    return
  }
  func.func @transform_0(%arg0: i32, %arg1: i32) -> (i32, i32) {
    %c0_i32 = arith.constant 0 : i32
    return %arg0, %arg1 : i32, i32
  }
  func.func @transform_1(%arg0: i32, %arg1: i32) -> (i32, i32) {
    %c0_i32 = arith.constant 0 : i32
    %c0_i32_0 = arith.constant 0 : i32
    return %arg1, %c0_i32 : i32, i32
  }
  func.func @transform_2(%arg0: i32, %arg1: i32) -> (i32, i32) {
    %c0_i32 = arith.constant 0 : i32
    %c0_i32_0 = arith.constant 0 : i32
    %c0_i32_1 = arith.constant 0 : i32
    return %c0_i32, %c0_i32_0 : i32, i32
  }
  func.func @transform_3(%arg0: i32, %arg1: i32) -> (i32, i32) {
    %c0_i32 = arith.constant 0 : i32
    %c0_i32_0 = arith.constant 0 : i32
    return %arg0, %c0_i32 : i32, i32
  }
  func.func @transform_4(%arg0: i32, %arg1: i32) -> (i32, i32) {
    %c0_i32 = arith.constant 0 : i32
    %c0_i32_0 = arith.constant 0 : i32
    %c0_i32_1 = arith.constant 0 : i32
    return %c0_i32, %c0_i32_0 : i32, i32
  }
  func.func @transform_5(%arg0: i32, %arg1: i32) -> (i32, i32) {
    %c0_i32 = arith.constant 0 : i32
    %c0_i32_0 = arith.constant 0 : i32
    %c0_i32_1 = arith.constant 0 : i32
    return %c0_i32, %c0_i32_0 : i32, i32
  }
  func.func @transform_6(%arg0: i32, %arg1: i32) -> (i32, i32) {
    %c0_i32 = arith.constant 0 : i32
    %c0_i32_0 = arith.constant 0 : i32
    return %arg0, %c0_i32 : i32, i32
  }
}

module attributes {stable_mosaic.version = 11 : i64} {
  func.func @_grouped_proj_kernel(%arg0: i32, %arg1: i32, %arg2: memref<16x32xbf16, #tpu.memory_space<vmem>>, %arg3: memref<3x32x32xbf16, #tpu.memory_space<vmem>>, %arg4: memref<3x1x32xf32, #tpu.memory_space<vmem>>, %arg5: memref<3x16x32xbf16, #tpu.memory_space<vmem>>, %arg6: memref<3x16x32xf32, #tpu.memory_space<vmem>>) attributes {dimension_semantics = [#tpu.dimension_semantics<parallel>, #tpu.dimension_semantics<arbitrary>], iteration_bounds = array<i64: 1, 1>, scalar_prefetch = 0 : i64, scratch_operands = 1 : i64, tpu.core_type = #tpu.core_type<tc>, window_params = [{transform_indices = @transform_0, window_bounds = array<i64: 16, 32>}, {transform_indices = @transform_1, window_bounds = array<i64: 3, 32, 32>}, {pipeline_mode = #tpu.pipeline_mode<synchronous>, transform_indices = @transform_2, window_bounds = array<i64: 3, 1, 32>}, {transform_indices = @transform_3, window_bounds = array<i64: 3, 16, 32>}]} {
    %c0_i32 = arith.constant 0 : i32
    %0 = arith.cmpi eq, %arg1, %c0_i32 : i32
    %1 = arith.extui %0 : i1 to i32
    %c0_i32_0 = arith.constant 0 : i32
    %2 = arith.cmpi ne, %1, %c0_i32_0 : i32
    scf.if %2 {
      %cst_31 = arith.constant 0.000000e+00 : f32
      %34 = vector.broadcast %cst_31 : f32 to vector<3x16x32xf32>
      %c0_32 = arith.constant 0 : index
      %c0_33 = arith.constant 0 : index
      %c0_34 = arith.constant 0 : index
      %35 = vector.load %arg6[%c0_32, %c0_33, %c0_34] : memref<3x16x32xf32, #tpu.memory_space<vmem>>, vector<3x16x32xf32>
      tpu.vector_store %arg6[%c0_32, %c0_33, %c0_34], %34 {strides = array<i32>} : memref<3x16x32xf32, #tpu.memory_space<vmem>>, vector<3x16x32xf32>,
    } else {
    }
    %c0 = arith.constant 0 : index
    %c0_1 = arith.constant 0 : index
    %3 = vector.load %arg2[%c0, %c0_1] : memref<16x32xbf16, #tpu.memory_space<vmem>>, vector<16x32xbf16>
    %c0_2 = arith.constant 0 : index
    %c0_3 = arith.constant 0 : index
    %c0_4 = arith.constant 0 : index
    %4 = vector.load %arg6[%c0_2, %c0_3, %c0_4] : memref<3x16x32xf32, #tpu.memory_space<vmem>>, vector<1x16x32xf32>
    %5 = vector.shape_cast %4 : vector<1x16x32xf32> to vector<16x32xf32>
    %c0_5 = arith.constant 0 : index
    %c0_6 = arith.constant 0 : index
    %c0_7 = arith.constant 0 : index
    %6 = vector.load %arg3[%c0_5, %c0_6, %c0_7] : memref<3x32x32xbf16, #tpu.memory_space<vmem>>, vector<1x32x32xbf16>
    %7 = vector.shape_cast %6 : vector<1x32x32xbf16> to vector<32x32xbf16>
    %cst = arith.constant dense<0.000000e+00> : vector<16x32xf32>
    %8 = tpu.matmul %3, %7, %cst {dimension_numbers = #tpu.dot_dimension_numbers<[1], [0], [0], [1], [0, 0, 1, 1], [], []>} : vector<16x32xbf16>, vector<32x32xbf16>, vector<16x32xf32> -> vector<16x32xf32>
    %9 = arith.addf %5, %8 : vector<16x32xf32>
    %c0_8 = arith.constant 0 : index
    %c0_9 = arith.constant 0 : index
    %c0_10 = arith.constant 0 : index
    %10 = vector.load %arg6[%c0_8, %c0_9, %c0_10] : memref<3x16x32xf32, #tpu.memory_space<vmem>>, vector<1x16x32xf32>
    %11 = vector.shape_cast %10 : vector<1x16x32xf32> to vector<16x32xf32>
    %12 = vector.shape_cast %9 : vector<16x32xf32> to vector<1x16x32xf32>
    tpu.vector_store %arg6[%c0_8, %c0_9, %c0_10], %12 {strides = array<i32>} : memref<3x16x32xf32, #tpu.memory_space<vmem>>, vector<1x16x32xf32>,
    %c1 = arith.constant 1 : index
    %c0_11 = arith.constant 0 : index
    %c0_12 = arith.constant 0 : index
    %13 = vector.load %arg6[%c1, %c0_11, %c0_12] : memref<3x16x32xf32, #tpu.memory_space<vmem>>, vector<1x16x32xf32>
    %14 = vector.shape_cast %13 : vector<1x16x32xf32> to vector<16x32xf32>
    %c1_13 = arith.constant 1 : index
    %c0_14 = arith.constant 0 : index
    %c0_15 = arith.constant 0 : index
    %15 = vector.load %arg3[%c1_13, %c0_14, %c0_15] : memref<3x32x32xbf16, #tpu.memory_space<vmem>>, vector<1x32x32xbf16>
    %16 = vector.shape_cast %15 : vector<1x32x32xbf16> to vector<32x32xbf16>
    %cst_16 = arith.constant dense<0.000000e+00> : vector<16x32xf32>
    %17 = tpu.matmul %3, %16, %cst_16 {dimension_numbers = #tpu.dot_dimension_numbers<[1], [0], [0], [1], [0, 0, 1, 1], [], []>} : vector<16x32xbf16>, vector<32x32xbf16>, vector<16x32xf32> -> vector<16x32xf32>
    %18 = arith.addf %14, %17 : vector<16x32xf32>
    %c1_17 = arith.constant 1 : index
    %c0_18 = arith.constant 0 : index
    %c0_19 = arith.constant 0 : index
    %19 = vector.load %arg6[%c1_17, %c0_18, %c0_19] : memref<3x16x32xf32, #tpu.memory_space<vmem>>, vector<1x16x32xf32>
    %20 = vector.shape_cast %19 : vector<1x16x32xf32> to vector<16x32xf32>
    %21 = vector.shape_cast %18 : vector<16x32xf32> to vector<1x16x32xf32>
    tpu.vector_store %arg6[%c1_17, %c0_18, %c0_19], %21 {strides = array<i32>} : memref<3x16x32xf32, #tpu.memory_space<vmem>>, vector<1x16x32xf32>,
    %c2 = arith.constant 2 : index
    %c0_20 = arith.constant 0 : index
    %c0_21 = arith.constant 0 : index
    %22 = vector.load %arg6[%c2, %c0_20, %c0_21] : memref<3x16x32xf32, #tpu.memory_space<vmem>>, vector<1x16x32xf32>
    %23 = vector.shape_cast %22 : vector<1x16x32xf32> to vector<16x32xf32>
    %c2_22 = arith.constant 2 : index
    %c0_23 = arith.constant 0 : index
    %c0_24 = arith.constant 0 : index
    %24 = vector.load %arg3[%c2_22, %c0_23, %c0_24] : memref<3x32x32xbf16, #tpu.memory_space<vmem>>, vector<1x32x32xbf16>
    %25 = vector.shape_cast %24 : vector<1x32x32xbf16> to vector<32x32xbf16>
    %cst_25 = arith.constant dense<0.000000e+00> : vector<16x32xf32>
    %26 = tpu.matmul %3, %25, %cst_25 {dimension_numbers = #tpu.dot_dimension_numbers<[1], [0], [0], [1], [0, 0, 1, 1], [], []>} : vector<16x32xbf16>, vector<32x32xbf16>, vector<16x32xf32> -> vector<16x32xf32>
    %27 = arith.addf %23, %26 : vector<16x32xf32>
    %c2_26 = arith.constant 2 : index
    %c0_27 = arith.constant 0 : index
    %c0_28 = arith.constant 0 : index
    %28 = vector.load %arg6[%c2_26, %c0_27, %c0_28] : memref<3x16x32xf32, #tpu.memory_space<vmem>>, vector<1x16x32xf32>
    %29 = vector.shape_cast %28 : vector<1x16x32xf32> to vector<16x32xf32>
    %30 = vector.shape_cast %27 : vector<16x32xf32> to vector<1x16x32xf32>
    tpu.vector_store %arg6[%c2_26, %c0_27, %c0_28], %30 {strides = array<i32>} : memref<3x16x32xf32, #tpu.memory_space<vmem>>, vector<1x16x32xf32>,
    %c0_i32_29 = arith.constant 0 : i32
    %31 = arith.cmpi eq, %arg1, %c0_i32_29 : i32
    %32 = arith.extui %31 : i1 to i32
    %c0_i32_30 = arith.constant 0 : i32
    %33 = arith.cmpi ne, %32, %c0_i32_30 : i32
    scf.if %33 {
      %c0_31 = arith.constant 0 : index
      %c0_32 = arith.constant 0 : index
      %c0_33 = arith.constant 0 : index
      %34 = vector.load %arg6[%c0_31, %c0_32, %c0_33] : memref<3x16x32xf32, #tpu.memory_space<vmem>>, vector<3x16x32xf32>
      %c0_34 = arith.constant 0 : index
      %c0_35 = arith.constant 0 : index
      %c0_36 = arith.constant 0 : index
      %35 = vector.load %arg4[%c0_34, %c0_35, %c0_36] : memref<3x1x32xf32, #tpu.memory_space<vmem>>, vector<3x1x32xf32>
      %36 = vector.broadcast %35 : vector<3x1x32xf32> to vector<3x16x32xf32>
      %37 = arith.addf %34, %36 : vector<3x16x32xf32>
      %38 = arith.truncf %37 : vector<3x16x32xf32> to vector<3x16x32xbf16>
      %c0_37 = arith.constant 0 : index
      %c0_38 = arith.constant 0 : index
      %c0_39 = arith.constant 0 : index
      %39 = vector.load %arg5[%c0_37, %c0_38, %c0_39] : memref<3x16x32xbf16, #tpu.memory_space<vmem>>, vector<3x16x32xbf16>
      tpu.vector_store %arg5[%c0_37, %c0_38, %c0_39], %38 {strides = array<i32>} : memref<3x16x32xbf16, #tpu.memory_space<vmem>>, vector<3x16x32xbf16>,
    } else {
    }
    return
  }
  func.func @transform_0(%arg0: i32, %arg1: i32) -> (i32, i32) {
    %c0_i32 = arith.constant 0 : i32
    return %arg0, %arg1 : i32, i32
  }
  func.func @transform_1(%arg0: i32, %arg1: i32) -> (i32, i32, i32) {
    %c0_i32 = arith.constant 0 : i32
    %c0_i32_0 = arith.constant 0 : i32
    %c0_i32_1 = arith.constant 0 : i32
    return %c0_i32, %arg1, %c0_i32_0 : i32, i32, i32
  }
  func.func @transform_2(%arg0: i32, %arg1: i32) -> (i32, i32, i32) {
    %c0_i32 = arith.constant 0 : i32
    %c0_i32_0 = arith.constant 0 : i32
    %c0_i32_1 = arith.constant 0 : i32
    %c0_i32_2 = arith.constant 0 : i32
    return %c0_i32, %c0_i32_0, %c0_i32_1 : i32, i32, i32
  }
  func.func @transform_3(%arg0: i32, %arg1: i32) -> (i32, i32, i32) {
    %c0_i32 = arith.constant 0 : i32
    %c0_i32_0 = arith.constant 0 : i32
    %c0_i32_1 = arith.constant 0 : i32
    return %c0_i32, %arg0, %c0_i32_0 : i32, i32, i32
  }
}

module attributes {stable_mosaic.version = 11 : i64} {
  func.func @_matmul_add_ln_kernel(%arg0: i32, %arg1: i32, %arg2: memref<1x16x32xbf16, #tpu.memory_space<vmem>>, %arg3: memref<1x32x32xbf16, #tpu.memory_space<vmem>>, %arg4: memref<1x32xf32, #tpu.memory_space<vmem>>, %arg5: memref<16x32xbf16, #tpu.memory_space<vmem>>, %arg6: memref<1x32xf32, #tpu.memory_space<vmem>>, %arg7: memref<1x32xf32, #tpu.memory_space<vmem>>, %arg8: memref<16x32xbf16, #tpu.memory_space<vmem>>, %arg9: memref<16x32xf32, #tpu.memory_space<vmem>>) attributes {dimension_semantics = [#tpu.dimension_semantics<parallel>, #tpu.dimension_semantics<arbitrary>], iteration_bounds = array<i64: 1, 1>, scalar_prefetch = 0 : i64, scratch_operands = 1 : i64, tpu.core_type = #tpu.core_type<tc>, window_params = [{transform_indices = @transform_0, window_bounds = array<i64: 1, 16, 32>}, {transform_indices = @transform_1, window_bounds = array<i64: 1, 32, 32>}, {pipeline_mode = #tpu.pipeline_mode<synchronous>, transform_indices = @transform_2, window_bounds = array<i64: 1, 32>}, {transform_indices = @transform_3, window_bounds = array<i64: 16, 32>}, {pipeline_mode = #tpu.pipeline_mode<synchronous>, transform_indices = @transform_4, window_bounds = array<i64: 1, 32>}, {pipeline_mode = #tpu.pipeline_mode<synchronous>, transform_indices = @transform_5, window_bounds = array<i64: 1, 32>}, {transform_indices = @transform_6, window_bounds = array<i64: 16, 32>}]} {
    %c0_i32 = arith.constant 0 : i32
    %0 = arith.cmpi eq, %arg1, %c0_i32 : i32
    %1 = arith.extui %0 : i1 to i32
    %c0_i32_0 = arith.constant 0 : i32
    %2 = arith.cmpi ne, %1, %c0_i32_0 : i32
    scf.if %2 {
      %cst_12 = arith.constant 0.000000e+00 : f32
      %14 = vector.broadcast %cst_12 : f32 to vector<16x32xf32>
      %c0_13 = arith.constant 0 : index
      %c0_14 = arith.constant 0 : index
      %15 = vector.load %arg9[%c0_13, %c0_14] : memref<16x32xf32, #tpu.memory_space<vmem>>, vector<16x32xf32>
      tpu.vector_store %arg9[%c0_13, %c0_14], %14 {strides = array<i32>} : memref<16x32xf32, #tpu.memory_space<vmem>>, vector<16x32xf32>,
    } else {
    }
    %c0 = arith.constant 0 : index
    %c0_1 = arith.constant 0 : index
    %3 = vector.load %arg9[%c0, %c0_1] : memref<16x32xf32, #tpu.memory_space<vmem>>, vector<16x32xf32>
    %c0_2 = arith.constant 0 : index
    %c0_3 = arith.constant 0 : index
    %c0_4 = arith.constant 0 : index
    %4 = vector.load %arg2[%c0_2, %c0_3, %c0_4] : memref<1x16x32xbf16, #tpu.memory_space<vmem>>, vector<1x16x32xbf16>
    %5 = vector.shape_cast %4 : vector<1x16x32xbf16> to vector<16x32xbf16>
    %c0_5 = arith.constant 0 : index
    %c0_6 = arith.constant 0 : index
    %c0_7 = arith.constant 0 : index
    %6 = vector.load %arg3[%c0_5, %c0_6, %c0_7] : memref<1x32x32xbf16, #tpu.memory_space<vmem>>, vector<1x32x32xbf16>
    %7 = vector.shape_cast %6 : vector<1x32x32xbf16> to vector<32x32xbf16>
    %cst = arith.constant dense<0.000000e+00> : vector<16x32xf32>
    %8 = tpu.matmul %5, %7, %cst {dimension_numbers = #tpu.dot_dimension_numbers<[1], [0], [0], [1], [0, 0, 1, 1], [], []>} : vector<16x32xbf16>, vector<32x32xbf16>, vector<16x32xf32> -> vector<16x32xf32>
    %9 = arith.addf %3, %8 : vector<16x32xf32>
    %c0_8 = arith.constant 0 : index
    %c0_9 = arith.constant 0 : index
    %10 = vector.load %arg9[%c0_8, %c0_9] : memref<16x32xf32, #tpu.memory_space<vmem>>, vector<16x32xf32>
    tpu.vector_store %arg9[%c0_8, %c0_9], %9 {strides = array<i32>} : memref<16x32xf32, #tpu.memory_space<vmem>>, vector<16x32xf32>,
    %c0_i32_10 = arith.constant 0 : i32
    %11 = arith.cmpi eq, %arg1, %c0_i32_10 : i32
    %12 = arith.extui %11 : i1 to i32
    %c0_i32_11 = arith.constant 0 : i32
    %13 = arith.cmpi ne, %12, %c0_i32_11 : i32
    scf.if %13 {
      %c0_12 = arith.constant 0 : index
      %c0_13 = arith.constant 0 : index
      %14 = vector.load %arg9[%c0_12, %c0_13] : memref<16x32xf32, #tpu.memory_space<vmem>>, vector<16x32xf32>
      %c0_14 = arith.constant 0 : index
      %c0_15 = arith.constant 0 : index
      %15 = vector.load %arg4[%c0_14, %c0_15] : memref<1x32xf32, #tpu.memory_space<vmem>>, vector<1x32xf32>
      %16 = vector.broadcast %15 : vector<1x32xf32> to vector<16x32xf32>
      %17 = arith.addf %14, %16 : vector<16x32xf32>
      %c0_16 = arith.constant 0 : index
      %c0_17 = arith.constant 0 : index
      %18 = vector.load %arg5[%c0_16, %c0_17] : memref<16x32xbf16, #tpu.memory_space<vmem>>, vector<16x32xbf16>
      %19 = arith.extf %18 : vector<16x32xbf16> to vector<16x32xf32>
      %20 = arith.addf %17, %19 : vector<16x32xf32>
      %cst_18 = arith.constant dense<0.000000e+00> : vector<16xf32>
      %21 = vector.multi_reduction <add>, %20, %cst_18 [1] : vector<16x32xf32> to vector<16xf32>
      %22 = vector.shape_cast %21 : vector<16xf32> to vector<16x1xf32>
      %cst_19 = arith.constant 3.200000e+01 : f32
      %23 = vector.broadcast %cst_19 : f32 to vector<16x1xf32>
      %24 = arith.divf %22, %23 : vector<16x1xf32>
      %25 = vector.broadcast %24 : vector<16x1xf32> to vector<16x32xf32>
      %26 = arith.subf %20, %25 : vector<16x32xf32>
      %27 = arith.mulf %26, %26 : vector<16x32xf32>
      %cst_20 = arith.constant dense<0.000000e+00> : vector<16xf32>
      %28 = vector.multi_reduction <add>, %27, %cst_20 [1] : vector<16x32xf32> to vector<16xf32>
      %29 = vector.shape_cast %28 : vector<16xf32> to vector<16x1xf32>
      %cst_21 = arith.constant 3.200000e+01 : f32
      %30 = vector.broadcast %cst_21 : f32 to vector<16x1xf32>
      %31 = arith.divf %29, %30 : vector<16x1xf32>
      %32 = vector.broadcast %24 : vector<16x1xf32> to vector<16x32xf32>
      %33 = arith.subf %20, %32 : vector<16x32xf32>
      %cst_22 = arith.constant 9.99999974E-6 : f32
      %34 = vector.broadcast %cst_22 : f32 to vector<16x1xf32>
      %35 = arith.addf %31, %34 : vector<16x1xf32>
      %36 = math.rsqrt %35 : vector<16x1xf32>
      %37 = vector.broadcast %36 : vector<16x1xf32> to vector<16x32xf32>
      %38 = arith.mulf %33, %37 : vector<16x32xf32>
      %c0_23 = arith.constant 0 : index
      %c0_24 = arith.constant 0 : index
      %39 = vector.load %arg6[%c0_23, %c0_24] : memref<1x32xf32, #tpu.memory_space<vmem>>, vector<1x32xf32>
      %40 = vector.broadcast %39 : vector<1x32xf32> to vector<16x32xf32>
      %41 = arith.mulf %38, %40 : vector<16x32xf32>
      %c0_25 = arith.constant 0 : index
      %c0_26 = arith.constant 0 : index
      %42 = vector.load %arg7[%c0_25, %c0_26] : memref<1x32xf32, #tpu.memory_space<vmem>>, vector<1x32xf32>
      %43 = vector.broadcast %42 : vector<1x32xf32> to vector<16x32xf32>
      %44 = arith.addf %41, %43 : vector<16x32xf32>
      %45 = arith.truncf %44 : vector<16x32xf32> to vector<16x32xbf16>
      %c0_27 = arith.constant 0 : index
      %c0_28 = arith.constant 0 : index
      %46 = vector.load %arg8[%c0_27, %c0_28] : memref<16x32xbf16, #tpu.memory_space<vmem>>, vector<16x32xbf16>
      tpu.vector_store %arg8[%c0_27, %c0_28], %45 {strides = array<i32>} : memref<16x32xbf16, #tpu.memory_space<vmem>>, vector<16x32xbf16>,
    } else {
    }
    return
  }
  func.func @transform_0(%arg0: i32, %arg1: i32) -> (i32, i32, i32) {
    %c0_i32 = arith.constant 0 : i32
    %c0_i32_0 = arith.constant 0 : i32
    return %arg1, %arg0, %c0_i32 : i32, i32, i32
  }
  func.func @transform_1(%arg0: i32, %arg1: i32) -> (i32, i32, i32) {
    %c0_i32 = arith.constant 0 : i32
    %c0_i32_0 = arith.constant 0 : i32
    %c0_i32_1 = arith.constant 0 : i32
    return %arg1, %c0_i32, %c0_i32_0 : i32, i32, i32
  }
  func.func @transform_2(%arg0: i32, %arg1: i32) -> (i32, i32) {
    %c0_i32 = arith.constant 0 : i32
    %c0_i32_0 = arith.constant 0 : i32
    %c0_i32_1 = arith.constant 0 : i32
    return %c0_i32, %c0_i32_0 : i32, i32
  }
  func.func @transform_3(%arg0: i32, %arg1: i32) -> (i32, i32) {
    %c0_i32 = arith.constant 0 : i32
    %c0_i32_0 = arith.constant 0 : i32
    return %arg0, %c0_i32 : i32, i32
  }
  func.func @transform_4(%arg0: i32, %arg1: i32) -> (i32, i32) {
    %c0_i32 = arith.constant 0 : i32
    %c0_i32_0 = arith.constant 0 : i32
    %c0_i32_1 = arith.constant 0 : i32
    return %c0_i32, %c0_i32_0 : i32, i32
  }
  func.func @transform_5(%arg0: i32, %arg1: i32) -> (i32, i32) {
    %c0_i32 = arith.constant 0 : i32
    %c0_i32_0 = arith.constant 0 : i32
    %c0_i32_1 = arith.constant 0 : i32
    return %c0_i32, %c0_i32_0 : i32, i32
  }
  func.func @transform_6(%arg0: i32, %arg1: i32) -> (i32, i32) {
    %c0_i32 = arith.constant 0 : i32
    %c0_i32_0 = arith.constant 0 : i32
    return %arg0, %c0_i32 : i32, i32
  }
}

module attributes {stable_mosaic.version = 11 : i64} {
  func.func @_grouped_proj_kernel(%arg0: i32, %arg1: i32, %arg2: memref<32x32xbf16, #tpu.memory_space<vmem>>, %arg3: memref<2x32x32xbf16, #tpu.memory_space<vmem>>, %arg4: memref<2x1x32xf32, #tpu.memory_space<vmem>>, %arg5: memref<2x32x32xbf16, #tpu.memory_space<vmem>>, %arg6: memref<2x32x32xf32, #tpu.memory_space<vmem>>) attributes {dimension_semantics = [#tpu.dimension_semantics<parallel>, #tpu.dimension_semantics<arbitrary>], iteration_bounds = array<i64: 1, 1>, scalar_prefetch = 0 : i64, scratch_operands = 1 : i64, tpu.core_type = #tpu.core_type<tc>, window_params = [{transform_indices = @transform_0, window_bounds = array<i64: 32, 32>}, {transform_indices = @transform_1, window_bounds = array<i64: 2, 32, 32>}, {pipeline_mode = #tpu.pipeline_mode<synchronous>, transform_indices = @transform_2, window_bounds = array<i64: 2, 1, 32>}, {transform_indices = @transform_3, window_bounds = array<i64: 2, 32, 32>}]} {
    %c0_i32 = arith.constant 0 : i32
    %0 = arith.cmpi eq, %arg1, %c0_i32 : i32
    %1 = arith.extui %0 : i1 to i32
    %c0_i32_0 = arith.constant 0 : i32
    %2 = arith.cmpi ne, %1, %c0_i32_0 : i32
    scf.if %2 {
      %cst_22 = arith.constant 0.000000e+00 : f32
      %25 = vector.broadcast %cst_22 : f32 to vector<2x32x32xf32>
      %c0_23 = arith.constant 0 : index
      %c0_24 = arith.constant 0 : index
      %c0_25 = arith.constant 0 : index
      %26 = vector.load %arg6[%c0_23, %c0_24, %c0_25] : memref<2x32x32xf32, #tpu.memory_space<vmem>>, vector<2x32x32xf32>
      tpu.vector_store %arg6[%c0_23, %c0_24, %c0_25], %25 {strides = array<i32>} : memref<2x32x32xf32, #tpu.memory_space<vmem>>, vector<2x32x32xf32>,
    } else {
    }
    %c0 = arith.constant 0 : index
    %c0_1 = arith.constant 0 : index
    %3 = vector.load %arg2[%c0, %c0_1] : memref<32x32xbf16, #tpu.memory_space<vmem>>, vector<32x32xbf16>
    %c0_2 = arith.constant 0 : index
    %c0_3 = arith.constant 0 : index
    %c0_4 = arith.constant 0 : index
    %4 = vector.load %arg6[%c0_2, %c0_3, %c0_4] : memref<2x32x32xf32, #tpu.memory_space<vmem>>, vector<1x32x32xf32>
    %5 = vector.shape_cast %4 : vector<1x32x32xf32> to vector<32x32xf32>
    %c0_5 = arith.constant 0 : index
    %c0_6 = arith.constant 0 : index
    %c0_7 = arith.constant 0 : index
    %6 = vector.load %arg3[%c0_5, %c0_6, %c0_7] : memref<2x32x32xbf16, #tpu.memory_space<vmem>>, vector<1x32x32xbf16>
    %7 = vector.shape_cast %6 : vector<1x32x32xbf16> to vector<32x32xbf16>
    %cst = arith.constant dense<0.000000e+00> : vector<32x32xf32>
    %8 = tpu.matmul %3, %7, %cst {dimension_numbers = #tpu.dot_dimension_numbers<[1], [0], [0], [1], [0, 0, 1, 1], [], []>} : vector<32x32xbf16>, vector<32x32xbf16>, vector<32x32xf32> -> vector<32x32xf32>
    %9 = arith.addf %5, %8 : vector<32x32xf32>
    %c0_8 = arith.constant 0 : index
    %c0_9 = arith.constant 0 : index
    %c0_10 = arith.constant 0 : index
    %10 = vector.load %arg6[%c0_8, %c0_9, %c0_10] : memref<2x32x32xf32, #tpu.memory_space<vmem>>, vector<1x32x32xf32>
    %11 = vector.shape_cast %10 : vector<1x32x32xf32> to vector<32x32xf32>
    %12 = vector.shape_cast %9 : vector<32x32xf32> to vector<1x32x32xf32>
    tpu.vector_store %arg6[%c0_8, %c0_9, %c0_10], %12 {strides = array<i32>} : memref<2x32x32xf32, #tpu.memory_space<vmem>>, vector<1x32x32xf32>,
    %c1 = arith.constant 1 : index
    %c0_11 = arith.constant 0 : index
    %c0_12 = arith.constant 0 : index
    %13 = vector.load %arg6[%c1, %c0_11, %c0_12] : memref<2x32x32xf32, #tpu.memory_space<vmem>>, vector<1x32x32xf32>
    %14 = vector.shape_cast %13 : vector<1x32x32xf32> to vector<32x32xf32>
    %c1_13 = arith.constant 1 : index
    %c0_14 = arith.constant 0 : index
    %c0_15 = arith.constant 0 : index
    %15 = vector.load %arg3[%c1_13, %c0_14, %c0_15] : memref<2x32x32xbf16, #tpu.memory_space<vmem>>, vector<1x32x32xbf16>
    %16 = vector.shape_cast %15 : vector<1x32x32xbf16> to vector<32x32xbf16>
    %cst_16 = arith.constant dense<0.000000e+00> : vector<32x32xf32>
    %17 = tpu.matmul %3, %16, %cst_16 {dimension_numbers = #tpu.dot_dimension_numbers<[1], [0], [0], [1], [0, 0, 1, 1], [], []>} : vector<32x32xbf16>, vector<32x32xbf16>, vector<32x32xf32> -> vector<32x32xf32>
    %18 = arith.addf %14, %17 : vector<32x32xf32>
    %c1_17 = arith.constant 1 : index
    %c0_18 = arith.constant 0 : index
    %c0_19 = arith.constant 0 : index
    %19 = vector.load %arg6[%c1_17, %c0_18, %c0_19] : memref<2x32x32xf32, #tpu.memory_space<vmem>>, vector<1x32x32xf32>
    %20 = vector.shape_cast %19 : vector<1x32x32xf32> to vector<32x32xf32>
    %21 = vector.shape_cast %18 : vector<32x32xf32> to vector<1x32x32xf32>
    tpu.vector_store %arg6[%c1_17, %c0_18, %c0_19], %21 {strides = array<i32>} : memref<2x32x32xf32, #tpu.memory_space<vmem>>, vector<1x32x32xf32>,
    %c0_i32_20 = arith.constant 0 : i32
    %22 = arith.cmpi eq, %arg1, %c0_i32_20 : i32
    %23 = arith.extui %22 : i1 to i32
    %c0_i32_21 = arith.constant 0 : i32
    %24 = arith.cmpi ne, %23, %c0_i32_21 : i32
    scf.if %24 {
      %c0_22 = arith.constant 0 : index
      %c0_23 = arith.constant 0 : index
      %c0_24 = arith.constant 0 : index
      %25 = vector.load %arg6[%c0_22, %c0_23, %c0_24] : memref<2x32x32xf32, #tpu.memory_space<vmem>>, vector<2x32x32xf32>
      %c0_25 = arith.constant 0 : index
      %c0_26 = arith.constant 0 : index
      %c0_27 = arith.constant 0 : index
      %26 = vector.load %arg4[%c0_25, %c0_26, %c0_27] : memref<2x1x32xf32, #tpu.memory_space<vmem>>, vector<2x1x32xf32>
      %27 = vector.broadcast %26 : vector<2x1x32xf32> to vector<2x32x32xf32>
      %28 = arith.addf %25, %27 : vector<2x32x32xf32>
      %29 = arith.truncf %28 : vector<2x32x32xf32> to vector<2x32x32xbf16>
      %c0_28 = arith.constant 0 : index
      %c0_29 = arith.constant 0 : index
      %c0_30 = arith.constant 0 : index
      %30 = vector.load %arg5[%c0_28, %c0_29, %c0_30] : memref<2x32x32xbf16, #tpu.memory_space<vmem>>, vector<2x32x32xbf16>
      tpu.vector_store %arg5[%c0_28, %c0_29, %c0_30], %29 {strides = array<i32>} : memref<2x32x32xbf16, #tpu.memory_space<vmem>>, vector<2x32x32xbf16>,
    } else {
    }
    return
  }
  func.func @transform_0(%arg0: i32, %arg1: i32) -> (i32, i32) {
    %c0_i32 = arith.constant 0 : i32
    return %arg0, %arg1 : i32, i32
  }
  func.func @transform_1(%arg0: i32, %arg1: i32) -> (i32, i32, i32) {
    %c0_i32 = arith.constant 0 : i32
    %c0_i32_0 = arith.constant 0 : i32
    %c0_i32_1 = arith.constant 0 : i32
    return %c0_i32, %arg1, %c0_i32_0 : i32, i32, i32
  }
  func.func @transform_2(%arg0: i32, %arg1: i32) -> (i32, i32, i32) {
    %c0_i32 = arith.constant 0 : i32
    %c0_i32_0 = arith.constant 0 : i32
    %c0_i32_1 = arith.constant 0 : i32
    %c0_i32_2 = arith.constant 0 : i32
    return %c0_i32, %c0_i32_0, %c0_i32_1 : i32, i32, i32
  }
  func.func @transform_3(%arg0: i32, %arg1: i32) -> (i32, i32, i32) {
    %c0_i32 = arith.constant 0 : i32
    %c0_i32_0 = arith.constant 0 : i32
    %c0_i32_1 = arith.constant 0 : i32
    return %c0_i32, %arg0, %c0_i32_0 : i32, i32, i32
  }
}

module attributes {stable_mosaic.version = 11 : i64} {
  func.func @_matmul_add_ln_kernel(%arg0: i32, %arg1: i32, %arg2: memref<16x64xbf16, #tpu.memory_space<vmem>>, %arg3: memref<64x32xbf16, #tpu.memory_space<vmem>>, %arg4: memref<1x32xf32, #tpu.memory_space<vmem>>, %arg5: memref<16x32xbf16, #tpu.memory_space<vmem>>, %arg6: memref<1x32xf32, #tpu.memory_space<vmem>>, %arg7: memref<1x32xf32, #tpu.memory_space<vmem>>, %arg8: memref<16x32xbf16, #tpu.memory_space<vmem>>, %arg9: memref<16x32xf32, #tpu.memory_space<vmem>>) attributes {dimension_semantics = [#tpu.dimension_semantics<parallel>, #tpu.dimension_semantics<arbitrary>], iteration_bounds = array<i64: 1, 1>, scalar_prefetch = 0 : i64, scratch_operands = 1 : i64, tpu.core_type = #tpu.core_type<tc>, window_params = [{transform_indices = @transform_0, window_bounds = array<i64: 16, 64>}, {transform_indices = @transform_1, window_bounds = array<i64: 64, 32>}, {pipeline_mode = #tpu.pipeline_mode<synchronous>, transform_indices = @transform_2, window_bounds = array<i64: 1, 32>}, {transform_indices = @transform_3, window_bounds = array<i64: 16, 32>}, {pipeline_mode = #tpu.pipeline_mode<synchronous>, transform_indices = @transform_4, window_bounds = array<i64: 1, 32>}, {pipeline_mode = #tpu.pipeline_mode<synchronous>, transform_indices = @transform_5, window_bounds = array<i64: 1, 32>}, {transform_indices = @transform_6, window_bounds = array<i64: 16, 32>}]} {
    %c0_i32 = arith.constant 0 : i32
    %0 = arith.cmpi eq, %arg1, %c0_i32 : i32
    %1 = arith.extui %0 : i1 to i32
    %c0_i32_0 = arith.constant 0 : i32
    %2 = arith.cmpi ne, %1, %c0_i32_0 : i32
    scf.if %2 {
      %cst_10 = arith.constant 0.000000e+00 : f32
      %12 = vector.broadcast %cst_10 : f32 to vector<16x32xf32>
      %c0_11 = arith.constant 0 : index
      %c0_12 = arith.constant 0 : index
      %13 = vector.load %arg9[%c0_11, %c0_12] : memref<16x32xf32, #tpu.memory_space<vmem>>, vector<16x32xf32>
      tpu.vector_store %arg9[%c0_11, %c0_12], %12 {strides = array<i32>} : memref<16x32xf32, #tpu.memory_space<vmem>>, vector<16x32xf32>,
    } else {
    }
    %c0 = arith.constant 0 : index
    %c0_1 = arith.constant 0 : index
    %3 = vector.load %arg9[%c0, %c0_1] : memref<16x32xf32, #tpu.memory_space<vmem>>, vector<16x32xf32>
    %c0_2 = arith.constant 0 : index
    %c0_3 = arith.constant 0 : index
    %4 = vector.load %arg2[%c0_2, %c0_3] : memref<16x64xbf16, #tpu.memory_space<vmem>>, vector<16x64xbf16>
    %c0_4 = arith.constant 0 : index
    %c0_5 = arith.constant 0 : index
    %5 = vector.load %arg3[%c0_4, %c0_5] : memref<64x32xbf16, #tpu.memory_space<vmem>>, vector<64x32xbf16>
    %cst = arith.constant dense<0.000000e+00> : vector<16x32xf32>
    %6 = tpu.matmul %4, %5, %cst {dimension_numbers = #tpu.dot_dimension_numbers<[1], [0], [0], [1], [0, 0, 1, 1], [], []>} : vector<16x64xbf16>, vector<64x32xbf16>, vector<16x32xf32> -> vector<16x32xf32>
    %7 = arith.addf %3, %6 : vector<16x32xf32>
    %c0_6 = arith.constant 0 : index
    %c0_7 = arith.constant 0 : index
    %8 = vector.load %arg9[%c0_6, %c0_7] : memref<16x32xf32, #tpu.memory_space<vmem>>, vector<16x32xf32>
    tpu.vector_store %arg9[%c0_6, %c0_7], %7 {strides = array<i32>} : memref<16x32xf32, #tpu.memory_space<vmem>>, vector<16x32xf32>,
    %c0_i32_8 = arith.constant 0 : i32
    %9 = arith.cmpi eq, %arg1, %c0_i32_8 : i32
    %10 = arith.extui %9 : i1 to i32
    %c0_i32_9 = arith.constant 0 : i32
    %11 = arith.cmpi ne, %10, %c0_i32_9 : i32
    scf.if %11 {
      %c0_10 = arith.constant 0 : index
      %c0_11 = arith.constant 0 : index
      %12 = vector.load %arg9[%c0_10, %c0_11] : memref<16x32xf32, #tpu.memory_space<vmem>>, vector<16x32xf32>
      %c0_12 = arith.constant 0 : index
      %c0_13 = arith.constant 0 : index
      %13 = vector.load %arg4[%c0_12, %c0_13] : memref<1x32xf32, #tpu.memory_space<vmem>>, vector<1x32xf32>
      %14 = vector.broadcast %13 : vector<1x32xf32> to vector<16x32xf32>
      %15 = arith.addf %12, %14 : vector<16x32xf32>
      %c0_14 = arith.constant 0 : index
      %c0_15 = arith.constant 0 : index
      %16 = vector.load %arg5[%c0_14, %c0_15] : memref<16x32xbf16, #tpu.memory_space<vmem>>, vector<16x32xbf16>
      %17 = arith.extf %16 : vector<16x32xbf16> to vector<16x32xf32>
      %18 = arith.addf %15, %17 : vector<16x32xf32>
      %cst_16 = arith.constant dense<0.000000e+00> : vector<16xf32>
      %19 = vector.multi_reduction <add>, %18, %cst_16 [1] : vector<16x32xf32> to vector<16xf32>
      %20 = vector.shape_cast %19 : vector<16xf32> to vector<16x1xf32>
      %cst_17 = arith.constant 3.200000e+01 : f32
      %21 = vector.broadcast %cst_17 : f32 to vector<16x1xf32>
      %22 = arith.divf %20, %21 : vector<16x1xf32>
      %23 = vector.broadcast %22 : vector<16x1xf32> to vector<16x32xf32>
      %24 = arith.subf %18, %23 : vector<16x32xf32>
      %25 = arith.mulf %24, %24 : vector<16x32xf32>
      %cst_18 = arith.constant dense<0.000000e+00> : vector<16xf32>
      %26 = vector.multi_reduction <add>, %25, %cst_18 [1] : vector<16x32xf32> to vector<16xf32>
      %27 = vector.shape_cast %26 : vector<16xf32> to vector<16x1xf32>
      %cst_19 = arith.constant 3.200000e+01 : f32
      %28 = vector.broadcast %cst_19 : f32 to vector<16x1xf32>
      %29 = arith.divf %27, %28 : vector<16x1xf32>
      %30 = vector.broadcast %22 : vector<16x1xf32> to vector<16x32xf32>
      %31 = arith.subf %18, %30 : vector<16x32xf32>
      %cst_20 = arith.constant 9.99999974E-6 : f32
      %32 = vector.broadcast %cst_20 : f32 to vector<16x1xf32>
      %33 = arith.addf %29, %32 : vector<16x1xf32>
      %34 = math.rsqrt %33 : vector<16x1xf32>
      %35 = vector.broadcast %34 : vector<16x1xf32> to vector<16x32xf32>
      %36 = arith.mulf %31, %35 : vector<16x32xf32>
      %c0_21 = arith.constant 0 : index
      %c0_22 = arith.constant 0 : index
      %37 = vector.load %arg6[%c0_21, %c0_22] : memref<1x32xf32, #tpu.memory_space<vmem>>, vector<1x32xf32>
      %38 = vector.broadcast %37 : vector<1x32xf32> to vector<16x32xf32>
      %39 = arith.mulf %36, %38 : vector<16x32xf32>
      %c0_23 = arith.constant 0 : index
      %c0_24 = arith.constant 0 : index
      %40 = vector.load %arg7[%c0_23, %c0_24] : memref<1x32xf32, #tpu.memory_space<vmem>>, vector<1x32xf32>
      %41 = vector.broadcast %40 : vector<1x32xf32> to vector<16x32xf32>
      %42 = arith.addf %39, %41 : vector<16x32xf32>
      %43 = arith.truncf %42 : vector<16x32xf32> to vector<16x32xbf16>
      %c0_25 = arith.constant 0 : index
      %c0_26 = arith.constant 0 : index
      %44 = vector.load %arg8[%c0_25, %c0_26] : memref<16x32xbf16, #tpu.memory_space<vmem>>, vector<16x32xbf16>
      tpu.vector_store %arg8[%c0_25, %c0_26], %43 {strides = array<i32>} : memref<16x32xbf16, #tpu.memory_space<vmem>>, vector<16x32xbf16>,
    } else {
    }
    return
  }
  func.func @transform_0(%arg0: i32, %arg1: i32) -> (i32, i32) {
    %c0_i32 = arith.constant 0 : i32
    return %arg0, %arg1 : i32, i32
  }
  func.func @transform_1(%arg0: i32, %arg1: i32) -> (i32, i32) {
    %c0_i32 = arith.constant 0 : i32
    %c0_i32_0 = arith.constant 0 : i32
    return %arg1, %c0_i32 : i32, i32
  }
  func.func @transform_2(%arg0: i32, %arg1: i32) -> (i32, i32) {
    %c0_i32 = arith.constant 0 : i32
    %c0_i32_0 = arith.constant 0 : i32
    %c0_i32_1 = arith.constant 0 : i32
    return %c0_i32, %c0_i32_0 : i32, i32
  }
  func.func @transform_3(%arg0: i32, %arg1: i32) -> (i32, i32) {
    %c0_i32 = arith.constant 0 : i32
    %c0_i32_0 = arith.constant 0 : i32
    return %arg0, %c0_i32 : i32, i32
  }
  func.func @transform_4(%arg0: i32, %arg1: i32) -> (i32, i32) {
    %c0_i32 = arith.constant 0 : i32
    %c0_i32_0 = arith.constant 0 : i32
    %c0_i32_1 = arith.constant 0 : i32
    return %c0_i32, %c0_i32_0 : i32, i32
  }
  func.func @transform_5(%arg0: i32, %arg1: i32) -> (i32, i32) {
    %c0_i32 = arith.constant 0 : i32
    %c0_i32_0 = arith.constant 0 : i32
    %c0_i32_1 = arith.constant 0 : i32
    return %c0_i32, %c0_i32_0 : i32, i32
  }
  func.func @transform_6(%arg0: i32, %arg1: i32) -> (i32, i32) {
    %c0_i32 = arith.constant 0 : i32
    %c0_i32_0 = arith.constant 0 : i32
    return %arg0, %c0_i32 : i32, i32
  }
}

module attributes {stable_mosaic.version = 11 : i64} {
  func.func @_ln_kernel(%arg0: i32, %arg1: memref<16x32xbf16, #tpu.memory_space<vmem>>, %arg2: memref<1x32xf32, #tpu.memory_space<vmem>>, %arg3: memref<1x32xf32, #tpu.memory_space<vmem>>, %arg4: memref<16x32xf32, #tpu.memory_space<vmem>>) attributes {dimension_semantics = [#tpu.dimension_semantics<parallel>], iteration_bounds = array<i64: 1>, scalar_prefetch = 0 : i64, scratch_operands = 0 : i64, tpu.core_type = #tpu.core_type<tc>, window_params = [{transform_indices = @transform_0, window_bounds = array<i64: 16, 32>}, {pipeline_mode = #tpu.pipeline_mode<synchronous>, transform_indices = @transform_1, window_bounds = array<i64: 1, 32>}, {pipeline_mode = #tpu.pipeline_mode<synchronous>, transform_indices = @transform_2, window_bounds = array<i64: 1, 32>}, {transform_indices = @transform_3, window_bounds = array<i64: 16, 32>}]} {
    %c0 = arith.constant 0 : index
    %c0_0 = arith.constant 0 : index
    %0 = vector.load %arg1[%c0, %c0_0] : memref<16x32xbf16, #tpu.memory_space<vmem>>, vector<16x32xbf16>
    %1 = arith.extf %0 : vector<16x32xbf16> to vector<16x32xf32>
    %cst = arith.constant dense<0.000000e+00> : vector<16xf32>
    %2 = vector.multi_reduction <add>, %1, %cst [1] : vector<16x32xf32> to vector<16xf32>
    %3 = vector.shape_cast %2 : vector<16xf32> to vector<16x1xf32>
    %cst_1 = arith.constant 3.200000e+01 : f32
    %4 = vector.broadcast %cst_1 : f32 to vector<16x1xf32>
    %5 = arith.divf %3, %4 : vector<16x1xf32>
    %6 = vector.broadcast %5 : vector<16x1xf32> to vector<16x32xf32>
    %7 = arith.subf %1, %6 : vector<16x32xf32>
    %8 = arith.mulf %7, %7 : vector<16x32xf32>
    %cst_2 = arith.constant dense<0.000000e+00> : vector<16xf32>
    %9 = vector.multi_reduction <add>, %8, %cst_2 [1] : vector<16x32xf32> to vector<16xf32>
    %10 = vector.shape_cast %9 : vector<16xf32> to vector<16x1xf32>
    %cst_3 = arith.constant 3.200000e+01 : f32
    %11 = vector.broadcast %cst_3 : f32 to vector<16x1xf32>
    %12 = arith.divf %10, %11 : vector<16x1xf32>
    %13 = vector.broadcast %5 : vector<16x1xf32> to vector<16x32xf32>
    %14 = arith.subf %1, %13 : vector<16x32xf32>
    %cst_4 = arith.constant 9.99999974E-6 : f32
    %15 = vector.broadcast %cst_4 : f32 to vector<16x1xf32>
    %16 = arith.addf %12, %15 : vector<16x1xf32>
    %17 = math.rsqrt %16 : vector<16x1xf32>
    %18 = vector.broadcast %17 : vector<16x1xf32> to vector<16x32xf32>
    %19 = arith.mulf %14, %18 : vector<16x32xf32>
    %c0_5 = arith.constant 0 : index
    %c0_6 = arith.constant 0 : index
    %20 = vector.load %arg2[%c0_5, %c0_6] : memref<1x32xf32, #tpu.memory_space<vmem>>, vector<1x32xf32>
    %21 = vector.broadcast %20 : vector<1x32xf32> to vector<16x32xf32>
    %22 = arith.mulf %19, %21 : vector<16x32xf32>
    %c0_7 = arith.constant 0 : index
    %c0_8 = arith.constant 0 : index
    %23 = vector.load %arg3[%c0_7, %c0_8] : memref<1x32xf32, #tpu.memory_space<vmem>>, vector<1x32xf32>
    %24 = vector.broadcast %23 : vector<1x32xf32> to vector<16x32xf32>
    %25 = arith.addf %22, %24 : vector<16x32xf32>
    %c0_9 = arith.constant 0 : index
    %c0_10 = arith.constant 0 : index
    %26 = vector.load %arg4[%c0_9, %c0_10] : memref<16x32xf32, #tpu.memory_space<vmem>>, vector<16x32xf32>
    tpu.vector_store %arg4[%c0_9, %c0_10], %25 {strides = array<i32>} : memref<16x32xf32, #tpu.memory_space<vmem>>, vector<16x32xf32>,
    return
  }
  func.func @transform_0(%arg0: i32) -> (i32, i32) {
    %c0_i32 = arith.constant 0 : i32
    %c0_i32_0 = arith.constant 0 : i32
    return %arg0, %c0_i32 : i32, i32
  }
  func.func @transform_1(%arg0: i32) -> (i32, i32) {
    %c0_i32 = arith.constant 0 : i32
    %c0_i32_0 = arith.constant 0 : i32
    %c0_i32_1 = arith.constant 0 : i32
    return %c0_i32, %c0_i32_0 : i32, i32
  }
  func.func @transform_2(%arg0: i32) -> (i32, i32) {
    %c0_i32 = arith.constant 0 : i32
    %c0_i32_0 = arith.constant 0 : i32
    %c0_i32_1 = arith.constant 0 : i32
    return %c0_i32, %c0_i32_0 : i32, i32
  }
  func.func @transform_3(%arg0: i32) -> (i32, i32) {
    %c0_i32 = arith.constant 0 : i32
    %c0_i32_0 = arith.constant 0 : i32
    return %arg0, %c0_i32 : i32, i32
  }
}

</mosaic_0001>

<llo_original>
// kernel: transformer_decoder.21
$region0: #{transformer_decoder.21}
  #allocation0 [shape = 'u32[]', space=smem, size = 0x4, offset = 0x4, fixed_abs, tag = 'smem constant byte address 0x4 - core index']
  #allocation1 [shape = 'u32[72,128]{1,0:T(1,128)}', space=vmem, size = 0x9000, scoped, tag = 'internal scratch']
  #allocation2 [shape = 'f32[16,32]{1,0:T(8,128)}', space=vmem, size = 0x2000, scoped, tag = 'scratch operand']
  %s0 = inlined_call_operand.vmem [shape: bf16[1,16,32], index: 0, kind: input, shape index: {}]
  %s1 = inlined_call_operand.vmem [shape: bf16[1,32,32], index: 1, kind: input, shape index: {}]
  %s2 = inlined_call_operand.hbm [shape: f32[1,32], index: 2, kind: input, shape index: {}]
  %s3 = inlined_call_operand.vmem [shape: bf16[16,32], index: 3, kind: input, shape index: {}]
  %s4 = inlined_call_operand.vmem [shape: f32[1,32], index: 4, kind: input, shape index: {}]
  %s5 = inlined_call_operand.vmem [shape: f32[1,32], index: 5, kind: input, shape index: {}]
  %s6 = inlined_call_operand.vmem [shape: bf16[16,32], index: 6, kind: output, shape index: {}]
  %s7 = sld [smem:[#allocation0]]
  $region46: #{transformer_decoder.21} parent=0
    _
  %s9 = ssub.s32 1, %s7
  %s10 = scalar_select 0, %s9, %s7
  $region1: #{transformer_decoder.21} parent=0
    #allocation3 [shape = 'u8[512]{0}', space=vmem, size = 0x400, scoped, tag = 'input window, operand 2, single buffered']
    #allocation4 [shape = 's32[1]{0}', space=sflag, size = 0x4, scoped, tag = 'scoped memory for transformer_decoder.21']
    %11 = vsyncpa [#allocation4], 0
    // Predicated region
    $region2: #{transformer_decoder.21} parent=1 // pred_check
      _
    $region3: #{transformer_decoder.21} parent=1 // pred_check_branch
      %13 = sbr.rel (0) target = $region5
    $region4: #{transformer_decoder.21} parent=1 // pred_region
      _
    $region5: #{transformer_decoder.21} parent=1 // pred_fallthru
      _
    // Predicated region
    $region6: #{transformer_decoder.21} parent=1 // pred_check
      _
    $region7: #{transformer_decoder.21} parent=1 // pred_check_branch
      %15 = sbr.rel (0) target = $region9
    $region8: #{transformer_decoder.21} parent=1 // pred_region
      _
    $region9: #{transformer_decoder.21} parent=1 // pred_fallthru
      _
    // Predicated region
    $region10: #{transformer_decoder.21} parent=1 // pred_check
      _
    $region11: #{transformer_decoder.21} parent=1 // pred_check_branch
      %17 = sbr.rel (0) target = $region13
    $region12: #{transformer_decoder.21} parent=1 // pred_region
      %19 = vsyncadd [#allocation4], 0
      %s21 = sshll.u32 %s2, 4
      %s22 = int_to_ptr.hbm [resolvable:$true] %s21
      %s23 = sshll.u32 [#allocation3], 4
      %s24 = int_to_ptr.vmem [resolvable:$true] %s23
      %26 = dma.hbm_to_vmem [thread:$0]  %s22, 16, %s24, [#allocation4]
    $region13: #{transformer_decoder.21} parent=1 // pred_fallthru
      _
    // Predicated region
    $region14: #{transformer_decoder.21} parent=1 // pred_check
      _
    $region15: #{transformer_decoder.21} parent=1 // pred_check_branch
      %28 = sbr.rel (0) target = $region17
    $region16: #{transformer_decoder.21} parent=1 // pred_region
      _
    $region17: #{transformer_decoder.21} parent=1 // pred_fallthru
      _
    // Predicated region
    $region18: #{transformer_decoder.21} parent=1 // pred_check
      _
    $region19: #{transformer_decoder.21} parent=1 // pred_check_branch
      %30 = sbr.rel (0) target = $region21
    $region20: #{transformer_decoder.21} parent=1 // pred_region
      _
    $region21: #{transformer_decoder.21} parent=1 // pred_fallthru
      _
    // Predicated region
    $region22: #{transformer_decoder.21} parent=1 // pred_check
      _
    $region23: #{transformer_decoder.21} parent=1 // pred_check_branch
      %32 = sbr.rel (0) target = $region25
    $region24: #{transformer_decoder.21} parent=1 // pred_region
      _
    $region25: #{transformer_decoder.21} parent=1 // pred_fallthru
      _
    // Predicated region
    $region26: #{transformer_decoder.21} parent=1 // pred_check
      _
    $region27: #{transformer_decoder.21} parent=1 // pred_check_branch
      %34 = sbr.rel (0) target = $region29
    $region28: #{transformer_decoder.21} parent=1 // pred_region
      %36 = dma.done [#allocation4], 16
    $region29: #{transformer_decoder.21} parent=1 // pred_fallthru
      _
    %p38 = scmp.eq.s32.totalorder 0, 0
    // Predicated region
    $region30: #{transformer_decoder.21} parent=1 // pred_check
      %p39 = pneg %p38
    $region31: #{transformer_decoder.21} parent=1 // pred_check_branch
      %41 = sbr.rel (%p39) target = $region33
    $region32: #{transformer_decoder.21} parent=1 // pred_region
      %vm42 = vcmask 261120
      %43 = vst.msk [vmem:[#allocation2] sm:$0xff] %vm42, 0.0
      %44 = vst.msk [vmem:[#allocation2 + $0x8] sm:$0xff] %vm42, 0.0
    $region33: #{transformer_decoder.21} parent=1 // pred_fallthru
      _
    %v45 = vld [vmem:[#allocation2] sm:$0xff]
    %v46 = vld [vmem:[#allocation2 + $0x8] sm:$0xff]
    %v47 = vld [vmem:[%s0] sm:$0xf]
    %v48 = vld [vmem:[%s0 + $0x4] sm:$0xf]
    %v49 = vld [vmem:[%s1] sm:$0xf]
    %v50 = vld [vmem:[%s1 + $0x4] sm:$0xf]
    %v51 = vld [vmem:[%s1 + $0x8] sm:$0xf]
    %v52 = vld [vmem:[%s1 + $0xc] sm:$0xf]
    %v55 = vunpack.c.l.b16 %v47
    %v56 = vunpack.c.l.b16 %v48
    %v57 = vpack.c.b16 %v56, %v55
    %v62 = vunpack.c.l.b16 %v49
    %v63 = vunpack.c.l.b16 %v50
    %v64 = vunpack.c.l.b16 %v51
    %v65 = vunpack.c.l.b16 %v52
    %v66 = vpack.c.b16 %v63, %v62
    %v67 = vpack.c.b16 %v65, %v64
    %vm70 = vcmask 261120
    %v72 = vsel %vm70, %v57, 0
    %74 = vmatpush.bf16.msra.mxu0 0
    %75 = vmatpush.bf16.msra.mxu0 0
    %76 = vmatpush.bf16.msra.mxu0 0
    %77 = vmatpush.bf16.msra.mxu0 0
    %78 = vmatpush.bf16.msra.mxu0 0
    %79 = vmatpush.bf16.msra.mxu0 0
    %80 = vmatpush.bf16.msra.mxu0 %v67
    %81 = vmatpush.bf16.msra.mxu0 %v66
    %82 = vmatmul.bf16.gmra.mxu0 %v72
    %v83 = vpop.f32.mrf.mxu0
    %v84 = vadd.f32 0.0, %v83
    %v85 = vpop.f32.mrf.mxu0
    %v86 = vadd.f32 0.0, %v85
    %87 = vdwg.mxu0
    %v88 = vadd.f32 %v45, %v84
    %v89 = vadd.f32 %v46, %v86
    %90 = vst.msk [vmem:[#allocation2] sm:$0xff] %vm70, %v88
    %91 = vst.msk [vmem:[#allocation2 + $0x8] sm:$0xff] %vm70, %v89
    // Predicated region
    $region34: #{transformer_decoder.21} parent=1 // pred_check
      %p92 = pneg %p38
    $region35: #{transformer_decoder.21} parent=1 // pred_check_branch
      %94 = sbr.rel (%p92) target = $region37
    $region36: #{transformer_decoder.21} parent=1 // pred_region
      %v95 = vld [vmem:[#allocation2] sm:$0xff]
      %v96 = vld [vmem:[#allocation2 + $0x8] sm:$0xff]
      %v97 = vld [vmem:[#allocation3] sm:$0x1]
      %v99 = vperm.slane %v97, 0
      %v101 = vadd.f32 %v95, %v99
      %v102 = vadd.f32 %v96, %v99
      %v103 = vld [vmem:[%s3] sm:$0xf]
      %v104 = vld [vmem:[%s3 + $0x4] sm:$0xf]
      %v105 = vunpack.c.l.bf16 %v103
      %v106 = vunpack.c.l.bf16 %v104
      %v107 = vadd.f32 %v101, %v105
      %v108 = vadd.f32 %v102, %v106
      %v109 = vsel %vm70, %v107, 0.0
      %110 = vadd.xlane.f32.xlu0 %v109
      %v111 = vpop.xlane.xlu0 %110
      %v112 = vsel %vm70, %v108, 0.0
      %113 = vadd.xlane.f32.xlu0 %v112
      %v114 = vpop.xlane.xlu0 %113
      %v115 = vrcp.pop 32.0
      %v116 = vmul.f32 32.0, %v115
      %v117 = vsub.f32 1.0, %v116
      %v118 = vmul.f32 %v115, %v117
      %v119 = vadd.f32 %v115, %v118
      %vm120 = vweird.f32 %v115
      %v121 = vsel %vm120, %v115, %v119
      %v122 = vmul.f32 %v111, %v121
      %v123 = vmul.f32 %v114, %v121
      %v124 = vsub.f32 %v107, %v122
      %v125 = vsub.f32 %v108, %v123
      %v126 = vmul.f32 %v124, %v124
      %v127 = vmul.f32 %v125, %v125
      %v128 = vsel %vm70, %v126, 0.0
      %129 = vadd.xlane.f32.xlu0 %v128
      %v130 = vpop.xlane.xlu0 %129
      %v131 = vsel %vm70, %v127, 0.0
      %132 = vadd.xlane.f32.xlu0 %v131
      %v133 = vpop.xlane.xlu0 %132
      %v134 = vmul.f32 %v130, %v121
      %v135 = vmul.f32 %v133, %v121
      %v136 = vadd.f32 %v134, 1e-05
      %v137 = vadd.f32 %v135, 1e-05
      %v138 = vrsqrt.pop %v136
      %v139 = vmul.f32 %v138, %v136
      %v140 = vmul.f32 %v139, %v138
      %v141 = vmul.f32 0.5, %v140
      %v142 = vsub.f32 1.5, %v141
      %v143 = vmul.f32 %v138, %v142
      %vm144 = vweird.f32 %v136
      %vm145 = vweird.f32 %v138
      %vm146 = vmor %vm144, %vm145
      %v147 = vsel %vm146, %v138, %v143
      %v148 = vrsqrt.pop %v137
      %v149 = vmul.f32 %v148, %v137
      %v150 = vmul.f32 %v149, %v148
      %v151 = vmul.f32 0.5, %v150
      %v152 = vsub.f32 1.5, %v151
      %v153 = vmul.f32 %v148, %v152
      %vm154 = vweird.f32 %v137
      %vm155 = vweird.f32 %v148
      %vm156 = vmor %vm154, %vm155
      %v157 = vsel %vm156, %v148, %v153
      %v158 = vmul.f32 %v124, %v147
      %v159 = vmul.f32 %v125, %v157
      %v160 = vld [vmem:[%s4] sm:$0x1]
      %v162 = vperm.slane %v160, 0
      %v164 = vmul.f32 %v158, %v162
      %v165 = vmul.f32 %v159, %v162
      %v166 = vld [vmem:[%s5] sm:$0x1]
      %v168 = vperm.slane %v166, 0
      %v170 = vadd.f32 %v164, %v168
      %v171 = vadd.f32 %v165, %v168
      %v172 = vpack.c.bf16 %v170, %v170
      %v173 = vpack.c.bf16 %v171, %v171
      %vm174 = vcmask 257024
      %175 = vst.msk [vmem:[%s6] sm:$0xf] %vm174, %v172
      %176 = vst.msk [vmem:[%s6 + $0x4] sm:$0xf] %vm174, %v173
    $region37: #{transformer_decoder.21} parent=1 // pred_fallthru
      _
    // Predicated region
    $region38: #{transformer_decoder.21} parent=1 // pred_check
      _
    $region39: #{transformer_decoder.21} parent=1 // pred_check_branch
      %178 = sbr.rel (0) target = $region41
    $region40: #{transformer_decoder.21} parent=1 // pred_region
      _
    $region41: #{transformer_decoder.21} parent=1 // pred_fallthru
      _
    // Predicated region
    $region42: #{transformer_decoder.21} parent=1 // pred_check
      _
    $region43: #{transformer_decoder.21} parent=1 // pred_check_branch
      %180 = sbr.rel (0) target = $region45
    $region44: #{transformer_decoder.21} parent=1 // pred_region
      _
    $region45: #{transformer_decoder.21} parent=1 // pred_fallthru
      _
    %181 = vsyncpa [#allocation4], 1

// kernel: transformer_decoder.19
$region0: #{transformer_decoder.19}
  #allocation0 [shape = 'u32[]', space=smem, size = 0x4, offset = 0x4, fixed_abs, tag = 'smem constant byte address 0x4 - core index']
  #allocation1 [shape = 'u32[72,128]{1,0:T(1,128)}', space=vmem, size = 0x9000, scoped, tag = 'internal scratch']
  #allocation2 [shape = 'f32[3,16,32]{2,1,0:T(8,128)}', space=vmem, size = 0x6000, scoped, tag = 'scratch operand']
  %s0 = inlined_call_operand.vmem [shape: bf16[16,32], index: 0, kind: input, shape index: {}]
  %s1 = inlined_call_operand.hbm [shape: bf16[3,32,32], index: 1, kind: input, shape index: {}]
  %s2 = inlined_call_operand.vmem [shape: f32[3,1,32], index: 2, kind: input, shape index: {}]
  %s3 = inlined_call_operand.vmem [shape: bf16[3,16,32], index: 3, kind: output, shape index: {}]
  %s4 = sld [smem:[#allocation0]]
  $region34: #{transformer_decoder.19} parent=0
    _
  %s6 = ssub.s32 1, %s4
  %s7 = scalar_select 0, %s6, %s4
  $region1: #{transformer_decoder.19} parent=0
    #allocation3 [shape = 'u8[24576]{0}', space=vmem, size = 0x6000, scoped, tag = 'input window, operand 1, single buffered']
    #allocation4 [shape = 's32[1]{0}', space=sflag, size = 0x4, scoped, tag = 'scoped memory for transformer_decoder.19']
    %8 = vsyncpa [#allocation4], 0
    // Predicated region
    $region2: #{transformer_decoder.19} parent=1 // pred_check
      _
    $region3: #{transformer_decoder.19} parent=1 // pred_check_branch
      %10 = sbr.rel (0) target = $region5
    $region4: #{transformer_decoder.19} parent=1 // pred_region
      _
    $region5: #{transformer_decoder.19} parent=1 // pred_fallthru
      _
    // Predicated region
    $region6: #{transformer_decoder.19} parent=1 // pred_check
      _
    $region7: #{transformer_decoder.19} parent=1 // pred_check_branch
      %12 = sbr.rel (0) target = $region9
    $region8: #{transformer_decoder.19} parent=1 // pred_region
      %14 = vsyncadd [#allocation4], 0
      %s15 = sshll.u32 %s1, 4
      %s16 = int_to_ptr.hbm [resolvable:$true] %s15
      %s17 = sshll.u32 [#allocation3], 4
      %s18 = int_to_ptr.vmem [resolvable:$true] %s17
      %23 = dma.hbm_to_vmem [thread:$0]  %s16, 768, %s18, [#allocation4], 64, 64, 4
    $region9: #{transformer_decoder.19} parent=1 // pred_fallthru
      _
    // Predicated region
    $region10: #{transformer_decoder.19} parent=1 // pred_check
      _
    $region11: #{transformer_decoder.19} parent=1 // pred_check_branch
      %25 = sbr.rel (0) target = $region13
    $region12: #{transformer_decoder.19} parent=1 // pred_region
      _
    $region13: #{transformer_decoder.19} parent=1 // pred_fallthru
      _
    // Predicated region
    $region14: #{transformer_decoder.19} parent=1 // pred_check
      _
    $region15: #{transformer_decoder.19} parent=1 // pred_check_branch
      %27 = sbr.rel (0) target = $region17
    $region16: #{transformer_decoder.19} parent=1 // pred_region
      %29 = dma.done [#allocation4], 768
    $region17: #{transformer_decoder.19} parent=1 // pred_fallthru
      _
    %p31 = scmp.eq.s32.totalorder 0, 0
    // Predicated region
    $region18: #{transformer_decoder.19} parent=1 // pred_check
      %p32 = pneg %p31
    $region19: #{transformer_decoder.19} parent=1 // pred_check_branch
      %34 = sbr.rel (%p32) target = $region21
    $region20: #{transformer_decoder.19} parent=1 // pred_region
      %vm35 = vcmask 261120
      %36 = vst.msk [vmem:[#allocation2] sm:$0xff] %vm35, 0.0
      %37 = vst.msk [vmem:[#allocation2 + $0x8] sm:$0xff] %vm35, 0.0
      %38 = vst.msk [vmem:[#allocation2 + $0x10] sm:$0xff] %vm35, 0.0
      %39 = vst.msk [vmem:[#allocation2 + $0x18] sm:$0xff] %vm35, 0.0
      %40 = vst.msk [vmem:[#allocation2 + $0x20] sm:$0xff] %vm35, 0.0
      %41 = vst.msk [vmem:[#allocation2 + $0x28] sm:$0xff] %vm35, 0.0
    $region21: #{transformer_decoder.19} parent=1 // pred_fallthru
      _
    %v42 = vld [vmem:[%s0] sm:$0xf]
    %v43 = vld [vmem:[%s0 + $0x4] sm:$0xf]
    %v44 = vld [vmem:[#allocation2] sm:$0xff]
    %v45 = vld [vmem:[#allocation2 + $0x8] sm:$0xff]
    %v46 = vld [vmem:[#allocation3] sm:$0xf]
    %v47 = vld [vmem:[#allocation3 + $0x4] sm:$0xf]
    %v48 = vld [vmem:[#allocation3 + $0x8] sm:$0xf]
    %v49 = vld [vmem:[#allocation3 + $0xc] sm:$0xf]
    %v52 = vunpack.c.l.b16 %v42
    %v53 = vunpack.c.l.b16 %v43
    %v54 = vpack.c.b16 %v53, %v52
    %v59 = vunpack.c.l.b16 %v46
    %v60 = vunpack.c.l.b16 %v47
    %v61 = vunpack.c.l.b16 %v48
    %v62 = vunpack.c.l.b16 %v49
    %v63 = vpack.c.b16 %v60, %v59
    %v64 = vpack.c.b16 %v62, %v61
    %vm67 = vcmask 261120
    %v69 = vsel %vm67, %v54, 0
    %71 = vmatpush.bf16.msra.mxu0 0
    %72 = vmatpush.bf16.msra.mxu0 0
    %73 = vmatpush.bf16.msra.mxu0 0
    %74 = vmatpush.bf16.msra.mxu0 0
    %75 = vmatpush.bf16.msra.mxu0 0
    %76 = vmatpush.bf16.msra.mxu0 0
    %77 = vmatpush.bf16.msra.mxu0 %v64
    %78 = vmatpush.bf16.msra.mxu0 %v63
    %79 = vmatmul.bf16.gmra.mxu0 %v69
    %v80 = vpop.f32.mrf.mxu0
    %v81 = vadd.f32 0.0, %v80
    %v82 = vpop.f32.mrf.mxu0
    %v83 = vadd.f32 0.0, %v82
    %84 = vdwg.mxu0
    %v85 = vadd.f32 %v44, %v81
    %v86 = vadd.f32 %v45, %v83
    %87 = vst.msk [vmem:[#allocation2] sm:$0xff] %vm67, %v85
    %88 = vst.msk [vmem:[#allocation2 + $0x8] sm:$0xff] %vm67, %v86
    %s89 = scalar_lea.vmem [#allocation2], 16
    %v90 = vld [vmem:[%s89] sm:$0xff]
    %v91 = vld [vmem:[%s89 + $0x8] sm:$0xff]
    %s92 = scalar_lea.vmem [#allocation3], 16
    %v93 = vld [vmem:[%s92] sm:$0xf]
    %v94 = vld [vmem:[%s92 + $0x4] sm:$0xf]
    %v95 = vld [vmem:[%s92 + $0x8] sm:$0xf]
    %v96 = vld [vmem:[%s92 + $0xc] sm:$0xf]
    %v101 = vunpack.c.l.b16 %v93
    %v102 = vunpack.c.l.b16 %v94
    %v103 = vunpack.c.l.b16 %v95
    %v104 = vunpack.c.l.b16 %v96
    %v105 = vpack.c.b16 %v102, %v101
    %v106 = vpack.c.b16 %v104, %v103
    %109 = vmatpush.bf16.msra.mxu0 0
    %110 = vmatpush.bf16.msra.mxu0 0
    %111 = vmatpush.bf16.msra.mxu0 0
    %112 = vmatpush.bf16.msra.mxu0 0
    %113 = vmatpush.bf16.msra.mxu0 0
    %114 = vmatpush.bf16.msra.mxu0 0
    %115 = vmatpush.bf16.msra.mxu0 %v106
    %116 = vmatpush.bf16.msra.mxu0 %v105
    %117 = vmatmul.bf16.gmra.mxu0 %v69
    %v118 = vpop.f32.mrf.mxu0
    %v119 = vadd.f32 0.0, %v118
    %v120 = vpop.f32.mrf.mxu0
    %v121 = vadd.f32 0.0, %v120
    %122 = vdwg.mxu0
    %v123 = vadd.f32 %v90, %v119
    %v124 = vadd.f32 %v91, %v121
    %125 = vst.msk [vmem:[%s89] sm:$0xff] %vm67, %v123
    %126 = vst.msk [vmem:[%s89 + $0x8] sm:$0xff] %vm67, %v124
    %s127 = scalar_lea.vmem [#allocation2], 32
    %v128 = vld [vmem:[%s127] sm:$0xff]
    %v129 = vld [vmem:[%s127 + $0x8] sm:$0xff]
    %s130 = scalar_lea.vmem [#allocation3], 32
    %v131 = vld [vmem:[%s130] sm:$0xf]
    %v132 = vld [vmem:[%s130 + $0x4] sm:$0xf]
    %v133 = vld [vmem:[%s130 + $0x8] sm:$0xf]
    %v134 = vld [vmem:[%s130 + $0xc] sm:$0xf]
    %v139 = vunpack.c.l.b16 %v131
    %v140 = vunpack.c.l.b16 %v132
    %v141 = vunpack.c.l.b16 %v133
    %v142 = vunpack.c.l.b16 %v134
    %v143 = vpack.c.b16 %v140, %v139
    %v144 = vpack.c.b16 %v142, %v141
    %147 = vmatpush.bf16.msra.mxu0 0
    %148 = vmatpush.bf16.msra.mxu0 0
    %149 = vmatpush.bf16.msra.mxu0 0
    %150 = vmatpush.bf16.msra.mxu0 0
    %151 = vmatpush.bf16.msra.mxu0 0
    %152 = vmatpush.bf16.msra.mxu0 0
    %153 = vmatpush.bf16.msra.mxu0 %v144
    %154 = vmatpush.bf16.msra.mxu0 %v143
    %155 = vmatmul.bf16.gmra.mxu0 %v69
    %v156 = vpop.f32.mrf.mxu0
    %v157 = vadd.f32 0.0, %v156
    %v158 = vpop.f32.mrf.mxu0
    %v159 = vadd.f32 0.0, %v158
    %160 = vdwg.mxu0
    %v161 = vadd.f32 %v128, %v157
    %v162 = vadd.f32 %v129, %v159
    %163 = vst.msk [vmem:[%s127] sm:$0xff] %vm67, %v161
    %164 = vst.msk [vmem:[%s127 + $0x8] sm:$0xff] %vm67, %v162
    // Predicated region
    $region22: #{transformer_decoder.19} parent=1 // pred_check
      %p165 = pneg %p31
    $region23: #{transformer_decoder.19} parent=1 // pred_check_branch
      %167 = sbr.rel (%p165) target = $region25
    $region24: #{transformer_decoder.19} parent=1 // pred_region
      %v168 = vld [vmem:[#allocation2] sm:$0xff]
      %v169 = vld [vmem:[#allocation2 + $0x8] sm:$0xff]
      %v170 = vld [vmem:[#allocation2 + $0x10] sm:$0xff]
      %v171 = vld [vmem:[#allocation2 + $0x18] sm:$0xff]
      %v172 = vld [vmem:[#allocation2 + $0x20] sm:$0xff]
      %v173 = vld [vmem:[#allocation2 + $0x28] sm:$0xff]
      %v174 = vld [vmem:[%s2] sm:$0x1]
      %v175 = vld [vmem:[%s2 + $0x1] sm:$0x1]
      %v176 = vld [vmem:[%s2 + $0x2] sm:$0x1]
      %v180 = vperm.slane %v174, 0
      %v181 = vperm.slane %v175, 0
      %v182 = vperm.slane %v176, 0
      %v186 = vadd.f32 %v168, %v180
      %v187 = vadd.f32 %v169, %v180
      %v188 = vadd.f32 %v170, %v181
      %v189 = vadd.f32 %v171, %v181
      %v190 = vadd.f32 %v172, %v182
      %v191 = vadd.f32 %v173, %v182
      %v192 = vpack.c.bf16 %v186, %v186
      %v193 = vpack.c.bf16 %v187, %v187
      %v194 = vpack.c.bf16 %v188, %v188
      %v195 = vpack.c.bf16 %v189, %v189
      %v196 = vpack.c.bf16 %v190, %v190
      %v197 = vpack.c.bf16 %v191, %v191
      %vm198 = vcmask 257024
      %199 = vst.msk [vmem:[%s3] sm:$0xf] %vm198, %v192
      %200 = vst.msk [vmem:[%s3 + $0x4] sm:$0xf] %vm198, %v193
      %201 = vst.msk [vmem:[%s3 + $0x8] sm:$0xf] %vm198, %v194
      %202 = vst.msk [vmem:[%s3 + $0xc] sm:$0xf] %vm198, %v195
      %203 = vst.msk [vmem:[%s3 + $0x10] sm:$0xf] %vm198, %v196
      %204 = vst.msk [vmem:[%s3 + $0x14] sm:$0xf] %vm198, %v197
    $region25: #{transformer_decoder.19} parent=1 // pred_fallthru
      _
    // Predicated region
    $region26: #{transformer_decoder.19} parent=1 // pred_check
      _
    $region27: #{transformer_decoder.19} parent=1 // pred_check_branch
      %206 = sbr.rel (0) target = $region29
    $region28: #{transformer_decoder.19} parent=1 // pred_region
      _
    $region29: #{transformer_decoder.19} parent=1 // pred_fallthru
      _
    // Predicated region
    $region30: #{transformer_decoder.19} parent=1 // pred_check
      _
    $region31: #{transformer_decoder.19} parent=1 // pred_check_branch
      %208 = sbr.rel (0) target = $region33
    $region32: #{transformer_decoder.19} parent=1 // pred_region
      _
    $region33: #{transformer_decoder.19} parent=1 // pred_fallthru
      _
    %209 = vsyncpa [#allocation4], 1

// kernel: transformer_decoder.20
$region0: #{transformer_decoder.20}
  #allocation0 [shape = 'u32[]', space=smem, size = 0x4, offset = 0x4, fixed_abs, tag = 'smem constant byte address 0x4 - core index']
  #allocation1 [shape = 'u32[72,128]{1,0:T(1,128)}', space=vmem, size = 0x9000, scoped, tag = 'internal scratch']
  #allocation2 [shape = 'f32[4,8,1]{2,1,0:T(8,128)}', space=vmem, size = 0x4000, scoped, tag = 'scratch operand']
  #allocation3 [shape = 'f32[4,8,1]{2,1,0:T(8,128)}', space=vmem, size = 0x4000, scoped, tag = 'scratch operand']
  #allocation4 [shape = 'f32[4,8,8]{2,1,0:T(8,128)}', space=vmem, size = 0x4000, scoped, tag = 'scratch operand']
  %s0 = inlined_call_operand.vmem [shape: bf16[6,8,32], index: 0, kind: input, shape index: {}, may-alias: {0,1,2}]
  %s1 = inlined_call_operand.vmem [shape: bf16[6,8,32], index: 1, kind: input, shape index: {}, may-alias: {0,1,2}]
  %s2 = inlined_call_operand.vmem [shape: bf16[6,8,32], index: 2, kind: input, shape index: {}, may-alias: {0,1,2}]
  %s3 = inlined_call_operand.vmem [shape: bf16[2,8,32], index: 3, kind: output, shape index: {}]
  %s4 = sld [smem:[#allocation0]]
  $region53: #{transformer_decoder.20} parent=0
    _
  %s6 = ssub.s32 1, %s4
  %s7 = scalar_select 0, %s6, %s4
  loop: start=0, step=1, limit=4
  $region2: #{transformer_decoder.20} parent=0 // loop_pre_header
    _
  $region3: #{transformer_decoder.20} parent=0 // loop_header
    %s9 = sphi 0, %s13
    %p10 = scmp.ge.s32.totalorder %s9, 4
    %s16 = sphi 0, %s28
    %s17 = sphi 0, %s24
    %s18 = sphi 0, %s16
    %s19 = sphi 0, %s17
    %s20 = sphi 0, %s18
    %s21 = sphi 0, %s19
    %s31 = sphi 0, %s33
    %s34 = sphi 0, %s31
    %s35 = sphi 0, %s34
    %s51 = sphi 0, %s35
    %s61 = sphi 0, %s63
    %s64 = sphi 0, %s61
    %s65 = sphi 0, %s64
    %s81 = sphi 0, %s65
    %s91 = sphi 0, %s93
    %s94 = sphi 0, %s91
    %s95 = sphi 0, %s94
    %s111 = sphi 0, %s95
    %s117 = sphi 0, %s119
    %s120 = sphi 0, %s117
    %s121 = sphi 0, %s120
    %s137 = sphi 0, %s121
  $region4: #{transformer_decoder.20} parent=0 // loop_header_branch
    %12 = sbr.rel (%p10) target = $region8
  $region5: #{transformer_decoder.20} parent=0 // loop_body
    %s14 = ssub.s32 %s9, 1
    %s15 = ssub.s32 %s9, 2
    %s22 = sadd.s32 1, %s17
    %p23 = scmp.ge.s32.totalorder %s22, 1
    %s24 = scalar_select %p23, 0, %s22
    %s25 = sadd.s32 1, %s16
    %s26 = scalar_select %p23, %s25, %s16
    %p27 = scmp.ge.s32.totalorder %s26, 2
    %s28 = scalar_select %p27, 0, %s26
    %s29 = ssub.s32 %s16, %s28
    %p30 = scmp.eq.s32.totalorder %s29, 0
    %s32 = sadd.s32 %s31, 1
    %s33 = scalar_select %p30, %s31, %s32
    %p36 = pneg %p30
    %p37 = scmp.eq.s32.totalorder %s9, 1
    %p38 = por %p36, %p37
    %p39 = scmp.ne.s32.totalorder %s31, %s34
    %p40 = scmp.eq.s32.totalorder %s9, 0
    %p41 = por %p39, %p40
    %p42 = scmp.ne.s32.totalorder %s31, %s34
    %p43 = scmp.eq.s32.totalorder %s14, 1
    %p44 = por %p42, %p43
    %p45 = scmp.ne.s32.totalorder %s34, %s35
    %p46 = scmp.eq.s32.totalorder %s14, 0
    %p47 = por %p45, %p46
    %p48 = scmp.ne.s32.totalorder %s34, %s35
    %p49 = scmp.eq.s32.totalorder %s15, 1
    %p50 = por %p48, %p49
    %p52 = scmp.ne.s32.totalorder %s35, %s51
    %p53 = scmp.eq.s32.totalorder %s15, 0
    %p54 = por %p52, %p53
    %s55 = sadd.s32 %s16, 2
    %s56 = sadd.s32 %s28, 2
    %s57 = ssub.s32 %s55, %s56
    %s58 = ssub.s32 %s17, %s24
    %s59 = sor.u32 %s57, %s58
    %p60 = scmp.eq.s32.totalorder %s59, 0
    %s62 = sadd.s32 %s61, 1
    %s63 = scalar_select %p60, %s61, %s62
    %p66 = pneg %p60
    %p67 = scmp.eq.s32.totalorder %s9, 1
    %p68 = por %p66, %p67
    %p69 = scmp.ne.s32.totalorder %s61, %s64
    %p70 = scmp.eq.s32.totalorder %s9, 0
    %p71 = por %p69, %p70
    %p72 = scmp.ne.s32.totalorder %s61, %s64
    %p73 = scmp.eq.s32.totalorder %s14, 1
    %p74 = por %p72, %p73
    %p75 = scmp.ne.s32.totalorder %s64, %s65
    %p76 = scmp.eq.s32.totalorder %s14, 0
    %p77 = por %p75, %p76
    %p78 = scmp.ne.s32.totalorder %s64, %s65
    %p79 = scmp.eq.s32.totalorder %s15, 1
    %p80 = por %p78, %p79
    %p82 = scmp.ne.s32.totalorder %s65, %s81
    %p83 = scmp.eq.s32.totalorder %s15, 0
    %p84 = por %p82, %p83
    %s85 = sadd.s32 %s16, 4
    %s86 = sadd.s32 %s28, 4
    %s87 = ssub.s32 %s85, %s86
    %s88 = ssub.s32 %s17, %s24
    %s89 = sor.u32 %s87, %s88
    %p90 = scmp.eq.s32.totalorder %s89, 0
    %s92 = sadd.s32 %s91, 1
    %s93 = scalar_select %p90, %s91, %s92
    %p96 = pneg %p90
    %p97 = scmp.eq.s32.totalorder %s9, 1
    %p98 = por %p96, %p97
    %p99 = scmp.ne.s32.totalorder %s91, %s94
    %p100 = scmp.eq.s32.totalorder %s9, 0
    %p101 = por %p99, %p100
    %p102 = scmp.ne.s32.totalorder %s91, %s94
    %p103 = scmp.eq.s32.totalorder %s14, 1
    %p104 = por %p102, %p103
    %p105 = scmp.ne.s32.totalorder %s94, %s95
    %p106 = scmp.eq.s32.totalorder %s14, 0
    %p107 = por %p105, %p106
    %p108 = scmp.ne.s32.totalorder %s94, %s95
    %p109 = scmp.eq.s32.totalorder %s15, 1
    %p110 = por %p108, %p109
    %p112 = scmp.ne.s32.totalorder %s95, %s111
    %p113 = scmp.eq.s32.totalorder %s15, 0
    %p114 = por %p112, %p113
    %s115 = ssub.s32 %s16, %s28
    %p116 = scmp.eq.s32.totalorder %s115, 0
    %s118 = sadd.s32 %s117, 1
    %s119 = scalar_select %p116, %s117, %s118
    %p122 = pneg %p116
    %p123 = scmp.eq.s32.totalorder %s9, 1
    %p124 = por %p122, %p123
    %p125 = scmp.ne.s32.totalorder %s117, %s120
    %p126 = scmp.eq.s32.totalorder %s9, 0
    %p127 = por %p125, %p126
    %p128 = scmp.ne.s32.totalorder %s117, %s120
    %p129 = scmp.eq.s32.totalorder %s14, 1
    %p130 = por %p128, %p129
    %p131 = scmp.ne.s32.totalorder %s120, %s121
    %p132 = scmp.eq.s32.totalorder %s14, 0
    %p133 = por %p131, %p132
    %p134 = scmp.ne.s32.totalorder %s120, %s121
    %p135 = scmp.eq.s32.totalorder %s15, 1
    %p136 = por %p134, %p135
    %p138 = scmp.ne.s32.totalorder %s121, %s137
    %p139 = scmp.eq.s32.totalorder %s15, 0
    %p140 = por %p138, %p139
    %p141 = scmp.le.s32.totalorder 1, %s9
    %p142 = scmp.lt.s32.totalorder %s9, 3
    %p143 = pnand %p141, %p142
    %p144 = pneg %p143
    // Predicated region
    $region9: #{transformer_decoder.20} parent=5 // pred_check
      _
    $region10: #{transformer_decoder.20} parent=5 // pred_check_branch
      %146 = sbr.rel (%p143) target = $region12
    $region11: #{transformer_decoder.20} parent=5 // pred_region
      %s147 = ssub.s32 %s9, 1
    $region12: #{transformer_decoder.20} parent=5 // pred_fallthru
      _
    %p148 = scmp.lt.s32.totalorder %s9, 2
    // Predicated region
    $region13: #{transformer_decoder.20} parent=5 // pred_check
      %p149 = pneg %p148
    $region14: #{transformer_decoder.20} parent=5 // pred_check_branch
      %151 = sbr.rel (%p149) target = $region16
    $region15: #{transformer_decoder.20} parent=5 // pred_region
      // Predicated region
      $region17: #{transformer_decoder.20} parent=15 // pred_check
        %p152 = pneg %p41
      $region18: #{transformer_decoder.20} parent=15 // pred_check_branch
        %154 = sbr.rel (%p152) target = $region20
      $region19: #{transformer_decoder.20} parent=15 // pred_region
        %p155 = scmp.lt.s32.totalorder %s16, 5
        %s156 = scalar_select %p155, %s16, 5
        %s157 = smul.addr %s156, 4
        %s158 = scalar_lea.vmem %s0, %s157
      $region20: #{transformer_decoder.20} parent=15 // pred_fallthru
        _
      // Predicated region
      $region21: #{transformer_decoder.20} parent=15 // pred_check
        %p159 = pneg %p71
      $region22: #{transformer_decoder.20} parent=15 // pred_check_branch
        %161 = sbr.rel (%p159) target = $region24
      $region23: #{transformer_decoder.20} parent=15 // pred_region
        %s162 = sadd.s32 %s16, 2
        %p163 = scmp.lt.s32.totalorder %s162, 5
        %s164 = scalar_select %p163, %s162, 5
        %p165 = scmp.lt.s32.totalorder %s17, 0
        %s166 = scalar_select %p165, %s17, 0
        %s167 = sadd.s32 %s166, %s164
        %s168 = smul.addr %s167, 4
        %s169 = scalar_lea.vmem %s1, %s168
        %s170 = sadd.s32 %s16, 2
      $region24: #{transformer_decoder.20} parent=15 // pred_fallthru
        _
      // Predicated region
      $region25: #{transformer_decoder.20} parent=15 // pred_check
        %p171 = pneg %p101
      $region26: #{transformer_decoder.20} parent=15 // pred_check_branch
        %173 = sbr.rel (%p171) target = $region28
      $region27: #{transformer_decoder.20} parent=15 // pred_region
        %s174 = sadd.s32 %s16, 4
        %p175 = scmp.lt.s32.totalorder %s174, 5
        %s176 = scalar_select %p175, %s174, 5
        %p177 = scmp.lt.s32.totalorder %s17, 0
        %s178 = scalar_select %p177, %s17, 0
        %s179 = sadd.s32 %s178, %s176
        %s180 = smul.addr %s179, 4
        %s181 = scalar_lea.vmem %s2, %s180
        %s182 = sadd.s32 %s16, 4
      $region28: #{transformer_decoder.20} parent=15 // pred_fallthru
        _
    $region16: #{transformer_decoder.20} parent=5 // pred_fallthru
      _
    %p183 = scmp.le.s32.totalorder 1, %s9
    %p184 = scmp.lt.s32.totalorder %s9, 3
    %p185 = pnand %p183, %p184
    %p186 = pneg %p185
    // Predicated region
    $region29: #{transformer_decoder.20} parent=5 // pred_check
      _
    $region30: #{transformer_decoder.20} parent=5 // pred_check_branch
      %188 = sbr.rel (%p185) target = $region32
    $region31: #{transformer_decoder.20} parent=5 // pred_region
      %s189 = ssub.s32 %s9, 1
      %p190 = scmp.lt.s32.totalorder %s18, 5
      %s191 = scalar_select %p190, %s18, 5
      %s192 = smul.addr %s191, 4
      %s193 = scalar_lea.vmem %s0, %s192
      %p194 = pneg %p47
      %p195 = pneg %p44
      %s196 = sadd.s32 %s18, 2
      %p197 = scmp.lt.s32.totalorder %s196, 5
      %s198 = scalar_select %p197, %s196, 5
      %p199 = scmp.lt.s32.totalorder %s19, 0
      %s200 = scalar_select %p199, %s19, 0
      %s201 = sadd.s32 %s200, %s198
      %s202 = smul.addr %s201, 4
      %s203 = scalar_lea.vmem %s1, %s202
      %p204 = pneg %p77
      %p205 = pneg %p74
      %s206 = sadd.s32 %s18, 4
      %p207 = scmp.lt.s32.totalorder %s206, 5
      %s208 = scalar_select %p207, %s206, 5
      %p209 = scmp.lt.s32.totalorder %s19, 0
      %s210 = scalar_select %p209, %s19, 0
      %s211 = sadd.s32 %s210, %s208
      %s212 = smul.addr %s211, 4
      %s213 = scalar_lea.vmem %s2, %s212
      %p214 = pneg %p107
      %p215 = pneg %p104
      %p216 = pneg %p133
      %p217 = pneg %p130
      %p218 = scmp.lt.s32.totalorder %s18, 1
      %s219 = scalar_select %p218, %s18, 1
      %s220 = smul.addr %s219, 4
      %s221 = scalar_lea.vmem %s3, %s220
      %p222 = scmp.lt.s32.totalorder %s18, 5
      %s223 = scalar_select %p222, %s18, 5
      %s224 = smul.addr %s223, 4
      %s225 = scalar_lea.vmem %s0, %s224
      %s226 = sadd.s32 %s18, 2
      %p227 = scmp.lt.s32.totalorder %s226, 5
      %s228 = scalar_select %p227, %s226, 5
      %p229 = scmp.lt.s32.totalorder %s19, 0
      %s230 = scalar_select %p229, %s19, 0
      %s231 = sadd.s32 %s230, %s228
      %s232 = smul.addr %s231, 4
      %s233 = scalar_lea.vmem %s1, %s232
      %s234 = sadd.s32 %s18, 2
      %s235 = sadd.s32 %s18, 4
      %p236 = scmp.lt.s32.totalorder %s235, 5
      %s237 = scalar_select %p236, %s235, 5
      %p238 = scmp.lt.s32.totalorder %s19, 0
      %s239 = scalar_select %p238, %s19, 0
      %s240 = sadd.s32 %s239, %s237
      %s241 = smul.addr %s240, 4
      %s242 = scalar_lea.vmem %s2, %s241
      %s243 = sadd.s32 %s18, 4
      %p244 = scmp.lt.s32.totalorder %s18, 1
      %s245 = scalar_select %p244, %s18, 1
      %s246 = smul.addr %s245, 4
      %s247 = scalar_lea.vmem %s3, %s246
      %p249 = scmp.eq.s32.totalorder %s19, 0
      // Predicated region
      $region33: #{transformer_decoder.20} parent=31 // pred_check
        %p250 = pneg %p249
      $region34: #{transformer_decoder.20} parent=31 // pred_check_branch
        %252 = sbr.rel (%p250) target = $region36
      $region35: #{transformer_decoder.20} parent=31 // pred_region
        %vm253 = vcmask 7168
        %254 = vst.msk [vmem:[#allocation2] sm:$0xff] %vm253, -inf
        %255 = vst.msk [vmem:[#allocation2 + $0x8] sm:$0xff] %vm253, -inf
        %256 = vst.msk [vmem:[#allocation2 + $0x10] sm:$0xff] %vm253, -inf
        %257 = vst.msk [vmem:[#allocation2 + $0x18] sm:$0xff] %vm253, -inf
        %258 = vst.msk [vmem:[#allocation3] sm:$0xff] %vm253, 0.0
        %259 = vst.msk [vmem:[#allocation3 + $0x8] sm:$0xff] %vm253, 0.0
        %260 = vst.msk [vmem:[#allocation3 + $0x10] sm:$0xff] %vm253, 0.0
        %261 = vst.msk [vmem:[#allocation3 + $0x18] sm:$0xff] %vm253, 0.0
        %vm262 = vcmask 64512
        %263 = vst.msk [vmem:[#allocation4] sm:$0xff] %vm262, 0.0
        %264 = vst.msk [vmem:[#allocation4 + $0x8] sm:$0xff] %vm262, 0.0
        %265 = vst.msk [vmem:[#allocation4 + $0x10] sm:$0xff] %vm262, 0.0
        %266 = vst.msk [vmem:[#allocation4 + $0x18] sm:$0xff] %vm262, 0.0
      $region36: #{transformer_decoder.20} parent=31 // pred_fallthru
        _
      %v267 = vld [vmem:[%s225] sm:$0xf]
      %v268 = vld [vmem:[%s233] sm:$0xf]
      %v269 = vld [vmem:[%s242] sm:$0xf]
      %vm270 = vcmask 64512
      %v272 = vsel %vm270, %v267, 0
      %v275 = vsel %vm270, %v268, 0
      %277 = vmatpush.bf16.xpose.msra.mxu0 0
      %278 = vmatpush.bf16.xpose.msra.mxu0 0
      %279 = vmatpush.bf16.xpose.msra.mxu0 0
      %280 = vmatpush.bf16.xpose.msra.mxu0 0
      %281 = vmatpush.bf16.xpose.msra.mxu0 0
      %282 = vmatpush.bf16.xpose.msra.mxu0 0
      %283 = vmatpush.bf16.xpose.msra.mxu0 0
      %284 = vmatpush.bf16.xpose.msra.mxu0 %v275
      %285 = vmatmul.bf16.gmra.mxu0 %v272
      %v286 = vpop.f32.mrf.mxu0
      %v287 = vadd.f32 0.0, %v286
      %v288 = vpop.f32.mrf.mxu0
      %289 = vdwg.mxu0
      %v290 = vld [vmem:[#allocation2] sm:$0xff]
      %v291 = vsel %vm270, %v287, -inf
      %292 = vmax.xlane.f32.xlu0 %v291
      %v293 = vpop.xlane.xlu0 %292
      %v294 = vmax.f32 %v290, %v293
      %v295 = vsub.f32 %v290, %v294
      %v296 = vmul.f32 %v295, 1.442695
      %v297 = vpow.pop %v296
      %299 = vset.pattern.permute.xlu0 0
      %300 = vperm.xlu0 %299, %v294
      %v301 = vpop.permute.xlu0 %300
      %v303 = vsub.f32 %v287, %v301
      %v304 = vmul.f32 %v303, 1.442695
      %v305 = vpow.pop %v304
      %v306 = vld [vmem:[#allocation3] sm:$0xff]
      %v307 = vmul.f32 %v297, %v306
      %v308 = vsel %vm270, %v305, 0.0
      %309 = vadd.xlane.f32.xlu0 %v308
      %v310 = vpop.xlane.xlu0 %309
      %v311 = vadd.f32 %v307, %v310
      %vm312 = vcmask 7168
      %313 = vst.msk [vmem:[#allocation3] sm:$0xff] %vm312, %v311
      %v314 = vld [vmem:[#allocation4] sm:$0xff]
      %316 = vset.pattern.permute.xlu0 0
      %317 = vperm.xlu0 %316, %v297
      %v318 = vpop.permute.xlu0 %317
      %v320 = vmul.f32 %v318, %v314
      %v321 = vpack.c.bf16 %v305, %v305
      %v323 = vsel %vm270, %v321, 0
      %vm325 = vcmask 1043456
      %v327 = vsel %vm325, %v269, 0
      %329 = vmatpush.bf16.msra.mxu0 0
      %330 = vmatpush.bf16.msra.mxu0 0
      %331 = vmatpush.bf16.msra.mxu0 0
      %332 = vmatpush.bf16.msra.mxu0 0
      %333 = vmatpush.bf16.msra.mxu0 0
      %334 = vmatpush.bf16.msra.mxu0 0
      %335 = vmatpush.bf16.msra.mxu0 0
      %336 = vmatpush.bf16.msra.mxu0 %v327
      %337 = vmatmul.bf16.gmra.mxu0 %v323
      %v338 = vpop.f32.mrf.mxu0
      %v339 = vadd.f32 0.0, %v338
      %v340 = vpop.f32.mrf.mxu0
      %341 = vdwg.mxu0
      %v342 = vadd.f32 %v320, %v339
      %343 = vst.msk [vmem:[#allocation4] sm:$0xff] %vm270, %v342
      %344 = vst.msk [vmem:[#allocation2] sm:$0xff] %vm312, %v294
      %v345 = vld [vmem:[%s225] sm:$0xf]
      %v346 = vld [vmem:[%s233] sm:$0xf]
      %v347 = vld [vmem:[%s242] sm:$0xf]
      %v349 = vunpack.c.l.b16 %v345
      %v350 = vpack.c.b16 %v349, %v349
      %351 = vrot.lane.b32.xlu0 %v350, 120
      %v352 = vpop.permute.xlu0 %351
      %v354 = vunpack.c.l.b16 %v346
      %v355 = vpack.c.b16 %v354, %v354
      %356 = vrot.lane.b32.xlu0 %v355, 120
      %v357 = vpop.permute.xlu0 %356
      %v359 = vsel %vm270, %v352, 0
      %v362 = vsel %vm270, %v357, 0
      %364 = vmatpush.bf16.xpose.msra.mxu0 0
      %365 = vmatpush.bf16.xpose.msra.mxu0 0
      %366 = vmatpush.bf16.xpose.msra.mxu0 0
      %367 = vmatpush.bf16.xpose.msra.mxu0 0
      %368 = vmatpush.bf16.xpose.msra.mxu0 0
      %369 = vmatpush.bf16.xpose.msra.mxu0 0
      %370 = vmatpush.bf16.xpose.msra.mxu0 0
      %371 = vmatpush.bf16.xpose.msra.mxu0 %v362
      %372 = vmatmul.bf16.gmra.mxu0 %v359
      %v373 = vpop.f32.mrf.mxu0
      %v374 = vadd.f32 0.0, %v373
      %v375 = vpop.f32.mrf.mxu0
      %376 = vdwg.mxu0
      %s377 = scalar_lea.vmem [#allocation2], 8
      %v378 = vld [vmem:[%s377] sm:$0xff]
      %v379 = vsel %vm270, %v374, -inf
      %380 = vmax.xlane.f32.xlu0 %v379
      %v381 = vpop.xlane.xlu0 %380
      %v382 = vmax.f32 %v378, %v381
      %v383 = vsub.f32 %v378, %v382
      %v384 = vmul.f32 %v383, 1.442695
      %v385 = vpow.pop %v384
      %387 = vset.pattern.permute.xlu0 0
      %388 = vperm.xlu0 %387, %v382
      %v389 = vpop.permute.xlu0 %388
      %v391 = vsub.f32 %v374, %v389
      %v392 = vmul.f32 %v391, 1.442695
      %v393 = vpow.pop %v392
      %s394 = scalar_lea.vmem [#allocation3], 8
      %v395 = vld [vmem:[%s394] sm:$0xff]
      %v396 = vmul.f32 %v385, %v395
      %v397 = vsel %vm270, %v393, 0.0
      %398 = vadd.xlane.f32.xlu0 %v397
      %v399 = vpop.xlane.xlu0 %398
      %v400 = vadd.f32 %v396, %v399
      %401 = vst.msk [vmem:[%s394] sm:$0xff] %vm312, %v400
      %s402 = scalar_lea.vmem [#allocation4], 8
      %v403 = vld [vmem:[%s402] sm:$0xff]
      %405 = vset.pattern.permute.xlu0 0
      %406 = vperm.xlu0 %405, %v385
      %v407 = vpop.permute.xlu0 %406
      %v409 = vmul.f32 %v407, %v403
      %v410 = vpack.c.bf16 %v393, %v393
      %v412 = vunpack.c.l.b16 %v347
      %v413 = vpack.c.b16 %v412, %v412
      %414 = vrot.lane.b32.xlu0 %v413, 120
      %v415 = vpop.permute.xlu0 %414
      %v417 = vsel %vm270, %v410, 0
      %v420 = vsel %vm325, %v415, 0
      %422 = vmatpush.bf16.msra.mxu0 0
      %423 = vmatpush.bf16.msra.mxu0 0
      %424 = vmatpush.bf16.msra.mxu0 0
      %425 = vmatpush.bf16.msra.mxu0 0
      %426 = vmatpush.bf16.msra.mxu0 0
      %427 = vmatpush.bf16.msra.mxu0 0
      %428 = vmatpush.bf16.msra.mxu0 0
      %429 = vmatpush.bf16.msra.mxu0 %v420
      %430 = vmatmul.bf16.gmra.mxu0 %v417
      %v431 = vpop.f32.mrf.mxu0
      %v432 = vadd.f32 0.0, %v431
      %v433 = vpop.f32.mrf.mxu0
      %434 = vdwg.mxu0
      %v435 = vadd.f32 %v409, %v432
      %436 = vst.msk [vmem:[%s402] sm:$0xff] %vm270, %v435
      %437 = vst.msk [vmem:[%s377] sm:$0xff] %vm312, %v382
      %v438 = vld [vmem:[%s225] sm:$0xf]
      %v439 = vld [vmem:[%s233] sm:$0xf]
      %v440 = vld [vmem:[%s242] sm:$0xf]
      %v442 = vunpack.c.l.b16 %v438
      %v443 = vpack.c.b16 %v442, %v442
      %444 = vrot.lane.b32.xlu0 %v443, 112
      %v445 = vpop.permute.xlu0 %444
      %v447 = vunpack.c.l.b16 %v439
      %v448 = vpack.c.b16 %v447, %v447
      %449 = vrot.lane.b32.xlu0 %v448, 112
      %v450 = vpop.permute.xlu0 %449
      %v452 = vsel %vm270, %v445, 0
      %v455 = vsel %vm270, %v450, 0
      %457 = vmatpush.bf16.xpose.msra.mxu0 0
      %458 = vmatpush.bf16.xpose.msra.mxu0 0
      %459 = vmatpush.bf16.xpose.msra.mxu0 0
      %460 = vmatpush.bf16.xpose.msra.mxu0 0
      %461 = vmatpush.bf16.xpose.msra.mxu0 0
      %462 = vmatpush.bf16.xpose.msra.mxu0 0
      %463 = vmatpush.bf16.xpose.msra.mxu0 0
      %464 = vmatpush.bf16.xpose.msra.mxu0 %v455
      %465 = vmatmul.bf16.gmra.mxu0 %v452
      %v466 = vpop.f32.mrf.mxu0
      %v467 = vadd.f32 0.0, %v466
      %v468 = vpop.f32.mrf.mxu0
      %469 = vdwg.mxu0
      %s470 = scalar_lea.vmem [#allocation2], 16
      %v471 = vld [vmem:[%s470] sm:$0xff]
      %v472 = vsel %vm270, %v467, -inf
      %473 = vmax.xlane.f32.xlu0 %v472
      %v474 = vpop.xlane.xlu0 %473
      %v475 = vmax.f32 %v471, %v474
      %v476 = vsub.f32 %v471, %v475
      %v477 = vmul.f32 %v476, 1.442695
      %v478 = vpow.pop %v477
      %480 = vset.pattern.permute.xlu0 0
      %481 = vperm.xlu0 %480, %v475
      %v482 = vpop.permute.xlu0 %481
      %v484 = vsub.f32 %v467, %v482
      %v485 = vmul.f32 %v484, 1.442695
      %v486 = vpow.pop %v485
      %s487 = scalar_lea.vmem [#allocation3], 16
      %v488 = vld [vmem:[%s487] sm:$0xff]
      %v489 = vmul.f32 %v478, %v488
      %v490 = vsel %vm270, %v486, 0.0
      %491 = vadd.xlane.f32.xlu0 %v490
      %v492 = vpop.xlane.xlu0 %491
      %v493 = vadd.f32 %v489, %v492
      %494 = vst.msk [vmem:[%s487] sm:$0xff] %vm312, %v493
      %s495 = scalar_lea.vmem [#allocation4], 16
      %v496 = vld [vmem:[%s495] sm:$0xff]
      %498 = vset.pattern.permute.xlu0 0
      %499 = vperm.xlu0 %498, %v478
      %v500 = vpop.permute.xlu0 %499
      %v502 = vmul.f32 %v500, %v496
      %v503 = vpack.c.bf16 %v486, %v486
      %v505 = vunpack.c.l.b16 %v440
      %v506 = vpack.c.b16 %v505, %v505
      %507 = vrot.lane.b32.xlu0 %v506, 112
      %v508 = vpop.permute.xlu0 %507
      %v510 = vsel %vm270, %v503, 0
      %v513 = vsel %vm325, %v508, 0
      %515 = vmatpush.bf16.msra.mxu0 0
      %516 = vmatpush.bf16.msra.mxu0 0
      %517 = vmatpush.bf16.msra.mxu0 0
      %518 = vmatpush.bf16.msra.mxu0 0
      %519 = vmatpush.bf16.msra.mxu0 0
      %520 = vmatpush.bf16.msra.mxu0 0
      %521 = vmatpush.bf16.msra.mxu0 0
      %522 = vmatpush.bf16.msra.mxu0 %v513
      %523 = vmatmul.bf16.gmra.mxu0 %v510
      %v524 = vpop.f32.mrf.mxu0
      %v525 = vadd.f32 0.0, %v524
      %v526 = vpop.f32.mrf.mxu0
      %527 = vdwg.mxu0
      %v528 = vadd.f32 %v502, %v525
      %529 = vst.msk [vmem:[%s495] sm:$0xff] %vm270, %v528
      %530 = vst.msk [vmem:[%s470] sm:$0xff] %vm312, %v475
      %v531 = vld [vmem:[%s225] sm:$0xf]
      %v532 = vld [vmem:[%s233] sm:$0xf]
      %v533 = vld [vmem:[%s242] sm:$0xf]
      %v535 = vunpack.c.l.b16 %v531
      %v536 = vpack.c.b16 %v535, %v535
      %537 = vrot.lane.b32.xlu0 %v536, 104
      %v538 = vpop.permute.xlu0 %537
      %v540 = vunpack.c.l.b16 %v532
      %v541 = vpack.c.b16 %v540, %v540
      %542 = vrot.lane.b32.xlu0 %v541, 104
      %v543 = vpop.permute.xlu0 %542
      %v545 = vsel %vm270, %v538, 0
      %v548 = vsel %vm270, %v543, 0
      %550 = vmatpush.bf16.xpose.msra.mxu0 0
      %551 = vmatpush.bf16.xpose.msra.mxu0 0
      %552 = vmatpush.bf16.xpose.msra.mxu0 0
      %553 = vmatpush.bf16.xpose.msra.mxu0 0
      %554 = vmatpush.bf16.xpose.msra.mxu0 0
      %555 = vmatpush.bf16.xpose.msra.mxu0 0
      %556 = vmatpush.bf16.xpose.msra.mxu0 0
      %557 = vmatpush.bf16.xpose.msra.mxu0 %v548
      %558 = vmatmul.bf16.gmra.mxu0 %v545
      %v559 = vpop.f32.mrf.mxu0
      %v560 = vadd.f32 0.0, %v559
      %v561 = vpop.f32.mrf.mxu0
      %562 = vdwg.mxu0
      %s563 = scalar_lea.vmem [#allocation2], 24
      %v564 = vld [vmem:[%s563] sm:$0xff]
      %v565 = vsel %vm270, %v560, -inf
      %566 = vmax.xlane.f32.xlu0 %v565
      %v567 = vpop.xlane.xlu0 %566
      %v568 = vmax.f32 %v564, %v567
      %v569 = vsub.f32 %v564, %v568
      %v570 = vmul.f32 %v569, 1.442695
      %v571 = vpow.pop %v570
      %573 = vset.pattern.permute.xlu0 0
      %574 = vperm.xlu0 %573, %v568
      %v575 = vpop.permute.xlu0 %574
      %v577 = vsub.f32 %v560, %v575
      %v578 = vmul.f32 %v577, 1.442695
      %v579 = vpow.pop %v578
      %s580 = scalar_lea.vmem [#allocation3], 24
      %v581 = vld [vmem:[%s580] sm:$0xff]
      %v582 = vmul.f32 %v571, %v581
      %v583 = vsel %vm270, %v579, 0.0
      %584 = vadd.xlane.f32.xlu0 %v583
      %v585 = vpop.xlane.xlu0 %584
      %v586 = vadd.f32 %v582, %v585
      %587 = vst.msk [vmem:[%s580] sm:$0xff] %vm312, %v586
      %s588 = scalar_lea.vmem [#allocation4], 24
      %v589 = vld [vmem:[%s588] sm:$0xff]
      %591 = vset.pattern.permute.xlu0 0
      %592 = vperm.xlu0 %591, %v571
      %v593 = vpop.permute.xlu0 %592
      %v595 = vmul.f32 %v593, %v589
      %v596 = vpack.c.bf16 %v579, %v579
      %v598 = vunpack.c.l.b16 %v533
      %v599 = vpack.c.b16 %v598, %v598
      %600 = vrot.lane.b32.xlu0 %v599, 104
      %v601 = vpop.permute.xlu0 %600
      %v603 = vsel %vm270, %v596, 0
      %v606 = vsel %vm325, %v601, 0
      %608 = vmatpush.bf16.msra.mxu0 0
      %609 = vmatpush.bf16.msra.mxu0 0
      %610 = vmatpush.bf16.msra.mxu0 0
      %611 = vmatpush.bf16.msra.mxu0 0
      %612 = vmatpush.bf16.msra.mxu0 0
      %613 = vmatpush.bf16.msra.mxu0 0
      %614 = vmatpush.bf16.msra.mxu0 0
      %615 = vmatpush.bf16.msra.mxu0 %v606
      %616 = vmatmul.bf16.gmra.mxu0 %v603
      %v617 = vpop.f32.mrf.mxu0
      %v618 = vadd.f32 0.0, %v617
      %v619 = vpop.f32.mrf.mxu0
      %620 = vdwg.mxu0
      %v621 = vadd.f32 %v595, %v618
      %622 = vst.msk [vmem:[%s588] sm:$0xff] %vm270, %v621
      %623 = vst.msk [vmem:[%s563] sm:$0xff] %vm312, %v568
      // Predicated region
      $region37: #{transformer_decoder.20} parent=31 // pred_check
        %p624 = pneg %p249
      $region38: #{transformer_decoder.20} parent=31 // pred_check_branch
        %626 = sbr.rel (%p624) target = $region40
      $region39: #{transformer_decoder.20} parent=31 // pred_region
        %v627 = vld [vmem:[#allocation3] sm:$0xff]
        %v628 = vrcp.pop %v627
        %v629 = vld [vmem:[#allocation4] sm:$0xff]
        %631 = vset.pattern.permute.xlu0 0
        %632 = vperm.xlu0 %631, %v628
        %v633 = vpop.permute.xlu0 %632
        %v635 = vmul.f32 %v629, %v633
        %v636 = vld [vmem:[%s394] sm:$0xff]
        %v637 = vrcp.pop %v636
        %v638 = vld [vmem:[%s402] sm:$0xff]
        %640 = vset.pattern.permute.xlu0 0
        %641 = vperm.xlu0 %640, %v637
        %v642 = vpop.permute.xlu0 %641
        %v644 = vmul.f32 %v638, %v642
        %v645 = vld [vmem:[%s487] sm:$0xff]
        %v646 = vrcp.pop %v645
        %v647 = vld [vmem:[%s495] sm:$0xff]
        %649 = vset.pattern.permute.xlu0 0
        %650 = vperm.xlu0 %649, %v646
        %v651 = vpop.permute.xlu0 %650
        %v653 = vmul.f32 %v647, %v651
        %v654 = vld [vmem:[%s580] sm:$0xff]
        %v655 = vrcp.pop %v654
        %v656 = vld [vmem:[%s588] sm:$0xff]
        %658 = vset.pattern.permute.xlu0 0
        %659 = vperm.xlu0 %658, %v655
        %v660 = vpop.permute.xlu0 %659
        %v662 = vmul.f32 %v656, %v660
        %664 = vrot.lane.b32.xlu0 %v644, 8
        %v665 = vpop.permute.xlu0 %664
        %668 = vrot.lane.b32.xlu0 %v653, 16
        %v669 = vpop.permute.xlu0 %668
        %672 = vrot.lane.b32.xlu0 %v662, 24
        %v673 = vpop.permute.xlu0 %672
        %v675 = vsel %vm270, %v635, %v665
        %vm676 = vcmask 130048
        %v677 = vsel %vm676, %v675, %v669
        %vm678 = vcmask 195584
        %v679 = vsel %vm678, %v677, %v673
        %v680 = vpack.c.bf16 %v679, %v679
        %vm681 = vcmask 257024
        %682 = vst.msk [vmem:[%s247] sm:$0xf] %vm681, %v680
      $region40: #{transformer_decoder.20} parent=31 // pred_fallthru
        _
      %p683 = scmp.lt.s32.totalorder %s18, 1
      %s684 = scalar_select %p683, %s18, 1
      %s685 = smul.addr %s684, 4
      %s686 = scalar_lea.vmem %s3, %s685
      // Predicated region
      $region41: #{transformer_decoder.20} parent=31 // pred_check
        %p687 = pneg %p130
      $region42: #{transformer_decoder.20} parent=31 // pred_check_branch
        %689 = sbr.rel (%p687) target = $region44
      $region43: #{transformer_decoder.20} parent=31 // pred_region
        _
      $region44: #{transformer_decoder.20} parent=31 // pred_fallthru
        _
    $region32: #{transformer_decoder.20} parent=5 // pred_fallthru
      _
    %p690 = scmp.le.s32.totalorder 2, %s9
    // Predicated region
    $region45: #{transformer_decoder.20} parent=5 // pred_check
      %p691 = pneg %p690
    $region46: #{transformer_decoder.20} parent=5 // pred_check_branch
      %693 = sbr.rel (%p691) target = $region48
    $region47: #{transformer_decoder.20} parent=5 // pred_region
      %s694 = ssub.s32 %s9, 2
      // Predicated region
      $region49: #{transformer_decoder.20} parent=47 // pred_check
        %p695 = pneg %p136
      $region50: #{transformer_decoder.20} parent=47 // pred_check_branch
        %697 = sbr.rel (%p695) target = $region52
      $region51: #{transformer_decoder.20} parent=47 // pred_region
        %p698 = scmp.lt.s32.totalorder %s20, 1
        %s699 = scalar_select %p698, %s20, 1
        %s700 = smul.addr %s699, 4
        %s701 = scalar_lea.vmem %s3, %s700
      $region52: #{transformer_decoder.20} parent=47 // pred_fallthru
        _
    $region48: #{transformer_decoder.20} parent=5 // pred_fallthru
      _
  $region6: #{transformer_decoder.20} parent=0 // loop_footer
    %s13 = sadd.s32 1, %s9
  $region7: #{transformer_decoder.20} parent=0 // loop_footer_branch
    %8 = sbr.rel target = $region3
  $region8: #{transformer_decoder.20} parent=0 // loop_exit
    _

// kernel: transformer_decoder.22
$region0: #{transformer_decoder.22}
  #allocation0 [shape = 'u32[]', space=smem, size = 0x4, offset = 0x4, fixed_abs, tag = 'smem constant byte address 0x4 - core index']
  #allocation1 [shape = 'u32[72,128]{1,0:T(1,128)}', space=vmem, size = 0x9000, scoped, tag = 'internal scratch']
  #allocation2 [shape = 'f32[1,16,32]{2,1,0:T(8,128)}', space=vmem, size = 0x2000, scoped, tag = 'scratch operand']
  %s0 = inlined_call_operand.vmem [shape: bf16[16,32], index: 0, kind: input, shape index: {}]
  %s1 = inlined_call_operand.hbm [shape: bf16[1,32,32], index: 1, kind: input, shape index: {}]
  %s2 = inlined_call_operand.hbm [shape: f32[1,1,32], index: 2, kind: input, shape index: {}]
  %s3 = inlined_call_operand.vmem [shape: bf16[1,16,32], index: 3, kind: output, shape index: {}]
  %s4 = sld [smem:[#allocation0]]
  $region38: #{transformer_decoder.22} parent=0
    _
  %s6 = ssub.s32 1, %s4
  %s7 = scalar_select 0, %s6, %s4
  $region1: #{transformer_decoder.22} parent=0
    #allocation3 [shape = 'u8[8192]{0}', space=vmem, size = 0x2000, scoped, tag = 'input window, operand 1, single buffered']
    #allocation4 [shape = 's32[1]{0}', space=sflag, size = 0x4, scoped, tag = 'scoped memory for transformer_decoder.22']
    #allocation5 [shape = 'u8[512]{0}', space=vmem, size = 0x400, scoped, tag = 'input window, operand 2, single buffered']
    #allocation6 [shape = 's32[1]{0}', space=sflag, size = 0x4, scoped, tag = 'scoped memory for transformer_decoder.22']
    %8 = vsyncpa [#allocation4], 0
    %9 = vsyncpa [#allocation6], 0
    // Predicated region
    $region2: #{transformer_decoder.22} parent=1 // pred_check
      _
    $region3: #{transformer_decoder.22} parent=1 // pred_check_branch
      %11 = sbr.rel (0) target = $region5
    $region4: #{transformer_decoder.22} parent=1 // pred_region
      _
    $region5: #{transformer_decoder.22} parent=1 // pred_fallthru
      _
    // Predicated region
    $region6: #{transformer_decoder.22} parent=1 // pred_check
      _
    $region7: #{transformer_decoder.22} parent=1 // pred_check_branch
      %13 = sbr.rel (0) target = $region9
    $region8: #{transformer_decoder.22} parent=1 // pred_region
      %15 = vsyncadd [#allocation4], 0
      %s16 = sshll.u32 %s1, 4
      %s17 = int_to_ptr.hbm [resolvable:$true] %s16
      %s18 = sshll.u32 [#allocation3], 4
      %s19 = int_to_ptr.vmem [resolvable:$true] %s18
      %24 = dma.hbm_to_vmem [thread:$0]  %s17, 256, %s19, [#allocation4], 64, 64, 4
    $region9: #{transformer_decoder.22} parent=1 // pred_fallthru
      _
    // Predicated region
    $region10: #{transformer_decoder.22} parent=1 // pred_check
      _
    $region11: #{transformer_decoder.22} parent=1 // pred_check_branch
      %26 = sbr.rel (0) target = $region13
    $region12: #{transformer_decoder.22} parent=1 // pred_region
      %28 = vsyncadd [#allocation6], 0
      %s30 = sshll.u32 %s2, 4
      %s31 = int_to_ptr.hbm [resolvable:$true] %s30
      %s32 = sshll.u32 [#allocation5], 4
      %s33 = int_to_ptr.vmem [resolvable:$true] %s32
      %35 = dma.hbm_to_vmem [thread:$0]  %s31, 16, %s33, [#allocation6]
    $region13: #{transformer_decoder.22} parent=1 // pred_fallthru
      _
    // Predicated region
    $region14: #{transformer_decoder.22} parent=1 // pred_check
      _
    $region15: #{transformer_decoder.22} parent=1 // pred_check_branch
      %37 = sbr.rel (0) target = $region17
    $region16: #{transformer_decoder.22} parent=1 // pred_region
      %39 = dma.done [#allocation4], 256
    $region17: #{transformer_decoder.22} parent=1 // pred_fallthru
      _
    // Predicated region
    $region18: #{transformer_decoder.22} parent=1 // pred_check
      _
    $region19: #{transformer_decoder.22} parent=1 // pred_check_branch
      %41 = sbr.rel (0) target = $region21
    $region20: #{transformer_decoder.22} parent=1 // pred_region
      %43 = dma.done [#allocation6], 16
    $region21: #{transformer_decoder.22} parent=1 // pred_fallthru
      _
    %p45 = scmp.eq.s32.totalorder 0, 0
    // Predicated region
    $region22: #{transformer_decoder.22} parent=1 // pred_check
      %p46 = pneg %p45
    $region23: #{transformer_decoder.22} parent=1 // pred_check_branch
      %48 = sbr.rel (%p46) target = $region25
    $region24: #{transformer_decoder.22} parent=1 // pred_region
      %vm49 = vcmask 261120
      %50 = vst.msk [vmem:[#allocation2] sm:$0xff] %vm49, 0.0
      %51 = vst.msk [vmem:[#allocation2 + $0x8] sm:$0xff] %vm49, 0.0
    $region25: #{transformer_decoder.22} parent=1 // pred_fallthru
      _
    %v52 = vld [vmem:[%s0] sm:$0xf]
    %v53 = vld [vmem:[%s0 + $0x4] sm:$0xf]
    %v54 = vld [vmem:[#allocation2] sm:$0xff]
    %v55 = vld [vmem:[#allocation2 + $0x8] sm:$0xff]
    %v56 = vld [vmem:[#allocation3] sm:$0xf]
    %v57 = vld [vmem:[#allocation3 + $0x4] sm:$0xf]
    %v58 = vld [vmem:[#allocation3 + $0x8] sm:$0xf]
    %v59 = vld [vmem:[#allocation3 + $0xc] sm:$0xf]
    %v62 = vunpack.c.l.b16 %v52
    %v63 = vunpack.c.l.b16 %v53
    %v64 = vpack.c.b16 %v63, %v62
    %v69 = vunpack.c.l.b16 %v56
    %v70 = vunpack.c.l.b16 %v57
    %v71 = vunpack.c.l.b16 %v58
    %v72 = vunpack.c.l.b16 %v59
    %v73 = vpack.c.b16 %v70, %v69
    %v74 = vpack.c.b16 %v72, %v71
    %vm77 = vcmask 261120
    %v79 = vsel %vm77, %v64, 0
    %81 = vmatpush.bf16.msra.mxu0 0
    %82 = vmatpush.bf16.msra.mxu0 0
    %83 = vmatpush.bf16.msra.mxu0 0
    %84 = vmatpush.bf16.msra.mxu0 0
    %85 = vmatpush.bf16.msra.mxu0 0
    %86 = vmatpush.bf16.msra.mxu0 0
    %87 = vmatpush.bf16.msra.mxu0 %v74
    %88 = vmatpush.bf16.msra.mxu0 %v73
    %89 = vmatmul.bf16.gmra.mxu0 %v79
    %v90 = vpop.f32.mrf.mxu0
    %v91 = vadd.f32 0.0, %v90
    %v92 = vpop.f32.mrf.mxu0
    %v93 = vadd.f32 0.0, %v92
    %94 = vdwg.mxu0
    %v95 = vadd.f32 %v54, %v91
    %v96 = vadd.f32 %v55, %v93
    %97 = vst.msk [vmem:[#allocation2] sm:$0xff] %vm77, %v95
    %98 = vst.msk [vmem:[#allocation2 + $0x8] sm:$0xff] %vm77, %v96
    // Predicated region
    $region26: #{transformer_decoder.22} parent=1 // pred_check
      %p99 = pneg %p45
    $region27: #{transformer_decoder.22} parent=1 // pred_check_branch
      %101 = sbr.rel (%p99) target = $region29
    $region28: #{transformer_decoder.22} parent=1 // pred_region
      %v102 = vld [vmem:[#allocation2] sm:$0xff]
      %v103 = vld [vmem:[#allocation2 + $0x8] sm:$0xff]
      %v104 = vld [vmem:[#allocation5] sm:$0x1]
      %v106 = vperm.slane %v104, 0
      %v108 = vadd.f32 %v102, %v106
      %v109 = vadd.f32 %v103, %v106
      %v110 = vpack.c.bf16 %v108, %v108
      %v111 = vpack.c.bf16 %v109, %v109
      %vm112 = vcmask 257024
      %113 = vst.msk [vmem:[%s3] sm:$0xf] %vm112, %v110
      %114 = vst.msk [vmem:[%s3 + $0x4] sm:$0xf] %vm112, %v111
    $region29: #{transformer_decoder.22} parent=1 // pred_fallthru
      _
    // Predicated region
    $region30: #{transformer_decoder.22} parent=1 // pred_check
      _
    $region31: #{transformer_decoder.22} parent=1 // pred_check_branch
      %116 = sbr.rel (0) target = $region33
    $region32: #{transformer_decoder.22} parent=1 // pred_region
      _
    $region33: #{transformer_decoder.22} parent=1 // pred_fallthru
      _
    // Predicated region
    $region34: #{transformer_decoder.22} parent=1 // pred_check
      _
    $region35: #{transformer_decoder.22} parent=1 // pred_check_branch
      %118 = sbr.rel (0) target = $region37
    $region36: #{transformer_decoder.22} parent=1 // pred_region
      _
    $region37: #{transformer_decoder.22} parent=1 // pred_fallthru
      _
    %119 = vsyncpa [#allocation4], 1
    %120 = vsyncpa [#allocation6], 1

// kernel: transformer_decoder.23
$region0: #{transformer_decoder.23}
  #allocation0 [shape = 'u32[]', space=smem, size = 0x4, offset = 0x4, fixed_abs, tag = 'smem constant byte address 0x4 - core index']
  #allocation1 [shape = 'u32[72,128]{1,0:T(1,128)}', space=vmem, size = 0x9000, scoped, tag = 'internal scratch']
  #allocation2 [shape = 'f32[2,32,32]{2,1,0:T(8,128)}', space=vmem, size = 0x8000, scoped, tag = 'scratch operand']
  %s0 = inlined_call_operand.vmem [shape: bf16[32,32], index: 0, kind: input, shape index: {}]
  %s1 = inlined_call_operand.vmem [shape: bf16[2,32,32], index: 1, kind: input, shape index: {}]
  %s2 = inlined_call_operand.hbm [shape: f32[2,1,32], index: 2, kind: input, shape index: {}]
  %s3 = inlined_call_operand.vmem [shape: bf16[2,32,32], index: 3, kind: output, shape index: {}]
  %s4 = sld [smem:[#allocation0]]
  $region34: #{transformer_decoder.23} parent=0
    _
  %s6 = ssub.s32 1, %s4
  %s7 = scalar_select 0, %s6, %s4
  $region1: #{transformer_decoder.23} parent=0
    #allocation3 [shape = 'u8[1024]{0}', space=vmem, size = 0x400, scoped, tag = 'input window, operand 2, single buffered']
    #allocation4 [shape = 's32[1]{0}', space=sflag, size = 0x4, scoped, tag = 'scoped memory for transformer_decoder.23']
    %8 = vsyncpa [#allocation4], 0
    // Predicated region
    $region2: #{transformer_decoder.23} parent=1 // pred_check
      _
    $region3: #{transformer_decoder.23} parent=1 // pred_check_branch
      %10 = sbr.rel (0) target = $region5
    $region4: #{transformer_decoder.23} parent=1 // pred_region
      _
    $region5: #{transformer_decoder.23} parent=1 // pred_fallthru
      _
    // Predicated region
    $region6: #{transformer_decoder.23} parent=1 // pred_check
      _
    $region7: #{transformer_decoder.23} parent=1 // pred_check_branch
      %12 = sbr.rel (0) target = $region9
    $region8: #{transformer_decoder.23} parent=1 // pred_region
      _
    $region9: #{transformer_decoder.23} parent=1 // pred_fallthru
      _
    // Predicated region
    $region10: #{transformer_decoder.23} parent=1 // pred_check
      _
    $region11: #{transformer_decoder.23} parent=1 // pred_check_branch
      %14 = sbr.rel (0) target = $region13
    $region12: #{transformer_decoder.23} parent=1 // pred_region
      %16 = vsyncadd [#allocation4], 0
      %s17 = sshll.u32 %s2, 4
      %s18 = int_to_ptr.hbm [resolvable:$true] %s17
      %s19 = sshll.u32 [#allocation3], 4
      %s20 = int_to_ptr.vmem [resolvable:$true] %s19
      %25 = dma.hbm_to_vmem [thread:$0]  %s18, 32, %s20, [#allocation4], 16, 16, 1
    $region13: #{transformer_decoder.23} parent=1 // pred_fallthru
      _
    // Predicated region
    $region14: #{transformer_decoder.23} parent=1 // pred_check
      _
    $region15: #{transformer_decoder.23} parent=1 // pred_check_branch
      %27 = sbr.rel (0) target = $region17
    $region16: #{transformer_decoder.23} parent=1 // pred_region
      %29 = dma.done [#allocation4], 32
    $region17: #{transformer_decoder.23} parent=1 // pred_fallthru
      _
    %p31 = scmp.eq.s32.totalorder 0, 0
    // Predicated region
    $region18: #{transformer_decoder.23} parent=1 // pred_check
      %p32 = pneg %p31
    $region19: #{transformer_decoder.23} parent=1 // pred_check_branch
      %34 = sbr.rel (%p32) target = $region21
    $region20: #{transformer_decoder.23} parent=1 // pred_region
      %vm35 = vcmask 261120
      %36 = vst.msk [vmem:[#allocation2] sm:$0xff] %vm35, 0.0
      %37 = vst.msk [vmem:[#allocation2 + $0x8] sm:$0xff] %vm35, 0.0
      %38 = vst.msk [vmem:[#allocation2 + $0x10] sm:$0xff] %vm35, 0.0
      %39 = vst.msk [vmem:[#allocation2 + $0x18] sm:$0xff] %vm35, 0.0
      %40 = vst.msk [vmem:[#allocation2 + $0x20] sm:$0xff] %vm35, 0.0
      %41 = vst.msk [vmem:[#allocation2 + $0x28] sm:$0xff] %vm35, 0.0
      %42 = vst.msk [vmem:[#allocation2 + $0x30] sm:$0xff] %vm35, 0.0
      %43 = vst.msk [vmem:[#allocation2 + $0x38] sm:$0xff] %vm35, 0.0
    $region21: #{transformer_decoder.23} parent=1 // pred_fallthru
      _
    %v44 = vld [vmem:[%s0] sm:$0xf]
    %v45 = vld [vmem:[%s0 + $0x4] sm:$0xf]
    %v46 = vld [vmem:[%s0 + $0x8] sm:$0xf]
    %v47 = vld [vmem:[%s0 + $0xc] sm:$0xf]
    %v48 = vld [vmem:[#allocation2] sm:$0xff]
    %v49 = vld [vmem:[#allocation2 + $0x8] sm:$0xff]
    %v50 = vld [vmem:[#allocation2 + $0x10] sm:$0xff]
    %v51 = vld [vmem:[#allocation2 + $0x18] sm:$0xff]
    %v52 = vld [vmem:[%s1] sm:$0xf]
    %v53 = vld [vmem:[%s1 + $0x4] sm:$0xf]
    %v54 = vld [vmem:[%s1 + $0x8] sm:$0xf]
    %v55 = vld [vmem:[%s1 + $0xc] sm:$0xf]
    %v60 = vunpack.c.l.b16 %v44
    %v61 = vunpack.c.l.b16 %v45
    %v62 = vunpack.c.l.b16 %v46
    %v63 = vunpack.c.l.b16 %v47
    %v64 = vpack.c.b16 %v61, %v60
    %v65 = vpack.c.b16 %v63, %v62
    %v70 = vunpack.c.l.b16 %v52
    %v71 = vunpack.c.l.b16 %v53
    %v72 = vunpack.c.l.b16 %v54
    %v73 = vunpack.c.l.b16 %v55
    %v74 = vpack.c.b16 %v71, %v70
    %v75 = vpack.c.b16 %v73, %v72
    %vm78 = vcmask 261120
    %v80 = vsel %vm78, %v64, 0
    %v83 = vsel %vm78, %v65, 0
    %85 = vmatpush.bf16.msra.mxu0 0
    %86 = vmatpush.bf16.msra.mxu0 0
    %87 = vmatpush.bf16.msra.mxu0 0
    %88 = vmatpush.bf16.msra.mxu0 0
    %89 = vmatpush.bf16.msra.mxu0 0
    %90 = vmatpush.bf16.msra.mxu0 0
    %91 = vmatpush.bf16.msra.mxu0 %v75
    %92 = vmatpush.bf16.msra.mxu0 %v74
    %93 = vmatmul.bf16.gmra.mxu0 %v80
    %v94 = vpop.f32.mrf.mxu0
    %v95 = vadd.f32 0.0, %v94
    %v96 = vpop.f32.mrf.mxu0
    %v97 = vadd.f32 0.0, %v96
    %98 = vmatmul.bf16.gmra.mxu0 %v83
    %v99 = vpop.f32.mrf.mxu0
    %v100 = vadd.f32 0.0, %v99
    %v101 = vpop.f32.mrf.mxu0
    %v102 = vadd.f32 0.0, %v101
    %103 = vdwg.mxu0
    %v104 = vadd.f32 %v48, %v95
    %v105 = vadd.f32 %v49, %v97
    %v106 = vadd.f32 %v50, %v100
    %v107 = vadd.f32 %v51, %v102
    %108 = vst.msk [vmem:[#allocation2] sm:$0xff] %vm78, %v104
    %109 = vst.msk [vmem:[#allocation2 + $0x8] sm:$0xff] %vm78, %v105
    %110 = vst.msk [vmem:[#allocation2 + $0x10] sm:$0xff] %vm78, %v106
    %111 = vst.msk [vmem:[#allocation2 + $0x18] sm:$0xff] %vm78, %v107
    %s112 = scalar_lea.vmem [#allocation2], 32
    %v113 = vld [vmem:[%s112] sm:$0xff]
    %v114 = vld [vmem:[%s112 + $0x8] sm:$0xff]
    %v115 = vld [vmem:[%s112 + $0x10] sm:$0xff]
    %v116 = vld [vmem:[%s112 + $0x18] sm:$0xff]
    %s117 = scalar_lea.vmem %s1, 16
    %v118 = vld [vmem:[%s117] sm:$0xf]
    %v119 = vld [vmem:[%s117 + $0x4] sm:$0xf]
    %v120 = vld [vmem:[%s117 + $0x8] sm:$0xf]
    %v121 = vld [vmem:[%s117 + $0xc] sm:$0xf]
    %v126 = vunpack.c.l.b16 %v118
    %v127 = vunpack.c.l.b16 %v119
    %v128 = vunpack.c.l.b16 %v120
    %v129 = vunpack.c.l.b16 %v121
    %v130 = vpack.c.b16 %v127, %v126
    %v131 = vpack.c.b16 %v129, %v128
    %134 = vmatpush.bf16.msra.mxu0 0
    %135 = vmatpush.bf16.msra.mxu0 0
    %136 = vmatpush.bf16.msra.mxu0 0
    %137 = vmatpush.bf16.msra.mxu0 0
    %138 = vmatpush.bf16.msra.mxu0 0
    %139 = vmatpush.bf16.msra.mxu0 0
    %140 = vmatpush.bf16.msra.mxu0 %v131
    %141 = vmatpush.bf16.msra.mxu0 %v130
    %142 = vmatmul.bf16.gmra.mxu0 %v80
    %v143 = vpop.f32.mrf.mxu0
    %v144 = vadd.f32 0.0, %v143
    %v145 = vpop.f32.mrf.mxu0
    %v146 = vadd.f32 0.0, %v145
    %147 = vmatmul.bf16.gmra.mxu0 %v83
    %v148 = vpop.f32.mrf.mxu0
    %v149 = vadd.f32 0.0, %v148
    %v150 = vpop.f32.mrf.mxu0
    %v151 = vadd.f32 0.0, %v150
    %152 = vdwg.mxu0
    %v153 = vadd.f32 %v113, %v144
    %v154 = vadd.f32 %v114, %v146
    %v155 = vadd.f32 %v115, %v149
    %v156 = vadd.f32 %v116, %v151
    %157 = vst.msk [vmem:[%s112] sm:$0xff] %vm78, %v153
    %158 = vst.msk [vmem:[%s112 + $0x8] sm:$0xff] %vm78, %v154
    %159 = vst.msk [vmem:[%s112 + $0x10] sm:$0xff] %vm78, %v155
    %160 = vst.msk [vmem:[%s112 + $0x18] sm:$0xff] %vm78, %v156
    // Predicated region
    $region22: #{transformer_decoder.23} parent=1 // pred_check
      %p161 = pneg %p31
    $region23: #{transformer_decoder.23} parent=1 // pred_check_branch
      %163 = sbr.rel (%p161) target = $region25
    $region24: #{transformer_decoder.23} parent=1 // pred_region
      %v164 = vld [vmem:[#allocation2] sm:$0xff]
      %v165 = vld [vmem:[#allocation2 + $0x8] sm:$0xff]
      %v166 = vld [vmem:[#allocation2 + $0x10] sm:$0xff]
      %v167 = vld [vmem:[#allocation2 + $0x18] sm:$0xff]
      %v168 = vld [vmem:[#allocation2 + $0x20] sm:$0xff]
      %v169 = vld [vmem:[#allocation2 + $0x28] sm:$0xff]
      %v170 = vld [vmem:[#allocation2 + $0x30] sm:$0xff]
      %v171 = vld [vmem:[#allocation2 + $0x38] sm:$0xff]
      %v172 = vld [vmem:[#allocation3] sm:$0x1]
      %v173 = vld [vmem:[#allocation3 + $0x1] sm:$0x1]
      %v176 = vperm.slane %v172, 0
      %v177 = vperm.slane %v173, 0
      %v180 = vadd.f32 %v164, %v176
      %v181 = vadd.f32 %v165, %v176
      %v182 = vadd.f32 %v166, %v176
      %v183 = vadd.f32 %v167, %v176
      %v184 = vadd.f32 %v168, %v177
      %v185 = vadd.f32 %v169, %v177
      %v186 = vadd.f32 %v170, %v177
      %v187 = vadd.f32 %v171, %v177
      %v188 = vpack.c.bf16 %v180, %v180
      %v189 = vpack.c.bf16 %v181, %v181
      %v190 = vpack.c.bf16 %v182, %v182
      %v191 = vpack.c.bf16 %v183, %v183
      %v192 = vpack.c.bf16 %v184, %v184
      %v193 = vpack.c.bf16 %v185, %v185
      %v194 = vpack.c.bf16 %v186, %v186
      %v195 = vpack.c.bf16 %v187, %v187
      %vm196 = vcmask 257024
      %197 = vst.msk [vmem:[%s3] sm:$0xf] %vm196, %v188
      %198 = vst.msk [vmem:[%s3 + $0x4] sm:$0xf] %vm196, %v189
      %199 = vst.msk [vmem:[%s3 + $0x8] sm:$0xf] %vm196, %v190
      %200 = vst.msk [vmem:[%s3 + $0xc] sm:$0xf] %vm196, %v191
      %201 = vst.msk [vmem:[%s3 + $0x10] sm:$0xf] %vm196, %v192
      %202 = vst.msk [vmem:[%s3 + $0x14] sm:$0xf] %vm196, %v193
      %203 = vst.msk [vmem:[%s3 + $0x18] sm:$0xf] %vm196, %v194
      %204 = vst.msk [vmem:[%s3 + $0x1c] sm:$0xf] %vm196, %v195
    $region25: #{transformer_decoder.23} parent=1 // pred_fallthru
      _
    // Predicated region
    $region26: #{transformer_decoder.23} parent=1 // pred_check
      _
    $region27: #{transformer_decoder.23} parent=1 // pred_check_branch
      %206 = sbr.rel (0) target = $region29
    $region28: #{transformer_decoder.23} parent=1 // pred_region
      _
    $region29: #{transformer_decoder.23} parent=1 // pred_fallthru
      _
    // Predicated region
    $region30: #{transformer_decoder.23} parent=1 // pred_check
      _
    $region31: #{transformer_decoder.23} parent=1 // pred_check_branch
      %208 = sbr.rel (0) target = $region33
    $region32: #{transformer_decoder.23} parent=1 // pred_region
      _
    $region33: #{transformer_decoder.23} parent=1 // pred_fallthru
      _
    %209 = vsyncpa [#allocation4], 1

// kernel: transformer_decoder.24
$region0: #{transformer_decoder.24}
  #allocation0 [shape = 'u32[]', space=smem, size = 0x4, offset = 0x4, fixed_abs, tag = 'smem constant byte address 0x4 - core index']
  #allocation1 [shape = 'u32[72,128]{1,0:T(1,128)}', space=vmem, size = 0x9000, scoped, tag = 'internal scratch']
  #allocation2 [shape = 'f32[4,8,1]{2,1,0:T(8,128)}', space=vmem, size = 0x4000, scoped, tag = 'scratch operand']
  #allocation3 [shape = 'f32[4,8,1]{2,1,0:T(8,128)}', space=vmem, size = 0x4000, scoped, tag = 'scratch operand']
  #allocation4 [shape = 'f32[4,8,8]{2,1,0:T(8,128)}', space=vmem, size = 0x4000, scoped, tag = 'scratch operand']
  %s0 = inlined_call_operand.vmem [shape: bf16[2,8,32], index: 0, kind: input, shape index: {}]
  %s1 = inlined_call_operand.vmem [shape: bf16[4,16,32], index: 1, kind: input, shape index: {}, may-alias: {1,2}]
  %s2 = inlined_call_operand.vmem [shape: bf16[4,16,32], index: 2, kind: input, shape index: {}, may-alias: {1,2}]
  %s3 = inlined_call_operand.vmem [shape: bf16[2,8,32], index: 3, kind: output, shape index: {}]
  %s4 = sld [smem:[#allocation0]]
  $region53: #{transformer_decoder.24} parent=0
    _
  %s6 = ssub.s32 1, %s4
  %s7 = scalar_select 0, %s6, %s4
  loop: start=0, step=1, limit=4
  $region2: #{transformer_decoder.24} parent=0 // loop_pre_header
    _
  $region3: #{transformer_decoder.24} parent=0 // loop_header
    %s9 = sphi 0, %s13
    %p10 = scmp.ge.s32.totalorder %s9, 4
    %s16 = sphi 0, %s28
    %s17 = sphi 0, %s24
    %s18 = sphi 0, %s16
    %s19 = sphi 0, %s17
    %s20 = sphi 0, %s18
    %s21 = sphi 0, %s19
    %s31 = sphi 0, %s33
    %s34 = sphi 0, %s31
    %s35 = sphi 0, %s34
    %s51 = sphi 0, %s35
    %s59 = sphi 0, %s61
    %s62 = sphi 0, %s59
    %s63 = sphi 0, %s62
    %s79 = sphi 0, %s63
    %s89 = sphi 0, %s91
    %s92 = sphi 0, %s89
    %s93 = sphi 0, %s92
    %s109 = sphi 0, %s93
    %s115 = sphi 0, %s117
    %s118 = sphi 0, %s115
    %s119 = sphi 0, %s118
    %s135 = sphi 0, %s119
  $region4: #{transformer_decoder.24} parent=0 // loop_header_branch
    %12 = sbr.rel (%p10) target = $region8
  $region5: #{transformer_decoder.24} parent=0 // loop_body
    %s14 = ssub.s32 %s9, 1
    %s15 = ssub.s32 %s9, 2
    %s22 = sadd.s32 1, %s17
    %p23 = scmp.ge.s32.totalorder %s22, 1
    %s24 = scalar_select %p23, 0, %s22
    %s25 = sadd.s32 1, %s16
    %s26 = scalar_select %p23, %s25, %s16
    %p27 = scmp.ge.s32.totalorder %s26, 2
    %s28 = scalar_select %p27, 0, %s26
    %s29 = ssub.s32 %s16, %s28
    %p30 = scmp.eq.s32.totalorder %s29, 0
    %s32 = sadd.s32 %s31, 1
    %s33 = scalar_select %p30, %s31, %s32
    %p36 = pneg %p30
    %p37 = scmp.eq.s32.totalorder %s9, 1
    %p38 = por %p36, %p37
    %p39 = scmp.ne.s32.totalorder %s31, %s34
    %p40 = scmp.eq.s32.totalorder %s9, 0
    %p41 = por %p39, %p40
    %p42 = scmp.ne.s32.totalorder %s31, %s34
    %p43 = scmp.eq.s32.totalorder %s14, 1
    %p44 = por %p42, %p43
    %p45 = scmp.ne.s32.totalorder %s34, %s35
    %p46 = scmp.eq.s32.totalorder %s14, 0
    %p47 = por %p45, %p46
    %p48 = scmp.ne.s32.totalorder %s34, %s35
    %p49 = scmp.eq.s32.totalorder %s15, 1
    %p50 = por %p48, %p49
    %p52 = scmp.ne.s32.totalorder %s35, %s51
    %p53 = scmp.eq.s32.totalorder %s15, 0
    %p54 = por %p52, %p53
    %s55 = ssub.s32 %s16, %s28
    %s56 = ssub.s32 %s17, %s24
    %s57 = sor.u32 %s55, %s56
    %p58 = scmp.eq.s32.totalorder %s57, 0
    %s60 = sadd.s32 %s59, 1
    %s61 = scalar_select %p58, %s59, %s60
    %p64 = pneg %p58
    %p65 = scmp.eq.s32.totalorder %s9, 1
    %p66 = por %p64, %p65
    %p67 = scmp.ne.s32.totalorder %s59, %s62
    %p68 = scmp.eq.s32.totalorder %s9, 0
    %p69 = por %p67, %p68
    %p70 = scmp.ne.s32.totalorder %s59, %s62
    %p71 = scmp.eq.s32.totalorder %s14, 1
    %p72 = por %p70, %p71
    %p73 = scmp.ne.s32.totalorder %s62, %s63
    %p74 = scmp.eq.s32.totalorder %s14, 0
    %p75 = por %p73, %p74
    %p76 = scmp.ne.s32.totalorder %s62, %s63
    %p77 = scmp.eq.s32.totalorder %s15, 1
    %p78 = por %p76, %p77
    %p80 = scmp.ne.s32.totalorder %s63, %s79
    %p81 = scmp.eq.s32.totalorder %s15, 0
    %p82 = por %p80, %p81
    %s83 = sadd.s32 %s16, 2
    %s84 = sadd.s32 %s28, 2
    %s85 = ssub.s32 %s83, %s84
    %s86 = ssub.s32 %s17, %s24
    %s87 = sor.u32 %s85, %s86
    %p88 = scmp.eq.s32.totalorder %s87, 0
    %s90 = sadd.s32 %s89, 1
    %s91 = scalar_select %p88, %s89, %s90
    %p94 = pneg %p88
    %p95 = scmp.eq.s32.totalorder %s9, 1
    %p96 = por %p94, %p95
    %p97 = scmp.ne.s32.totalorder %s89, %s92
    %p98 = scmp.eq.s32.totalorder %s9, 0
    %p99 = por %p97, %p98
    %p100 = scmp.ne.s32.totalorder %s89, %s92
    %p101 = scmp.eq.s32.totalorder %s14, 1
    %p102 = por %p100, %p101
    %p103 = scmp.ne.s32.totalorder %s92, %s93
    %p104 = scmp.eq.s32.totalorder %s14, 0
    %p105 = por %p103, %p104
    %p106 = scmp.ne.s32.totalorder %s92, %s93
    %p107 = scmp.eq.s32.totalorder %s15, 1
    %p108 = por %p106, %p107
    %p110 = scmp.ne.s32.totalorder %s93, %s109
    %p111 = scmp.eq.s32.totalorder %s15, 0
    %p112 = por %p110, %p111
    %s113 = ssub.s32 %s16, %s28
    %p114 = scmp.eq.s32.totalorder %s113, 0
    %s116 = sadd.s32 %s115, 1
    %s117 = scalar_select %p114, %s115, %s116
    %p120 = pneg %p114
    %p121 = scmp.eq.s32.totalorder %s9, 1
    %p122 = por %p120, %p121
    %p123 = scmp.ne.s32.totalorder %s115, %s118
    %p124 = scmp.eq.s32.totalorder %s9, 0
    %p125 = por %p123, %p124
    %p126 = scmp.ne.s32.totalorder %s115, %s118
    %p127 = scmp.eq.s32.totalorder %s14, 1
    %p128 = por %p126, %p127
    %p129 = scmp.ne.s32.totalorder %s118, %s119
    %p130 = scmp.eq.s32.totalorder %s14, 0
    %p131 = por %p129, %p130
    %p132 = scmp.ne.s32.totalorder %s118, %s119
    %p133 = scmp.eq.s32.totalorder %s15, 1
    %p134 = por %p132, %p133
    %p136 = scmp.ne.s32.totalorder %s119, %s135
    %p137 = scmp.eq.s32.totalorder %s15, 0
    %p138 = por %p136, %p137
    %p139 = scmp.le.s32.totalorder 1, %s9
    %p140 = scmp.lt.s32.totalorder %s9, 3
    %p141 = pnand %p139, %p140
    %p142 = pneg %p141
    // Predicated region
    $region9: #{transformer_decoder.24} parent=5 // pred_check
      _
    $region10: #{transformer_decoder.24} parent=5 // pred_check_branch
      %144 = sbr.rel (%p141) target = $region12
    $region11: #{transformer_decoder.24} parent=5 // pred_region
      %s145 = ssub.s32 %s9, 1
    $region12: #{transformer_decoder.24} parent=5 // pred_fallthru
      _
    %p146 = scmp.lt.s32.totalorder %s9, 2
    // Predicated region
    $region13: #{transformer_decoder.24} parent=5 // pred_check
      %p147 = pneg %p146
    $region14: #{transformer_decoder.24} parent=5 // pred_check_branch
      %149 = sbr.rel (%p147) target = $region16
    $region15: #{transformer_decoder.24} parent=5 // pred_region
      // Predicated region
      $region17: #{transformer_decoder.24} parent=15 // pred_check
        %p150 = pneg %p41
      $region18: #{transformer_decoder.24} parent=15 // pred_check_branch
        %152 = sbr.rel (%p150) target = $region20
      $region19: #{transformer_decoder.24} parent=15 // pred_region
        %p153 = scmp.lt.s32.totalorder %s16, 1
        %s154 = scalar_select %p153, %s16, 1
        %s155 = smul.addr %s154, 4
        %s156 = scalar_lea.vmem %s0, %s155
      $region20: #{transformer_decoder.24} parent=15 // pred_fallthru
        _
      // Predicated region
      $region21: #{transformer_decoder.24} parent=15 // pred_check
        %p157 = pneg %p69
      $region22: #{transformer_decoder.24} parent=15 // pred_check_branch
        %159 = sbr.rel (%p157) target = $region24
      $region23: #{transformer_decoder.24} parent=15 // pred_region
        %s160 = smul.u32 2, %s17
        %p161 = scmp.lt.s32.totalorder %s16, 3
        %s162 = scalar_select %p161, %s16, 3
        %p163 = scmp.lt.s32.totalorder %s160, 1
        %s164 = scalar_select %p163, %s160, 1
        %s165 = smul.addr %s162, 2
        %s166 = sadd.s32 %s164, %s165
        %s167 = smul.addr %s166, 4
        %s168 = scalar_lea.vmem %s1, %s167
        %s169 = smul.u32 2, %s17
      $region24: #{transformer_decoder.24} parent=15 // pred_fallthru
        _
      // Predicated region
      $region25: #{transformer_decoder.24} parent=15 // pred_check
        %p170 = pneg %p99
      $region26: #{transformer_decoder.24} parent=15 // pred_check_branch
        %172 = sbr.rel (%p170) target = $region28
      $region27: #{transformer_decoder.24} parent=15 // pred_region
        %s173 = sadd.s32 %s16, 2
        %s174 = smul.u32 2, %s17
        %p175 = scmp.lt.s32.totalorder %s173, 3
        %s176 = scalar_select %p175, %s173, 3
        %p177 = scmp.lt.s32.totalorder %s174, 1
        %s178 = scalar_select %p177, %s174, 1
        %s179 = smul.addr %s176, 2
        %s180 = sadd.s32 %s178, %s179
        %s181 = smul.addr %s180, 4
        %s182 = scalar_lea.vmem %s2, %s181
        %s183 = sadd.s32 %s16, 2
        %s184 = smul.u32 2, %s17
      $region28: #{transformer_decoder.24} parent=15 // pred_fallthru
        _
    $region16: #{transformer_decoder.24} parent=5 // pred_fallthru
      _
    %p185 = scmp.le.s32.totalorder 1, %s9
    %p186 = scmp.lt.s32.totalorder %s9, 3
    %p187 = pnand %p185, %p186
    %p188 = pneg %p187
    // Predicated region
    $region29: #{transformer_decoder.24} parent=5 // pred_check
      _
    $region30: #{transformer_decoder.24} parent=5 // pred_check_branch
      %190 = sbr.rel (%p187) target = $region32
    $region31: #{transformer_decoder.24} parent=5 // pred_region
      %s191 = ssub.s32 %s9, 1
      %p192 = scmp.lt.s32.totalorder %s18, 1
      %s193 = scalar_select %p192, %s18, 1
      %s194 = smul.addr %s193, 4
      %s195 = scalar_lea.vmem %s0, %s194
      %p196 = pneg %p47
      %p197 = pneg %p44
      %s198 = smul.u32 2, %s19
      %p199 = scmp.lt.s32.totalorder %s18, 3
      %s200 = scalar_select %p199, %s18, 3
      %p201 = scmp.lt.s32.totalorder %s198, 1
      %s202 = scalar_select %p201, %s198, 1
      %s203 = smul.addr %s200, 2
      %s204 = sadd.s32 %s202, %s203
      %s205 = smul.addr %s204, 4
      %s206 = scalar_lea.vmem %s1, %s205
      %p207 = pneg %p75
      %p208 = pneg %p72
      %s209 = sadd.s32 %s18, 2
      %s210 = smul.u32 2, %s19
      %p211 = scmp.lt.s32.totalorder %s209, 3
      %s212 = scalar_select %p211, %s209, 3
      %p213 = scmp.lt.s32.totalorder %s210, 1
      %s214 = scalar_select %p213, %s210, 1
      %s215 = smul.addr %s212, 2
      %s216 = sadd.s32 %s214, %s215
      %s217 = smul.addr %s216, 4
      %s218 = scalar_lea.vmem %s2, %s217
      %p219 = pneg %p105
      %p220 = pneg %p102
      %p221 = pneg %p131
      %p222 = pneg %p128
      %p223 = scmp.lt.s32.totalorder %s18, 1
      %s224 = scalar_select %p223, %s18, 1
      %s225 = smul.addr %s224, 4
      %s226 = scalar_lea.vmem %s3, %s225
      %p227 = scmp.lt.s32.totalorder %s18, 1
      %s228 = scalar_select %p227, %s18, 1
      %s229 = smul.addr %s228, 4
      %s230 = scalar_lea.vmem %s0, %s229
      %s231 = smul.u32 2, %s19
      %p232 = scmp.lt.s32.totalorder %s18, 3
      %s233 = scalar_select %p232, %s18, 3
      %p234 = scmp.lt.s32.totalorder %s231, 1
      %s235 = scalar_select %p234, %s231, 1
      %s236 = smul.addr %s233, 2
      %s237 = sadd.s32 %s235, %s236
      %s238 = smul.addr %s237, 4
      %s239 = scalar_lea.vmem %s1, %s238
      %s240 = smul.u32 2, %s19
      %s241 = sadd.s32 %s18, 2
      %s242 = smul.u32 2, %s19
      %p243 = scmp.lt.s32.totalorder %s241, 3
      %s244 = scalar_select %p243, %s241, 3
      %p245 = scmp.lt.s32.totalorder %s242, 1
      %s246 = scalar_select %p245, %s242, 1
      %s247 = smul.addr %s244, 2
      %s248 = sadd.s32 %s246, %s247
      %s249 = smul.addr %s248, 4
      %s250 = scalar_lea.vmem %s2, %s249
      %s251 = sadd.s32 %s18, 2
      %s252 = smul.u32 2, %s19
      %p253 = scmp.lt.s32.totalorder %s18, 1
      %s254 = scalar_select %p253, %s18, 1
      %s255 = smul.addr %s254, 4
      %s256 = scalar_lea.vmem %s3, %s255
      %p258 = scmp.eq.s32.totalorder %s19, 0
      // Predicated region
      $region33: #{transformer_decoder.24} parent=31 // pred_check
        %p259 = pneg %p258
      $region34: #{transformer_decoder.24} parent=31 // pred_check_branch
        %261 = sbr.rel (%p259) target = $region36
      $region35: #{transformer_decoder.24} parent=31 // pred_region
        %vm262 = vcmask 7168
        %263 = vst.msk [vmem:[#allocation2] sm:$0xff] %vm262, -inf
        %264 = vst.msk [vmem:[#allocation2 + $0x8] sm:$0xff] %vm262, -inf
        %265 = vst.msk [vmem:[#allocation2 + $0x10] sm:$0xff] %vm262, -inf
        %266 = vst.msk [vmem:[#allocation2 + $0x18] sm:$0xff] %vm262, -inf
        %267 = vst.msk [vmem:[#allocation3] sm:$0xff] %vm262, 0.0
        %268 = vst.msk [vmem:[#allocation3 + $0x8] sm:$0xff] %vm262, 0.0
        %269 = vst.msk [vmem:[#allocation3 + $0x10] sm:$0xff] %vm262, 0.0
        %270 = vst.msk [vmem:[#allocation3 + $0x18] sm:$0xff] %vm262, 0.0
        %vm271 = vcmask 64512
        %272 = vst.msk [vmem:[#allocation4] sm:$0xff] %vm271, 0.0
        %273 = vst.msk [vmem:[#allocation4 + $0x8] sm:$0xff] %vm271, 0.0
        %274 = vst.msk [vmem:[#allocation4 + $0x10] sm:$0xff] %vm271, 0.0
        %275 = vst.msk [vmem:[#allocation4 + $0x18] sm:$0xff] %vm271, 0.0
      $region36: #{transformer_decoder.24} parent=31 // pred_fallthru
        _
      %v276 = vld [vmem:[%s230] sm:$0xf]
      %v277 = vld [vmem:[%s239] sm:$0xf]
      %v278 = vld [vmem:[%s239 + $0x4] sm:$0xf]
      %v279 = vld [vmem:[%s250] sm:$0xf]
      %v280 = vld [vmem:[%s250 + $0x4] sm:$0xf]
      %v283 = vunpack.c.l.b16 %v277
      %v284 = vunpack.c.l.b16 %v278
      %v285 = vpack.c.b16 %v284, %v283
      %vm286 = vcmask 64512
      %v288 = vsel %vm286, %v276, 0
      %v291 = vsel %vm286, %v285, 0
      %293 = vmatpush.bf16.xpose.msra.mxu0 0
      %294 = vmatpush.bf16.xpose.msra.mxu0 0
      %295 = vmatpush.bf16.xpose.msra.mxu0 0
      %296 = vmatpush.bf16.xpose.msra.mxu0 0
      %297 = vmatpush.bf16.xpose.msra.mxu0 0
      %298 = vmatpush.bf16.xpose.msra.mxu0 0
      %299 = vmatpush.bf16.xpose.msra.mxu0 0
      %300 = vmatpush.bf16.xpose.msra.mxu0 %v291
      %301 = vmatmul.bf16.gmra.mxu0 %v288
      %v302 = vpop.f32.mrf.mxu0
      %v303 = vadd.f32 0.0, %v302
      %v304 = vpop.f32.mrf.mxu0
      %305 = vdwg.mxu0
      %v306 = vld [vmem:[#allocation2] sm:$0xff]
      %vm307 = vcmask 130048
      %v308 = vsel %vm307, %v303, -inf
      %309 = vmax.xlane.f32.xlu0 %v308
      %v310 = vpop.xlane.xlu0 %309
      %v311 = vmax.f32 %v306, %v310
      %v312 = vsub.f32 %v306, %v311
      %v313 = vmul.f32 %v312, 1.442695
      %v314 = vpow.pop %v313
      %316 = vset.pattern.permute.xlu0 0
      %317 = vperm.xlu0 %316, %v311
      %v318 = vpop.permute.xlu0 %317
      %v320 = vsub.f32 %v303, %v318
      %v321 = vmul.f32 %v320, 1.442695
      %v322 = vpow.pop %v321
      %v323 = vld [vmem:[#allocation3] sm:$0xff]
      %v324 = vmul.f32 %v314, %v323
      %v325 = vsel %vm307, %v322, 0.0
      %326 = vadd.xlane.f32.xlu0 %v325
      %v327 = vpop.xlane.xlu0 %326
      %v328 = vadd.f32 %v324, %v327
      %vm329 = vcmask 7168
      %330 = vst.msk [vmem:[#allocation3] sm:$0xff] %vm329, %v328
      %v331 = vld [vmem:[#allocation4] sm:$0xff]
      %333 = vset.pattern.permute.xlu0 0
      %334 = vperm.xlu0 %333, %v314
      %v335 = vpop.permute.xlu0 %334
      %v337 = vmul.f32 %v335, %v331
      %v338 = vpack.c.bf16 %v322, %v322
      %v341 = vunpack.c.l.b16 %v279
      %v342 = vunpack.c.l.b16 %v280
      %v343 = vpack.c.b16 %v342, %v341
      %v346 = vsel %vm307, %v338, 0
      %348 = vmatpush.bf16.msra.mxu0 0
      %349 = vmatpush.bf16.msra.mxu0 0
      %350 = vmatpush.bf16.msra.mxu0 0
      %351 = vmatpush.bf16.msra.mxu0 0
      %352 = vmatpush.bf16.msra.mxu0 0
      %353 = vmatpush.bf16.msra.mxu0 0
      %354 = vmatpush.bf16.msra.mxu0 0
      %355 = vmatpush.bf16.msra.mxu0 %v343
      %356 = vmatmul.bf16.gmra.mxu0 %v346
      %v357 = vpop.f32.mrf.mxu0
      %v358 = vadd.f32 0.0, %v357
      %v359 = vpop.f32.mrf.mxu0
      %360 = vdwg.mxu0
      %v361 = vadd.f32 %v337, %v358
      %362 = vst.msk [vmem:[#allocation4] sm:$0xff] %vm286, %v361
      %363 = vst.msk [vmem:[#allocation2] sm:$0xff] %vm329, %v311
      %v364 = vld [vmem:[%s230] sm:$0xf]
      %v365 = vld [vmem:[%s239] sm:$0xf]
      %v366 = vld [vmem:[%s239 + $0x4] sm:$0xf]
      %v367 = vld [vmem:[%s250] sm:$0xf]
      %v368 = vld [vmem:[%s250 + $0x4] sm:$0xf]
      %v370 = vunpack.c.l.b16 %v364
      %v371 = vpack.c.b16 %v370, %v370
      %372 = vrot.lane.b32.xlu0 %v371, 120
      %v373 = vpop.permute.xlu0 %372
      %v376 = vunpack.c.l.b16 %v365
      %v377 = vunpack.c.l.b16 %v366
      %v378 = vpack.c.b16 %v377, %v376
      %379 = vrot.lane.b32.xlu0 %v378, 120
      %v380 = vpop.permute.xlu0 %379
      %v382 = vsel %vm286, %v373, 0
      %v385 = vsel %vm286, %v380, 0
      %387 = vmatpush.bf16.xpose.msra.mxu0 0
      %388 = vmatpush.bf16.xpose.msra.mxu0 0
      %389 = vmatpush.bf16.xpose.msra.mxu0 0
      %390 = vmatpush.bf16.xpose.msra.mxu0 0
      %391 = vmatpush.bf16.xpose.msra.mxu0 0
      %392 = vmatpush.bf16.xpose.msra.mxu0 0
      %393 = vmatpush.bf16.xpose.msra.mxu0 0
      %394 = vmatpush.bf16.xpose.msra.mxu0 %v385
      %395 = vmatmul.bf16.gmra.mxu0 %v382
      %v396 = vpop.f32.mrf.mxu0
      %v397 = vadd.f32 0.0, %v396
      %v398 = vpop.f32.mrf.mxu0
      %399 = vdwg.mxu0
      %s400 = scalar_lea.vmem [#allocation2], 8
      %v401 = vld [vmem:[%s400] sm:$0xff]
      %v402 = vsel %vm307, %v397, -inf
      %403 = vmax.xlane.f32.xlu0 %v402
      %v404 = vpop.xlane.xlu0 %403
      %v405 = vmax.f32 %v401, %v404
      %v406 = vsub.f32 %v401, %v405
      %v407 = vmul.f32 %v406, 1.442695
      %v408 = vpow.pop %v407
      %410 = vset.pattern.permute.xlu0 0
      %411 = vperm.xlu0 %410, %v405
      %v412 = vpop.permute.xlu0 %411
      %v414 = vsub.f32 %v397, %v412
      %v415 = vmul.f32 %v414, 1.442695
      %v416 = vpow.pop %v415
      %s417 = scalar_lea.vmem [#allocation3], 8
      %v418 = vld [vmem:[%s417] sm:$0xff]
      %v419 = vmul.f32 %v408, %v418
      %v420 = vsel %vm307, %v416, 0.0
      %421 = vadd.xlane.f32.xlu0 %v420
      %v422 = vpop.xlane.xlu0 %421
      %v423 = vadd.f32 %v419, %v422
      %424 = vst.msk [vmem:[%s417] sm:$0xff] %vm329, %v423
      %s425 = scalar_lea.vmem [#allocation4], 8
      %v426 = vld [vmem:[%s425] sm:$0xff]
      %428 = vset.pattern.permute.xlu0 0
      %429 = vperm.xlu0 %428, %v408
      %v430 = vpop.permute.xlu0 %429
      %v432 = vmul.f32 %v430, %v426
      %v433 = vpack.c.bf16 %v416, %v416
      %v436 = vunpack.c.l.b16 %v367
      %v437 = vunpack.c.l.b16 %v368
      %v438 = vpack.c.b16 %v437, %v436
      %439 = vrot.lane.b32.xlu0 %v438, 120
      %v440 = vpop.permute.xlu0 %439
      %v443 = vsel %vm307, %v433, 0
      %445 = vmatpush.bf16.msra.mxu0 0
      %446 = vmatpush.bf16.msra.mxu0 0
      %447 = vmatpush.bf16.msra.mxu0 0
      %448 = vmatpush.bf16.msra.mxu0 0
      %449 = vmatpush.bf16.msra.mxu0 0
      %450 = vmatpush.bf16.msra.mxu0 0
      %451 = vmatpush.bf16.msra.mxu0 0
      %452 = vmatpush.bf16.msra.mxu0 %v440
      %453 = vmatmul.bf16.gmra.mxu0 %v443
      %v454 = vpop.f32.mrf.mxu0
      %v455 = vadd.f32 0.0, %v454
      %v456 = vpop.f32.mrf.mxu0
      %457 = vdwg.mxu0
      %v458 = vadd.f32 %v432, %v455
      %459 = vst.msk [vmem:[%s425] sm:$0xff] %vm286, %v458
      %460 = vst.msk [vmem:[%s400] sm:$0xff] %vm329, %v405
      %v461 = vld [vmem:[%s230] sm:$0xf]
      %v462 = vld [vmem:[%s239] sm:$0xf]
      %v463 = vld [vmem:[%s239 + $0x4] sm:$0xf]
      %v464 = vld [vmem:[%s250] sm:$0xf]
      %v465 = vld [vmem:[%s250 + $0x4] sm:$0xf]
      %v467 = vunpack.c.l.b16 %v461
      %v468 = vpack.c.b16 %v467, %v467
      %469 = vrot.lane.b32.xlu0 %v468, 112
      %v470 = vpop.permute.xlu0 %469
      %v473 = vunpack.c.l.b16 %v462
      %v474 = vunpack.c.l.b16 %v463
      %v475 = vpack.c.b16 %v474, %v473
      %476 = vrot.lane.b32.xlu0 %v475, 112
      %v477 = vpop.permute.xlu0 %476
      %v479 = vsel %vm286, %v470, 0
      %v482 = vsel %vm286, %v477, 0
      %484 = vmatpush.bf16.xpose.msra.mxu0 0
      %485 = vmatpush.bf16.xpose.msra.mxu0 0
      %486 = vmatpush.bf16.xpose.msra.mxu0 0
      %487 = vmatpush.bf16.xpose.msra.mxu0 0
      %488 = vmatpush.bf16.xpose.msra.mxu0 0
      %489 = vmatpush.bf16.xpose.msra.mxu0 0
      %490 = vmatpush.bf16.xpose.msra.mxu0 0
      %491 = vmatpush.bf16.xpose.msra.mxu0 %v482
      %492 = vmatmul.bf16.gmra.mxu0 %v479
      %v493 = vpop.f32.mrf.mxu0
      %v494 = vadd.f32 0.0, %v493
      %v495 = vpop.f32.mrf.mxu0
      %496 = vdwg.mxu0
      %s497 = scalar_lea.vmem [#allocation2], 16
      %v498 = vld [vmem:[%s497] sm:$0xff]
      %v499 = vsel %vm307, %v494, -inf
      %500 = vmax.xlane.f32.xlu0 %v499
      %v501 = vpop.xlane.xlu0 %500
      %v502 = vmax.f32 %v498, %v501
      %v503 = vsub.f32 %v498, %v502
      %v504 = vmul.f32 %v503, 1.442695
      %v505 = vpow.pop %v504
      %507 = vset.pattern.permute.xlu0 0
      %508 = vperm.xlu0 %507, %v502
      %v509 = vpop.permute.xlu0 %508
      %v511 = vsub.f32 %v494, %v509
      %v512 = vmul.f32 %v511, 1.442695
      %v513 = vpow.pop %v512
      %s514 = scalar_lea.vmem [#allocation3], 16
      %v515 = vld [vmem:[%s514] sm:$0xff]
      %v516 = vmul.f32 %v505, %v515
      %v517 = vsel %vm307, %v513, 0.0
      %518 = vadd.xlane.f32.xlu0 %v517
      %v519 = vpop.xlane.xlu0 %518
      %v520 = vadd.f32 %v516, %v519
      %521 = vst.msk [vmem:[%s514] sm:$0xff] %vm329, %v520
      %s522 = scalar_lea.vmem [#allocation4], 16
      %v523 = vld [vmem:[%s522] sm:$0xff]
      %525 = vset.pattern.permute.xlu0 0
      %526 = vperm.xlu0 %525, %v505
      %v527 = vpop.permute.xlu0 %526
      %v529 = vmul.f32 %v527, %v523
      %v530 = vpack.c.bf16 %v513, %v513
      %v533 = vunpack.c.l.b16 %v464
      %v534 = vunpack.c.l.b16 %v465
      %v535 = vpack.c.b16 %v534, %v533
      %536 = vrot.lane.b32.xlu0 %v535, 112
      %v537 = vpop.permute.xlu0 %536
      %v540 = vsel %vm307, %v530, 0
      %542 = vmatpush.bf16.msra.mxu0 0
      %543 = vmatpush.bf16.msra.mxu0 0
      %544 = vmatpush.bf16.msra.mxu0 0
      %545 = vmatpush.bf16.msra.mxu0 0
      %546 = vmatpush.bf16.msra.mxu0 0
      %547 = vmatpush.bf16.msra.mxu0 0
      %548 = vmatpush.bf16.msra.mxu0 0
      %549 = vmatpush.bf16.msra.mxu0 %v537
      %550 = vmatmul.bf16.gmra.mxu0 %v540
      %v551 = vpop.f32.mrf.mxu0
      %v552 = vadd.f32 0.0, %v551
      %v553 = vpop.f32.mrf.mxu0
      %554 = vdwg.mxu0
      %v555 = vadd.f32 %v529, %v552
      %556 = vst.msk [vmem:[%s522] sm:$0xff] %vm286, %v555
      %557 = vst.msk [vmem:[%s497] sm:$0xff] %vm329, %v502
      %v558 = vld [vmem:[%s230] sm:$0xf]
      %v559 = vld [vmem:[%s239] sm:$0xf]
      %v560 = vld [vmem:[%s239 + $0x4] sm:$0xf]
      %v561 = vld [vmem:[%s250] sm:$0xf]
      %v562 = vld [vmem:[%s250 + $0x4] sm:$0xf]
      %v564 = vunpack.c.l.b16 %v558
      %v565 = vpack.c.b16 %v564, %v564
      %566 = vrot.lane.b32.xlu0 %v565, 104
      %v567 = vpop.permute.xlu0 %566
      %v570 = vunpack.c.l.b16 %v559
      %v571 = vunpack.c.l.b16 %v560
      %v572 = vpack.c.b16 %v571, %v570
      %573 = vrot.lane.b32.xlu0 %v572, 104
      %v574 = vpop.permute.xlu0 %573
      %v576 = vsel %vm286, %v567, 0
      %v579 = vsel %vm286, %v574, 0
      %581 = vmatpush.bf16.xpose.msra.mxu0 0
      %582 = vmatpush.bf16.xpose.msra.mxu0 0
      %583 = vmatpush.bf16.xpose.msra.mxu0 0
      %584 = vmatpush.bf16.xpose.msra.mxu0 0
      %585 = vmatpush.bf16.xpose.msra.mxu0 0
      %586 = vmatpush.bf16.xpose.msra.mxu0 0
      %587 = vmatpush.bf16.xpose.msra.mxu0 0
      %588 = vmatpush.bf16.xpose.msra.mxu0 %v579
      %589 = vmatmul.bf16.gmra.mxu0 %v576
      %v590 = vpop.f32.mrf.mxu0
      %v591 = vadd.f32 0.0, %v590
      %v592 = vpop.f32.mrf.mxu0
      %593 = vdwg.mxu0
      %s594 = scalar_lea.vmem [#allocation2], 24
      %v595 = vld [vmem:[%s594] sm:$0xff]
      %v596 = vsel %vm307, %v591, -inf
      %597 = vmax.xlane.f32.xlu0 %v596
      %v598 = vpop.xlane.xlu0 %597
      %v599 = vmax.f32 %v595, %v598
      %v600 = vsub.f32 %v595, %v599
      %v601 = vmul.f32 %v600, 1.442695
      %v602 = vpow.pop %v601
      %604 = vset.pattern.permute.xlu0 0
      %605 = vperm.xlu0 %604, %v599
      %v606 = vpop.permute.xlu0 %605
      %v608 = vsub.f32 %v591, %v606
      %v609 = vmul.f32 %v608, 1.442695
      %v610 = vpow.pop %v609
      %s611 = scalar_lea.vmem [#allocation3], 24
      %v612 = vld [vmem:[%s611] sm:$0xff]
      %v613 = vmul.f32 %v602, %v612
      %v614 = vsel %vm307, %v610, 0.0
      %615 = vadd.xlane.f32.xlu0 %v614
      %v616 = vpop.xlane.xlu0 %615
      %v617 = vadd.f32 %v613, %v616
      %618 = vst.msk [vmem:[%s611] sm:$0xff] %vm329, %v617
      %s619 = scalar_lea.vmem [#allocation4], 24
      %v620 = vld [vmem:[%s619] sm:$0xff]
      %622 = vset.pattern.permute.xlu0 0
      %623 = vperm.xlu0 %622, %v602
      %v624 = vpop.permute.xlu0 %623
      %v626 = vmul.f32 %v624, %v620
      %v627 = vpack.c.bf16 %v610, %v610
      %v630 = vunpack.c.l.b16 %v561
      %v631 = vunpack.c.l.b16 %v562
      %v632 = vpack.c.b16 %v631, %v630
      %633 = vrot.lane.b32.xlu0 %v632, 104
      %v634 = vpop.permute.xlu0 %633
      %v637 = vsel %vm307, %v627, 0
      %639 = vmatpush.bf16.msra.mxu0 0
      %640 = vmatpush.bf16.msra.mxu0 0
      %641 = vmatpush.bf16.msra.mxu0 0
      %642 = vmatpush.bf16.msra.mxu0 0
      %643 = vmatpush.bf16.msra.mxu0 0
      %644 = vmatpush.bf16.msra.mxu0 0
      %645 = vmatpush.bf16.msra.mxu0 0
      %646 = vmatpush.bf16.msra.mxu0 %v634
      %647 = vmatmul.bf16.gmra.mxu0 %v637
      %v648 = vpop.f32.mrf.mxu0
      %v649 = vadd.f32 0.0, %v648
      %v650 = vpop.f32.mrf.mxu0
      %651 = vdwg.mxu0
      %v652 = vadd.f32 %v626, %v649
      %653 = vst.msk [vmem:[%s619] sm:$0xff] %vm286, %v652
      %654 = vst.msk [vmem:[%s594] sm:$0xff] %vm329, %v599
      // Predicated region
      $region37: #{transformer_decoder.24} parent=31 // pred_check
        %p655 = pneg %p258
      $region38: #{transformer_decoder.24} parent=31 // pred_check_branch
        %657 = sbr.rel (%p655) target = $region40
      $region39: #{transformer_decoder.24} parent=31 // pred_region
        %v658 = vld [vmem:[#allocation3] sm:$0xff]
        %v659 = vrcp.pop %v658
        %v660 = vld [vmem:[#allocation4] sm:$0xff]
        %662 = vset.pattern.permute.xlu0 0
        %663 = vperm.xlu0 %662, %v659
        %v664 = vpop.permute.xlu0 %663
        %v666 = vmul.f32 %v660, %v664
        %v667 = vld [vmem:[%s417] sm:$0xff]
        %v668 = vrcp.pop %v667
        %v669 = vld [vmem:[%s425] sm:$0xff]
        %671 = vset.pattern.permute.xlu0 0
        %672 = vperm.xlu0 %671, %v668
        %v673 = vpop.permute.xlu0 %672
        %v675 = vmul.f32 %v669, %v673
        %v676 = vld [vmem:[%s514] sm:$0xff]
        %v677 = vrcp.pop %v676
        %v678 = vld [vmem:[%s522] sm:$0xff]
        %680 = vset.pattern.permute.xlu0 0
        %681 = vperm.xlu0 %680, %v677
        %v682 = vpop.permute.xlu0 %681
        %v684 = vmul.f32 %v678, %v682
        %v685 = vld [vmem:[%s611] sm:$0xff]
        %v686 = vrcp.pop %v685
        %v687 = vld [vmem:[%s619] sm:$0xff]
        %689 = vset.pattern.permute.xlu0 0
        %690 = vperm.xlu0 %689, %v686
        %v691 = vpop.permute.xlu0 %690
        %v693 = vmul.f32 %v687, %v691
        %695 = vrot.lane.b32.xlu0 %v675, 8
        %v696 = vpop.permute.xlu0 %695
        %699 = vrot.lane.b32.xlu0 %v684, 16
        %v700 = vpop.permute.xlu0 %699
        %703 = vrot.lane.b32.xlu0 %v693, 24
        %v704 = vpop.permute.xlu0 %703
        %v706 = vsel %vm286, %v666, %v696
        %v707 = vsel %vm307, %v706, %v700
        %vm708 = vcmask 195584
        %v709 = vsel %vm708, %v707, %v704
        %v710 = vpack.c.bf16 %v709, %v709
        %vm711 = vcmask 257024
        %712 = vst.msk [vmem:[%s256] sm:$0xf] %vm711, %v710
      $region40: #{transformer_decoder.24} parent=31 // pred_fallthru
        _
      %p713 = scmp.lt.s32.totalorder %s18, 1
      %s714 = scalar_select %p713, %s18, 1
      %s715 = smul.addr %s714, 4
      %s716 = scalar_lea.vmem %s3, %s715
      // Predicated region
      $region41: #{transformer_decoder.24} parent=31 // pred_check
        %p717 = pneg %p128
      $region42: #{transformer_decoder.24} parent=31 // pred_check_branch
        %719 = sbr.rel (%p717) target = $region44
      $region43: #{transformer_decoder.24} parent=31 // pred_region
        _
      $region44: #{transformer_decoder.24} parent=31 // pred_fallthru
        _
    $region32: #{transformer_decoder.24} parent=5 // pred_fallthru
      _
    %p720 = scmp.le.s32.totalorder 2, %s9
    // Predicated region
    $region45: #{transformer_decoder.24} parent=5 // pred_check
      %p721 = pneg %p720
    $region46: #{transformer_decoder.24} parent=5 // pred_check_branch
      %723 = sbr.rel (%p721) target = $region48
    $region47: #{transformer_decoder.24} parent=5 // pred_region
      %s724 = ssub.s32 %s9, 2
      // Predicated region
      $region49: #{transformer_decoder.24} parent=47 // pred_check
        %p725 = pneg %p134
      $region50: #{transformer_decoder.24} parent=47 // pred_check_branch
        %727 = sbr.rel (%p725) target = $region52
      $region51: #{transformer_decoder.24} parent=47 // pred_region
        %p728 = scmp.lt.s32.totalorder %s20, 1
        %s729 = scalar_select %p728, %s20, 1
        %s730 = smul.addr %s729, 4
        %s731 = scalar_lea.vmem %s3, %s730
      $region52: #{transformer_decoder.24} parent=47 // pred_fallthru
        _
    $region48: #{transformer_decoder.24} parent=5 // pred_fallthru
      _
  $region6: #{transformer_decoder.24} parent=0 // loop_footer
    %s13 = sadd.s32 1, %s9
  $region7: #{transformer_decoder.24} parent=0 // loop_footer_branch
    %8 = sbr.rel target = $region3
  $region8: #{transformer_decoder.24} parent=0 // loop_exit
    _

// kernel: transformer_decoder.25
$region0: #{transformer_decoder.25}
  #allocation0 [shape = 'u32[]', space=smem, size = 0x4, offset = 0x4, fixed_abs, tag = 'smem constant byte address 0x4 - core index']
  #allocation1 [shape = 'u32[72,128]{1,0:T(1,128)}', space=vmem, size = 0x9000, scoped, tag = 'internal scratch']
  #allocation2 [shape = 'f32[16,32]{1,0:T(8,128)}', space=vmem, size = 0x2000, scoped, tag = 'scratch operand']
  %s0 = inlined_call_operand.vmem [shape: bf16[1,16,32], index: 0, kind: input, shape index: {}]
  %s1 = inlined_call_operand.hbm [shape: bf16[1,32,32], index: 1, kind: input, shape index: {}]
  %s2 = inlined_call_operand.vmem [shape: f32[1,32], index: 2, kind: input, shape index: {}]
  %s3 = inlined_call_operand.vmem [shape: bf16[16,32], index: 3, kind: input, shape index: {}]
  %s4 = inlined_call_operand.hbm [shape: f32[1,32], index: 4, kind: input, shape index: {}]
  %s5 = inlined_call_operand.hbm [shape: f32[1,32], index: 5, kind: input, shape index: {}]
  %s6 = inlined_call_operand.vmem [shape: bf16[16,32], index: 6, kind: output, shape index: {}]
  %s7 = sld [smem:[#allocation0]]
  $region54: #{transformer_decoder.25} parent=0
    _
  %s9 = ssub.s32 1, %s7
  %s10 = scalar_select 0, %s9, %s7
  $region1: #{transformer_decoder.25} parent=0
    #allocation3 [shape = 'u8[8192]{0}', space=vmem, size = 0x2000, scoped, tag = 'input window, operand 1, single buffered']
    #allocation4 [shape = 's32[1]{0}', space=sflag, size = 0x4, scoped, tag = 'scoped memory for transformer_decoder.25']
    #allocation5 [shape = 'u8[512]{0}', space=vmem, size = 0x400, scoped, tag = 'input window, operand 4, single buffered']
    #allocation6 [shape = 's32[1]{0}', space=sflag, size = 0x4, scoped, tag = 'scoped memory for transformer_decoder.25']
    #allocation7 [shape = 'u8[512]{0}', space=vmem, size = 0x400, scoped, tag = 'input window, operand 5, single buffered']
    %11 = vsyncpa [#allocation4], 0
    %12 = vsyncpa [#allocation6], 0
    // Predicated region
    $region2: #{transformer_decoder.25} parent=1 // pred_check
      _
    $region3: #{transformer_decoder.25} parent=1 // pred_check_branch
      %14 = sbr.rel (0) target = $region5
    $region4: #{transformer_decoder.25} parent=1 // pred_region
      _
    $region5: #{transformer_decoder.25} parent=1 // pred_fallthru
      _
    // Predicated region
    $region6: #{transformer_decoder.25} parent=1 // pred_check
      _
    $region7: #{transformer_decoder.25} parent=1 // pred_check_branch
      %16 = sbr.rel (0) target = $region9
    $region8: #{transformer_decoder.25} parent=1 // pred_region
      %18 = vsyncadd [#allocation4], 0
      %s19 = sshll.u32 %s1, 4
      %s20 = int_to_ptr.hbm [resolvable:$true] %s19
      %s21 = sshll.u32 [#allocation3], 4
      %s22 = int_to_ptr.vmem [resolvable:$true] %s21
      %27 = dma.hbm_to_vmem [thread:$0]  %s20, 256, %s22, [#allocation4], 64, 64, 4
    $region9: #{transformer_decoder.25} parent=1 // pred_fallthru
      _
    // Predicated region
    $region10: #{transformer_decoder.25} parent=1 // pred_check
      _
    $region11: #{transformer_decoder.25} parent=1 // pred_check_branch
      %29 = sbr.rel (0) target = $region13
    $region12: #{transformer_decoder.25} parent=1 // pred_region
      _
    $region13: #{transformer_decoder.25} parent=1 // pred_fallthru
      _
    // Predicated region
    $region14: #{transformer_decoder.25} parent=1 // pred_check
      _
    $region15: #{transformer_decoder.25} parent=1 // pred_check_branch
      %31 = sbr.rel (0) target = $region17
    $region16: #{transformer_decoder.25} parent=1 // pred_region
      _
    $region17: #{transformer_decoder.25} parent=1 // pred_fallthru
      _
    // Predicated region
    $region18: #{transformer_decoder.25} parent=1 // pred_check
      _
    $region19: #{transformer_decoder.25} parent=1 // pred_check_branch
      %33 = sbr.rel (0) target = $region21
    $region20: #{transformer_decoder.25} parent=1 // pred_region
      %35 = vsyncadd [#allocation6], 0
      %s37 = sshll.u32 %s4, 4
      %s38 = int_to_ptr.hbm [resolvable:$true] %s37
      %s39 = sshll.u32 [#allocation5], 4
      %s40 = int_to_ptr.vmem [resolvable:$true] %s39
      %42 = dma.hbm_to_vmem [thread:$0]  %s38, 16, %s40, [#allocation6]
    $region21: #{transformer_decoder.25} parent=1 // pred_fallthru
      _
    // Predicated region
    $region22: #{transformer_decoder.25} parent=1 // pred_check
      _
    $region23: #{transformer_decoder.25} parent=1 // pred_check_branch
      %44 = sbr.rel (0) target = $region25
    $region24: #{transformer_decoder.25} parent=1 // pred_region
      %46 = vsyncadd [#allocation6], 0
      %s48 = sshll.u32 %s5, 4
      %s49 = int_to_ptr.hbm [resolvable:$true] %s48
      %s50 = sshll.u32 [#allocation7], 4
      %s51 = int_to_ptr.vmem [resolvable:$true] %s50
      %53 = dma.hbm_to_vmem [thread:$0]  %s49, 16, %s51, [#allocation6]
    $region25: #{transformer_decoder.25} parent=1 // pred_fallthru
      _
    // Predicated region
    $region26: #{transformer_decoder.25} parent=1 // pred_check
      _
    $region27: #{transformer_decoder.25} parent=1 // pred_check_branch
      %55 = sbr.rel (0) target = $region29
    $region28: #{transformer_decoder.25} parent=1 // pred_region
      %57 = dma.done [#allocation4], 256
    $region29: #{transformer_decoder.25} parent=1 // pred_fallthru
      _
    // Predicated region
    $region30: #{transformer_decoder.25} parent=1 // pred_check
      _
    $region31: #{transformer_decoder.25} parent=1 // pred_check_branch
      %59 = sbr.rel (0) target = $region33
    $region32: #{transformer_decoder.25} parent=1 // pred_region
      %61 = dma.done [#allocation6], 16
    $region33: #{transformer_decoder.25} parent=1 // pred_fallthru
      _
    // Predicated region
    $region34: #{transformer_decoder.25} parent=1 // pred_check
      _
    $region35: #{transformer_decoder.25} parent=1 // pred_check_branch
      %63 = sbr.rel (0) target = $region37
    $region36: #{transformer_decoder.25} parent=1 // pred_region
      %65 = dma.done [#allocation6], 16
    $region37: #{transformer_decoder.25} parent=1 // pred_fallthru
      _
    %p67 = scmp.eq.s32.totalorder 0, 0
    // Predicated region
    $region38: #{transformer_decoder.25} parent=1 // pred_check
      %p68 = pneg %p67
    $region39: #{transformer_decoder.25} parent=1 // pred_check_branch
      %70 = sbr.rel (%p68) target = $region41
    $region40: #{transformer_decoder.25} parent=1 // pred_region
      %vm71 = vcmask 261120
      %72 = vst.msk [vmem:[#allocation2] sm:$0xff] %vm71, 0.0
      %73 = vst.msk [vmem:[#allocation2 + $0x8] sm:$0xff] %vm71, 0.0
    $region41: #{transformer_decoder.25} parent=1 // pred_fallthru
      _
    %v74 = vld [vmem:[#allocation2] sm:$0xff]
    %v75 = vld [vmem:[#allocation2 + $0x8] sm:$0xff]
    %v76 = vld [vmem:[%s0] sm:$0xf]
    %v77 = vld [vmem:[%s0 + $0x4] sm:$0xf]
    %v78 = vld [vmem:[#allocation3] sm:$0xf]
    %v79 = vld [vmem:[#allocation3 + $0x4] sm:$0xf]
    %v80 = vld [vmem:[#allocation3 + $0x8] sm:$0xf]
    %v81 = vld [vmem:[#allocation3 + $0xc] sm:$0xf]
    %v84 = vunpack.c.l.b16 %v76
    %v85 = vunpack.c.l.b16 %v77
    %v86 = vpack.c.b16 %v85, %v84
    %v91 = vunpack.c.l.b16 %v78
    %v92 = vunpack.c.l.b16 %v79
    %v93 = vunpack.c.l.b16 %v80
    %v94 = vunpack.c.l.b16 %v81
    %v95 = vpack.c.b16 %v92, %v91
    %v96 = vpack.c.b16 %v94, %v93
    %vm99 = vcmask 261120
    %v101 = vsel %vm99, %v86, 0
    %103 = vmatpush.bf16.msra.mxu0 0
    %104 = vmatpush.bf16.msra.mxu0 0
    %105 = vmatpush.bf16.msra.mxu0 0
    %106 = vmatpush.bf16.msra.mxu0 0
    %107 = vmatpush.bf16.msra.mxu0 0
    %108 = vmatpush.bf16.msra.mxu0 0
    %109 = vmatpush.bf16.msra.mxu0 %v96
    %110 = vmatpush.bf16.msra.mxu0 %v95
    %111 = vmatmul.bf16.gmra.mxu0 %v101
    %v112 = vpop.f32.mrf.mxu0
    %v113 = vadd.f32 0.0, %v112
    %v114 = vpop.f32.mrf.mxu0
    %v115 = vadd.f32 0.0, %v114
    %116 = vdwg.mxu0
    %v117 = vadd.f32 %v74, %v113
    %v118 = vadd.f32 %v75, %v115
    %119 = vst.msk [vmem:[#allocation2] sm:$0xff] %vm99, %v117
    %120 = vst.msk [vmem:[#allocation2 + $0x8] sm:$0xff] %vm99, %v118
    // Predicated region
    $region42: #{transformer_decoder.25} parent=1 // pred_check
      %p121 = pneg %p67
    $region43: #{transformer_decoder.25} parent=1 // pred_check_branch
      %123 = sbr.rel (%p121) target = $region45
    $region44: #{transformer_decoder.25} parent=1 // pred_region
      %v124 = vld [vmem:[#allocation2] sm:$0xff]
      %v125 = vld [vmem:[#allocation2 + $0x8] sm:$0xff]
      %v126 = vld [vmem:[%s2] sm:$0x1]
      %v128 = vperm.slane %v126, 0
      %v130 = vadd.f32 %v124, %v128
      %v131 = vadd.f32 %v125, %v128
      %v132 = vld [vmem:[%s3] sm:$0xf]
      %v133 = vld [vmem:[%s3 + $0x4] sm:$0xf]
      %v134 = vunpack.c.l.bf16 %v132
      %v135 = vunpack.c.l.bf16 %v133
      %v136 = vadd.f32 %v130, %v134
      %v137 = vadd.f32 %v131, %v135
      %v138 = vsel %vm99, %v136, 0.0
      %139 = vadd.xlane.f32.xlu0 %v138
      %v140 = vpop.xlane.xlu0 %139
      %v141 = vsel %vm99, %v137, 0.0
      %142 = vadd.xlane.f32.xlu0 %v141
      %v143 = vpop.xlane.xlu0 %142
      %v144 = vrcp.pop 32.0
      %v145 = vmul.f32 32.0, %v144
      %v146 = vsub.f32 1.0, %v145
      %v147 = vmul.f32 %v144, %v146
      %v148 = vadd.f32 %v144, %v147
      %vm149 = vweird.f32 %v144
      %v150 = vsel %vm149, %v144, %v148
      %v151 = vmul.f32 %v140, %v150
      %v152 = vmul.f32 %v143, %v150
      %v153 = vsub.f32 %v136, %v151
      %v154 = vsub.f32 %v137, %v152
      %v155 = vmul.f32 %v153, %v153
      %v156 = vmul.f32 %v154, %v154
      %v157 = vsel %vm99, %v155, 0.0
      %158 = vadd.xlane.f32.xlu0 %v157
      %v159 = vpop.xlane.xlu0 %158
      %v160 = vsel %vm99, %v156, 0.0
      %161 = vadd.xlane.f32.xlu0 %v160
      %v162 = vpop.xlane.xlu0 %161
      %v163 = vmul.f32 %v159, %v150
      %v164 = vmul.f32 %v162, %v150
      %v165 = vadd.f32 %v163, 1e-05
      %v166 = vadd.f32 %v164, 1e-05
      %v167 = vrsqrt.pop %v165
      %v168 = vmul.f32 %v167, %v165
      %v169 = vmul.f32 %v168, %v167
      %v170 = vmul.f32 0.5, %v169
      %v171 = vsub.f32 1.5, %v170
      %v172 = vmul.f32 %v167, %v171
      %vm173 = vweird.f32 %v165
      %vm174 = vweird.f32 %v167
      %vm175 = vmor %vm173, %vm174
      %v176 = vsel %vm175, %v167, %v172
      %v177 = vrsqrt.pop %v166
      %v178 = vmul.f32 %v177, %v166
      %v179 = vmul.f32 %v178, %v177
      %v180 = vmul.f32 0.5, %v179
      %v181 = vsub.f32 1.5, %v180
      %v182 = vmul.f32 %v177, %v181
      %vm183 = vweird.f32 %v166
      %vm184 = vweird.f32 %v177
      %vm185 = vmor %vm183, %vm184
      %v186 = vsel %vm185, %v177, %v182
      %v187 = vmul.f32 %v153, %v176
      %v188 = vmul.f32 %v154, %v186
      %v189 = vld [vmem:[#allocation5] sm:$0x1]
      %v191 = vperm.slane %v189, 0
      %v193 = vmul.f32 %v187, %v191
      %v194 = vmul.f32 %v188, %v191
      %v195 = vld [vmem:[#allocation7] sm:$0x1]
      %v197 = vperm.slane %v195, 0
      %v199 = vadd.f32 %v193, %v197
      %v200 = vadd.f32 %v194, %v197
      %v201 = vpack.c.bf16 %v199, %v199
      %v202 = vpack.c.bf16 %v200, %v200
      %vm203 = vcmask 257024
      %204 = vst.msk [vmem:[%s6] sm:$0xf] %vm203, %v201
      %205 = vst.msk [vmem:[%s6 + $0x4] sm:$0xf] %vm203, %v202
    $region45: #{transformer_decoder.25} parent=1 // pred_fallthru
      _
    // Predicated region
    $region46: #{transformer_decoder.25} parent=1 // pred_check
      _
    $region47: #{transformer_decoder.25} parent=1 // pred_check_branch
      %207 = sbr.rel (0) target = $region49
    $region48: #{transformer_decoder.25} parent=1 // pred_region
      _
    $region49: #{transformer_decoder.25} parent=1 // pred_fallthru
      _
    // Predicated region
    $region50: #{transformer_decoder.25} parent=1 // pred_check
      _
    $region51: #{transformer_decoder.25} parent=1 // pred_check_branch
      %209 = sbr.rel (0) target = $region53
    $region52: #{transformer_decoder.25} parent=1 // pred_region
      _
    $region53: #{transformer_decoder.25} parent=1 // pred_fallthru
      _
    %210 = vsyncpa [#allocation4], 1
    %211 = vsyncpa [#allocation6], 1

// kernel: transformer_decoder.26
$region0: #{transformer_decoder.26}
  #allocation0 [shape = 'u32[]', space=smem, size = 0x4, offset = 0x4, fixed_abs, tag = 'smem constant byte address 0x4 - core index']
  #allocation1 [shape = 'u32[72,128]{1,0:T(1,128)}', space=vmem, size = 0x9000, scoped, tag = 'internal scratch']
  #allocation2 [shape = 'f32[16,64]{1,0:T(8,128)}', space=vmem, size = 0x2000, scoped, tag = 'scratch operand']
  %s0 = inlined_call_operand.vmem [shape: bf16[16,32], index: 0, kind: input, shape index: {}]
  %s1 = inlined_call_operand.hbm [shape: bf16[32,64], index: 1, kind: input, shape index: {}]
  %s2 = inlined_call_operand.hbm [shape: f32[1,64], index: 2, kind: input, shape index: {}]
  %s3 = inlined_call_operand.vmem [shape: bf16[16,64], index: 3, kind: output, shape index: {}]
  %s4 = sld [smem:[#allocation0]]
  $region38: #{transformer_decoder.26} parent=0
    _
  %s6 = ssub.s32 1, %s4
  %s7 = scalar_select 0, %s6, %s4
  $region1: #{transformer_decoder.26} parent=0
    #allocation3 [shape = 'u8[8192]{0}', space=vmem, size = 0x2000, scoped, tag = 'input window, operand 1, single buffered']
    #allocation4 [shape = 's32[1]{0}', space=sflag, size = 0x4, scoped, tag = 'scoped memory for transformer_decoder.26']
    #allocation5 [shape = 'u8[512]{0}', space=vmem, size = 0x400, scoped, tag = 'input window, operand 2, single buffered']
    #allocation6 [shape = 's32[1]{0}', space=sflag, size = 0x4, scoped, tag = 'scoped memory for transformer_decoder.26']
    %8 = vsyncpa [#allocation4], 0
    %9 = vsyncpa [#allocation6], 0
    // Predicated region
    $region2: #{transformer_decoder.26} parent=1 // pred_check
      _
    $region3: #{transformer_decoder.26} parent=1 // pred_check_branch
      %11 = sbr.rel (0) target = $region5
    $region4: #{transformer_decoder.26} parent=1 // pred_region
      _
    $region5: #{transformer_decoder.26} parent=1 // pred_fallthru
      _
    // Predicated region
    $region6: #{transformer_decoder.26} parent=1 // pred_check
      _
    $region7: #{transformer_decoder.26} parent=1 // pred_check_branch
      %13 = sbr.rel (0) target = $region9
    $region8: #{transformer_decoder.26} parent=1 // pred_region
      %15 = vsyncadd [#allocation4], 0
      %s16 = sshll.u32 %s1, 4
      %s17 = int_to_ptr.hbm [resolvable:$true] %s16
      %s18 = sshll.u32 [#allocation3], 4
      %s19 = int_to_ptr.vmem [resolvable:$true] %s18
      %24 = dma.hbm_to_vmem [thread:$0]  %s17, 256, %s19, [#allocation4], 64, 64, 4
    $region9: #{transformer_decoder.26} parent=1 // pred_fallthru
      _
    // Predicated region
    $region10: #{transformer_decoder.26} parent=1 // pred_check
      _
    $region11: #{transformer_decoder.26} parent=1 // pred_check_branch
      %26 = sbr.rel (0) target = $region13
    $region12: #{transformer_decoder.26} parent=1 // pred_region
      %28 = vsyncadd [#allocation6], 0
      %s30 = sshll.u32 %s2, 4
      %s31 = int_to_ptr.hbm [resolvable:$true] %s30
      %s32 = sshll.u32 [#allocation5], 4
      %s33 = int_to_ptr.vmem [resolvable:$true] %s32
      %35 = dma.hbm_to_vmem [thread:$0]  %s31, 16, %s33, [#allocation6]
    $region13: #{transformer_decoder.26} parent=1 // pred_fallthru
      _
    // Predicated region
    $region14: #{transformer_decoder.26} parent=1 // pred_check
      _
    $region15: #{transformer_decoder.26} parent=1 // pred_check_branch
      %37 = sbr.rel (0) target = $region17
    $region16: #{transformer_decoder.26} parent=1 // pred_region
      %39 = dma.done [#allocation4], 256
    $region17: #{transformer_decoder.26} parent=1 // pred_fallthru
      _
    // Predicated region
    $region18: #{transformer_decoder.26} parent=1 // pred_check
      _
    $region19: #{transformer_decoder.26} parent=1 // pred_check_branch
      %41 = sbr.rel (0) target = $region21
    $region20: #{transformer_decoder.26} parent=1 // pred_region
      %43 = dma.done [#allocation6], 16
    $region21: #{transformer_decoder.26} parent=1 // pred_fallthru
      _
    %p45 = scmp.eq.s32.totalorder 0, 0
    // Predicated region
    $region22: #{transformer_decoder.26} parent=1 // pred_check
      %p46 = pneg %p45
    $region23: #{transformer_decoder.26} parent=1 // pred_check_branch
      %48 = sbr.rel (%p46) target = $region25
    $region24: #{transformer_decoder.26} parent=1 // pred_region
      %vm49 = vcmask 523264
      %50 = vst.msk [vmem:[#allocation2] sm:$0xff] %vm49, 0.0
      %51 = vst.msk [vmem:[#allocation2 + $0x8] sm:$0xff] %vm49, 0.0
    $region25: #{transformer_decoder.26} parent=1 // pred_fallthru
      _
    %v52 = vld [vmem:[#allocation2] sm:$0xff]
    %v53 = vld [vmem:[#allocation2 + $0x8] sm:$0xff]
    %v54 = vld [vmem:[%s0] sm:$0xf]
    %v55 = vld [vmem:[%s0 + $0x4] sm:$0xf]
    %v56 = vld [vmem:[#allocation3] sm:$0xf]
    %v57 = vld [vmem:[#allocation3 + $0x4] sm:$0xf]
    %v58 = vld [vmem:[#allocation3 + $0x8] sm:$0xf]
    %v59 = vld [vmem:[#allocation3 + $0xc] sm:$0xf]
    %v62 = vunpack.c.l.b16 %v54
    %v63 = vunpack.c.l.b16 %v55
    %v64 = vpack.c.b16 %v63, %v62
    %v69 = vunpack.c.l.b16 %v56
    %v70 = vunpack.c.l.b16 %v57
    %v71 = vunpack.c.l.b16 %v58
    %v72 = vunpack.c.l.b16 %v59
    %v73 = vpack.c.b16 %v70, %v69
    %v74 = vpack.c.b16 %v72, %v71
    %vm77 = vcmask 261120
    %v79 = vsel %vm77, %v64, 0
    %81 = vmatpush.bf16.msra.mxu0 0
    %82 = vmatpush.bf16.msra.mxu0 0
    %83 = vmatpush.bf16.msra.mxu0 0
    %84 = vmatpush.bf16.msra.mxu0 0
    %85 = vmatpush.bf16.msra.mxu0 0
    %86 = vmatpush.bf16.msra.mxu0 0
    %87 = vmatpush.bf16.msra.mxu0 %v74
    %88 = vmatpush.bf16.msra.mxu0 %v73
    %89 = vmatmul.bf16.gmra.mxu0 %v79
    %v90 = vpop.f32.mrf.mxu0
    %v91 = vadd.f32 0.0, %v90
    %v92 = vpop.f32.mrf.mxu0
    %v93 = vadd.f32 0.0, %v92
    %94 = vdwg.mxu0
    %v95 = vadd.f32 %v52, %v91
    %v96 = vadd.f32 %v53, %v93
    %vm97 = vcmask 523264
    %98 = vst.msk [vmem:[#allocation2] sm:$0xff] %vm97, %v95
    %99 = vst.msk [vmem:[#allocation2 + $0x8] sm:$0xff] %vm97, %v96
    // Predicated region
    $region26: #{transformer_decoder.26} parent=1 // pred_check
      %p100 = pneg %p45
    $region27: #{transformer_decoder.26} parent=1 // pred_check_branch
      %102 = sbr.rel (%p100) target = $region29
    $region28: #{transformer_decoder.26} parent=1 // pred_region
      %v103 = vld [vmem:[#allocation2] sm:$0xff]
      %v104 = vld [vmem:[#allocation2 + $0x8] sm:$0xff]
      %v105 = vld [vmem:[#allocation5] sm:$0x1]
      %v107 = vperm.slane %v105, 0
      %v109 = vadd.f32 %v103, %v107
      %v110 = vadd.f32 %v104, %v107
      %v111 = vmax.f32 %v109, 0.0
      %v112 = vmax.f32 %v110, 0.0
      %v113 = vpack.c.bf16 %v111, %v111
      %v114 = vpack.c.bf16 %v112, %v112
      %vm115 = vcmask 519168
      %116 = vst.msk [vmem:[%s3] sm:$0xf] %vm115, %v113
      %117 = vst.msk [vmem:[%s3 + $0x4] sm:$0xf] %vm115, %v114
    $region29: #{transformer_decoder.26} parent=1 // pred_fallthru
      _
    // Predicated region
    $region30: #{transformer_decoder.26} parent=1 // pred_check
      _
    $region31: #{transformer_decoder.26} parent=1 // pred_check_branch
      %119 = sbr.rel (0) target = $region33
    $region32: #{transformer_decoder.26} parent=1 // pred_region
      _
    $region33: #{transformer_decoder.26} parent=1 // pred_fallthru
      _
    // Predicated region
    $region34: #{transformer_decoder.26} parent=1 // pred_check
      _
    $region35: #{transformer_decoder.26} parent=1 // pred_check_branch
      %121 = sbr.rel (0) target = $region37
    $region36: #{transformer_decoder.26} parent=1 // pred_region
      _
    $region37: #{transformer_decoder.26} parent=1 // pred_fallthru
      _
    %122 = vsyncpa [#allocation4], 1
    %123 = vsyncpa [#allocation6], 1

// kernel: transformer_decoder.27
$region0: #{transformer_decoder.27}
  #allocation0 [shape = 'u32[]', space=smem, size = 0x4, offset = 0x4, fixed_abs, tag = 'smem constant byte address 0x4 - core index']
  #allocation1 [shape = 'u32[72,128]{1,0:T(1,128)}', space=vmem, size = 0x9000, scoped, tag = 'internal scratch']
  #allocation2 [shape = 'f32[16,32]{1,0:T(8,128)}', space=vmem, size = 0x2000, scoped, tag = 'scratch operand']
  %s0 = inlined_call_operand.vmem [shape: bf16[16,64], index: 0, kind: input, shape index: {}]
  %s1 = inlined_call_operand.vmem [shape: bf16[64,32], index: 1, kind: input, shape index: {}]
  %s2 = inlined_call_operand.hbm [shape: f32[1,32], index: 2, kind: input, shape index: {}]
  %s3 = inlined_call_operand.vmem [shape: bf16[16,32], index: 3, kind: input, shape index: {}]
  %s4 = inlined_call_operand.hbm [shape: f32[1,32], index: 4, kind: input, shape index: {}]
  %s5 = inlined_call_operand.hbm [shape: f32[1,32], index: 5, kind: input, shape index: {}]
  %s6 = inlined_call_operand.vmem [shape: bf16[16,32], index: 6, kind: output, shape index: {}]
  %s7 = sld [smem:[#allocation0]]
  $region54: #{transformer_decoder.27} parent=0
    _
  %s9 = ssub.s32 1, %s7
  %s10 = scalar_select 0, %s9, %s7
  $region1: #{transformer_decoder.27} parent=0
    #allocation3 [shape = 'u8[512]{0}', space=vmem, size = 0x400, scoped, tag = 'input window, operand 2, single buffered']
    #allocation4 [shape = 's32[1]{0}', space=sflag, size = 0x4, scoped, tag = 'scoped memory for transformer_decoder.27']
    #allocation5 [shape = 'u8[512]{0}', space=vmem, size = 0x400, scoped, tag = 'input window, operand 4, single buffered']
    #allocation6 [shape = 's32[1]{0}', space=sflag, size = 0x4, scoped, tag = 'scoped memory for transformer_decoder.27']
    #allocation7 [shape = 'u8[512]{0}', space=vmem, size = 0x400, scoped, tag = 'input window, operand 5, single buffered']
    %11 = vsyncpa [#allocation4], 0
    %12 = vsyncpa [#allocation6], 0
    // Predicated region
    $region2: #{transformer_decoder.27} parent=1 // pred_check
      _
    $region3: #{transformer_decoder.27} parent=1 // pred_check_branch
      %14 = sbr.rel (0) target = $region5
    $region4: #{transformer_decoder.27} parent=1 // pred_region
      _
    $region5: #{transformer_decoder.27} parent=1 // pred_fallthru
      _
    // Predicated region
    $region6: #{transformer_decoder.27} parent=1 // pred_check
      _
    $region7: #{transformer_decoder.27} parent=1 // pred_check_branch
      %16 = sbr.rel (0) target = $region9
    $region8: #{transformer_decoder.27} parent=1 // pred_region
      _
    $region9: #{transformer_decoder.27} parent=1 // pred_fallthru
      _
    // Predicated region
    $region10: #{transformer_decoder.27} parent=1 // pred_check
      _
    $region11: #{transformer_decoder.27} parent=1 // pred_check_branch
      %18 = sbr.rel (0) target = $region13
    $region12: #{transformer_decoder.27} parent=1 // pred_region
      %20 = vsyncadd [#allocation4], 0
      %s22 = sshll.u32 %s2, 4
      %s23 = int_to_ptr.hbm [resolvable:$true] %s22
      %s24 = sshll.u32 [#allocation3], 4
      %s25 = int_to_ptr.vmem [resolvable:$true] %s24
      %27 = dma.hbm_to_vmem [thread:$0]  %s23, 16, %s25, [#allocation4]
    $region13: #{transformer_decoder.27} parent=1 // pred_fallthru
      _
    // Predicated region
    $region14: #{transformer_decoder.27} parent=1 // pred_check
      _
    $region15: #{transformer_decoder.27} parent=1 // pred_check_branch
      %29 = sbr.rel (0) target = $region17
    $region16: #{transformer_decoder.27} parent=1 // pred_region
      _
    $region17: #{transformer_decoder.27} parent=1 // pred_fallthru
      _
    // Predicated region
    $region18: #{transformer_decoder.27} parent=1 // pred_check
      _
    $region19: #{transformer_decoder.27} parent=1 // pred_check_branch
      %31 = sbr.rel (0) target = $region21
    $region20: #{transformer_decoder.27} parent=1 // pred_region
      %33 = vsyncadd [#allocation6], 0
      %s35 = sshll.u32 %s4, 4
      %s36 = int_to_ptr.hbm [resolvable:$true] %s35
      %s37 = sshll.u32 [#allocation5], 4
      %s38 = int_to_ptr.vmem [resolvable:$true] %s37
      %40 = dma.hbm_to_vmem [thread:$0]  %s36, 16, %s38, [#allocation6]
    $region21: #{transformer_decoder.27} parent=1 // pred_fallthru
      _
    // Predicated region
    $region22: #{transformer_decoder.27} parent=1 // pred_check
      _
    $region23: #{transformer_decoder.27} parent=1 // pred_check_branch
      %42 = sbr.rel (0) target = $region25
    $region24: #{transformer_decoder.27} parent=1 // pred_region
      %44 = vsyncadd [#allocation6], 0
      %s46 = sshll.u32 %s5, 4
      %s47 = int_to_ptr.hbm [resolvable:$true] %s46
      %s48 = sshll.u32 [#allocation7], 4
      %s49 = int_to_ptr.vmem [resolvable:$true] %s48
      %51 = dma.hbm_to_vmem [thread:$0]  %s47, 16, %s49, [#allocation6]
    $region25: #{transformer_decoder.27} parent=1 // pred_fallthru
      _
    // Predicated region
    $region26: #{transformer_decoder.27} parent=1 // pred_check
      _
    $region27: #{transformer_decoder.27} parent=1 // pred_check_branch
      %53 = sbr.rel (0) target = $region29
    $region28: #{transformer_decoder.27} parent=1 // pred_region
      %55 = dma.done [#allocation4], 16
    $region29: #{transformer_decoder.27} parent=1 // pred_fallthru
      _
    // Predicated region
    $region30: #{transformer_decoder.27} parent=1 // pred_check
      _
    $region31: #{transformer_decoder.27} parent=1 // pred_check_branch
      %57 = sbr.rel (0) target = $region33
    $region32: #{transformer_decoder.27} parent=1 // pred_region
      %59 = dma.done [#allocation6], 16
    $region33: #{transformer_decoder.27} parent=1 // pred_fallthru
      _
    // Predicated region
    $region34: #{transformer_decoder.27} parent=1 // pred_check
      _
    $region35: #{transformer_decoder.27} parent=1 // pred_check_branch
      %61 = sbr.rel (0) target = $region37
    $region36: #{transformer_decoder.27} parent=1 // pred_region
      %63 = dma.done [#allocation6], 16
    $region37: #{transformer_decoder.27} parent=1 // pred_fallthru
      _
    %p65 = scmp.eq.s32.totalorder 0, 0
    // Predicated region
    $region38: #{transformer_decoder.27} parent=1 // pred_check
      %p66 = pneg %p65
    $region39: #{transformer_decoder.27} parent=1 // pred_check_branch
      %68 = sbr.rel (%p66) target = $region41
    $region40: #{transformer_decoder.27} parent=1 // pred_region
      %vm69 = vcmask 261120
      %70 = vst.msk [vmem:[#allocation2] sm:$0xff] %vm69, 0.0
      %71 = vst.msk [vmem:[#allocation2 + $0x8] sm:$0xff] %vm69, 0.0
    $region41: #{transformer_decoder.27} parent=1 // pred_fallthru
      _
    %v72 = vld [vmem:[#allocation2] sm:$0xff]
    %v73 = vld [vmem:[#allocation2 + $0x8] sm:$0xff]
    %v74 = vld [vmem:[%s0] sm:$0xf]
    %v75 = vld [vmem:[%s0 + $0x4] sm:$0xf]
    %v76 = vld [vmem:[%s1] sm:$0xf]
    %v77 = vld [vmem:[%s1 + $0x4] sm:$0xf]
    %v78 = vld [vmem:[%s1 + $0x8] sm:$0xf]
    %v79 = vld [vmem:[%s1 + $0xc] sm:$0xf]
    %v80 = vld [vmem:[%s1 + $0x10] sm:$0xf]
    %v81 = vld [vmem:[%s1 + $0x14] sm:$0xf]
    %v82 = vld [vmem:[%s1 + $0x18] sm:$0xf]
    %v83 = vld [vmem:[%s1 + $0x1c] sm:$0xf]
    %v86 = vunpack.c.l.b16 %v74
    %v87 = vunpack.c.l.b16 %v75
    %v88 = vpack.c.b16 %v87, %v86
    %v97 = vunpack.c.l.b16 %v76
    %v98 = vunpack.c.l.b16 %v77
    %v99 = vunpack.c.l.b16 %v78
    %v100 = vunpack.c.l.b16 %v79
    %v101 = vunpack.c.l.b16 %v80
    %v102 = vunpack.c.l.b16 %v81
    %v103 = vunpack.c.l.b16 %v82
    %v104 = vunpack.c.l.b16 %v83
    %v105 = vpack.c.b16 %v98, %v97
    %v106 = vpack.c.b16 %v100, %v99
    %v107 = vpack.c.b16 %v102, %v101
    %v108 = vpack.c.b16 %v104, %v103
    %vm113 = vcmask 523264
    %v115 = vsel %vm113, %v88, 0
    %117 = vmatpush.bf16.msra.mxu0 0
    %118 = vmatpush.bf16.msra.mxu0 0
    %119 = vmatpush.bf16.msra.mxu0 0
    %120 = vmatpush.bf16.msra.mxu0 0
    %121 = vmatpush.bf16.msra.mxu0 %v108
    %122 = vmatpush.bf16.msra.mxu0 %v107
    %123 = vmatpush.bf16.msra.mxu0 %v106
    %124 = vmatpush.bf16.msra.mxu0 %v105
    %125 = vmatmul.bf16.gmra.mxu0 %v115
    %v126 = vpop.f32.mrf.mxu0
    %v127 = vadd.f32 0.0, %v126
    %v128 = vpop.f32.mrf.mxu0
    %v129 = vadd.f32 0.0, %v128
    %130 = vdwg.mxu0
    %v131 = vadd.f32 %v72, %v127
    %v132 = vadd.f32 %v73, %v129
    %vm133 = vcmask 261120
    %134 = vst.msk [vmem:[#allocation2] sm:$0xff] %vm133, %v131
    %135 = vst.msk [vmem:[#allocation2 + $0x8] sm:$0xff] %vm133, %v132
    // Predicated region
    $region42: #{transformer_decoder.27} parent=1 // pred_check
      %p136 = pneg %p65
    $region43: #{transformer_decoder.27} parent=1 // pred_check_branch
      %138 = sbr.rel (%p136) target = $region45
    $region44: #{transformer_decoder.27} parent=1 // pred_region
      %v139 = vld [vmem:[#allocation2] sm:$0xff]
      %v140 = vld [vmem:[#allocation2 + $0x8] sm:$0xff]
      %v141 = vld [vmem:[#allocation3] sm:$0x1]
      %v143 = vperm.slane %v141, 0
      %v145 = vadd.f32 %v139, %v143
      %v146 = vadd.f32 %v140, %v143
      %v147 = vld [vmem:[%s3] sm:$0xf]
      %v148 = vld [vmem:[%s3 + $0x4] sm:$0xf]
      %v149 = vunpack.c.l.bf16 %v147
      %v150 = vunpack.c.l.bf16 %v148
      %v151 = vadd.f32 %v145, %v149
      %v152 = vadd.f32 %v146, %v150
      %v153 = vsel %vm133, %v151, 0.0
      %154 = vadd.xlane.f32.xlu0 %v153
      %v155 = vpop.xlane.xlu0 %154
      %v156 = vsel %vm133, %v152, 0.0
      %157 = vadd.xlane.f32.xlu0 %v156
      %v158 = vpop.xlane.xlu0 %157
      %v159 = vrcp.pop 32.0
      %v160 = vmul.f32 32.0, %v159
      %v161 = vsub.f32 1.0, %v160
      %v162 = vmul.f32 %v159, %v161
      %v163 = vadd.f32 %v159, %v162
      %vm164 = vweird.f32 %v159
      %v165 = vsel %vm164, %v159, %v163
      %v166 = vmul.f32 %v155, %v165
      %v167 = vmul.f32 %v158, %v165
      %v168 = vsub.f32 %v151, %v166
      %v169 = vsub.f32 %v152, %v167
      %v170 = vmul.f32 %v168, %v168
      %v171 = vmul.f32 %v169, %v169
      %v172 = vsel %vm133, %v170, 0.0
      %173 = vadd.xlane.f32.xlu0 %v172
      %v174 = vpop.xlane.xlu0 %173
      %v175 = vsel %vm133, %v171, 0.0
      %176 = vadd.xlane.f32.xlu0 %v175
      %v177 = vpop.xlane.xlu0 %176
      %v178 = vmul.f32 %v174, %v165
      %v179 = vmul.f32 %v177, %v165
      %v180 = vadd.f32 %v178, 1e-05
      %v181 = vadd.f32 %v179, 1e-05
      %v182 = vrsqrt.pop %v180
      %v183 = vmul.f32 %v182, %v180
      %v184 = vmul.f32 %v183, %v182
      %v185 = vmul.f32 0.5, %v184
      %v186 = vsub.f32 1.5, %v185
      %v187 = vmul.f32 %v182, %v186
      %vm188 = vweird.f32 %v180
      %vm189 = vweird.f32 %v182
      %vm190 = vmor %vm188, %vm189
      %v191 = vsel %vm190, %v182, %v187
      %v192 = vrsqrt.pop %v181
      %v193 = vmul.f32 %v192, %v181
      %v194 = vmul.f32 %v193, %v192
      %v195 = vmul.f32 0.5, %v194
      %v196 = vsub.f32 1.5, %v195
      %v197 = vmul.f32 %v192, %v196
      %vm198 = vweird.f32 %v181
      %vm199 = vweird.f32 %v192
      %vm200 = vmor %vm198, %vm199
      %v201 = vsel %vm200, %v192, %v197
      %v202 = vmul.f32 %v168, %v191
      %v203 = vmul.f32 %v169, %v201
      %v204 = vld [vmem:[#allocation5] sm:$0x1]
      %v206 = vperm.slane %v204, 0
      %v208 = vmul.f32 %v202, %v206
      %v209 = vmul.f32 %v203, %v206
      %v210 = vld [vmem:[#allocation7] sm:$0x1]
      %v212 = vperm.slane %v210, 0
      %v214 = vadd.f32 %v208, %v212
      %v215 = vadd.f32 %v209, %v212
      %v216 = vpack.c.bf16 %v214, %v214
      %v217 = vpack.c.bf16 %v215, %v215
      %vm218 = vcmask 257024
      %219 = vst.msk [vmem:[%s6] sm:$0xf] %vm218, %v216
      %220 = vst.msk [vmem:[%s6 + $0x4] sm:$0xf] %vm218, %v217
    $region45: #{transformer_decoder.27} parent=1 // pred_fallthru
      _
    // Predicated region
    $region46: #{transformer_decoder.27} parent=1 // pred_check
      _
    $region47: #{transformer_decoder.27} parent=1 // pred_check_branch
      %222 = sbr.rel (0) target = $region49
    $region48: #{transformer_decoder.27} parent=1 // pred_region
      _
    $region49: #{transformer_decoder.27} parent=1 // pred_fallthru
      _
    // Predicated region
    $region50: #{transformer_decoder.27} parent=1 // pred_check
      _
    $region51: #{transformer_decoder.27} parent=1 // pred_check_branch
      %224 = sbr.rel (0) target = $region53
    $region52: #{transformer_decoder.27} parent=1 // pred_region
      _
    $region53: #{transformer_decoder.27} parent=1 // pred_fallthru
      _
    %225 = vsyncpa [#allocation4], 1
    %226 = vsyncpa [#allocation6], 1

// kernel: transformer_decoder.30
$region0: #{transformer_decoder.30}
  #allocation0 [shape = 'u32[]', space=smem, size = 0x4, offset = 0x4, fixed_abs, tag = 'smem constant byte address 0x4 - core index']
  #allocation1 [shape = 'u32[72,128]{1,0:T(1,128)}', space=vmem, size = 0x9000, scoped, tag = 'internal scratch']
  #allocation2 [shape = 'f32[16,32]{1,0:T(8,128)}', space=vmem, size = 0x2000, scoped, tag = 'scratch operand']
  %s0 = inlined_call_operand.vmem [shape: bf16[1,16,32], index: 0, kind: input, shape index: {}]
  %s1 = inlined_call_operand.hbm [shape: bf16[1,32,32], index: 1, kind: input, shape index: {}]
  %s2 = inlined_call_operand.hbm [shape: f32[1,32], index: 2, kind: input, shape index: {}]
  %s3 = inlined_call_operand.vmem [shape: bf16[16,32], index: 3, kind: input, shape index: {}]
  %s4 = inlined_call_operand.hbm [shape: f32[1,32], index: 4, kind: input, shape index: {}]
  %s5 = inlined_call_operand.hbm [shape: f32[1,32], index: 5, kind: input, shape index: {}]
  %s6 = inlined_call_operand.vmem [shape: bf16[16,32], index: 6, kind: output, shape index: {}]
  %s7 = sld [smem:[#allocation0]]
  $region58: #{transformer_decoder.30} parent=0
    _
  %s9 = ssub.s32 1, %s7
  %s10 = scalar_select 0, %s9, %s7
  $region1: #{transformer_decoder.30} parent=0
    #allocation3 [shape = 'u8[8192]{0}', space=vmem, size = 0x2000, scoped, tag = 'input window, operand 1, single buffered']
    #allocation4 [shape = 's32[1]{0}', space=sflag, size = 0x4, scoped, tag = 'scoped memory for transformer_decoder.30']
    #allocation5 [shape = 'u8[512]{0}', space=vmem, size = 0x400, scoped, tag = 'input window, operand 2, single buffered']
    #allocation6 [shape = 's32[1]{0}', space=sflag, size = 0x4, scoped, tag = 'scoped memory for transformer_decoder.30']
    #allocation7 [shape = 'u8[512]{0}', space=vmem, size = 0x400, scoped, tag = 'input window, operand 4, single buffered']
    #allocation8 [shape = 'u8[512]{0}', space=vmem, size = 0x400, scoped, tag = 'input window, operand 5, single buffered']
    #allocation9 [shape = 's32[1]{0}', space=sflag, size = 0x4, scoped, tag = 'scoped memory for transformer_decoder.30']
    %11 = vsyncpa [#allocation4], 0
    %12 = vsyncpa [#allocation6], 0
    %13 = vsyncpa [#allocation9], 0
    // Predicated region
    $region2: #{transformer_decoder.30} parent=1 // pred_check
      _
    $region3: #{transformer_decoder.30} parent=1 // pred_check_branch
      %15 = sbr.rel (0) target = $region5
    $region4: #{transformer_decoder.30} parent=1 // pred_region
      _
    $region5: #{transformer_decoder.30} parent=1 // pred_fallthru
      _
    // Predicated region
    $region6: #{transformer_decoder.30} parent=1 // pred_check
      _
    $region7: #{transformer_decoder.30} parent=1 // pred_check_branch
      %17 = sbr.rel (0) target = $region9
    $region8: #{transformer_decoder.30} parent=1 // pred_region
      %19 = vsyncadd [#allocation4], 0
      %s20 = sshll.u32 %s1, 4
      %s21 = int_to_ptr.hbm [resolvable:$true] %s20
      %s22 = sshll.u32 [#allocation3], 4
      %s23 = int_to_ptr.vmem [resolvable:$true] %s22
      %28 = dma.hbm_to_vmem [thread:$0]  %s21, 256, %s23, [#allocation4], 64, 64, 4
    $region9: #{transformer_decoder.30} parent=1 // pred_fallthru
      _
    // Predicated region
    $region10: #{transformer_decoder.30} parent=1 // pred_check
      _
    $region11: #{transformer_decoder.30} parent=1 // pred_check_branch
      %30 = sbr.rel (0) target = $region13
    $region12: #{transformer_decoder.30} parent=1 // pred_region
      %32 = vsyncadd [#allocation6], 0
      %s34 = sshll.u32 %s2, 4
      %s35 = int_to_ptr.hbm [resolvable:$true] %s34
      %s36 = sshll.u32 [#allocation5], 4
      %s37 = int_to_ptr.vmem [resolvable:$true] %s36
      %39 = dma.hbm_to_vmem [thread:$0]  %s35, 16, %s37, [#allocation6]
    $region13: #{transformer_decoder.30} parent=1 // pred_fallthru
      _
    // Predicated region
    $region14: #{transformer_decoder.30} parent=1 // pred_check
      _
    $region15: #{transformer_decoder.30} parent=1 // pred_check_branch
      %41 = sbr.rel (0) target = $region17
    $region16: #{transformer_decoder.30} parent=1 // pred_region
      _
    $region17: #{transformer_decoder.30} parent=1 // pred_fallthru
      _
    // Predicated region
    $region18: #{transformer_decoder.30} parent=1 // pred_check
      _
    $region19: #{transformer_decoder.30} parent=1 // pred_check_branch
      %43 = sbr.rel (0) target = $region21
    $region20: #{transformer_decoder.30} parent=1 // pred_region
      %45 = vsyncadd [#allocation6], 0
      %s47 = sshll.u32 %s4, 4
      %s48 = int_to_ptr.hbm [resolvable:$true] %s47
      %s49 = sshll.u32 [#allocation7], 4
      %s50 = int_to_ptr.vmem [resolvable:$true] %s49
      %52 = dma.hbm_to_vmem [thread:$0]  %s48, 16, %s50, [#allocation6]
    $region21: #{transformer_decoder.30} parent=1 // pred_fallthru
      _
    // Predicated region
    $region22: #{transformer_decoder.30} parent=1 // pred_check
      _
    $region23: #{transformer_decoder.30} parent=1 // pred_check_branch
      %54 = sbr.rel (0) target = $region25
    $region24: #{transformer_decoder.30} parent=1 // pred_region
      %56 = vsyncadd [#allocation9], 0
      %s58 = sshll.u32 %s5, 4
      %s59 = int_to_ptr.hbm [resolvable:$true] %s58
      %s60 = sshll.u32 [#allocation8], 4
      %s61 = int_to_ptr.vmem [resolvable:$true] %s60
      %63 = dma.hbm_to_vmem [thread:$0]  %s59, 16, %s61, [#allocation9]
    $region25: #{transformer_decoder.30} parent=1 // pred_fallthru
      _
    // Predicated region
    $region26: #{transformer_decoder.30} parent=1 // pred_check
      _
    $region27: #{transformer_decoder.30} parent=1 // pred_check_branch
      %65 = sbr.rel (0) target = $region29
    $region28: #{transformer_decoder.30} parent=1 // pred_region
      %67 = dma.done [#allocation4], 256
    $region29: #{transformer_decoder.30} parent=1 // pred_fallthru
      _
    // Predicated region
    $region30: #{transformer_decoder.30} parent=1 // pred_check
      _
    $region31: #{transformer_decoder.30} parent=1 // pred_check_branch
      %69 = sbr.rel (0) target = $region33
    $region32: #{transformer_decoder.30} parent=1 // pred_region
      %71 = dma.done [#allocation6], 16
    $region33: #{transformer_decoder.30} parent=1 // pred_fallthru
      _
    // Predicated region
    $region34: #{transformer_decoder.30} parent=1 // pred_check
      _
    $region35: #{transformer_decoder.30} parent=1 // pred_check_branch
      %73 = sbr.rel (0) target = $region37
    $region36: #{transformer_decoder.30} parent=1 // pred_region
      %75 = dma.done [#allocation6], 16
    $region37: #{transformer_decoder.30} parent=1 // pred_fallthru
      _
    // Predicated region
    $region38: #{transformer_decoder.30} parent=1 // pred_check
      _
    $region39: #{transformer_decoder.30} parent=1 // pred_check_branch
      %77 = sbr.rel (0) target = $region41
    $region40: #{transformer_decoder.30} parent=1 // pred_region
      %79 = dma.done [#allocation9], 16
    $region41: #{transformer_decoder.30} parent=1 // pred_fallthru
      _
    %p81 = scmp.eq.s32.totalorder 0, 0
    // Predicated region
    $region42: #{transformer_decoder.30} parent=1 // pred_check
      %p82 = pneg %p81
    $region43: #{transformer_decoder.30} parent=1 // pred_check_branch
      %84 = sbr.rel (%p82) target = $region45
    $region44: #{transformer_decoder.30} parent=1 // pred_region
      %vm85 = vcmask 261120
      %86 = vst.msk [vmem:[#allocation2] sm:$0xff] %vm85, 0.0
      %87 = vst.msk [vmem:[#allocation2 + $0x8] sm:$0xff] %vm85, 0.0
    $region45: #{transformer_decoder.30} parent=1 // pred_fallthru
      _
    %v88 = vld [vmem:[#allocation2] sm:$0xff]
    %v89 = vld [vmem:[#allocation2 + $0x8] sm:$0xff]
    %v90 = vld [vmem:[%s0] sm:$0xf]
    %v91 = vld [vmem:[%s0 + $0x4] sm:$0xf]
    %v92 = vld [vmem:[#allocation3] sm:$0xf]
    %v93 = vld [vmem:[#allocation3 + $0x4] sm:$0xf]
    %v94 = vld [vmem:[#allocation3 + $0x8] sm:$0xf]
    %v95 = vld [vmem:[#allocation3 + $0xc] sm:$0xf]
    %v98 = vunpack.c.l.b16 %v90
    %v99 = vunpack.c.l.b16 %v91
    %v100 = vpack.c.b16 %v99, %v98
    %v105 = vunpack.c.l.b16 %v92
    %v106 = vunpack.c.l.b16 %v93
    %v107 = vunpack.c.l.b16 %v94
    %v108 = vunpack.c.l.b16 %v95
    %v109 = vpack.c.b16 %v106, %v105
    %v110 = vpack.c.b16 %v108, %v107
    %vm113 = vcmask 261120
    %v115 = vsel %vm113, %v100, 0
    %117 = vmatpush.bf16.msra.mxu0 0
    %118 = vmatpush.bf16.msra.mxu0 0
    %119 = vmatpush.bf16.msra.mxu0 0
    %120 = vmatpush.bf16.msra.mxu0 0
    %121 = vmatpush.bf16.msra.mxu0 0
    %122 = vmatpush.bf16.msra.mxu0 0
    %123 = vmatpush.bf16.msra.mxu0 %v110
    %124 = vmatpush.bf16.msra.mxu0 %v109
    %125 = vmatmul.bf16.gmra.mxu0 %v115
    %v126 = vpop.f32.mrf.mxu0
    %v127 = vadd.f32 0.0, %v126
    %v128 = vpop.f32.mrf.mxu0
    %v129 = vadd.f32 0.0, %v128
    %130 = vdwg.mxu0
    %v131 = vadd.f32 %v88, %v127
    %v132 = vadd.f32 %v89, %v129
    %133 = vst.msk [vmem:[#allocation2] sm:$0xff] %vm113, %v131
    %134 = vst.msk [vmem:[#allocation2 + $0x8] sm:$0xff] %vm113, %v132
    // Predicated region
    $region46: #{transformer_decoder.30} parent=1 // pred_check
      %p135 = pneg %p81
    $region47: #{transformer_decoder.30} parent=1 // pred_check_branch
      %137 = sbr.rel (%p135) target = $region49
    $region48: #{transformer_decoder.30} parent=1 // pred_region
      %v138 = vld [vmem:[#allocation2] sm:$0xff]
      %v139 = vld [vmem:[#allocation2 + $0x8] sm:$0xff]
      %v140 = vld [vmem:[#allocation5] sm:$0x1]
      %v142 = vperm.slane %v140, 0
      %v144 = vadd.f32 %v138, %v142
      %v145 = vadd.f32 %v139, %v142
      %v146 = vld [vmem:[%s3] sm:$0xf]
      %v147 = vld [vmem:[%s3 + $0x4] sm:$0xf]
      %v148 = vunpack.c.l.bf16 %v146
      %v149 = vunpack.c.l.bf16 %v147
      %v150 = vadd.f32 %v144, %v148
      %v151 = vadd.f32 %v145, %v149
      %v152 = vsel %vm113, %v150, 0.0
      %153 = vadd.xlane.f32.xlu0 %v152
      %v154 = vpop.xlane.xlu0 %153
      %v155 = vsel %vm113, %v151, 0.0
      %156 = vadd.xlane.f32.xlu0 %v155
      %v157 = vpop.xlane.xlu0 %156
      %v158 = vrcp.pop 32.0
      %v159 = vmul.f32 32.0, %v158
      %v160 = vsub.f32 1.0, %v159
      %v161 = vmul.f32 %v158, %v160
      %v162 = vadd.f32 %v158, %v161
      %vm163 = vweird.f32 %v158
      %v164 = vsel %vm163, %v158, %v162
      %v165 = vmul.f32 %v154, %v164
      %v166 = vmul.f32 %v157, %v164
      %v167 = vsub.f32 %v150, %v165
      %v168 = vsub.f32 %v151, %v166
      %v169 = vmul.f32 %v167, %v167
      %v170 = vmul.f32 %v168, %v168
      %v171 = vsel %vm113, %v169, 0.0
      %172 = vadd.xlane.f32.xlu0 %v171
      %v173 = vpop.xlane.xlu0 %172
      %v174 = vsel %vm113, %v170, 0.0
      %175 = vadd.xlane.f32.xlu0 %v174
      %v176 = vpop.xlane.xlu0 %175
      %v177 = vmul.f32 %v173, %v164
      %v178 = vmul.f32 %v176, %v164
      %v179 = vadd.f32 %v177, 1e-05
      %v180 = vadd.f32 %v178, 1e-05
      %v181 = vrsqrt.pop %v179
      %v182 = vmul.f32 %v181, %v179
      %v183 = vmul.f32 %v182, %v181
      %v184 = vmul.f32 0.5, %v183
      %v185 = vsub.f32 1.5, %v184
      %v186 = vmul.f32 %v181, %v185
      %vm187 = vweird.f32 %v179
      %vm188 = vweird.f32 %v181
      %vm189 = vmor %vm187, %vm188
      %v190 = vsel %vm189, %v181, %v186
      %v191 = vrsqrt.pop %v180
      %v192 = vmul.f32 %v191, %v180
      %v193 = vmul.f32 %v192, %v191
      %v194 = vmul.f32 0.5, %v193
      %v195 = vsub.f32 1.5, %v194
      %v196 = vmul.f32 %v191, %v195
      %vm197 = vweird.f32 %v180
      %vm198 = vweird.f32 %v191
      %vm199 = vmor %vm197, %vm198
      %v200 = vsel %vm199, %v191, %v196
      %v201 = vmul.f32 %v167, %v190
      %v202 = vmul.f32 %v168, %v200
      %v203 = vld [vmem:[#allocation7] sm:$0x1]
      %v205 = vperm.slane %v203, 0
      %v207 = vmul.f32 %v201, %v205
      %v208 = vmul.f32 %v202, %v205
      %v209 = vld [vmem:[#allocation8] sm:$0x1]
      %v211 = vperm.slane %v209, 0
      %v213 = vadd.f32 %v207, %v211
      %v214 = vadd.f32 %v208, %v211
      %v215 = vpack.c.bf16 %v213, %v213
      %v216 = vpack.c.bf16 %v214, %v214
      %vm217 = vcmask 257024
      %218 = vst.msk [vmem:[%s6] sm:$0xf] %vm217, %v215
      %219 = vst.msk [vmem:[%s6 + $0x4] sm:$0xf] %vm217, %v216
    $region49: #{transformer_decoder.30} parent=1 // pred_fallthru
      _
    // Predicated region
    $region50: #{transformer_decoder.30} parent=1 // pred_check
      _
    $region51: #{transformer_decoder.30} parent=1 // pred_check_branch
      %221 = sbr.rel (0) target = $region53
    $region52: #{transformer_decoder.30} parent=1 // pred_region
      _
    $region53: #{transformer_decoder.30} parent=1 // pred_fallthru
      _
    // Predicated region
    $region54: #{transformer_decoder.30} parent=1 // pred_check
      _
    $region55: #{transformer_decoder.30} parent=1 // pred_check_branch
      %223 = sbr.rel (0) target = $region57
    $region56: #{transformer_decoder.30} parent=1 // pred_region
      _
    $region57: #{transformer_decoder.30} parent=1 // pred_fallthru
      _
    %224 = vsyncpa [#allocation4], 1
    %225 = vsyncpa [#allocation6], 1
    %226 = vsyncpa [#allocation9], 1

// kernel: transformer_decoder.32
$region0: #{transformer_decoder.32}
  #allocation0 [shape = 'u32[]', space=smem, size = 0x4, offset = 0x4, fixed_abs, tag = 'smem constant byte address 0x4 - core index']
  #allocation1 [shape = 'u32[72,128]{1,0:T(1,128)}', space=vmem, size = 0x9000, scoped, tag = 'internal scratch']
  #allocation2 [shape = 'f32[2,32,32]{2,1,0:T(8,128)}', space=vmem, size = 0x8000, scoped, tag = 'scratch operand']
  %s0 = inlined_call_operand.vmem [shape: bf16[32,32], index: 0, kind: input, shape index: {}]
  %s1 = inlined_call_operand.hbm [shape: bf16[2,32,32], index: 1, kind: input, shape index: {}]
  %s2 = inlined_call_operand.hbm [shape: f32[2,1,32], index: 2, kind: input, shape index: {}]
  %s3 = inlined_call_operand.vmem [shape: bf16[2,32,32], index: 3, kind: output, shape index: {}]
  %s4 = sld [smem:[#allocation0]]
  $region38: #{transformer_decoder.32} parent=0
    _
  %s6 = ssub.s32 1, %s4
  %s7 = scalar_select 0, %s6, %s4
  $region1: #{transformer_decoder.32} parent=0
    #allocation3 [shape = 'u8[16384]{0}', space=vmem, size = 0x4000, scoped, tag = 'input window, operand 1, single buffered']
    #allocation4 [shape = 's32[1]{0}', space=sflag, size = 0x4, scoped, tag = 'scoped memory for transformer_decoder.32']
    #allocation5 [shape = 'u8[1024]{0}', space=vmem, size = 0x400, scoped, tag = 'input window, operand 2, single buffered']
    #allocation6 [shape = 's32[1]{0}', space=sflag, size = 0x4, scoped, tag = 'scoped memory for transformer_decoder.32']
    %8 = vsyncpa [#allocation4], 0
    %9 = vsyncpa [#allocation6], 0
    // Predicated region
    $region2: #{transformer_decoder.32} parent=1 // pred_check
      _
    $region3: #{transformer_decoder.32} parent=1 // pred_check_branch
      %11 = sbr.rel (0) target = $region5
    $region4: #{transformer_decoder.32} parent=1 // pred_region
      _
    $region5: #{transformer_decoder.32} parent=1 // pred_fallthru
      _
    // Predicated region
    $region6: #{transformer_decoder.32} parent=1 // pred_check
      _
    $region7: #{transformer_decoder.32} parent=1 // pred_check_branch
      %13 = sbr.rel (0) target = $region9
    $region8: #{transformer_decoder.32} parent=1 // pred_region
      %15 = vsyncadd [#allocation4], 0
      %s16 = sshll.u32 %s1, 4
      %s17 = int_to_ptr.hbm [resolvable:$true] %s16
      %s18 = sshll.u32 [#allocation3], 4
      %s19 = int_to_ptr.vmem [resolvable:$true] %s18
      %24 = dma.hbm_to_vmem [thread:$0]  %s17, 512, %s19, [#allocation4], 64, 64, 4
    $region9: #{transformer_decoder.32} parent=1 // pred_fallthru
      _
    // Predicated region
    $region10: #{transformer_decoder.32} parent=1 // pred_check
      _
    $region11: #{transformer_decoder.32} parent=1 // pred_check_branch
      %26 = sbr.rel (0) target = $region13
    $region12: #{transformer_decoder.32} parent=1 // pred_region
      %28 = vsyncadd [#allocation6], 0
      %s29 = sshll.u32 %s2, 4
      %s30 = int_to_ptr.hbm [resolvable:$true] %s29
      %s31 = sshll.u32 [#allocation5], 4
      %s32 = int_to_ptr.vmem [resolvable:$true] %s31
      %37 = dma.hbm_to_vmem [thread:$0]  %s30, 32, %s32, [#allocation6], 16, 16, 1
    $region13: #{transformer_decoder.32} parent=1 // pred_fallthru
      _
    // Predicated region
    $region14: #{transformer_decoder.32} parent=1 // pred_check
      _
    $region15: #{transformer_decoder.32} parent=1 // pred_check_branch
      %39 = sbr.rel (0) target = $region17
    $region16: #{transformer_decoder.32} parent=1 // pred_region
      %41 = dma.done [#allocation4], 512
    $region17: #{transformer_decoder.32} parent=1 // pred_fallthru
      _
    // Predicated region
    $region18: #{transformer_decoder.32} parent=1 // pred_check
      _
    $region19: #{transformer_decoder.32} parent=1 // pred_check_branch
      %43 = sbr.rel (0) target = $region21
    $region20: #{transformer_decoder.32} parent=1 // pred_region
      %45 = dma.done [#allocation6], 32
    $region21: #{transformer_decoder.32} parent=1 // pred_fallthru
      _
    %p47 = scmp.eq.s32.totalorder 0, 0
    // Predicated region
    $region22: #{transformer_decoder.32} parent=1 // pred_check
      %p48 = pneg %p47
    $region23: #{transformer_decoder.32} parent=1 // pred_check_branch
      %50 = sbr.rel (%p48) target = $region25
    $region24: #{transformer_decoder.32} parent=1 // pred_region
      %vm51 = vcmask 261120
      %52 = vst.msk [vmem:[#allocation2] sm:$0xff] %vm51, 0.0
      %53 = vst.msk [vmem:[#allocation2 + $0x8] sm:$0xff] %vm51, 0.0
      %54 = vst.msk [vmem:[#allocation2 + $0x10] sm:$0xff] %vm51, 0.0
      %55 = vst.msk [vmem:[#allocation2 + $0x18] sm:$0xff] %vm51, 0.0
      %56 = vst.msk [vmem:[#allocation2 + $0x20] sm:$0xff] %vm51, 0.0
      %57 = vst.msk [vmem:[#allocation2 + $0x28] sm:$0xff] %vm51, 0.0
      %58 = vst.msk [vmem:[#allocation2 + $0x30] sm:$0xff] %vm51, 0.0
      %59 = vst.msk [vmem:[#allocation2 + $0x38] sm:$0xff] %vm51, 0.0
    $region25: #{transformer_decoder.32} parent=1 // pred_fallthru
      _
    %v60 = vld [vmem:[%s0] sm:$0xf]
    %v61 = vld [vmem:[%s0 + $0x4] sm:$0xf]
    %v62 = vld [vmem:[%s0 + $0x8] sm:$0xf]
    %v63 = vld [vmem:[%s0 + $0xc] sm:$0xf]
    %v64 = vld [vmem:[#allocation2] sm:$0xff]
    %v65 = vld [vmem:[#allocation2 + $0x8] sm:$0xff]
    %v66 = vld [vmem:[#allocation2 + $0x10] sm:$0xff]
    %v67 = vld [vmem:[#allocation2 + $0x18] sm:$0xff]
    %v68 = vld [vmem:[#allocation3] sm:$0xf]
    %v69 = vld [vmem:[#allocation3 + $0x4] sm:$0xf]
    %v70 = vld [vmem:[#allocation3 + $0x8] sm:$0xf]
    %v71 = vld [vmem:[#allocation3 + $0xc] sm:$0xf]
    %v76 = vunpack.c.l.b16 %v60
    %v77 = vunpack.c.l.b16 %v61
    %v78 = vunpack.c.l.b16 %v62
    %v79 = vunpack.c.l.b16 %v63
    %v80 = vpack.c.b16 %v77, %v76
    %v81 = vpack.c.b16 %v79, %v78
    %v86 = vunpack.c.l.b16 %v68
    %v87 = vunpack.c.l.b16 %v69
    %v88 = vunpack.c.l.b16 %v70
    %v89 = vunpack.c.l.b16 %v71
    %v90 = vpack.c.b16 %v87, %v86
    %v91 = vpack.c.b16 %v89, %v88
    %vm94 = vcmask 261120
    %v96 = vsel %vm94, %v80, 0
    %v99 = vsel %vm94, %v81, 0
    %101 = vmatpush.bf16.msra.mxu0 0
    %102 = vmatpush.bf16.msra.mxu0 0
    %103 = vmatpush.bf16.msra.mxu0 0
    %104 = vmatpush.bf16.msra.mxu0 0
    %105 = vmatpush.bf16.msra.mxu0 0
    %106 = vmatpush.bf16.msra.mxu0 0
    %107 = vmatpush.bf16.msra.mxu0 %v91
    %108 = vmatpush.bf16.msra.mxu0 %v90
    %109 = vmatmul.bf16.gmra.mxu0 %v96
    %v110 = vpop.f32.mrf.mxu0
    %v111 = vadd.f32 0.0, %v110
    %v112 = vpop.f32.mrf.mxu0
    %v113 = vadd.f32 0.0, %v112
    %114 = vmatmul.bf16.gmra.mxu0 %v99
    %v115 = vpop.f32.mrf.mxu0
    %v116 = vadd.f32 0.0, %v115
    %v117 = vpop.f32.mrf.mxu0
    %v118 = vadd.f32 0.0, %v117
    %119 = vdwg.mxu0
    %v120 = vadd.f32 %v64, %v111
    %v121 = vadd.f32 %v65, %v113
    %v122 = vadd.f32 %v66, %v116
    %v123 = vadd.f32 %v67, %v118
    %124 = vst.msk [vmem:[#allocation2] sm:$0xff] %vm94, %v120
    %125 = vst.msk [vmem:[#allocation2 + $0x8] sm:$0xff] %vm94, %v121
    %126 = vst.msk [vmem:[#allocation2 + $0x10] sm:$0xff] %vm94, %v122
    %127 = vst.msk [vmem:[#allocation2 + $0x18] sm:$0xff] %vm94, %v123
    %s128 = scalar_lea.vmem [#allocation2], 32
    %v129 = vld [vmem:[%s128] sm:$0xff]
    %v130 = vld [vmem:[%s128 + $0x8] sm:$0xff]
    %v131 = vld [vmem:[%s128 + $0x10] sm:$0xff]
    %v132 = vld [vmem:[%s128 + $0x18] sm:$0xff]
    %s133 = scalar_lea.vmem [#allocation3], 16
    %v134 = vld [vmem:[%s133] sm:$0xf]
    %v135 = vld [vmem:[%s133 + $0x4] sm:$0xf]
    %v136 = vld [vmem:[%s133 + $0x8] sm:$0xf]
    %v137 = vld [vmem:[%s133 + $0xc] sm:$0xf]
    %v142 = vunpack.c.l.b16 %v134
    %v143 = vunpack.c.l.b16 %v135
    %v144 = vunpack.c.l.b16 %v136
    %v145 = vunpack.c.l.b16 %v137
    %v146 = vpack.c.b16 %v143, %v142
    %v147 = vpack.c.b16 %v145, %v144
    %150 = vmatpush.bf16.msra.mxu0 0
    %151 = vmatpush.bf16.msra.mxu0 0
    %152 = vmatpush.bf16.msra.mxu0 0
    %153 = vmatpush.bf16.msra.mxu0 0
    %154 = vmatpush.bf16.msra.mxu0 0
    %155 = vmatpush.bf16.msra.mxu0 0
    %156 = vmatpush.bf16.msra.mxu0 %v147
    %157 = vmatpush.bf16.msra.mxu0 %v146
    %158 = vmatmul.bf16.gmra.mxu0 %v96
    %v159 = vpop.f32.mrf.mxu0
    %v160 = vadd.f32 0.0, %v159
    %v161 = vpop.f32.mrf.mxu0
    %v162 = vadd.f32 0.0, %v161
    %163 = vmatmul.bf16.gmra.mxu0 %v99
    %v164 = vpop.f32.mrf.mxu0
    %v165 = vadd.f32 0.0, %v164
    %v166 = vpop.f32.mrf.mxu0
    %v167 = vadd.f32 0.0, %v166
    %168 = vdwg.mxu0
    %v169 = vadd.f32 %v129, %v160
    %v170 = vadd.f32 %v130, %v162
    %v171 = vadd.f32 %v131, %v165
    %v172 = vadd.f32 %v132, %v167
    %173 = vst.msk [vmem:[%s128] sm:$0xff] %vm94, %v169
    %174 = vst.msk [vmem:[%s128 + $0x8] sm:$0xff] %vm94, %v170
    %175 = vst.msk [vmem:[%s128 + $0x10] sm:$0xff] %vm94, %v171
    %176 = vst.msk [vmem:[%s128 + $0x18] sm:$0xff] %vm94, %v172
    // Predicated region
    $region26: #{transformer_decoder.32} parent=1 // pred_check
      %p177 = pneg %p47
    $region27: #{transformer_decoder.32} parent=1 // pred_check_branch
      %179 = sbr.rel (%p177) target = $region29
    $region28: #{transformer_decoder.32} parent=1 // pred_region
      %v180 = vld [vmem:[#allocation2] sm:$0xff]
      %v181 = vld [vmem:[#allocation2 + $0x8] sm:$0xff]
      %v182 = vld [vmem:[#allocation2 + $0x10] sm:$0xff]
      %v183 = vld [vmem:[#allocation2 + $0x18] sm:$0xff]
      %v184 = vld [vmem:[#allocation2 + $0x20] sm:$0xff]
      %v185 = vld [vmem:[#allocation2 + $0x28] sm:$0xff]
      %v186 = vld [vmem:[#allocation2 + $0x30] sm:$0xff]
      %v187 = vld [vmem:[#allocation2 + $0x38] sm:$0xff]
      %v188 = vld [vmem:[#allocation5] sm:$0x1]
      %v189 = vld [vmem:[#allocation5 + $0x1] sm:$0x1]
      %v192 = vperm.slane %v188, 0
      %v193 = vperm.slane %v189, 0
      %v196 = vadd.f32 %v180, %v192
      %v197 = vadd.f32 %v181, %v192
      %v198 = vadd.f32 %v182, %v192
      %v199 = vadd.f32 %v183, %v192
      %v200 = vadd.f32 %v184, %v193
      %v201 = vadd.f32 %v185, %v193
      %v202 = vadd.f32 %v186, %v193
      %v203 = vadd.f32 %v187, %v193
      %v204 = vpack.c.bf16 %v196, %v196
      %v205 = vpack.c.bf16 %v197, %v197
      %v206 = vpack.c.bf16 %v198, %v198
      %v207 = vpack.c.bf16 %v199, %v199
      %v208 = vpack.c.bf16 %v200, %v200
      %v209 = vpack.c.bf16 %v201, %v201
      %v210 = vpack.c.bf16 %v202, %v202
      %v211 = vpack.c.bf16 %v203, %v203
      %vm212 = vcmask 257024
      %213 = vst.msk [vmem:[%s3] sm:$0xf] %vm212, %v204
      %214 = vst.msk [vmem:[%s3 + $0x4] sm:$0xf] %vm212, %v205
      %215 = vst.msk [vmem:[%s3 + $0x8] sm:$0xf] %vm212, %v206
      %216 = vst.msk [vmem:[%s3 + $0xc] sm:$0xf] %vm212, %v207
      %217 = vst.msk [vmem:[%s3 + $0x10] sm:$0xf] %vm212, %v208
      %218 = vst.msk [vmem:[%s3 + $0x14] sm:$0xf] %vm212, %v209
      %219 = vst.msk [vmem:[%s3 + $0x18] sm:$0xf] %vm212, %v210
      %220 = vst.msk [vmem:[%s3 + $0x1c] sm:$0xf] %vm212, %v211
    $region29: #{transformer_decoder.32} parent=1 // pred_fallthru
      _
    // Predicated region
    $region30: #{transformer_decoder.32} parent=1 // pred_check
      _
    $region31: #{transformer_decoder.32} parent=1 // pred_check_branch
      %222 = sbr.rel (0) target = $region33
    $region32: #{transformer_decoder.32} parent=1 // pred_region
      _
    $region33: #{transformer_decoder.32} parent=1 // pred_fallthru
      _
    // Predicated region
    $region34: #{transformer_decoder.32} parent=1 // pred_check
      _
    $region35: #{transformer_decoder.32} parent=1 // pred_check_branch
      %224 = sbr.rel (0) target = $region37
    $region36: #{transformer_decoder.32} parent=1 // pred_region
      _
    $region37: #{transformer_decoder.32} parent=1 // pred_fallthru
      _
    %225 = vsyncpa [#allocation4], 1
    %226 = vsyncpa [#allocation6], 1

// kernel: transformer_decoder.28
$region0: #{transformer_decoder.28}
  #allocation0 [shape = 'u32[]', space=smem, size = 0x4, offset = 0x4, fixed_abs, tag = 'smem constant byte address 0x4 - core index']
  #allocation1 [shape = 'u32[72,128]{1,0:T(1,128)}', space=vmem, size = 0x9000, scoped, tag = 'internal scratch']
  #allocation2 [shape = 'f32[3,16,32]{2,1,0:T(8,128)}', space=vmem, size = 0x6000, scoped, tag = 'scratch operand']
  %s0 = inlined_call_operand.vmem [shape: bf16[16,32], index: 0, kind: input, shape index: {}]
  %s1 = inlined_call_operand.vmem [shape: bf16[3,32,32], index: 1, kind: input, shape index: {}]
  %s2 = inlined_call_operand.vmem [shape: f32[3,1,32], index: 2, kind: input, shape index: {}]
  %s3 = inlined_call_operand.vmem [shape: bf16[3,16,32], index: 3, kind: output, shape index: {}]
  %s4 = sld [smem:[#allocation0]]
  $region30: #{transformer_decoder.28} parent=0
    _
  %s6 = ssub.s32 1, %s4
  %s7 = scalar_select 0, %s6, %s4
  // Predicated region
  $region2: #{transformer_decoder.28} parent=0 // pred_check
    _
  $region3: #{transformer_decoder.28} parent=0 // pred_check_branch
    %9 = sbr.rel (0) target = $region5
  $region4: #{transformer_decoder.28} parent=0 // pred_region
    _
  $region5: #{transformer_decoder.28} parent=0 // pred_fallthru
    _
  // Predicated region
  $region6: #{transformer_decoder.28} parent=0 // pred_check
    _
  $region7: #{transformer_decoder.28} parent=0 // pred_check_branch
    %11 = sbr.rel (0) target = $region9
  $region8: #{transformer_decoder.28} parent=0 // pred_region
    _
  $region9: #{transformer_decoder.28} parent=0 // pred_fallthru
    _
  // Predicated region
  $region10: #{transformer_decoder.28} parent=0 // pred_check
    _
  $region11: #{transformer_decoder.28} parent=0 // pred_check_branch
    %13 = sbr.rel (0) target = $region13
  $region12: #{transformer_decoder.28} parent=0 // pred_region
    _
  $region13: #{transformer_decoder.28} parent=0 // pred_fallthru
    _
  %p15 = scmp.eq.s32.totalorder 0, 0
  // Predicated region
  $region14: #{transformer_decoder.28} parent=0 // pred_check
    %p16 = pneg %p15
  $region15: #{transformer_decoder.28} parent=0 // pred_check_branch
    %18 = sbr.rel (%p16) target = $region17
  $region16: #{transformer_decoder.28} parent=0 // pred_region
    %vm19 = vcmask 261120
    %20 = vst.msk [vmem:[#allocation2] sm:$0xff] %vm19, 0.0
    %21 = vst.msk [vmem:[#allocation2 + $0x8] sm:$0xff] %vm19, 0.0
    %22 = vst.msk [vmem:[#allocation2 + $0x10] sm:$0xff] %vm19, 0.0
    %23 = vst.msk [vmem:[#allocation2 + $0x18] sm:$0xff] %vm19, 0.0
    %24 = vst.msk [vmem:[#allocation2 + $0x20] sm:$0xff] %vm19, 0.0
    %25 = vst.msk [vmem:[#allocation2 + $0x28] sm:$0xff] %vm19, 0.0
  $region17: #{transformer_decoder.28} parent=0 // pred_fallthru
    _
  %v26 = vld [vmem:[%s0] sm:$0xf]
  %v27 = vld [vmem:[%s0 + $0x4] sm:$0xf]
  %v28 = vld [vmem:[#allocation2] sm:$0xff]
  %v29 = vld [vmem:[#allocation2 + $0x8] sm:$0xff]
  %v30 = vld [vmem:[%s1] sm:$0xf]
  %v31 = vld [vmem:[%s1 + $0x4] sm:$0xf]
  %v32 = vld [vmem:[%s1 + $0x8] sm:$0xf]
  %v33 = vld [vmem:[%s1 + $0xc] sm:$0xf]
  %v36 = vunpack.c.l.b16 %v26
  %v37 = vunpack.c.l.b16 %v27
  %v38 = vpack.c.b16 %v37, %v36
  %v43 = vunpack.c.l.b16 %v30
  %v44 = vunpack.c.l.b16 %v31
  %v45 = vunpack.c.l.b16 %v32
  %v46 = vunpack.c.l.b16 %v33
  %v47 = vpack.c.b16 %v44, %v43
  %v48 = vpack.c.b16 %v46, %v45
  %vm51 = vcmask 261120
  %v53 = vsel %vm51, %v38, 0
  %55 = vmatpush.bf16.msra.mxu0 0
  %56 = vmatpush.bf16.msra.mxu0 0
  %57 = vmatpush.bf16.msra.mxu0 0
  %58 = vmatpush.bf16.msra.mxu0 0
  %59 = vmatpush.bf16.msra.mxu0 0
  %60 = vmatpush.bf16.msra.mxu0 0
  %61 = vmatpush.bf16.msra.mxu0 %v48
  %62 = vmatpush.bf16.msra.mxu0 %v47
  %63 = vmatmul.bf16.gmra.mxu0 %v53
  %v64 = vpop.f32.mrf.mxu0
  %v65 = vadd.f32 0.0, %v64
  %v66 = vpop.f32.mrf.mxu0
  %v67 = vadd.f32 0.0, %v66
  %68 = vdwg.mxu0
  %v69 = vadd.f32 %v28, %v65
  %v70 = vadd.f32 %v29, %v67
  %71 = vst.msk [vmem:[#allocation2] sm:$0xff] %vm51, %v69
  %72 = vst.msk [vmem:[#allocation2 + $0x8] sm:$0xff] %vm51, %v70
  %s73 = scalar_lea.vmem [#allocation2], 16
  %v74 = vld [vmem:[%s73] sm:$0xff]
  %v75 = vld [vmem:[%s73 + $0x8] sm:$0xff]
  %s76 = scalar_lea.vmem %s1, 16
  %v77 = vld [vmem:[%s76] sm:$0xf]
  %v78 = vld [vmem:[%s76 + $0x4] sm:$0xf]
  %v79 = vld [vmem:[%s76 + $0x8] sm:$0xf]
  %v80 = vld [vmem:[%s76 + $0xc] sm:$0xf]
  %v85 = vunpack.c.l.b16 %v77
  %v86 = vunpack.c.l.b16 %v78
  %v87 = vunpack.c.l.b16 %v79
  %v88 = vunpack.c.l.b16 %v80
  %v89 = vpack.c.b16 %v86, %v85
  %v90 = vpack.c.b16 %v88, %v87
  %93 = vmatpush.bf16.msra.mxu0 0
  %94 = vmatpush.bf16.msra.mxu0 0
  %95 = vmatpush.bf16.msra.mxu0 0
  %96 = vmatpush.bf16.msra.mxu0 0
  %97 = vmatpush.bf16.msra.mxu0 0
  %98 = vmatpush.bf16.msra.mxu0 0
  %99 = vmatpush.bf16.msra.mxu0 %v90
  %100 = vmatpush.bf16.msra.mxu0 %v89
  %101 = vmatmul.bf16.gmra.mxu0 %v53
  %v102 = vpop.f32.mrf.mxu0
  %v103 = vadd.f32 0.0, %v102
  %v104 = vpop.f32.mrf.mxu0
  %v105 = vadd.f32 0.0, %v104
  %106 = vdwg.mxu0
  %v107 = vadd.f32 %v74, %v103
  %v108 = vadd.f32 %v75, %v105
  %109 = vst.msk [vmem:[%s73] sm:$0xff] %vm51, %v107
  %110 = vst.msk [vmem:[%s73 + $0x8] sm:$0xff] %vm51, %v108
  %s111 = scalar_lea.vmem [#allocation2], 32
  %v112 = vld [vmem:[%s111] sm:$0xff]
  %v113 = vld [vmem:[%s111 + $0x8] sm:$0xff]
  %s114 = scalar_lea.vmem %s1, 32
  %v115 = vld [vmem:[%s114] sm:$0xf]
  %v116 = vld [vmem:[%s114 + $0x4] sm:$0xf]
  %v117 = vld [vmem:[%s114 + $0x8] sm:$0xf]
  %v118 = vld [vmem:[%s114 + $0xc] sm:$0xf]
  %v123 = vunpack.c.l.b16 %v115
  %v124 = vunpack.c.l.b16 %v116
  %v125 = vunpack.c.l.b16 %v117
  %v126 = vunpack.c.l.b16 %v118
  %v127 = vpack.c.b16 %v124, %v123
  %v128 = vpack.c.b16 %v126, %v125
  %131 = vmatpush.bf16.msra.mxu0 0
  %132 = vmatpush.bf16.msra.mxu0 0
  %133 = vmatpush.bf16.msra.mxu0 0
  %134 = vmatpush.bf16.msra.mxu0 0
  %135 = vmatpush.bf16.msra.mxu0 0
  %136 = vmatpush.bf16.msra.mxu0 0
  %137 = vmatpush.bf16.msra.mxu0 %v128
  %138 = vmatpush.bf16.msra.mxu0 %v127
  %139 = vmatmul.bf16.gmra.mxu0 %v53
  %v140 = vpop.f32.mrf.mxu0
  %v141 = vadd.f32 0.0, %v140
  %v142 = vpop.f32.mrf.mxu0
  %v143 = vadd.f32 0.0, %v142
  %144 = vdwg.mxu0
  %v145 = vadd.f32 %v112, %v141
  %v146 = vadd.f32 %v113, %v143
  %147 = vst.msk [vmem:[%s111] sm:$0xff] %vm51, %v145
  %148 = vst.msk [vmem:[%s111 + $0x8] sm:$0xff] %vm51, %v146
  // Predicated region
  $region18: #{transformer_decoder.28} parent=0 // pred_check
    %p149 = pneg %p15
  $region19: #{transformer_decoder.28} parent=0 // pred_check_branch
    %151 = sbr.rel (%p149) target = $region21
  $region20: #{transformer_decoder.28} parent=0 // pred_region
    %v152 = vld [vmem:[#allocation2] sm:$0xff]
    %v153 = vld [vmem:[#allocation2 + $0x8] sm:$0xff]
    %v154 = vld [vmem:[#allocation2 + $0x10] sm:$0xff]
    %v155 = vld [vmem:[#allocation2 + $0x18] sm:$0xff]
    %v156 = vld [vmem:[#allocation2 + $0x20] sm:$0xff]
    %v157 = vld [vmem:[#allocation2 + $0x28] sm:$0xff]
    %v158 = vld [vmem:[%s2] sm:$0x1]
    %v159 = vld [vmem:[%s2 + $0x1] sm:$0x1]
    %v160 = vld [vmem:[%s2 + $0x2] sm:$0x1]
    %v164 = vperm.slane %v158, 0
    %v165 = vperm.slane %v159, 0
    %v166 = vperm.slane %v160, 0
    %v170 = vadd.f32 %v152, %v164
    %v171 = vadd.f32 %v153, %v164
    %v172 = vadd.f32 %v154, %v165
    %v173 = vadd.f32 %v155, %v165
    %v174 = vadd.f32 %v156, %v166
    %v175 = vadd.f32 %v157, %v166
    %v176 = vpack.c.bf16 %v170, %v170
    %v177 = vpack.c.bf16 %v171, %v171
    %v178 = vpack.c.bf16 %v172, %v172
    %v179 = vpack.c.bf16 %v173, %v173
    %v180 = vpack.c.bf16 %v174, %v174
    %v181 = vpack.c.bf16 %v175, %v175
    %vm182 = vcmask 257024
    %183 = vst.msk [vmem:[%s3] sm:$0xf] %vm182, %v176
    %184 = vst.msk [vmem:[%s3 + $0x4] sm:$0xf] %vm182, %v177
    %185 = vst.msk [vmem:[%s3 + $0x8] sm:$0xf] %vm182, %v178
    %186 = vst.msk [vmem:[%s3 + $0xc] sm:$0xf] %vm182, %v179
    %187 = vst.msk [vmem:[%s3 + $0x10] sm:$0xf] %vm182, %v180
    %188 = vst.msk [vmem:[%s3 + $0x14] sm:$0xf] %vm182, %v181
  $region21: #{transformer_decoder.28} parent=0 // pred_fallthru
    _
  // Predicated region
  $region22: #{transformer_decoder.28} parent=0 // pred_check
    _
  $region23: #{transformer_decoder.28} parent=0 // pred_check_branch
    %190 = sbr.rel (0) target = $region25
  $region24: #{transformer_decoder.28} parent=0 // pred_region
    _
  $region25: #{transformer_decoder.28} parent=0 // pred_fallthru
    _
  // Predicated region
  $region26: #{transformer_decoder.28} parent=0 // pred_check
    _
  $region27: #{transformer_decoder.28} parent=0 // pred_check_branch
    %192 = sbr.rel (0) target = $region29
  $region28: #{transformer_decoder.28} parent=0 // pred_region
    _
  $region29: #{transformer_decoder.28} parent=0 // pred_fallthru
    _

// kernel: transformer_decoder.37
$region0: #{transformer_decoder.37}
  #allocation0 [shape = 'u32[]', space=smem, size = 0x4, offset = 0x4, fixed_abs, tag = 'smem constant byte address 0x4 - core index']
  #allocation1 [shape = 'u32[72,128]{1,0:T(1,128)}', space=vmem, size = 0x9000, scoped, tag = 'internal scratch']
  %s0 = inlined_call_operand.vmem [shape: bf16[16,32], index: 0, kind: input, shape index: {}]
  %s1 = inlined_call_operand.vmem [shape: f32[1,32], index: 1, kind: input, shape index: {}]
  %s2 = inlined_call_operand.vmem [shape: f32[1,32], index: 2, kind: input, shape index: {}]
  %s3 = inlined_call_operand.hbm [shape: f32[16,32], index: 3, kind: output, shape index: {}]
  %s4 = sld [smem:[#allocation0]]
  $region22: #{transformer_decoder.37} parent=0
    _
  %s6 = ssub.s32 1, %s4
  %s7 = scalar_select 0, %s6, %s4
  $region1: #{transformer_decoder.37} parent=0
    #allocation2 [shape = 'u8[8192]{0}', space=vmem, size = 0x2000, scoped, tag = 'output window, operand 0, single buffered']
    #allocation3 [shape = 's32[1]{0}', space=sflag, size = 0x4, scoped, tag = 'scoped memory for transformer_decoder.37']
    %8 = vsyncpa [#allocation3], 0
    // Predicated region
    $region2: #{transformer_decoder.37} parent=1 // pred_check
      _
    $region3: #{transformer_decoder.37} parent=1 // pred_check_branch
      %10 = sbr.rel (0) target = $region5
    $region4: #{transformer_decoder.37} parent=1 // pred_region
      _
    $region5: #{transformer_decoder.37} parent=1 // pred_fallthru
      _
    // Predicated region
    $region6: #{transformer_decoder.37} parent=1 // pred_check
      _
    $region7: #{transformer_decoder.37} parent=1 // pred_check_branch
      %12 = sbr.rel (0) target = $region9
    $region8: #{transformer_decoder.37} parent=1 // pred_region
      _
    $region9: #{transformer_decoder.37} parent=1 // pred_fallthru
      _
    // Predicated region
    $region10: #{transformer_decoder.37} parent=1 // pred_check
      _
    $region11: #{transformer_decoder.37} parent=1 // pred_check_branch
      %14 = sbr.rel (0) target = $region13
    $region12: #{transformer_decoder.37} parent=1 // pred_region
      _
    $region13: #{transformer_decoder.37} parent=1 // pred_fallthru
      _
    %v15 = vld [vmem:[%s0] sm:$0xf]
    %v16 = vld [vmem:[%s0 + $0x4] sm:$0xf]
    %v17 = vunpack.c.l.bf16 %v15
    %v18 = vunpack.c.l.bf16 %v16
    %vm19 = vcmask 261120
    %v20 = vsel %vm19, %v17, 0.0
    %21 = vadd.xlane.f32.xlu0 %v20
    %v22 = vpop.xlane.xlu0 %21
    %v23 = vsel %vm19, %v18, 0.0
    %24 = vadd.xlane.f32.xlu0 %v23
    %v25 = vpop.xlane.xlu0 %24
    %v26 = vrcp.pop 32.0
    %v27 = vmul.f32 32.0, %v26
    %v28 = vsub.f32 1.0, %v27
    %v29 = vmul.f32 %v26, %v28
    %v30 = vadd.f32 %v26, %v29
    %vm31 = vweird.f32 %v26
    %v32 = vsel %vm31, %v26, %v30
    %v33 = vmul.f32 %v22, %v32
    %v34 = vmul.f32 %v25, %v32
    %v35 = vsub.f32 %v17, %v33
    %v36 = vsub.f32 %v18, %v34
    %v37 = vmul.f32 %v35, %v35
    %v38 = vmul.f32 %v36, %v36
    %v39 = vsel %vm19, %v37, 0.0
    %40 = vadd.xlane.f32.xlu0 %v39
    %v41 = vpop.xlane.xlu0 %40
    %v42 = vsel %vm19, %v38, 0.0
    %43 = vadd.xlane.f32.xlu0 %v42
    %v44 = vpop.xlane.xlu0 %43
    %v45 = vmul.f32 %v41, %v32
    %v46 = vmul.f32 %v44, %v32
    %v47 = vadd.f32 %v45, 1e-05
    %v48 = vadd.f32 %v46, 1e-05
    %v49 = vrsqrt.pop %v47
    %v50 = vmul.f32 %v49, %v47
    %v51 = vmul.f32 %v50, %v49
    %v52 = vmul.f32 0.5, %v51
    %v53 = vsub.f32 1.5, %v52
    %v54 = vmul.f32 %v49, %v53
    %vm55 = vweird.f32 %v47
    %vm56 = vweird.f32 %v49
    %vm57 = vmor %vm55, %vm56
    %v58 = vsel %vm57, %v49, %v54
    %v59 = vrsqrt.pop %v48
    %v60 = vmul.f32 %v59, %v48
    %v61 = vmul.f32 %v60, %v59
    %v62 = vmul.f32 0.5, %v61
    %v63 = vsub.f32 1.5, %v62
    %v64 = vmul.f32 %v59, %v63
    %vm65 = vweird.f32 %v48
    %vm66 = vweird.f32 %v59
    %vm67 = vmor %vm65, %vm66
    %v68 = vsel %vm67, %v59, %v64
    %v69 = vmul.f32 %v35, %v58
    %v70 = vmul.f32 %v36, %v68
    %v71 = vld [vmem:[%s1] sm:$0x1]
    %v73 = vperm.slane %v71, 0
    %v75 = vmul.f32 %v69, %v73
    %v76 = vmul.f32 %v70, %v73
    %v77 = vld [vmem:[%s2] sm:$0x1]
    %v79 = vperm.slane %v77, 0
    %v81 = vadd.f32 %v75, %v79
    %v82 = vadd.f32 %v76, %v79
    %83 = vst.msk [vmem:[#allocation2] sm:$0xff] %vm19, %v81
    %84 = vst.msk [vmem:[#allocation2 + $0x8] sm:$0xff] %vm19, %v82
    // Predicated region
    $region14: #{transformer_decoder.37} parent=1 // pred_check
      _
    $region15: #{transformer_decoder.37} parent=1 // pred_check_branch
      %86 = sbr.rel (0) target = $region17
    $region16: #{transformer_decoder.37} parent=1 // pred_region
      %88 = vsyncadd [#allocation3], 0
      %s89 = sshll.u32 [#allocation2], 4
      %s90 = int_to_ptr.vmem [resolvable:$true] %s89
      %s91 = sshll.u32 %s3, 4
      %s92 = int_to_ptr.hbm [resolvable:$true] %s91
      %97 = dma.vmem_to_hbm [thread:$0]  %s90, 256, %s92, [#allocation3], 128, 128, 8
    $region17: #{transformer_decoder.37} parent=1 // pred_fallthru
      _
    // Predicated region
    $region18: #{transformer_decoder.37} parent=1 // pred_check
      _
    $region19: #{transformer_decoder.37} parent=1 // pred_check_branch
      %99 = sbr.rel (0) target = $region21
    $region20: #{transformer_decoder.37} parent=1 // pred_region
      %101 = dma.done [#allocation3], 256
    $region21: #{transformer_decoder.37} parent=1 // pred_fallthru
      _
    %102 = vsyncpa [#allocation3], 1

// kernel: transformer_decoder.36
$region0: #{transformer_decoder.36}
  #allocation0 [shape = 'u32[]', space=smem, size = 0x4, offset = 0x4, fixed_abs, tag = 'smem constant byte address 0x4 - core index']
  #allocation1 [shape = 'u32[72,128]{1,0:T(1,128)}', space=vmem, size = 0x9000, scoped, tag = 'internal scratch']
  #allocation2 [shape = 'f32[16,32]{1,0:T(8,128)}', space=vmem, size = 0x2000, scoped, tag = 'scratch operand']
  %s0 = inlined_call_operand.vmem [shape: bf16[16,64], index: 0, kind: input, shape index: {}]
  %s1 = inlined_call_operand.vmem [shape: bf16[64,32], index: 1, kind: input, shape index: {}]
  %s2 = inlined_call_operand.vmem [shape: f32[1,32], index: 2, kind: input, shape index: {}]
  %s3 = inlined_call_operand.vmem [shape: bf16[16,32], index: 3, kind: input, shape index: {}]
  %s4 = inlined_call_operand.vmem [shape: f32[1,32], index: 4, kind: input, shape index: {}]
  %s5 = inlined_call_operand.vmem [shape: f32[1,32], index: 5, kind: input, shape index: {}]
  %s6 = inlined_call_operand.vmem [shape: bf16[16,32], index: 6, kind: output, shape index: {}]
  %s7 = sld [smem:[#allocation0]]
  $region42: #{transformer_decoder.36} parent=0
    _
  %s9 = ssub.s32 1, %s7
  %s10 = scalar_select 0, %s9, %s7
  // Predicated region
  $region2: #{transformer_decoder.36} parent=0 // pred_check
    _
  $region3: #{transformer_decoder.36} parent=0 // pred_check_branch
    %12 = sbr.rel (0) target = $region5
  $region4: #{transformer_decoder.36} parent=0 // pred_region
    _
  $region5: #{transformer_decoder.36} parent=0 // pred_fallthru
    _
  // Predicated region
  $region6: #{transformer_decoder.36} parent=0 // pred_check
    _
  $region7: #{transformer_decoder.36} parent=0 // pred_check_branch
    %14 = sbr.rel (0) target = $region9
  $region8: #{transformer_decoder.36} parent=0 // pred_region
    _
  $region9: #{transformer_decoder.36} parent=0 // pred_fallthru
    _
  // Predicated region
  $region10: #{transformer_decoder.36} parent=0 // pred_check
    _
  $region11: #{transformer_decoder.36} parent=0 // pred_check_branch
    %16 = sbr.rel (0) target = $region13
  $region12: #{transformer_decoder.36} parent=0 // pred_region
    _
  $region13: #{transformer_decoder.36} parent=0 // pred_fallthru
    _
  // Predicated region
  $region14: #{transformer_decoder.36} parent=0 // pred_check
    _
  $region15: #{transformer_decoder.36} parent=0 // pred_check_branch
    %18 = sbr.rel (0) target = $region17
  $region16: #{transformer_decoder.36} parent=0 // pred_region
    _
  $region17: #{transformer_decoder.36} parent=0 // pred_fallthru
    _
  // Predicated region
  $region18: #{transformer_decoder.36} parent=0 // pred_check
    _
  $region19: #{transformer_decoder.36} parent=0 // pred_check_branch
    %20 = sbr.rel (0) target = $region21
  $region20: #{transformer_decoder.36} parent=0 // pred_region
    _
  $region21: #{transformer_decoder.36} parent=0 // pred_fallthru
    _
  // Predicated region
  $region22: #{transformer_decoder.36} parent=0 // pred_check
    _
  $region23: #{transformer_decoder.36} parent=0 // pred_check_branch
    %22 = sbr.rel (0) target = $region25
  $region24: #{transformer_decoder.36} parent=0 // pred_region
    _
  $region25: #{transformer_decoder.36} parent=0 // pred_fallthru
    _
  %p24 = scmp.eq.s32.totalorder 0, 0
  // Predicated region
  $region26: #{transformer_decoder.36} parent=0 // pred_check
    %p25 = pneg %p24
  $region27: #{transformer_decoder.36} parent=0 // pred_check_branch
    %27 = sbr.rel (%p25) target = $region29
  $region28: #{transformer_decoder.36} parent=0 // pred_region
    %vm28 = vcmask 261120
    %29 = vst.msk [vmem:[#allocation2] sm:$0xff] %vm28, 0.0
    %30 = vst.msk [vmem:[#allocation2 + $0x8] sm:$0xff] %vm28, 0.0
  $region29: #{transformer_decoder.36} parent=0 // pred_fallthru
    _
  %v31 = vld [vmem:[#allocation2] sm:$0xff]
  %v32 = vld [vmem:[#allocation2 + $0x8] sm:$0xff]
  %v33 = vld [vmem:[%s0] sm:$0xf]
  %v34 = vld [vmem:[%s0 + $0x4] sm:$0xf]
  %v35 = vld [vmem:[%s1] sm:$0xf]
  %v36 = vld [vmem:[%s1 + $0x4] sm:$0xf]
  %v37 = vld [vmem:[%s1 + $0x8] sm:$0xf]
  %v38 = vld [vmem:[%s1 + $0xc] sm:$0xf]
  %v39 = vld [vmem:[%s1 + $0x10] sm:$0xf]
  %v40 = vld [vmem:[%s1 + $0x14] sm:$0xf]
  %v41 = vld [vmem:[%s1 + $0x18] sm:$0xf]
  %v42 = vld [vmem:[%s1 + $0x1c] sm:$0xf]
  %v45 = vunpack.c.l.b16 %v33
  %v46 = vunpack.c.l.b16 %v34
  %v47 = vpack.c.b16 %v46, %v45
  %v56 = vunpack.c.l.b16 %v35
  %v57 = vunpack.c.l.b16 %v36
  %v58 = vunpack.c.l.b16 %v37
  %v59 = vunpack.c.l.b16 %v38
  %v60 = vunpack.c.l.b16 %v39
  %v61 = vunpack.c.l.b16 %v40
  %v62 = vunpack.c.l.b16 %v41
  %v63 = vunpack.c.l.b16 %v42
  %v64 = vpack.c.b16 %v57, %v56
  %v65 = vpack.c.b16 %v59, %v58
  %v66 = vpack.c.b16 %v61, %v60
  %v67 = vpack.c.b16 %v63, %v62
  %vm72 = vcmask 523264
  %v74 = vsel %vm72, %v47, 0
  %76 = vmatpush.bf16.msra.mxu0 0
  %77 = vmatpush.bf16.msra.mxu0 0
  %78 = vmatpush.bf16.msra.mxu0 0
  %79 = vmatpush.bf16.msra.mxu0 0
  %80 = vmatpush.bf16.msra.mxu0 %v67
  %81 = vmatpush.bf16.msra.mxu0 %v66
  %82 = vmatpush.bf16.msra.mxu0 %v65
  %83 = vmatpush.bf16.msra.mxu0 %v64
  %84 = vmatmul.bf16.gmra.mxu0 %v74
  %v85 = vpop.f32.mrf.mxu0
  %v86 = vadd.f32 0.0, %v85
  %v87 = vpop.f32.mrf.mxu0
  %v88 = vadd.f32 0.0, %v87
  %89 = vdwg.mxu0
  %v90 = vadd.f32 %v31, %v86
  %v91 = vadd.f32 %v32, %v88
  %vm92 = vcmask 261120
  %93 = vst.msk [vmem:[#allocation2] sm:$0xff] %vm92, %v90
  %94 = vst.msk [vmem:[#allocation2 + $0x8] sm:$0xff] %vm92, %v91
  // Predicated region
  $region30: #{transformer_decoder.36} parent=0 // pred_check
    %p95 = pneg %p24
  $region31: #{transformer_decoder.36} parent=0 // pred_check_branch
    %97 = sbr.rel (%p95) target = $region33
  $region32: #{transformer_decoder.36} parent=0 // pred_region
    %v98 = vld [vmem:[#allocation2] sm:$0xff]
    %v99 = vld [vmem:[#allocation2 + $0x8] sm:$0xff]
    %v100 = vld [vmem:[%s2] sm:$0x1]
    %v102 = vperm.slane %v100, 0
    %v104 = vadd.f32 %v98, %v102
    %v105 = vadd.f32 %v99, %v102
    %v106 = vld [vmem:[%s3] sm:$0xf]
    %v107 = vld [vmem:[%s3 + $0x4] sm:$0xf]
    %v108 = vunpack.c.l.bf16 %v106
    %v109 = vunpack.c.l.bf16 %v107
    %v110 = vadd.f32 %v104, %v108
    %v111 = vadd.f32 %v105, %v109
    %v112 = vsel %vm92, %v110, 0.0
    %113 = vadd.xlane.f32.xlu0 %v112
    %v114 = vpop.xlane.xlu0 %113
    %v115 = vsel %vm92, %v111, 0.0
    %116 = vadd.xlane.f32.xlu0 %v115
    %v117 = vpop.xlane.xlu0 %116
    %v118 = vrcp.pop 32.0
    %v119 = vmul.f32 32.0, %v118
    %v120 = vsub.f32 1.0, %v119
    %v121 = vmul.f32 %v118, %v120
    %v122 = vadd.f32 %v118, %v121
    %vm123 = vweird.f32 %v118
    %v124 = vsel %vm123, %v118, %v122
    %v125 = vmul.f32 %v114, %v124
    %v126 = vmul.f32 %v117, %v124
    %v127 = vsub.f32 %v110, %v125
    %v128 = vsub.f32 %v111, %v126
    %v129 = vmul.f32 %v127, %v127
    %v130 = vmul.f32 %v128, %v128
    %v131 = vsel %vm92, %v129, 0.0
    %132 = vadd.xlane.f32.xlu0 %v131
    %v133 = vpop.xlane.xlu0 %132
    %v134 = vsel %vm92, %v130, 0.0
    %135 = vadd.xlane.f32.xlu0 %v134
    %v136 = vpop.xlane.xlu0 %135
    %v137 = vmul.f32 %v133, %v124
    %v138 = vmul.f32 %v136, %v124
    %v139 = vadd.f32 %v137, 1e-05
    %v140 = vadd.f32 %v138, 1e-05
    %v141 = vrsqrt.pop %v139
    %v142 = vmul.f32 %v141, %v139
    %v143 = vmul.f32 %v142, %v141
    %v144 = vmul.f32 0.5, %v143
    %v145 = vsub.f32 1.5, %v144
    %v146 = vmul.f32 %v141, %v145
    %vm147 = vweird.f32 %v139
    %vm148 = vweird.f32 %v141
    %vm149 = vmor %vm147, %vm148
    %v150 = vsel %vm149, %v141, %v146
    %v151 = vrsqrt.pop %v140
    %v152 = vmul.f32 %v151, %v140
    %v153 = vmul.f32 %v152, %v151
    %v154 = vmul.f32 0.5, %v153
    %v155 = vsub.f32 1.5, %v154
    %v156 = vmul.f32 %v151, %v155
    %vm157 = vweird.f32 %v140
    %vm158 = vweird.f32 %v151
    %vm159 = vmor %vm157, %vm158
    %v160 = vsel %vm159, %v151, %v156
    %v161 = vmul.f32 %v127, %v150
    %v162 = vmul.f32 %v128, %v160
    %v163 = vld [vmem:[%s4] sm:$0x1]
    %v165 = vperm.slane %v163, 0
    %v167 = vmul.f32 %v161, %v165
    %v168 = vmul.f32 %v162, %v165
    %v169 = vld [vmem:[%s5] sm:$0x1]
    %v171 = vperm.slane %v169, 0
    %v173 = vadd.f32 %v167, %v171
    %v174 = vadd.f32 %v168, %v171
    %v175 = vpack.c.bf16 %v173, %v173
    %v176 = vpack.c.bf16 %v174, %v174
    %vm177 = vcmask 257024
    %178 = vst.msk [vmem:[%s6] sm:$0xf] %vm177, %v175
    %179 = vst.msk [vmem:[%s6 + $0x4] sm:$0xf] %vm177, %v176
  $region33: #{transformer_decoder.36} parent=0 // pred_fallthru
    _
  // Predicated region
  $region34: #{transformer_decoder.36} parent=0 // pred_check
    _
  $region35: #{transformer_decoder.36} parent=0 // pred_check_branch
    %181 = sbr.rel (0) target = $region37
  $region36: #{transformer_decoder.36} parent=0 // pred_region
    _
  $region37: #{transformer_decoder.36} parent=0 // pred_fallthru
    _
  // Predicated region
  $region38: #{transformer_decoder.36} parent=0 // pred_check
    _
  $region39: #{transformer_decoder.36} parent=0 // pred_check_branch
    %183 = sbr.rel (0) target = $region41
  $region40: #{transformer_decoder.36} parent=0 // pred_region
    _
  $region41: #{transformer_decoder.36} parent=0 // pred_fallthru
    _

</llo_original>
